<compile_context>
chip_gen: v7x
topology: tpu7x:2x2x1
jax: 0.10.0
libtpu: 0.0.40
codegen_flags: <defaults>
</compile_context>

<pallas_src>
import functools

import jax
import jax.numpy as jnp
from jax import lax
from jax.experimental import pallas as pl
from jax.experimental.pallas import tpu as pltpu


_VMEM_LIMIT = 32 * 1024 * 1024          # explicit scoped-VMEM budget (safe on v5e/v6e/v7x)
_SQRT_2_OVER_PI = 0.7978845608028654


# ----------------------------- in-kernel helpers ----------------------------

def _gelu(x):
    # TODO(synk): PyTorch nn.GELU default is exact erf-GELU; the tanh approximation
    # is used in-kernel (erf has no guaranteed Mosaic lowering).
    return 0.5 * x * (1.0 + jnp.tanh(_SQRT_2_OVER_PI * (x + 0.044715 * x * x * x)))


def _mxu(a, b):
    """a @ b on the MXU: bf16 operands, f32 accumulation."""
    return jnp.dot(a.astype(jnp.bfloat16), b.astype(jnp.bfloat16),
                   preferred_element_type=jnp.float32)


def _mxu_nt(a, b):
    """a @ b.T (contract last dims of both) without an explicit transpose."""
    return lax.dot_general(a.astype(jnp.bfloat16), b.astype(jnp.bfloat16),
                           (((1,), (1,)), ((), ())),
                           preferred_element_type=jnp.float32)


def _bmm(a, b):
    """Batched (h,m,k) @ (h,k,n) on the MXU: bf16 operands, f32 accumulation."""
    return jnp.einsum('hmk,hkn->hmn', a.astype(jnp.bfloat16), b.astype(jnp.bfloat16),
                      preferred_element_type=jnp.float32)


def _bmm_nt(a, b):
    """Batched (h,m,k) @ (h,n,k)^T on the MXU."""
    return jnp.einsum('hmk,hnk->hmn', a.astype(jnp.bfloat16), b.astype(jnp.bfloat16),
                      preferred_element_type=jnp.float32)


def _softmax_rows(s):
    m = jnp.max(s, axis=-1, keepdims=True)
    e = jnp.exp(s - m)
    return e * pl.reciprocal(jnp.sum(e, axis=-1, keepdims=True), approx=True)


def _layernorm(x, g, b):
    mu = jnp.mean(x, axis=-1, keepdims=True)
    var = jnp.mean((x - mu) ** 2, axis=-1, keepdims=True)
    return (x - mu) * lax.rsqrt(var + 1e-5) * g + b


# ------------------------------ fused kernels -------------------------------

def _attn_local_kernel(x_ref, adj_ref, thr_ref, g_ref, b_ref,
                       qkvw_ref, qkvb_ref, projw_ref, o_ref, *, heads, t, d, scale):
    """PreNorm + Residual(Attention_local) for one batch element, all heads stacked."""
    x = x_ref[0].astype(jnp.float32)                       # (t, dim)
    x_ln = _layernorm(x, g_ref[...], b_ref[...])
    # NOTE: the reference wraps Residual INSIDE PreNorm (PreNorm(dim, Residual(attn))),
    # so the residual adds the LayerNorm OUTPUT, i.e. out = attn(LN(x)) + LN(x).
    xh = jnp.stack([x_ln[:, h * d:(h + 1) * d] for h in range(heads)], axis=0)  # (h,t,d)

    adj = adj_ref[0]                                       # (h, t, t) bf16
    # TODO(synk): GIN is undefined in the reference source; standard GIN aggregation
    # (adj @ x + x, then a shared per-feature linear) is the stand-in.
    agg = _bmm(adj, xh) + xh                               # (h, t, d) f32

    qkv = _mxu(agg.reshape(heads * t, d), qkvw_ref[...]) + qkvb_ref[...]   # (h*t, 3d)
    qkv = qkv.reshape(heads, t, 3 * d)
    q = qkv[..., :d]
    k = qkv[..., d:2 * d]
    v = qkv[..., 2 * d:]

    s = _bmm_nt(q, k) * scale                              # (h, t, t) f32
    # Top-k routing as an in-kernel threshold mask: softmax over {keys with
    # adj >= k-th largest adj of that row} == softmax over the gathered top-k subset
    # (KGather with mul_weight='none'); no O(h*t^2) mask tensor ever hits HBM.
    adj_f = adj.astype(jnp.float32)
    s = jnp.where(adj_f >= thr_ref[0], s, -1e30)
    p = _softmax_rows(s)

    vh = _gelu(_bmm(p, v))                                 # (h, t, d)
    v_cat = jnp.concatenate([vh[h] for h in range(heads)], axis=-1)        # (t, dim)
    out = x_ln + _mxu(v_cat, projw_ref[...])               # single K=dim projection
    o_ref[0] = out.astype(o_ref.dtype)                     # one lane-dense store


def _attn_global_kernel(x_ref, adj_ref, g_ref, b_ref, qkw_ref, qkb_ref,
                        vw_ref, vb_ref, lam_ref, o_ref, *, heads, t, d, scale):
    """PreNorm + Residual(Attention_global) for one batch element, all heads stacked."""
    x = x_ref[0].astype(jnp.float32)                       # (t, dim)
    x_ln = _layernorm(x, g_ref[...], b_ref[...])
    xh = jnp.stack([x_ln[:, h * d:(h + 1) * d] for h in range(heads)], axis=0)  # (h,t,d)

    agg = _bmm(adj_ref[0], xh) + xh                        # GIN aggregation, (h,t,d)
    qk = _mxu(agg.reshape(heads * t, d), qkw_ref[...]) + qkb_ref[...]      # (h*t, 2d)
    qk = qk.reshape(heads, t, 2 * d)
    q = qk[..., :d]
    k = qk[..., d:]
    s = _bmm_nt(q, k) * scale                              # (h, t, t) f32

    # Lambda head-mixing: mixed[l] = sum_h Lambda[l, h] * s[h].
    # TODO(synk): for larger `heads`, move this to the MXU as
    # (heads, heads) @ (heads, t*t); at heads=2 the scalar-broadcast FMAs are cheaper.
    rows = []
    for l in range(heads):
        acc = lam_ref[l, 0] * s[0]
        for h2 in range(1, heads):
            acc = acc + lam_ref[l, h2] * s[h2]
        rows.append(acc)
    mixed = jnp.stack(rows, axis=0)                        # (h, t, t)
    new_adj = _softmax_rows(mixed)

    agg_v = _bmm(new_adj, xh) + xh                         # GIN with the new adjacency
    v = _mxu(agg_v.reshape(heads * t, d), vw_ref[...]) + vb_ref[...]       # (h*t, d)
    v = v.reshape(heads, t, d)
    out_h = _gelu(v) + xh                                  # residual adds LN output slice
    out = jnp.concatenate([out_h[h] for h in range(heads)], axis=-1)       # (t, dim)
    o_ref[0] = out.astype(o_ref.dtype)                     # one lane-dense store


def _pool_kernel(x_ref, adj_ref, gum_ref, wt_ref, bcol_ref, xo_ref, ao_ref, *, heads):
    """Upool linear + gumbel-softmax + x' = C@x and adj' = C@adj@C^T, fused."""
    x = x_ref[0]                                           # (t, dim) bf16
    logits = _mxu_nt(wt_ref[...], x) + bcol_ref[...] + gum_ref[0]   # (m, t) f32
    C = _softmax_rows(logits)                              # gumbel_softmax, tau = 1.0
    xo_ref[0] = _mxu(C, x).astype(xo_ref.dtype)            # (m, dim)
    Cb = C.astype(jnp.bfloat16)
    for h in range(heads):
        t2 = _mxu(Cb, adj_ref[0, h])                       # (m, t)
        ao_ref[0, h] = _mxu_nt(t2, Cb).astype(ao_ref.dtype)  # (m, m)


def _final_pool_predict_kernel(x_ref, wout_ref, pw_ref, pb_ref, xo_ref, cls_ref):
    """Upool_out attention pooling (softmax(temp/2) @ x) fused with the Predictor head."""
    x = x_ref[0]                                           # (t, dim) bf16
    s = _mxu_nt(wout_ref[...], x) * 0.5                    # (1, t) f32
    p = _softmax_rows(s)
    xo = _mxu(p, x)                                        # (1, dim) f32
    xo_ref[0] = xo
    cls_ref[0] = _mxu(xo, pw_ref[...]) + pb_ref[...]       # (1, num_classes)


def _conv_mm_stats_kernel(cols_ref, w_ref, cb_ref, y_ref, stats_ref):
    """Row-tiled im2col matmul; accumulates per-channel sum / sum-of-squares."""
    y = _mxu(cols_ref[...], w_ref[...]) + cb_ref[...]      # (TM, E) f32
    y_ref[...] = y
    part = jnp.concatenate([jnp.sum(y, axis=0, keepdims=True),
                            jnp.sum(y * y, axis=0, keepdims=True)], axis=0)  # (2, E)

    @pl.when(pl.program_id(0) == 0)
    def _():
        stats_ref[...] = jnp.zeros_like(stats_ref)
    stats_ref[...] += part


def _bn_gelu_kernel(y_ref, stats_ref, g_ref, b_ref, o_ref, *, m_rows):
    """Row-tiled BatchNorm2d(batch stats, biased var) + GELU."""
    y = y_ref[...]
    stats = stats_ref[...]
    mean = stats[0:1, :] * (1.0 / m_rows)
    var = stats[1:2, :] * (1.0 / m_rows) - mean * mean
    scale = g_ref[...] * lax.rsqrt(var + 1e-5)
    shift = b_ref[...] - mean * scale
    o_ref[...] = _gelu(y * scale + shift)


def _linear_kernel(x_ref, w_ref, b_ref, o_ref):
    o_ref[...] = (_mxu(x_ref[...], w_ref[...]) + b_ref[...]).astype(o_ref.dtype)


# ------------------------------ pallas wrappers ------------------------------

def _row_tile(m, cap=512):
    """Largest multiple-of-8 row tile <= cap that divides m (full m if m <= cap)."""
    if m <= cap:
        return m
    for tm in range(cap, 7, -8):
        if m % tm == 0:
            return tm
    return m


def fused_attn_local(x, adj, thr, lp, heads, scale):
    b, t, dim = x.shape
    d = dim // heads
    kern = functools.partial(_attn_local_kernel, heads=heads, t=t, d=d, scale=scale)
    # TODO(synk): at production t, add grid axes over (head, query-tile) and fold a
    # batch tile into the matmul M dimension; re-derive block sizes against the
    # vmem_limit_bytes budget (64 MiB physical on v7x).
    return pl.pallas_call(
        kern,
        out_shape=jax.ShapeDtypeStruct((b, t, dim), jnp.bfloat16),
        grid=(b,),
        in_specs=[
            pl.BlockSpec((1, t, dim), lambda i: (i, 0, 0)),
            pl.BlockSpec((1, heads, t, t), lambda i: (i, 0, 0, 0)),
            pl.BlockSpec((1, heads, t, 1), lambda i: (i, 0, 0, 0)),
            pl.BlockSpec((1, dim), lambda i: (0, 0)),
            pl.BlockSpec((1, dim), lambda i: (0, 0)),
            pl.BlockSpec((d, 3 * d), lambda i: (0, 0)),
            pl.BlockSpec((1, 3 * d), lambda i: (0, 0)),
            pl.BlockSpec((dim, dim), lambda i: (0, 0)),
        ],
        out_specs=pl.BlockSpec((1, t, dim), lambda i: (i, 0, 0)),
        compiler_params=pltpu.CompilerParams(
            dimension_semantics=("parallel",), vmem_limit_bytes=_VMEM_LIMIT),
    )(x.astype(jnp.bfloat16), adj.astype(jnp.bfloat16), thr.astype(jnp.float32),
      lp['ln_g'].reshape(1, dim), lp['ln_b'].reshape(1, dim),
      lp['qkv_W'].astype(jnp.bfloat16), lp['qkv_b'].reshape(1, -1),
      lp['proj_W'].astype(jnp.bfloat16))


def fused_attn_global(x, adj, lp, heads, scale):
    b, t, dim = x.shape
    d = dim // heads
    kern = functools.partial(_attn_global_kernel, heads=heads, t=t, d=d, scale=scale)
    return pl.pallas_call(
        kern,
        out_shape=jax.ShapeDtypeStruct((b, t, dim), jnp.bfloat16),
        grid=(b,),
        in_specs=[
            pl.BlockSpec((1, t, dim), lambda i: (i, 0, 0)),
            pl.BlockSpec((1, heads, t, t), lambda i: (i, 0, 0, 0)),
            pl.BlockSpec((1, dim), lambda i: (0, 0)),
            pl.BlockSpec((1, dim), lambda i: (0, 0)),
            pl.BlockSpec((d, 2 * d), lambda i: (0, 0)),
            pl.BlockSpec((1, 2 * d), lambda i: (0, 0)),
            pl.BlockSpec((d, d), lambda i: (0, 0)),
            pl.BlockSpec((1, d), lambda i: (0, 0)),
            pl.BlockSpec(memory_space=pltpu.MemorySpace.SMEM),   # lambda mixing matrix
        ],
        out_specs=pl.BlockSpec((1, t, dim), lambda i: (i, 0, 0)),
        compiler_params=pltpu.CompilerParams(
            dimension_semantics=("parallel",), vmem_limit_bytes=_VMEM_LIMIT),
    )(x.astype(jnp.bfloat16), adj.astype(jnp.bfloat16),
      lp['ln_g'].reshape(1, dim), lp['ln_b'].reshape(1, dim),
      lp['qk_W'].astype(jnp.bfloat16), lp['qk_b'].reshape(1, -1),
      lp['v_W'].astype(jnp.bfloat16), lp['v_b'].reshape(1, -1),
      lp['lambda'])


def fused_pool(x, adj, Wt, bvec, gumbel, heads):
    """Wt: (m, dim) = Upool weight transposed on the host (keeps in-kernel dots NT)."""
    b, t, dim = x.shape
    m = Wt.shape[0]
    kern = functools.partial(_pool_kernel, heads=heads)
    x_new, adj_new = pl.pallas_call(
        kern,
        out_shape=(jax.ShapeDtypeStruct((b, m, dim), jnp.bfloat16),
                   jax.ShapeDtypeStruct((b, heads, m, m), jnp.bfloat16)),
        grid=(b,),
        in_specs=[
            pl.BlockSpec((1, t, dim), lambda i: (i, 0, 0)),
            pl.BlockSpec((1, heads, t, t), lambda i: (i, 0, 0, 0)),
            pl.BlockSpec((1, m, t), lambda i: (i, 0, 0)),
            pl.BlockSpec((m, dim), lambda i: (0, 0)),
            pl.BlockSpec((m, 1), lambda i: (0, 0)),
        ],
        out_specs=[pl.BlockSpec((1, m, dim), lambda i: (i, 0, 0)),
                   pl.BlockSpec((1, heads, m, m), lambda i: (i, 0, 0, 0))],
        compiler_params=pltpu.CompilerParams(
            dimension_semantics=("parallel",), vmem_limit_bytes=_VMEM_LIMIT),
    )(x.astype(jnp.bfloat16), adj.astype(jnp.bfloat16), gumbel.astype(jnp.float32),
      Wt.astype(jnp.bfloat16), bvec.reshape(m, 1).astype(jnp.float32))
    return x_new, adj_new


def fused_final_pool_predict(x, w_out, pred_W, pred_b):
    b, t, dim = x.shape
    nc = pred_W.shape[1]
    x_out, cls = pl.pallas_call(
        _final_pool_predict_kernel,
        out_shape=(jax.ShapeDtypeStruct((b, 1, dim), jnp.float32),
                   jax.ShapeDtypeStruct((b, 1, nc), jnp.float32)),
        grid=(b,),
        in_specs=[
            pl.BlockSpec((1, t, dim), lambda i: (i, 0, 0)),
            pl.BlockSpec((1, dim), lambda i: (0, 0)),
            pl.BlockSpec((dim, nc), lambda i: (0, 0)),
            pl.BlockSpec((1, nc), lambda i: (0, 0)),
        ],
        out_specs=[pl.BlockSpec((1, 1, dim), lambda i: (i, 0, 0)),
                   pl.BlockSpec((1, 1, nc), lambda i: (i, 0, 0))],
        compiler_params=pltpu.CompilerParams(
            dimension_semantics=("parallel",), vmem_limit_bytes=_VMEM_LIMIT),
    )(x.astype(jnp.bfloat16), w_out.reshape(1, dim).astype(jnp.bfloat16),
      pred_W.astype(jnp.bfloat16), pred_b.reshape(1, nc).astype(jnp.float32))
    return x_out, cls.reshape(b, nc)


def pl_linear(x, w, b, out_dtype=jnp.float32):
    """Row-tiled linear (patch_to_embedding projection).
    TODO(synk): for production N/K also tile the output/contraction dims with an f32
    VMEM accumulator (grid=(M/tm, N/tn, K/tk))."""
    M, K = x.shape
    N = w.shape[1]
    TM = _row_tile(M)
    return pl.pallas_call(
        _linear_kernel,
        out_shape=jax.ShapeDtypeStruct((M, N), out_dtype),
        grid=(M // TM,),
        in_specs=[pl.BlockSpec((TM, K), lambda i: (i, 0)),
                  pl.BlockSpec((K, N), lambda i: (0, 0)),
                  pl.BlockSpec((1, N), lambda i: (0, 0))],
        out_specs=pl.BlockSpec((TM, N), lambda i: (i, 0)),
        compiler_params=pltpu.CompilerParams(
            dimension_semantics=("parallel",), vmem_limit_bytes=_VMEM_LIMIT),
    )(x.astype(jnp.bfloat16), w.astype(jnp.bfloat16),
      b.reshape(1, N).astype(jnp.float32))


# ------------------------------ model pieces --------------------------------

def conv_embed(xp, params):
    """ConvEmbed: Conv2d(k=3,s=2,p=1) + BatchNorm2d(train mode) + GELU + MaxPool(3,s=2,p=1).
    xp: (N, C, P, P) NCHW patches -> (N, E, P//4, P//4)."""
    N, C, P, _ = xp.shape
    W = params['conv_W']                                   # (E, C, 3, 3)
    E = W.shape[0]
    OH = (P + 2 - 3) // 2 + 1
    xpad = jnp.pad(xp, ((0, 0), (0, 0), (1, 1), (1, 1)))
    cols = []
    for ki in range(3):
        for kj in range(3):
            cols.append(xpad[:, :, ki:ki + 2 * OH:2, kj:kj + 2 * OH:2])   # (N,C,OH,OW)
    cols = jnp.stack(cols, axis=2)                          # (N, C, 9, OH, OW)
    cols = jnp.transpose(cols, (0, 3, 4, 1, 2)).reshape(N * OH * OH, C * 9)
    K = C * 9
    Kp = ((K + 7) // 8) * 8                                 # pad contraction dim (27 -> 32)
    cols = jnp.pad(cols, ((0, 0), (0, Kp - K))).astype(jnp.bfloat16)
    w2 = jnp.pad(W.reshape(E, K).T, ((0, Kp - K), (0, 0))).astype(jnp.bfloat16)
    M = N * OH * OH
    TM = _row_tile(M)
    grid_m = M // TM

    # Pass 1: row-tiled matmul + per-channel partial sum / sum-of-squares accumulation.
    y, stats = pl.pallas_call(
        _conv_mm_stats_kernel,
        out_shape=(jax.ShapeDtypeStruct((M, E), jnp.float32),
                   jax.ShapeDtypeStruct((2, E), jnp.float32)),
        grid=(grid_m,),
        in_specs=[pl.BlockSpec((TM, Kp), lambda i: (i, 0)),
                  pl.BlockSpec((Kp, E), lambda i: (0, 0)),
                  pl.BlockSpec((1, E), lambda i: (0, 0))],
        out_specs=[pl.BlockSpec((TM, E), lambda i: (i, 0)),
                   pl.BlockSpec((2, E), lambda i: (0, 0))],
        compiler_params=pltpu.CompilerParams(
            dimension_semantics=("arbitrary",), vmem_limit_bytes=_VMEM_LIMIT),
    )(cols, w2, params['conv_b'].reshape(1, E).astype(jnp.float32))

    # Pass 2: row-tiled normalize (batch stats, biased variance) + GELU.
    bn_kern = functools.partial(_bn_gelu_kernel, m_rows=float(M))
    y = pl.pallas_call(
        bn_kern,
        out_shape=jax.ShapeDtypeStruct((M, E), jnp.float32),
        grid=(grid_m,),
        in_specs=[pl.BlockSpec((TM, E), lambda i: (i, 0)),
                  pl.BlockSpec((2, E), lambda i: (0, 0)),
                  pl.BlockSpec((1, E), lambda i: (0, 0)),
                  pl.BlockSpec((1, E), lambda i: (0, 0))],
        out_specs=pl.BlockSpec((TM, E), lambda i: (i, 0)),
        compiler_params=pltpu.CompilerParams(
            dimension_semantics=("parallel",), vmem_limit_bytes=_VMEM_LIMIT),
    )(y, stats, params['bn_g'].reshape(1, E), params['bn_b'].reshape(1, E))

    y = y.reshape(N, OH, OH, E)
    # MaxPool2d(kernel=3, stride=2, padding=1) with -inf padding (channel-last here).
    y = lax.reduce_window(y, -jnp.inf, lax.max,
                          window_dimensions=(1, 3, 3, 1),
                          window_strides=(1, 2, 2, 1),
                          padding=((0, 0), (1, 1), (1, 1), (0, 0)))
    return jnp.transpose(y, (0, 3, 1, 2))                   # NCHW like torch


def transformer_forward(img, adj, params, cfg, key):
    p = cfg['patch_size']
    dim, heads, depth = cfg['dim'], cfg['heads'], cfg['depth']
    depth4pool = depth // 4
    depth4pool2 = int(depth // 1.5)
    scale = dim ** (-0.5)
    topk = int(cfg['image_size'] / cfg['patch_size'] * cfg['downsample']) ** 2
    b, c, H, W = img.shape
    hh, ww = H // p, W // p
    T = hh * ww
    # 'b c (h p1) (w p2) -> (b h w) c p1 p2'
    xp = img.reshape(b, c, hh, p, ww, p)
    xp = jnp.transpose(xp, (0, 2, 4, 1, 3, 5)).reshape(b * T, c, p, p)
    conv_img = conv_embed(xp, params).reshape(b, T, -1)      # (b, T, patch_dim)
    x = pl_linear(conv_img.reshape(b * T, -1), params['emb_W'], params['emb_b'],
                  out_dtype=jnp.bfloat16).reshape(b, T, dim)
    # 'b (h w) c -> b c h w -> b (h w) c' is an identity.
    rep_adj = adj.astype(jnp.bfloat16)       # bf16 adjacency: halves HBM->VMEM traffic

    # TopkRouting replacement: per-row k-th largest adjacency value (computed once on
    # the host from the same bf16-rounded adjacency the kernel sees; all local layers
    # share the unmodified input adjacency).
    kth = lax.top_k(rep_adj.astype(jnp.float32), topk)[0][..., -1:]  # (b, heads, T, 1)

    key1, key2 = jax.random.split(key)

    for index in range(depth):
        lp = params['layers'][index]
        if index < depth4pool:
            x = fused_attn_local(x, rep_adj, kth, lp, heads, scale)
        else:
            if index == depth4pool:
                m1 = params['Upool_W'].shape[1]
                g1 = jax.random.gumbel(key1, (b, m1, x.shape[1]), jnp.float32)
                x, rep_adj = fused_pool(x, rep_adj, params['Upool_W'].T,
                                        params['Upool_b'], g1, heads)
            if index == depth4pool2:
                m2 = params['Upool2_W'].shape[1]
                g2 = jax.random.gumbel(key2, (b, m2, x.shape[1]), jnp.float32)
                x, rep_adj = fused_pool(x, rep_adj, params['Upool2_W'].T,
                                        params['Upool2_b'], g2, heads)
            x = fused_attn_global(x, rep_adj, lp, heads, scale)
        # FeedForward is nn.Identity()

    x_out, class_result = fused_final_pool_predict(
        x, params['Upool_out_W'], params['pred_W'], params['pred_b'])
    return x_out, class_result


def vit_forward(img, gen_adj, label, adj_matrix, interation, params, cfg, key):
    adj = adj_matrix if label == 0 else gen_adj
    x_out, class_result = transformer_forward(img, adj, params, cfg, key)
    pred = x_out.reshape(x_out.shape[0], x_out.shape[-1])    # squeeze (b,1,dim)->(b,dim)
    return pred, class_result, adj_matrix                    # to_cls_token = Identity


# ------------------------------- parameters ---------------------------------

def init_params(key, cfg):
    dim, heads = cfg['dim'], cfg['heads']
    d = dim // heads
    E = dim // 4
    in_chans, ks = cfg['in_chans'], cfg['kernel_size']
    patch_dim = (cfg['patch_size'] // 4) ** 2 * (dim // 4)
    m1 = int(cfg['image_size'] / cfg['patch_size'] * cfg['downsample']) ** 2
    m2 = int(cfg['image_size'] / cfg['patch_size'] * cfg['downsample'] * 0.5) ** 2
    depth = cfg['depth']
    depth4pool = depth // 4

    keys = iter(jax.random.split(key, 64))

    def nrm(shape, s=0.05):
        return s * jax.random.normal(next(keys), shape, jnp.float32)

    params = {
        'conv_W': nrm((E, in_chans, ks, ks), 0.1),
        'conv_b': jnp.zeros((E,), jnp.float32),
        'bn_g': jnp.ones((E,), jnp.float32),
        'bn_b': jnp.zeros((E,), jnp.float32),
        'emb_W': nrm((patch_dim, dim)),
        'emb_b': jnp.zeros((dim,), jnp.float32),
        'Upool_W': nrm((dim, m1)),
        'Upool_b': jnp.zeros((m1,), jnp.float32),
        'Upool2_W': nrm((dim, m2)),
        'Upool2_b': jnp.zeros((m2,), jnp.float32),
        'Upool_out_W': nrm((dim, 1)),
        'pred_W': nrm((dim, cfg['num_classes'])),
        'pred_b': jnp.zeros((cfg['num_classes'],), jnp.float32),
        'layers': [],
    }
    for i in range(depth):
        lp = {'ln_g': jnp.ones((dim,), jnp.float32),
              'ln_b': jnp.zeros((dim,), jnp.float32)}
        if i < depth4pool:   # Attention_local
            lp['qkv_W'] = nrm((d, 3 * d))
            lp['qkv_b'] = jnp.zeros((3 * d,), jnp.float32)
            lp['proj_W'] = nrm((dim, dim))
        else:                # Attention_global
            lp['qk_W'] = nrm((d, 2 * d))
            lp['qk_b'] = jnp.zeros((2 * d,), jnp.float32)
            lp['v_W'] = nrm((d, d))
            lp['v_b'] = jnp.zeros((d,), jnp.float32)
            lp['lambda'] = jax.random.normal(next(keys), (heads, heads), jnp.float32)
        params['layers'].append(lp)
    return params


# ----------------------------------- main ------------------------------------

if __name__ == "__main__":
    cfg = dict(image_size=16, patch_size=4, kernel_size=3, downsample=1.0,
               batch_size=2, num_classes=10, dim=32, depth=4, heads=2,
               mlp_dim=32, patch_stride=2, patch_padding=1, in_chans=3)
    key = jax.random.PRNGKey(0)
    k_param, k_img, k_adj, k_gumbel = jax.random.split(key, 4)
    params = init_params(k_param, cfg)

    b = cfg['batch_size']
    T = (cfg['image_size'] // cfg['patch_size']) ** 2
    img = jax.random.normal(
        k_img, (b, cfg['in_chans'], cfg['image_size'], cfg['image_size']), jnp.float32)
    adj_matrix = jax.random.uniform(k_adj, (b, cfg['heads'], T, T), jnp.float32)
    gen_adj = adj_matrix  # unused when label == 0

    # Whole-forward jit fuses the host-side glue (reshapes, top_k thresholds, gumbel,
    # maxpool) around the fused Pallas kernels.  label / interation are static ints.
    fwd = jax.jit(lambda im, ga, am, pr, kk: vit_forward(
        im, ga, 0, am, 0, pr, cfg, kk))

    pred, class_result, adj_out = fwd(img, gen_adj, adj_matrix, params, k_gumbel)
    jax.block_until_ready((pred, class_result, adj_out))

    assert pred.shape == (b, cfg['dim'])
    assert class_result.shape == (b, cfg['num_classes'])
    assert adj_out.shape == (b, cfg['heads'], T, T)
    print("KERNEL_OK")
</pallas_src>

<mosaic_0001>
module attributes {stable_mosaic.version = 11 : i64} {
  func.func @_bn_gelu_kernel(%arg0: i32, %arg1: memref<128x8xf32, #tpu.memory_space<vmem>>, %arg2: memref<2x8xf32, #tpu.memory_space<vmem>>, %arg3: memref<1x8xf32, #tpu.memory_space<vmem>>, %arg4: memref<1x8xf32, #tpu.memory_space<vmem>>, %arg5: memref<128x8xf32, #tpu.memory_space<vmem>>) attributes {dimension_semantics = [#tpu.dimension_semantics<parallel>], iteration_bounds = array<i64: 1>, scalar_prefetch = 0 : i64, scratch_operands = 0 : i64, tpu.core_type = #tpu.core_type<tc>, window_params = [{transform_indices = @transform_0, window_bounds = array<i64: 128, 8>}, {pipeline_mode = #tpu.pipeline_mode<synchronous>, transform_indices = @transform_1, window_bounds = array<i64: 2, 8>}, {pipeline_mode = #tpu.pipeline_mode<synchronous>, transform_indices = @transform_2, window_bounds = array<i64: 1, 8>}, {pipeline_mode = #tpu.pipeline_mode<synchronous>, transform_indices = @transform_3, window_bounds = array<i64: 1, 8>}, {transform_indices = @transform_4, window_bounds = array<i64: 128, 8>}]} {
    %c0 = arith.constant 0 : index
    %c0_0 = arith.constant 0 : index
    %0 = vector.load %arg1[%c0, %c0_0] : memref<128x8xf32, #tpu.memory_space<vmem>>, vector<128x8xf32>
    %c0_1 = arith.constant 0 : index
    %c0_2 = arith.constant 0 : index
    %1 = vector.load %arg2[%c0_1, %c0_2] : memref<2x8xf32, #tpu.memory_space<vmem>>, vector<2x8xf32>
    %2 = vector.extract_strided_slice %1 {offsets = [0, 0], sizes = [1, 8], strides = [1, 1]} : vector<2x8xf32> to vector<1x8xf32>
    %cst = arith.constant 7.812500e-03 : f32
    %3 = vector.broadcast %cst : f32 to vector<1x8xf32>
    %4 = arith.mulf %2, %3 : vector<1x8xf32>
    %5 = vector.extract_strided_slice %1 {offsets = [1, 0], sizes = [1, 8], strides = [1, 1]} : vector<2x8xf32> to vector<1x8xf32>
    %cst_3 = arith.constant 7.812500e-03 : f32
    %6 = vector.broadcast %cst_3 : f32 to vector<1x8xf32>
    %7 = arith.mulf %5, %6 : vector<1x8xf32>
    %8 = arith.mulf %4, %4 : vector<1x8xf32>
    %9 = arith.subf %7, %8 : vector<1x8xf32>
    %c0_4 = arith.constant 0 : index
    %c0_5 = arith.constant 0 : index
    %10 = vector.load %arg3[%c0_4, %c0_5] : memref<1x8xf32, #tpu.memory_space<vmem>>, vector<1x8xf32>
    %cst_6 = arith.constant 9.99999974E-6 : f32
    %11 = vector.broadcast %cst_6 : f32 to vector<1x8xf32>
    %12 = arith.addf %9, %11 : vector<1x8xf32>
    %13 = math.rsqrt %12 : vector<1x8xf32>
    %14 = arith.mulf %10, %13 : vector<1x8xf32>
    %c0_7 = arith.constant 0 : index
    %c0_8 = arith.constant 0 : index
    %15 = vector.load %arg4[%c0_7, %c0_8] : memref<1x8xf32, #tpu.memory_space<vmem>>, vector<1x8xf32>
    %16 = arith.mulf %4, %14 : vector<1x8xf32>
    %17 = arith.subf %15, %16 : vector<1x8xf32>
    %18 = vector.broadcast %14 : vector<1x8xf32> to vector<128x8xf32>
    %19 = arith.mulf %0, %18 : vector<128x8xf32>
    %20 = vector.broadcast %17 : vector<1x8xf32> to vector<128x8xf32>
    %21 = arith.addf %19, %20 : vector<128x8xf32>
    %cst_9 = arith.constant 5.000000e-01 : f32
    %22 = vector.broadcast %cst_9 : f32 to vector<128x8xf32>
    %23 = arith.mulf %22, %21 : vector<128x8xf32>
    %cst_10 = arith.constant 4.471500e-02 : f32
    %24 = vector.broadcast %cst_10 : f32 to vector<128x8xf32>
    %25 = arith.mulf %24, %21 : vector<128x8xf32>
    %26 = arith.mulf %25, %21 : vector<128x8xf32>
    %27 = arith.mulf %26, %21 : vector<128x8xf32>
    %28 = arith.addf %21, %27 : vector<128x8xf32>
    %cst_11 = arith.constant 0.797884583 : f32
    %29 = vector.broadcast %cst_11 : f32 to vector<128x8xf32>
    %30 = arith.mulf %29, %28 : vector<128x8xf32>
    %31 = math.tanh %30 : vector<128x8xf32>
    %cst_12 = arith.constant 1.000000e+00 : f32
    %32 = vector.broadcast %cst_12 : f32 to vector<128x8xf32>
    %33 = arith.addf %32, %31 : vector<128x8xf32>
    %34 = arith.mulf %23, %33 : vector<128x8xf32>
    %c0_13 = arith.constant 0 : index
    %c0_14 = arith.constant 0 : index
    %35 = vector.load %arg5[%c0_13, %c0_14] : memref<128x8xf32, #tpu.memory_space<vmem>>, vector<128x8xf32>
    tpu.vector_store %arg5[%c0_13, %c0_14], %34 {strides = array<i32>} : memref<128x8xf32, #tpu.memory_space<vmem>>, vector<128x8xf32>,
    return
  }
  func.func @transform_0(%arg0: i32) -> (i32, i32) {
    %c0_i32 = arith.constant 0 : i32
    %c0_i32_0 = arith.constant 0 : i32
    return %arg0, %c0_i32 : i32, i32
  }
  func.func @transform_1(%arg0: i32) -> (i32, i32) {
    %c0_i32 = arith.constant 0 : i32
    %c0_i32_0 = arith.constant 0 : i32
    %c0_i32_1 = arith.constant 0 : i32
    return %c0_i32, %c0_i32_0 : i32, i32
  }
  func.func @transform_2(%arg0: i32) -> (i32, i32) {
    %c0_i32 = arith.constant 0 : i32
    %c0_i32_0 = arith.constant 0 : i32
    %c0_i32_1 = arith.constant 0 : i32
    return %c0_i32, %c0_i32_0 : i32, i32
  }
  func.func @transform_3(%arg0: i32) -> (i32, i32) {
    %c0_i32 = arith.constant 0 : i32
    %c0_i32_0 = arith.constant 0 : i32
    %c0_i32_1 = arith.constant 0 : i32
    return %c0_i32, %c0_i32_0 : i32, i32
  }
  func.func @transform_4(%arg0: i32) -> (i32, i32) {
    %c0_i32 = arith.constant 0 : i32
    %c0_i32_0 = arith.constant 0 : i32
    return %arg0, %c0_i32 : i32, i32
  }
}

module attributes {stable_mosaic.version = 11 : i64} {
  func.func @_conv_mm_stats_kernel(%arg0: i32, %arg1: memref<128x32xbf16, #tpu.memory_space<vmem>>, %arg2: memref<32x8xbf16, #tpu.memory_space<vmem>>, %arg3: memref<1x8xf32, #tpu.memory_space<vmem>>, %arg4: memref<128x8xf32, #tpu.memory_space<vmem>>, %arg5: memref<2x8xf32, #tpu.memory_space<vmem>>) attributes {dimension_semantics = [#tpu.dimension_semantics<arbitrary>], iteration_bounds = array<i64: 1>, scalar_prefetch = 0 : i64, scratch_operands = 0 : i64, tpu.core_type = #tpu.core_type<tc>, window_params = [{transform_indices = @transform_0, window_bounds = array<i64: 128, 32>}, {pipeline_mode = #tpu.pipeline_mode<synchronous>, transform_indices = @transform_1, window_bounds = array<i64: 32, 8>}, {pipeline_mode = #tpu.pipeline_mode<synchronous>, transform_indices = @transform_2, window_bounds = array<i64: 1, 8>}, {transform_indices = @transform_3, window_bounds = array<i64: 128, 8>}, {pipeline_mode = #tpu.pipeline_mode<synchronous>, transform_indices = @transform_4, window_bounds = array<i64: 2, 8>}]} {
    %c0 = arith.constant 0 : index
    %c0_0 = arith.constant 0 : index
    %0 = vector.load %arg1[%c0, %c0_0] : memref<128x32xbf16, #tpu.memory_space<vmem>>, vector<128x32xbf16>
    %c0_1 = arith.constant 0 : index
    %c0_2 = arith.constant 0 : index
    %1 = vector.load %arg2[%c0_1, %c0_2] : memref<32x8xbf16, #tpu.memory_space<vmem>>, vector<32x8xbf16>
    %cst = arith.constant dense<0.000000e+00> : vector<128x8xf32>
    %2 = tpu.matmul %0, %1, %cst {dimension_numbers = #tpu.dot_dimension_numbers<[1], [0], [0], [1], [0, 0, 1, 1], [], []>} : vector<128x32xbf16>, vector<32x8xbf16>, vector<128x8xf32> -> vector<128x8xf32>
    %c0_3 = arith.constant 0 : index
    %c0_4 = arith.constant 0 : index
    %3 = vector.load %arg3[%c0_3, %c0_4] : memref<1x8xf32, #tpu.memory_space<vmem>>, vector<1x8xf32>
    %4 = vector.broadcast %3 : vector<1x8xf32> to vector<128x8xf32>
    %5 = arith.addf %2, %4 : vector<128x8xf32>
    %c0_5 = arith.constant 0 : index
    %c0_6 = arith.constant 0 : index
    %6 = vector.load %arg4[%c0_5, %c0_6] : memref<128x8xf32, #tpu.memory_space<vmem>>, vector<128x8xf32>
    tpu.vector_store %arg4[%c0_5, %c0_6], %5 {strides = array<i32>} : memref<128x8xf32, #tpu.memory_space<vmem>>, vector<128x8xf32>,
    %cst_7 = arith.constant dense<0.000000e+00> : vector<8xf32>
    %7 = vector.multi_reduction <add>, %5, %cst_7 [0] : vector<128x8xf32> to vector<8xf32>
    %8 = vector.shape_cast %7 : vector<8xf32> to vector<1x8xf32>
    %9 = arith.mulf %5, %5 : vector<128x8xf32>
    %cst_8 = arith.constant dense<0.000000e+00> : vector<8xf32>
    %10 = vector.multi_reduction <add>, %9, %cst_8 [0] : vector<128x8xf32> to vector<8xf32>
    %11 = vector.shape_cast %10 : vector<8xf32> to vector<1x8xf32>
    %12 = tpu.concatenate %8, %11 in 0 : vector<1x8xf32>, vector<1x8xf32> -> vector<2x8xf32>
    %c0_i32 = arith.constant 0 : i32
    %13 = arith.cmpi eq, %arg0, %c0_i32 : i32
    %14 = arith.extui %13 : i1 to i32
    %c0_i32_9 = arith.constant 0 : i32
    %15 = arith.cmpi ne, %14, %c0_i32_9 : i32
    scf.if %15 {
      %cst_14 = arith.constant 0.000000e+00 : f32
      %19 = vector.broadcast %cst_14 : f32 to vector<2x8xf32>
      %c0_15 = arith.constant 0 : index
      %c0_16 = arith.constant 0 : index
      %20 = vector.load %arg5[%c0_15, %c0_16] : memref<2x8xf32, #tpu.memory_space<vmem>>, vector<2x8xf32>
      tpu.vector_store %arg5[%c0_15, %c0_16], %19 {strides = array<i32>} : memref<2x8xf32, #tpu.memory_space<vmem>>, vector<2x8xf32>,
    } else {
    }
    %c0_10 = arith.constant 0 : index
    %c0_11 = arith.constant 0 : index
    %16 = vector.load %arg5[%c0_10, %c0_11] : memref<2x8xf32, #tpu.memory_space<vmem>>, vector<2x8xf32>
    %17 = arith.addf %16, %12 : vector<2x8xf32>
    %c0_12 = arith.constant 0 : index
    %c0_13 = arith.constant 0 : index
    %18 = vector.load %arg5[%c0_12, %c0_13] : memref<2x8xf32, #tpu.memory_space<vmem>>, vector<2x8xf32>
    tpu.vector_store %arg5[%c0_12, %c0_13], %17 {strides = array<i32>} : memref<2x8xf32, #tpu.memory_space<vmem>>, vector<2x8xf32>,
    return
  }
  func.func @transform_0(%arg0: i32) -> (i32, i32) {
    %c0_i32 = arith.constant 0 : i32
    %c0_i32_0 = arith.constant 0 : i32
    return %arg0, %c0_i32 : i32, i32
  }
  func.func @transform_1(%arg0: i32) -> (i32, i32) {
    %c0_i32 = arith.constant 0 : i32
    %c0_i32_0 = arith.constant 0 : i32
    %c0_i32_1 = arith.constant 0 : i32
    return %c0_i32, %c0_i32_0 : i32, i32
  }
  func.func @transform_2(%arg0: i32) -> (i32, i32) {
    %c0_i32 = arith.constant 0 : i32
    %c0_i32_0 = arith.constant 0 : i32
    %c0_i32_1 = arith.constant 0 : i32
    return %c0_i32, %c0_i32_0 : i32, i32
  }
  func.func @transform_3(%arg0: i32) -> (i32, i32) {
    %c0_i32 = arith.constant 0 : i32
    %c0_i32_0 = arith.constant 0 : i32
    return %arg0, %c0_i32 : i32, i32
  }
  func.func @transform_4(%arg0: i32) -> (i32, i32) {
    %c0_i32 = arith.constant 0 : i32
    %c0_i32_0 = arith.constant 0 : i32
    %c0_i32_1 = arith.constant 0 : i32
    return %c0_i32, %c0_i32_0 : i32, i32
  }
}

module attributes {stable_mosaic.version = 11 : i64} {
  func.func @_linear_kernel(%arg0: i32, %arg1: memref<32x8xbf16, #tpu.memory_space<vmem>>, %arg2: memref<8x32xbf16, #tpu.memory_space<vmem>>, %arg3: memref<1x32xf32, #tpu.memory_space<vmem>>, %arg4: memref<32x32xbf16, #tpu.memory_space<vmem>>) attributes {dimension_semantics = [#tpu.dimension_semantics<parallel>], iteration_bounds = array<i64: 1>, scalar_prefetch = 0 : i64, scratch_operands = 0 : i64, tpu.core_type = #tpu.core_type<tc>, window_params = [{transform_indices = @transform_0, window_bounds = array<i64: 32, 8>}, {pipeline_mode = #tpu.pipeline_mode<synchronous>, transform_indices = @transform_1, window_bounds = array<i64: 8, 32>}, {pipeline_mode = #tpu.pipeline_mode<synchronous>, transform_indices = @transform_2, window_bounds = array<i64: 1, 32>}, {transform_indices = @transform_3, window_bounds = array<i64: 32, 32>}]} {
    %c0 = arith.constant 0 : index
    %c0_0 = arith.constant 0 : index
    %0 = vector.load %arg1[%c0, %c0_0] : memref<32x8xbf16, #tpu.memory_space<vmem>>, vector<32x8xbf16>
    %c0_1 = arith.constant 0 : index
    %c0_2 = arith.constant 0 : index
    %1 = vector.load %arg2[%c0_1, %c0_2] : memref<8x32xbf16, #tpu.memory_space<vmem>>, vector<8x32xbf16>
    %cst = arith.constant dense<0.000000e+00> : vector<32x32xf32>
    %2 = tpu.matmul %0, %1, %cst {dimension_numbers = #tpu.dot_dimension_numbers<[1], [0], [0], [1], [0, 0, 1, 1], [], []>} : vector<32x8xbf16>, vector<8x32xbf16>, vector<32x32xf32> -> vector<32x32xf32>
    %c0_3 = arith.constant 0 : index
    %c0_4 = arith.constant 0 : index
    %3 = vector.load %arg3[%c0_3, %c0_4] : memref<1x32xf32, #tpu.memory_space<vmem>>, vector<1x32xf32>
    %4 = vector.broadcast %3 : vector<1x32xf32> to vector<32x32xf32>
    %5 = arith.addf %2, %4 : vector<32x32xf32>
    %6 = arith.truncf %5 : vector<32x32xf32> to vector<32x32xbf16>
    %c0_5 = arith.constant 0 : index
    %c0_6 = arith.constant 0 : index
    %7 = vector.load %arg4[%c0_5, %c0_6] : memref<32x32xbf16, #tpu.memory_space<vmem>>, vector<32x32xbf16>
    tpu.vector_store %arg4[%c0_5, %c0_6], %6 {strides = array<i32>} : memref<32x32xbf16, #tpu.memory_space<vmem>>, vector<32x32xbf16>,
    return
  }
  func.func @transform_0(%arg0: i32) -> (i32, i32) {
    %c0_i32 = arith.constant 0 : i32
    %c0_i32_0 = arith.constant 0 : i32
    return %arg0, %c0_i32 : i32, i32
  }
  func.func @transform_1(%arg0: i32) -> (i32, i32) {
    %c0_i32 = arith.constant 0 : i32
    %c0_i32_0 = arith.constant 0 : i32
    %c0_i32_1 = arith.constant 0 : i32
    return %c0_i32, %c0_i32_0 : i32, i32
  }
  func.func @transform_2(%arg0: i32) -> (i32, i32) {
    %c0_i32 = arith.constant 0 : i32
    %c0_i32_0 = arith.constant 0 : i32
    %c0_i32_1 = arith.constant 0 : i32
    return %c0_i32, %c0_i32_0 : i32, i32
  }
  func.func @transform_3(%arg0: i32) -> (i32, i32) {
    %c0_i32 = arith.constant 0 : i32
    %c0_i32_0 = arith.constant 0 : i32
    return %arg0, %c0_i32 : i32, i32
  }
}

module attributes {stable_mosaic.version = 11 : i64} {
  func.func @_attn_local_kernel(%arg0: i32, %arg1: memref<1x16x32xbf16, #tpu.memory_space<vmem>>, %arg2: memref<1x2x16x16xbf16, #tpu.memory_space<vmem>>, %arg3: memref<1x2x16x1xf32, #tpu.memory_space<vmem>>, %arg4: memref<1x32xf32, #tpu.memory_space<vmem>>, %arg5: memref<1x32xf32, #tpu.memory_space<vmem>>, %arg6: memref<16x48xbf16, #tpu.memory_space<vmem>>, %arg7: memref<1x48xf32, #tpu.memory_space<vmem>>, %arg8: memref<32x32xbf16, #tpu.memory_space<vmem>>, %arg9: memref<1x16x32xbf16, #tpu.memory_space<vmem>>) attributes {dimension_semantics = [#tpu.dimension_semantics<parallel>], iteration_bounds = array<i64: 2>, scalar_prefetch = 0 : i64, scratch_operands = 0 : i64, tpu.core_type = #tpu.core_type<tc>, window_params = [{transform_indices = @transform_0, window_bounds = array<i64: 1, 16, 32>}, {transform_indices = @transform_1, window_bounds = array<i64: 1, 2, 16, 16>}, {transform_indices = @transform_2, window_bounds = array<i64: 1, 2, 16, 1>}, {pipeline_mode = #tpu.pipeline_mode<synchronous>, transform_indices = @transform_3, window_bounds = array<i64: 1, 32>}, {pipeline_mode = #tpu.pipeline_mode<synchronous>, transform_indices = @transform_4, window_bounds = array<i64: 1, 32>}, {pipeline_mode = #tpu.pipeline_mode<synchronous>, transform_indices = @transform_5, window_bounds = array<i64: 16, 48>}, {pipeline_mode = #tpu.pipeline_mode<synchronous>, transform_indices = @transform_6, window_bounds = array<i64: 1, 48>}, {pipeline_mode = #tpu.pipeline_mode<synchronous>, transform_indices = @transform_7, window_bounds = array<i64: 32, 32>}, {transform_indices = @transform_8, window_bounds = array<i64: 1, 16, 32>}]} {
    %c0 = arith.constant 0 : index
    %c0_0 = arith.constant 0 : index
    %c0_1 = arith.constant 0 : index
    %0 = vector.load %arg1[%c0, %c0_0, %c0_1] : memref<1x16x32xbf16, #tpu.memory_space<vmem>>, vector<1x16x32xbf16>
    %1 = vector.shape_cast %0 : vector<1x16x32xbf16> to vector<16x32xbf16>
    %2 = arith.extf %1 : vector<16x32xbf16> to vector<16x32xf32>
    %c0_2 = arith.constant 0 : index
    %c0_3 = arith.constant 0 : index
    %3 = vector.load %arg4[%c0_2, %c0_3] : memref<1x32xf32, #tpu.memory_space<vmem>>, vector<1x32xf32>
    %c0_4 = arith.constant 0 : index
    %c0_5 = arith.constant 0 : index
    %4 = vector.load %arg5[%c0_4, %c0_5] : memref<1x32xf32, #tpu.memory_space<vmem>>, vector<1x32xf32>
    %cst = arith.constant dense<0.000000e+00> : vector<16xf32>
    %5 = vector.multi_reduction <add>, %2, %cst [1] : vector<16x32xf32> to vector<16xf32>
    %6 = vector.shape_cast %5 : vector<16xf32> to vector<16x1xf32>
    %cst_6 = arith.constant 3.200000e+01 : f32
    %7 = vector.broadcast %cst_6 : f32 to vector<16x1xf32>
    %8 = arith.divf %6, %7 : vector<16x1xf32>
    %9 = vector.broadcast %8 : vector<16x1xf32> to vector<16x32xf32>
    %10 = arith.subf %2, %9 : vector<16x32xf32>
    %11 = arith.mulf %10, %10 : vector<16x32xf32>
    %cst_7 = arith.constant dense<0.000000e+00> : vector<16xf32>
    %12 = vector.multi_reduction <add>, %11, %cst_7 [1] : vector<16x32xf32> to vector<16xf32>
    %13 = vector.shape_cast %12 : vector<16xf32> to vector<16x1xf32>
    %cst_8 = arith.constant 3.200000e+01 : f32
    %14 = vector.broadcast %cst_8 : f32 to vector<16x1xf32>
    %15 = arith.divf %13, %14 : vector<16x1xf32>
    %16 = vector.broadcast %8 : vector<16x1xf32> to vector<16x32xf32>
    %17 = arith.subf %2, %16 : vector<16x32xf32>
    %cst_9 = arith.constant 9.99999974E-6 : f32
    %18 = vector.broadcast %cst_9 : f32 to vector<16x1xf32>
    %19 = arith.addf %15, %18 : vector<16x1xf32>
    %20 = math.rsqrt %19 : vector<16x1xf32>
    %21 = vector.broadcast %20 : vector<16x1xf32> to vector<16x32xf32>
    %22 = arith.mulf %17, %21 : vector<16x32xf32>
    %23 = vector.broadcast %3 : vector<1x32xf32> to vector<16x32xf32>
    %24 = arith.mulf %22, %23 : vector<16x32xf32>
    %25 = vector.broadcast %4 : vector<1x32xf32> to vector<16x32xf32>
    %26 = arith.addf %24, %25 : vector<16x32xf32>
    %27 = vector.extract_strided_slice %26 {offsets = [0, 0], sizes = [16, 16], strides = [1, 1]} : vector<16x32xf32> to vector<16x16xf32>
    %28 = vector.extract_strided_slice %26 {offsets = [0, 16], sizes = [16, 16], strides = [1, 1]} : vector<16x32xf32> to vector<16x16xf32>
    %29 = vector.shape_cast %27 : vector<16x16xf32> to vector<1x16x16xf32>
    %30 = vector.shape_cast %28 : vector<16x16xf32> to vector<1x16x16xf32>
    %31 = tpu.concatenate %29, %30 in 0 : vector<1x16x16xf32>, vector<1x16x16xf32> -> vector<2x16x16xf32>
    %c0_10 = arith.constant 0 : index
    %c0_11 = arith.constant 0 : index
    %c0_12 = arith.constant 0 : index
    %c0_13 = arith.constant 0 : index
    %32 = vector.load %arg2[%c0_10, %c0_11, %c0_12, %c0_13] : memref<1x2x16x16xbf16, #tpu.memory_space<vmem>>, vector<1x2x16x16xbf16>
    %33 = vector.shape_cast %32 : vector<1x2x16x16xbf16> to vector<2x16x16xbf16>
    %34 = arith.truncf %31 : vector<2x16x16xf32> to vector<2x16x16xbf16>
    "tpu.trace_start"() <{level = 10 : i32, message = "hmk,hkn->hmn"}> : () -> ()
    %cst_14 = arith.constant dense<0.000000e+00> : vector<2x16x16xf32>
    %35 = tpu.matmul %33, %34, %cst_14 {dimension_numbers = #tpu.dot_dimension_numbers<[2], [1], [1], [2], [0, 0, 0, 1, 1, 2], [0], [0]>} : vector<2x16x16xbf16>, vector<2x16x16xbf16>, vector<2x16x16xf32> -> vector<2x16x16xf32>
    "tpu.trace_stop"() : () -> ()
    %36 = arith.addf %35, %31 : vector<2x16x16xf32>
    %37 = vector.shape_cast %36 : vector<2x16x16xf32> to vector<32x16xf32>
    %c0_15 = arith.constant 0 : index
    %c0_16 = arith.constant 0 : index
    %38 = vector.load %arg6[%c0_15, %c0_16] : memref<16x48xbf16, #tpu.memory_space<vmem>>, vector<16x48xbf16>
    %39 = arith.truncf %37 : vector<32x16xf32> to vector<32x16xbf16>
    %cst_17 = arith.constant dense<0.000000e+00> : vector<32x48xf32>
    %40 = tpu.matmul %39, %38, %cst_17 {dimension_numbers = #tpu.dot_dimension_numbers<[1], [0], [0], [1], [0, 0, 1, 1], [], []>} : vector<32x16xbf16>, vector<16x48xbf16>, vector<32x48xf32> -> vector<32x48xf32>
    %c0_18 = arith.constant 0 : index
    %c0_19 = arith.constant 0 : index
    %41 = vector.load %arg7[%c0_18, %c0_19] : memref<1x48xf32, #tpu.memory_space<vmem>>, vector<1x48xf32>
    %42 = vector.broadcast %41 : vector<1x48xf32> to vector<32x48xf32>
    %43 = arith.addf %40, %42 : vector<32x48xf32>
    %44 = vector.shape_cast %43 : vector<32x48xf32> to vector<2x16x48xf32>
    %45 = vector.extract_strided_slice %44 {offsets = [0, 0, 0], sizes = [2, 16, 16], strides = [1, 1, 1]} : vector<2x16x48xf32> to vector<2x16x16xf32>
    %46 = vector.extract_strided_slice %44 {offsets = [0, 0, 16], sizes = [2, 16, 16], strides = [1, 1, 1]} : vector<2x16x48xf32> to vector<2x16x16xf32>
    %47 = vector.extract_strided_slice %44 {offsets = [0, 0, 32], sizes = [2, 16, 16], strides = [1, 1, 1]} : vector<2x16x48xf32> to vector<2x16x16xf32>
    %48 = arith.truncf %45 : vector<2x16x16xf32> to vector<2x16x16xbf16>
    %49 = arith.truncf %46 : vector<2x16x16xf32> to vector<2x16x16xbf16>
    "tpu.trace_start"() <{level = 10 : i32, message = "hmk,hnk->hmn"}> : () -> ()
    %cst_20 = arith.constant dense<0.000000e+00> : vector<2x16x16xf32>
    %50 = tpu.matmul %48, %49, %cst_20 {dimension_numbers = #tpu.dot_dimension_numbers<[2], [2], [1], [1], [0, 0, 0, 1, 1, 1], [0], [0]>} : vector<2x16x16xbf16>, vector<2x16x16xbf16>, vector<2x16x16xf32> -> vector<2x16x16xf32>
    "tpu.trace_stop"() : () -> ()
    %cst_21 = arith.constant 0.176776692 : f32
    %51 = vector.broadcast %cst_21 : f32 to vector<2x16x16xf32>
    %52 = arith.mulf %50, %51 : vector<2x16x16xf32>
    %53 = arith.extf %33 : vector<2x16x16xbf16> to vector<2x16x16xf32>
    %c0_22 = arith.constant 0 : index
    %c0_23 = arith.constant 0 : index
    %c0_24 = arith.constant 0 : index
    %c0_25 = arith.constant 0 : index
    %54 = vector.load %arg3[%c0_22, %c0_23, %c0_24, %c0_25] : memref<1x2x16x1xf32, #tpu.memory_space<vmem>>, vector<1x2x16x1xf32>
    %55 = vector.shape_cast %54 : vector<1x2x16x1xf32> to vector<2x16x1xf32>
    %56 = vector.broadcast %55 : vector<2x16x1xf32> to vector<2x16x16xf32>
    %57 = arith.cmpf oge, %53, %56 : vector<2x16x16xf32>
    %cst_26 = arith.constant -1.000000e+30 : f32
    %58 = vector.broadcast %cst_26 : f32 to vector<2x16x16xf32>
    %59 = arith.select %57, %52, %58 : vector<2x16x16xi1>, vector<2x16x16xf32>
    %cst_27 = arith.constant dense<0xFF800000> : vector<2x16xf32>
    %60 = vector.multi_reduction <maximumf>, %59, %cst_27 [2] : vector<2x16x16xf32> to vector<2x16xf32>
    %61 = vector.shape_cast %60 : vector<2x16xf32> to vector<2x16x1xf32>
    %62 = vector.broadcast %61 : vector<2x16x1xf32> to vector<2x16x16xf32>
    %63 = arith.subf %59, %62 : vector<2x16x16xf32>
    %64 = math.exp %63 : vector<2x16x16xf32>
    %cst_28 = arith.constant dense<0.000000e+00> : vector<2x16xf32>
    %65 = vector.multi_reduction <add>, %64, %cst_28 [2] : vector<2x16x16xf32> to vector<2x16xf32>
    %66 = vector.shape_cast %65 : vector<2x16xf32> to vector<2x16x1xf32>
    %67 = tpu.reciprocal %66 {approx = true} : vector<2x16x1xf32> -> vector<2x16x1xf32>
    %68 = vector.broadcast %67 : vector<2x16x1xf32> to vector<2x16x16xf32>
    %69 = arith.mulf %64, %68 : vector<2x16x16xf32>
    %70 = arith.truncf %69 : vector<2x16x16xf32> to vector<2x16x16xbf16>
    %71 = arith.truncf %47 : vector<2x16x16xf32> to vector<2x16x16xbf16>
    "tpu.trace_start"() <{level = 10 : i32, message = "hmk,hkn->hmn"}> : () -> ()
    %cst_29 = arith.constant dense<0.000000e+00> : vector<2x16x16xf32>
    %72 = tpu.matmul %70, %71, %cst_29 {dimension_numbers = #tpu.dot_dimension_numbers<[2], [1], [1], [2], [0, 0, 0, 1, 1, 2], [0], [0]>} : vector<2x16x16xbf16>, vector<2x16x16xbf16>, vector<2x16x16xf32> -> vector<2x16x16xf32>
    "tpu.trace_stop"() : () -> ()
    %cst_30 = arith.constant 5.000000e-01 : f32
    %73 = vector.broadcast %cst_30 : f32 to vector<2x16x16xf32>
    %74 = arith.mulf %73, %72 : vector<2x16x16xf32>
    %cst_31 = arith.constant 4.471500e-02 : f32
    %75 = vector.broadcast %cst_31 : f32 to vector<2x16x16xf32>
    %76 = arith.mulf %75, %72 : vector<2x16x16xf32>
    %77 = arith.mulf %76, %72 : vector<2x16x16xf32>
    %78 = arith.mulf %77, %72 : vector<2x16x16xf32>
    %79 = arith.addf %72, %78 : vector<2x16x16xf32>
    %cst_32 = arith.constant 0.797884583 : f32
    %80 = vector.broadcast %cst_32 : f32 to vector<2x16x16xf32>
    %81 = arith.mulf %80, %79 : vector<2x16x16xf32>
    %82 = math.tanh %81 : vector<2x16x16xf32>
    %cst_33 = arith.constant 1.000000e+00 : f32
    %83 = vector.broadcast %cst_33 : f32 to vector<2x16x16xf32>
    %84 = arith.addf %83, %82 : vector<2x16x16xf32>
    %85 = arith.mulf %74, %84 : vector<2x16x16xf32>
    %86 = vector.extract_strided_slice %85 {offsets = [0, 0, 0], sizes = [1, 16, 16], strides = [1, 1, 1]} : vector<2x16x16xf32> to vector<1x16x16xf32>
    %87 = vector.shape_cast %86 : vector<1x16x16xf32> to vector<16x16xf32>
    %88 = vector.extract_strided_slice %85 {offsets = [1, 0, 0], sizes = [1, 16, 16], strides = [1, 1, 1]} : vector<2x16x16xf32> to vector<1x16x16xf32>
    %89 = vector.shape_cast %88 : vector<1x16x16xf32> to vector<16x16xf32>
    %90 = tpu.concatenate %87, %89 in 1 : vector<16x16xf32>, vector<16x16xf32> -> vector<16x32xf32>
    %c0_34 = arith.constant 0 : index
    %c0_35 = arith.constant 0 : index
    %91 = vector.load %arg8[%c0_34, %c0_35] : memref<32x32xbf16, #tpu.memory_space<vmem>>, vector<32x32xbf16>
    %92 = arith.truncf %90 : vector<16x32xf32> to vector<16x32xbf16>
    %cst_36 = arith.constant dense<0.000000e+00> : vector<16x32xf32>
    %93 = tpu.matmul %92, %91, %cst_36 {dimension_numbers = #tpu.dot_dimension_numbers<[1], [0], [0], [1], [0, 0, 1, 1], [], []>} : vector<16x32xbf16>, vector<32x32xbf16>, vector<16x32xf32> -> vector<16x32xf32>
    %94 = arith.addf %26, %93 : vector<16x32xf32>
    %95 = arith.truncf %94 : vector<16x32xf32> to vector<16x32xbf16>
    %c0_37 = arith.constant 0 : index
    %c0_38 = arith.constant 0 : index
    %c0_39 = arith.constant 0 : index
    %96 = vector.load %arg9[%c0_37, %c0_38, %c0_39] : memref<1x16x32xbf16, #tpu.memory_space<vmem>>, vector<1x16x32xbf16>
    %97 = vector.shape_cast %96 : vector<1x16x32xbf16> to vector<16x32xbf16>
    %98 = vector.shape_cast %95 : vector<16x32xbf16> to vector<1x16x32xbf16>
    tpu.vector_store %arg9[%c0_37, %c0_38, %c0_39], %98 {strides = array<i32>} : memref<1x16x32xbf16, #tpu.memory_space<vmem>>, vector<1x16x32xbf16>,
    return
  }
  func.func @transform_0(%arg0: i32) -> (i32, i32, i32) {
    %c0_i32 = arith.constant 0 : i32
    %c0_i32_0 = arith.constant 0 : i32
    %c0_i32_1 = arith.constant 0 : i32
    return %arg0, %c0_i32, %c0_i32_0 : i32, i32, i32
  }
  func.func @transform_1(%arg0: i32) -> (i32, i32, i32, i32) {
    %c0_i32 = arith.constant 0 : i32
    %c0_i32_0 = arith.constant 0 : i32
    %c0_i32_1 = arith.constant 0 : i32
    %c0_i32_2 = arith.constant 0 : i32
    return %arg0, %c0_i32, %c0_i32_0, %c0_i32_1 : i32, i32, i32, i32
  }
  func.func @transform_2(%arg0: i32) -> (i32, i32, i32, i32) {
    %c0_i32 = arith.constant 0 : i32
    %c0_i32_0 = arith.constant 0 : i32
    %c0_i32_1 = arith.constant 0 : i32
    %c0_i32_2 = arith.constant 0 : i32
    return %arg0, %c0_i32, %c0_i32_0, %c0_i32_1 : i32, i32, i32, i32
  }
  func.func @transform_3(%arg0: i32) -> (i32, i32) {
    %c0_i32 = arith.constant 0 : i32
    %c0_i32_0 = arith.constant 0 : i32
    %c0_i32_1 = arith.constant 0 : i32
    return %c0_i32, %c0_i32_0 : i32, i32
  }
  func.func @transform_4(%arg0: i32) -> (i32, i32) {
    %c0_i32 = arith.constant 0 : i32
    %c0_i32_0 = arith.constant 0 : i32
    %c0_i32_1 = arith.constant 0 : i32
    return %c0_i32, %c0_i32_0 : i32, i32
  }
  func.func @transform_5(%arg0: i32) -> (i32, i32) {
    %c0_i32 = arith.constant 0 : i32
    %c0_i32_0 = arith.constant 0 : i32
    %c0_i32_1 = arith.constant 0 : i32
    return %c0_i32, %c0_i32_0 : i32, i32
  }
  func.func @transform_6(%arg0: i32) -> (i32, i32) {
    %c0_i32 = arith.constant 0 : i32
    %c0_i32_0 = arith.constant 0 : i32
    %c0_i32_1 = arith.constant 0 : i32
    return %c0_i32, %c0_i32_0 : i32, i32
  }
  func.func @transform_7(%arg0: i32) -> (i32, i32) {
    %c0_i32 = arith.constant 0 : i32
    %c0_i32_0 = arith.constant 0 : i32
    %c0_i32_1 = arith.constant 0 : i32
    return %c0_i32, %c0_i32_0 : i32, i32
  }
  func.func @transform_8(%arg0: i32) -> (i32, i32, i32) {
    %c0_i32 = arith.constant 0 : i32
    %c0_i32_0 = arith.constant 0 : i32
    %c0_i32_1 = arith.constant 0 : i32
    return %arg0, %c0_i32, %c0_i32_0 : i32, i32, i32
  }
}

module attributes {stable_mosaic.version = 11 : i64} {
  func.func @_pool_kernel(%arg0: i32, %arg1: memref<1x16x32xbf16, #tpu.memory_space<vmem>>, %arg2: memref<1x2x16x16xbf16, #tpu.memory_space<vmem>>, %arg3: memref<1x16x16xf32, #tpu.memory_space<vmem>>, %arg4: memref<16x32xbf16, #tpu.memory_space<vmem>>, %arg5: memref<16x1xf32, #tpu.memory_space<vmem>>, %arg6: memref<1x16x32xbf16, #tpu.memory_space<vmem>>, %arg7: memref<1x2x16x16xbf16, #tpu.memory_space<vmem>>) attributes {dimension_semantics = [#tpu.dimension_semantics<parallel>], iteration_bounds = array<i64: 2>, scalar_prefetch = 0 : i64, scratch_operands = 0 : i64, tpu.core_type = #tpu.core_type<tc>, window_params = [{transform_indices = @transform_0, window_bounds = array<i64: 1, 16, 32>}, {transform_indices = @transform_1, window_bounds = array<i64: 1, 2, 16, 16>}, {transform_indices = @transform_2, window_bounds = array<i64: 1, 16, 16>}, {pipeline_mode = #tpu.pipeline_mode<synchronous>, transform_indices = @transform_3, window_bounds = array<i64: 16, 32>}, {pipeline_mode = #tpu.pipeline_mode<synchronous>, transform_indices = @transform_4, window_bounds = array<i64: 16, 1>}, {transform_indices = @transform_5, window_bounds = array<i64: 1, 16, 32>}, {transform_indices = @transform_6, window_bounds = array<i64: 1, 2, 16, 16>}]} {
    %c0 = arith.constant 0 : index
    %c0_0 = arith.constant 0 : index
    %c0_1 = arith.constant 0 : index
    %0 = vector.load %arg1[%c0, %c0_0, %c0_1] : memref<1x16x32xbf16, #tpu.memory_space<vmem>>, vector<1x16x32xbf16>
    %1 = vector.shape_cast %0 : vector<1x16x32xbf16> to vector<16x32xbf16>
    %c0_2 = arith.constant 0 : index
    %c0_3 = arith.constant 0 : index
    %2 = vector.load %arg4[%c0_2, %c0_3] : memref<16x32xbf16, #tpu.memory_space<vmem>>, vector<16x32xbf16>
    %cst = arith.constant dense<0.000000e+00> : vector<16x16xf32>
    %3 = tpu.matmul %2, %1, %cst {dimension_numbers = #tpu.dot_dimension_numbers<[1], [1], [0], [0], [0, 0, 1, 0], [], []>} : vector<16x32xbf16>, vector<16x32xbf16>, vector<16x16xf32> -> vector<16x16xf32>
    %c0_4 = arith.constant 0 : index
    %c0_5 = arith.constant 0 : index
    %4 = vector.load %arg5[%c0_4, %c0_5] : memref<16x1xf32, #tpu.memory_space<vmem>>, vector<16x1xf32>
    %5 = vector.broadcast %4 : vector<16x1xf32> to vector<16x16xf32>
    %6 = arith.addf %3, %5 : vector<16x16xf32>
    %c0_6 = arith.constant 0 : index
    %c0_7 = arith.constant 0 : index
    %c0_8 = arith.constant 0 : index
    %7 = vector.load %arg3[%c0_6, %c0_7, %c0_8] : memref<1x16x16xf32, #tpu.memory_space<vmem>>, vector<1x16x16xf32>
    %8 = vector.shape_cast %7 : vector<1x16x16xf32> to vector<16x16xf32>
    %9 = arith.addf %6, %8 : vector<16x16xf32>
    %cst_9 = arith.constant dense<0xFF800000> : vector<16xf32>
    %10 = vector.multi_reduction <maximumf>, %9, %cst_9 [1] : vector<16x16xf32> to vector<16xf32>
    %11 = vector.shape_cast %10 : vector<16xf32> to vector<16x1xf32>
    %12 = vector.broadcast %11 : vector<16x1xf32> to vector<16x16xf32>
    %13 = arith.subf %9, %12 : vector<16x16xf32>
    %14 = math.exp %13 : vector<16x16xf32>
    %cst_10 = arith.constant dense<0.000000e+00> : vector<16xf32>
    %15 = vector.multi_reduction <add>, %14, %cst_10 [1] : vector<16x16xf32> to vector<16xf32>
    %16 = vector.shape_cast %15 : vector<16xf32> to vector<16x1xf32>
    %17 = tpu.reciprocal %16 {approx = true} : vector<16x1xf32> -> vector<16x1xf32>
    %18 = vector.broadcast %17 : vector<16x1xf32> to vector<16x16xf32>
    %19 = arith.mulf %14, %18 : vector<16x16xf32>
    %20 = arith.truncf %19 : vector<16x16xf32> to vector<16x16xbf16>
    %cst_11 = arith.constant dense<0.000000e+00> : vector<16x32xf32>
    %21 = tpu.matmul %20, %1, %cst_11 {dimension_numbers = #tpu.dot_dimension_numbers<[1], [0], [0], [1], [0, 0, 1, 1], [], []>} : vector<16x16xbf16>, vector<16x32xbf16>, vector<16x32xf32> -> vector<16x32xf32>
    %22 = arith.truncf %21 : vector<16x32xf32> to vector<16x32xbf16>
    %c0_12 = arith.constant 0 : index
    %c0_13 = arith.constant 0 : index
    %c0_14 = arith.constant 0 : index
    %23 = vector.load %arg6[%c0_12, %c0_13, %c0_14] : memref<1x16x32xbf16, #tpu.memory_space<vmem>>, vector<1x16x32xbf16>
    %24 = vector.shape_cast %23 : vector<1x16x32xbf16> to vector<16x32xbf16>
    %25 = vector.shape_cast %22 : vector<16x32xbf16> to vector<1x16x32xbf16>
    tpu.vector_store %arg6[%c0_12, %c0_13, %c0_14], %25 {strides = array<i32>} : memref<1x16x32xbf16, #tpu.memory_space<vmem>>, vector<1x16x32xbf16>,
    %26 = arith.truncf %19 : vector<16x16xf32> to vector<16x16xbf16>
    %c0_15 = arith.constant 0 : index
    %c0_16 = arith.constant 0 : index
    %c0_17 = arith.constant 0 : index
    %c0_18 = arith.constant 0 : index
    %27 = vector.load %arg2[%c0_15, %c0_16, %c0_17, %c0_18] : memref<1x2x16x16xbf16, #tpu.memory_space<vmem>>, vector<1x1x16x16xbf16>
    %28 = vector.shape_cast %27 : vector<1x1x16x16xbf16> to vector<16x16xbf16>
    %cst_19 = arith.constant dense<0.000000e+00> : vector<16x16xf32>
    %29 = tpu.matmul %26, %28, %cst_19 {dimension_numbers = #tpu.dot_dimension_numbers<[1], [0], [0], [1], [0, 0, 1, 1], [], []>} : vector<16x16xbf16>, vector<16x16xbf16>, vector<16x16xf32> -> vector<16x16xf32>
    %30 = arith.truncf %29 : vector<16x16xf32> to vector<16x16xbf16>
    %cst_20 = arith.constant dense<0.000000e+00> : vector<16x16xf32>
    %31 = tpu.matmul %30, %26, %cst_20 {dimension_numbers = #tpu.dot_dimension_numbers<[1], [1], [0], [0], [0, 0, 1, 0], [], []>} : vector<16x16xbf16>, vector<16x16xbf16>, vector<16x16xf32> -> vector<16x16xf32>
    %32 = arith.truncf %31 : vector<16x16xf32> to vector<16x16xbf16>
    %c0_21 = arith.constant 0 : index
    %c0_22 = arith.constant 0 : index
    %c0_23 = arith.constant 0 : index
    %c0_24 = arith.constant 0 : index
    %33 = vector.load %arg7[%c0_21, %c0_22, %c0_23, %c0_24] : memref<1x2x16x16xbf16, #tpu.memory_space<vmem>>, vector<1x1x16x16xbf16>
    %34 = vector.shape_cast %33 : vector<1x1x16x16xbf16> to vector<16x16xbf16>
    %35 = vector.shape_cast %32 : vector<16x16xbf16> to vector<1x1x16x16xbf16>
    tpu.vector_store %arg7[%c0_21, %c0_22, %c0_23, %c0_24], %35 {strides = array<i32>} : memref<1x2x16x16xbf16, #tpu.memory_space<vmem>>, vector<1x1x16x16xbf16>,
    %c0_25 = arith.constant 0 : index
    %c1 = arith.constant 1 : index
    %c0_26 = arith.constant 0 : index
    %c0_27 = arith.constant 0 : index
    %36 = vector.load %arg2[%c0_25, %c1, %c0_26, %c0_27] : memref<1x2x16x16xbf16, #tpu.memory_space<vmem>>, vector<1x1x16x16xbf16>
    %37 = vector.shape_cast %36 : vector<1x1x16x16xbf16> to vector<16x16xbf16>
    %cst_28 = arith.constant dense<0.000000e+00> : vector<16x16xf32>
    %38 = tpu.matmul %26, %37, %cst_28 {dimension_numbers = #tpu.dot_dimension_numbers<[1], [0], [0], [1], [0, 0, 1, 1], [], []>} : vector<16x16xbf16>, vector<16x16xbf16>, vector<16x16xf32> -> vector<16x16xf32>
    %39 = arith.truncf %38 : vector<16x16xf32> to vector<16x16xbf16>
    %cst_29 = arith.constant dense<0.000000e+00> : vector<16x16xf32>
    %40 = tpu.matmul %39, %26, %cst_29 {dimension_numbers = #tpu.dot_dimension_numbers<[1], [1], [0], [0], [0, 0, 1, 0], [], []>} : vector<16x16xbf16>, vector<16x16xbf16>, vector<16x16xf32> -> vector<16x16xf32>
    %41 = arith.truncf %40 : vector<16x16xf32> to vector<16x16xbf16>
    %c0_30 = arith.constant 0 : index
    %c1_31 = arith.constant 1 : index
    %c0_32 = arith.constant 0 : index
    %c0_33 = arith.constant 0 : index
    %42 = vector.load %arg7[%c0_30, %c1_31, %c0_32, %c0_33] : memref<1x2x16x16xbf16, #tpu.memory_space<vmem>>, vector<1x1x16x16xbf16>
    %43 = vector.shape_cast %42 : vector<1x1x16x16xbf16> to vector<16x16xbf16>
    %44 = vector.shape_cast %41 : vector<16x16xbf16> to vector<1x1x16x16xbf16>
    tpu.vector_store %arg7[%c0_30, %c1_31, %c0_32, %c0_33], %44 {strides = array<i32>} : memref<1x2x16x16xbf16, #tpu.memory_space<vmem>>, vector<1x1x16x16xbf16>,
    return
  }
  func.func @transform_0(%arg0: i32) -> (i32, i32, i32) {
    %c0_i32 = arith.constant 0 : i32
    %c0_i32_0 = arith.constant 0 : i32
    %c0_i32_1 = arith.constant 0 : i32
    return %arg0, %c0_i32, %c0_i32_0 : i32, i32, i32
  }
  func.func @transform_1(%arg0: i32) -> (i32, i32, i32, i32) {
    %c0_i32 = arith.constant 0 : i32
    %c0_i32_0 = arith.constant 0 : i32
    %c0_i32_1 = arith.constant 0 : i32
    %c0_i32_2 = arith.constant 0 : i32
    return %arg0, %c0_i32, %c0_i32_0, %c0_i32_1 : i32, i32, i32, i32
  }
  func.func @transform_2(%arg0: i32) -> (i32, i32, i32) {
    %c0_i32 = arith.constant 0 : i32
    %c0_i32_0 = arith.constant 0 : i32
    %c0_i32_1 = arith.constant 0 : i32
    return %arg0, %c0_i32, %c0_i32_0 : i32, i32, i32
  }
  func.func @transform_3(%arg0: i32) -> (i32, i32) {
    %c0_i32 = arith.constant 0 : i32
    %c0_i32_0 = arith.constant 0 : i32
    %c0_i32_1 = arith.constant 0 : i32
    return %c0_i32, %c0_i32_0 : i32, i32
  }
  func.func @transform_4(%arg0: i32) -> (i32, i32) {
    %c0_i32 = arith.constant 0 : i32
    %c0_i32_0 = arith.constant 0 : i32
    %c0_i32_1 = arith.constant 0 : i32
    return %c0_i32, %c0_i32_0 : i32, i32
  }
  func.func @transform_5(%arg0: i32) -> (i32, i32, i32) {
    %c0_i32 = arith.constant 0 : i32
    %c0_i32_0 = arith.constant 0 : i32
    %c0_i32_1 = arith.constant 0 : i32
    return %arg0, %c0_i32, %c0_i32_0 : i32, i32, i32
  }
  func.func @transform_6(%arg0: i32) -> (i32, i32, i32, i32) {
    %c0_i32 = arith.constant 0 : i32
    %c0_i32_0 = arith.constant 0 : i32
    %c0_i32_1 = arith.constant 0 : i32
    %c0_i32_2 = arith.constant 0 : i32
    return %arg0, %c0_i32, %c0_i32_0, %c0_i32_1 : i32, i32, i32, i32
  }
}

module attributes {stable_mosaic.version = 11 : i64} {
  func.func @_attn_global_kernel(%arg0: i32, %arg1: memref<1x16x32xbf16, #tpu.memory_space<vmem>>, %arg2: memref<1x2x16x16xbf16, #tpu.memory_space<vmem>>, %arg3: memref<1x32xf32, #tpu.memory_space<vmem>>, %arg4: memref<1x32xf32, #tpu.memory_space<vmem>>, %arg5: memref<16x32xbf16, #tpu.memory_space<vmem>>, %arg6: memref<1x32xf32, #tpu.memory_space<vmem>>, %arg7: memref<16x16xbf16, #tpu.memory_space<vmem>>, %arg8: memref<1x16xf32, #tpu.memory_space<vmem>>, %arg9: memref<2x2xf32, #tpu.memory_space<smem>>, %arg10: memref<1x16x32xbf16, #tpu.memory_space<vmem>>) attributes {dimension_semantics = [#tpu.dimension_semantics<parallel>], iteration_bounds = array<i64: 2>, scalar_prefetch = 0 : i64, scratch_operands = 0 : i64, tpu.core_type = #tpu.core_type<tc>, window_params = [{transform_indices = @transform_0, window_bounds = array<i64: 1, 16, 32>}, {transform_indices = @transform_1, window_bounds = array<i64: 1, 2, 16, 16>}, {pipeline_mode = #tpu.pipeline_mode<synchronous>, transform_indices = @transform_2, window_bounds = array<i64: 1, 32>}, {pipeline_mode = #tpu.pipeline_mode<synchronous>, transform_indices = @transform_3, window_bounds = array<i64: 1, 32>}, {pipeline_mode = #tpu.pipeline_mode<synchronous>, transform_indices = @transform_4, window_bounds = array<i64: 16, 32>}, {pipeline_mode = #tpu.pipeline_mode<synchronous>, transform_indices = @transform_5, window_bounds = array<i64: 1, 32>}, {pipeline_mode = #tpu.pipeline_mode<synchronous>, transform_indices = @transform_6, window_bounds = array<i64: 16, 16>}, {pipeline_mode = #tpu.pipeline_mode<synchronous>, transform_indices = @transform_7, window_bounds = array<i64: 1, 16>}, {transform_indices = @transform_8, window_bounds = array<i64: 2, 2>}, {transform_indices = @transform_9, window_bounds = array<i64: 1, 16, 32>}]} {
    %c0 = arith.constant 0 : index
    %c0_0 = arith.constant 0 : index
    %c0_1 = arith.constant 0 : index
    %0 = vector.load %arg1[%c0, %c0_0, %c0_1] : memref<1x16x32xbf16, #tpu.memory_space<vmem>>, vector<1x16x32xbf16>
    %1 = vector.shape_cast %0 : vector<1x16x32xbf16> to vector<16x32xbf16>
    %2 = arith.extf %1 : vector<16x32xbf16> to vector<16x32xf32>
    %c0_2 = arith.constant 0 : index
    %c0_3 = arith.constant 0 : index
    %3 = vector.load %arg3[%c0_2, %c0_3] : memref<1x32xf32, #tpu.memory_space<vmem>>, vector<1x32xf32>
    %c0_4 = arith.constant 0 : index
    %c0_5 = arith.constant 0 : index
    %4 = vector.load %arg4[%c0_4, %c0_5] : memref<1x32xf32, #tpu.memory_space<vmem>>, vector<1x32xf32>
    %cst = arith.constant dense<0.000000e+00> : vector<16xf32>
    %5 = vector.multi_reduction <add>, %2, %cst [1] : vector<16x32xf32> to vector<16xf32>
    %6 = vector.shape_cast %5 : vector<16xf32> to vector<16x1xf32>
    %cst_6 = arith.constant 3.200000e+01 : f32
    %7 = vector.broadcast %cst_6 : f32 to vector<16x1xf32>
    %8 = arith.divf %6, %7 : vector<16x1xf32>
    %9 = vector.broadcast %8 : vector<16x1xf32> to vector<16x32xf32>
    %10 = arith.subf %2, %9 : vector<16x32xf32>
    %11 = arith.mulf %10, %10 : vector<16x32xf32>
    %cst_7 = arith.constant dense<0.000000e+00> : vector<16xf32>
    %12 = vector.multi_reduction <add>, %11, %cst_7 [1] : vector<16x32xf32> to vector<16xf32>
    %13 = vector.shape_cast %12 : vector<16xf32> to vector<16x1xf32>
    %cst_8 = arith.constant 3.200000e+01 : f32
    %14 = vector.broadcast %cst_8 : f32 to vector<16x1xf32>
    %15 = arith.divf %13, %14 : vector<16x1xf32>
    %16 = vector.broadcast %8 : vector<16x1xf32> to vector<16x32xf32>
    %17 = arith.subf %2, %16 : vector<16x32xf32>
    %cst_9 = arith.constant 9.99999974E-6 : f32
    %18 = vector.broadcast %cst_9 : f32 to vector<16x1xf32>
    %19 = arith.addf %15, %18 : vector<16x1xf32>
    %20 = math.rsqrt %19 : vector<16x1xf32>
    %21 = vector.broadcast %20 : vector<16x1xf32> to vector<16x32xf32>
    %22 = arith.mulf %17, %21 : vector<16x32xf32>
    %23 = vector.broadcast %3 : vector<1x32xf32> to vector<16x32xf32>
    %24 = arith.mulf %22, %23 : vector<16x32xf32>
    %25 = vector.broadcast %4 : vector<1x32xf32> to vector<16x32xf32>
    %26 = arith.addf %24, %25 : vector<16x32xf32>
    %27 = vector.extract_strided_slice %26 {offsets = [0, 0], sizes = [16, 16], strides = [1, 1]} : vector<16x32xf32> to vector<16x16xf32>
    %28 = vector.extract_strided_slice %26 {offsets = [0, 16], sizes = [16, 16], strides = [1, 1]} : vector<16x32xf32> to vector<16x16xf32>
    %29 = vector.shape_cast %27 : vector<16x16xf32> to vector<1x16x16xf32>
    %30 = vector.shape_cast %28 : vector<16x16xf32> to vector<1x16x16xf32>
    %31 = tpu.concatenate %29, %30 in 0 : vector<1x16x16xf32>, vector<1x16x16xf32> -> vector<2x16x16xf32>
    %c0_10 = arith.constant 0 : index
    %c0_11 = arith.constant 0 : index
    %c0_12 = arith.constant 0 : index
    %c0_13 = arith.constant 0 : index
    %32 = vector.load %arg2[%c0_10, %c0_11, %c0_12, %c0_13] : memref<1x2x16x16xbf16, #tpu.memory_space<vmem>>, vector<1x2x16x16xbf16>
    %33 = vector.shape_cast %32 : vector<1x2x16x16xbf16> to vector<2x16x16xbf16>
    %34 = arith.truncf %31 : vector<2x16x16xf32> to vector<2x16x16xbf16>
    "tpu.trace_start"() <{level = 10 : i32, message = "hmk,hkn->hmn"}> : () -> ()
    %cst_14 = arith.constant dense<0.000000e+00> : vector<2x16x16xf32>
    %35 = tpu.matmul %33, %34, %cst_14 {dimension_numbers = #tpu.dot_dimension_numbers<[2], [1], [1], [2], [0, 0, 0, 1, 1, 2], [0], [0]>} : vector<2x16x16xbf16>, vector<2x16x16xbf16>, vector<2x16x16xf32> -> vector<2x16x16xf32>
    "tpu.trace_stop"() : () -> ()
    %36 = arith.addf %35, %31 : vector<2x16x16xf32>
    %37 = vector.shape_cast %36 : vector<2x16x16xf32> to vector<32x16xf32>
    %c0_15 = arith.constant 0 : index
    %c0_16 = arith.constant 0 : index
    %38 = vector.load %arg5[%c0_15, %c0_16] : memref<16x32xbf16, #tpu.memory_space<vmem>>, vector<16x32xbf16>
    %39 = arith.truncf %37 : vector<32x16xf32> to vector<32x16xbf16>
    %cst_17 = arith.constant dense<0.000000e+00> : vector<32x32xf32>
    %40 = tpu.matmul %39, %38, %cst_17 {dimension_numbers = #tpu.dot_dimension_numbers<[1], [0], [0], [1], [0, 0, 1, 1], [], []>} : vector<32x16xbf16>, vector<16x32xbf16>, vector<32x32xf32> -> vector<32x32xf32>
    %c0_18 = arith.constant 0 : index
    %c0_19 = arith.constant 0 : index
    %41 = vector.load %arg6[%c0_18, %c0_19] : memref<1x32xf32, #tpu.memory_space<vmem>>, vector<1x32xf32>
    %42 = vector.broadcast %41 : vector<1x32xf32> to vector<32x32xf32>
    %43 = arith.addf %40, %42 : vector<32x32xf32>
    %44 = vector.shape_cast %43 : vector<32x32xf32> to vector<2x16x32xf32>
    %45 = vector.extract_strided_slice %44 {offsets = [0, 0, 0], sizes = [2, 16, 16], strides = [1, 1, 1]} : vector<2x16x32xf32> to vector<2x16x16xf32>
    %46 = vector.extract_strided_slice %44 {offsets = [0, 0, 16], sizes = [2, 16, 16], strides = [1, 1, 1]} : vector<2x16x32xf32> to vector<2x16x16xf32>
    %47 = arith.truncf %45 : vector<2x16x16xf32> to vector<2x16x16xbf16>
    %48 = arith.truncf %46 : vector<2x16x16xf32> to vector<2x16x16xbf16>
    "tpu.trace_start"() <{level = 10 : i32, message = "hmk,hnk->hmn"}> : () -> ()
    %cst_20 = arith.constant dense<0.000000e+00> : vector<2x16x16xf32>
    %49 = tpu.matmul %47, %48, %cst_20 {dimension_numbers = #tpu.dot_dimension_numbers<[2], [2], [1], [1], [0, 0, 0, 1, 1, 1], [0], [0]>} : vector<2x16x16xbf16>, vector<2x16x16xbf16>, vector<2x16x16xf32> -> vector<2x16x16xf32>
    "tpu.trace_stop"() : () -> ()
    %cst_21 = arith.constant 0.176776692 : f32
    %50 = vector.broadcast %cst_21 : f32 to vector<2x16x16xf32>
    %51 = arith.mulf %49, %50 : vector<2x16x16xf32>
    %c0_22 = arith.constant 0 : index
    %c0_23 = arith.constant 0 : index
    %52 = memref.load %arg9[%c0_22, %c0_23] : memref<2x2xf32, #tpu.memory_space<smem>>
    %53 = vector.extract_strided_slice %51 {offsets = [0, 0, 0], sizes = [1, 16, 16], strides = [1, 1, 1]} : vector<2x16x16xf32> to vector<1x16x16xf32>
    %54 = vector.shape_cast %53 : vector<1x16x16xf32> to vector<16x16xf32>
    %55 = vector.broadcast %52 : f32 to vector<16x16xf32>
    %56 = arith.mulf %55, %54 : vector<16x16xf32>
    %c0_24 = arith.constant 0 : index
    %c1 = arith.constant 1 : index
    %57 = memref.load %arg9[%c0_24, %c1] : memref<2x2xf32, #tpu.memory_space<smem>>
    %58 = vector.extract_strided_slice %51 {offsets = [1, 0, 0], sizes = [1, 16, 16], strides = [1, 1, 1]} : vector<2x16x16xf32> to vector<1x16x16xf32>
    %59 = vector.shape_cast %58 : vector<1x16x16xf32> to vector<16x16xf32>
    %60 = vector.broadcast %57 : f32 to vector<16x16xf32>
    %61 = arith.mulf %60, %59 : vector<16x16xf32>
    %62 = arith.addf %56, %61 : vector<16x16xf32>
    %c1_25 = arith.constant 1 : index
    %c0_26 = arith.constant 0 : index
    %63 = memref.load %arg9[%c1_25, %c0_26] : memref<2x2xf32, #tpu.memory_space<smem>>
    %64 = vector.extract_strided_slice %51 {offsets = [0, 0, 0], sizes = [1, 16, 16], strides = [1, 1, 1]} : vector<2x16x16xf32> to vector<1x16x16xf32>
    %65 = vector.shape_cast %64 : vector<1x16x16xf32> to vector<16x16xf32>
    %66 = vector.broadcast %63 : f32 to vector<16x16xf32>
    %67 = arith.mulf %66, %65 : vector<16x16xf32>
    %c1_27 = arith.constant 1 : index
    %c1_28 = arith.constant 1 : index
    %68 = memref.load %arg9[%c1_27, %c1_28] : memref<2x2xf32, #tpu.memory_space<smem>>
    %69 = vector.extract_strided_slice %51 {offsets = [1, 0, 0], sizes = [1, 16, 16], strides = [1, 1, 1]} : vector<2x16x16xf32> to vector<1x16x16xf32>
    %70 = vector.shape_cast %69 : vector<1x16x16xf32> to vector<16x16xf32>
    %71 = vector.broadcast %68 : f32 to vector<16x16xf32>
    %72 = arith.mulf %71, %70 : vector<16x16xf32>
    %73 = arith.addf %67, %72 : vector<16x16xf32>
    %74 = vector.shape_cast %62 : vector<16x16xf32> to vector<1x16x16xf32>
    %75 = vector.shape_cast %73 : vector<16x16xf32> to vector<1x16x16xf32>
    %76 = tpu.concatenate %74, %75 in 0 : vector<1x16x16xf32>, vector<1x16x16xf32> -> vector<2x16x16xf32>
    %cst_29 = arith.constant dense<0xFF800000> : vector<2x16xf32>
    %77 = vector.multi_reduction <maximumf>, %76, %cst_29 [2] : vector<2x16x16xf32> to vector<2x16xf32>
    %78 = vector.shape_cast %77 : vector<2x16xf32> to vector<2x16x1xf32>
    %79 = vector.broadcast %78 : vector<2x16x1xf32> to vector<2x16x16xf32>
    %80 = arith.subf %76, %79 : vector<2x16x16xf32>
    %81 = math.exp %80 : vector<2x16x16xf32>
    %cst_30 = arith.constant dense<0.000000e+00> : vector<2x16xf32>
    %82 = vector.multi_reduction <add>, %81, %cst_30 [2] : vector<2x16x16xf32> to vector<2x16xf32>
    %83 = vector.shape_cast %82 : vector<2x16xf32> to vector<2x16x1xf32>
    %84 = tpu.reciprocal %83 {approx = true} : vector<2x16x1xf32> -> vector<2x16x1xf32>
    %85 = vector.broadcast %84 : vector<2x16x1xf32> to vector<2x16x16xf32>
    %86 = arith.mulf %81, %85 : vector<2x16x16xf32>
    %87 = arith.truncf %86 : vector<2x16x16xf32> to vector<2x16x16xbf16>
    %88 = arith.truncf %31 : vector<2x16x16xf32> to vector<2x16x16xbf16>
    "tpu.trace_start"() <{level = 10 : i32, message = "hmk,hkn->hmn"}> : () -> ()
    %cst_31 = arith.constant dense<0.000000e+00> : vector<2x16x16xf32>
    %89 = tpu.matmul %87, %88, %cst_31 {dimension_numbers = #tpu.dot_dimension_numbers<[2], [1], [1], [2], [0, 0, 0, 1, 1, 2], [0], [0]>} : vector<2x16x16xbf16>, vector<2x16x16xbf16>, vector<2x16x16xf32> -> vector<2x16x16xf32>
    "tpu.trace_stop"() : () -> ()
    %90 = arith.addf %89, %31 : vector<2x16x16xf32>
    %91 = vector.shape_cast %90 : vector<2x16x16xf32> to vector<32x16xf32>
    %c0_32 = arith.constant 0 : index
    %c0_33 = arith.constant 0 : index
    %92 = vector.load %arg7[%c0_32, %c0_33] : memref<16x16xbf16, #tpu.memory_space<vmem>>, vector<16x16xbf16>
    %93 = arith.truncf %91 : vector<32x16xf32> to vector<32x16xbf16>
    %cst_34 = arith.constant dense<0.000000e+00> : vector<32x16xf32>
    %94 = tpu.matmul %93, %92, %cst_34 {dimension_numbers = #tpu.dot_dimension_numbers<[1], [0], [0], [1], [0, 0, 1, 1], [], []>} : vector<32x16xbf16>, vector<16x16xbf16>, vector<32x16xf32> -> vector<32x16xf32>
    %c0_35 = arith.constant 0 : index
    %c0_36 = arith.constant 0 : index
    %95 = vector.load %arg8[%c0_35, %c0_36] : memref<1x16xf32, #tpu.memory_space<vmem>>, vector<1x16xf32>
    %96 = vector.broadcast %95 : vector<1x16xf32> to vector<32x16xf32>
    %97 = arith.addf %94, %96 : vector<32x16xf32>
    %98 = vector.shape_cast %97 : vector<32x16xf32> to vector<2x16x16xf32>
    %cst_37 = arith.constant 5.000000e-01 : f32
    %99 = vector.broadcast %cst_37 : f32 to vector<2x16x16xf32>
    %100 = arith.mulf %99, %98 : vector<2x16x16xf32>
    %cst_38 = arith.constant 4.471500e-02 : f32
    %101 = vector.broadcast %cst_38 : f32 to vector<2x16x16xf32>
    %102 = arith.mulf %101, %98 : vector<2x16x16xf32>
    %103 = arith.mulf %102, %98 : vector<2x16x16xf32>
    %104 = arith.mulf %103, %98 : vector<2x16x16xf32>
    %105 = arith.addf %98, %104 : vector<2x16x16xf32>
    %cst_39 = arith.constant 0.797884583 : f32
    %106 = vector.broadcast %cst_39 : f32 to vector<2x16x16xf32>
    %107 = arith.mulf %106, %105 : vector<2x16x16xf32>
    %108 = math.tanh %107 : vector<2x16x16xf32>
    %cst_40 = arith.constant 1.000000e+00 : f32
    %109 = vector.broadcast %cst_40 : f32 to vector<2x16x16xf32>
    %110 = arith.addf %109, %108 : vector<2x16x16xf32>
    %111 = arith.mulf %100, %110 : vector<2x16x16xf32>
    %112 = arith.addf %111, %31 : vector<2x16x16xf32>
    %113 = vector.extract_strided_slice %112 {offsets = [0, 0, 0], sizes = [1, 16, 16], strides = [1, 1, 1]} : vector<2x16x16xf32> to vector<1x16x16xf32>
    %114 = vector.shape_cast %113 : vector<1x16x16xf32> to vector<16x16xf32>
    %115 = vector.extract_strided_slice %112 {offsets = [1, 0, 0], sizes = [1, 16, 16], strides = [1, 1, 1]} : vector<2x16x16xf32> to vector<1x16x16xf32>
    %116 = vector.shape_cast %115 : vector<1x16x16xf32> to vector<16x16xf32>
    %117 = tpu.concatenate %114, %116 in 1 : vector<16x16xf32>, vector<16x16xf32> -> vector<16x32xf32>
    %118 = arith.truncf %117 : vector<16x32xf32> to vector<16x32xbf16>
    %c0_41 = arith.constant 0 : index
    %c0_42 = arith.constant 0 : index
    %c0_43 = arith.constant 0 : index
    %119 = vector.load %arg10[%c0_41, %c0_42, %c0_43] : memref<1x16x32xbf16, #tpu.memory_space<vmem>>, vector<1x16x32xbf16>
    %120 = vector.shape_cast %119 : vector<1x16x32xbf16> to vector<16x32xbf16>
    %121 = vector.shape_cast %118 : vector<16x32xbf16> to vector<1x16x32xbf16>
    tpu.vector_store %arg10[%c0_41, %c0_42, %c0_43], %121 {strides = array<i32>} : memref<1x16x32xbf16, #tpu.memory_space<vmem>>, vector<1x16x32xbf16>,
    return
  }
  func.func @transform_0(%arg0: i32) -> (i32, i32, i32) {
    %c0_i32 = arith.constant 0 : i32
    %c0_i32_0 = arith.constant 0 : i32
    %c0_i32_1 = arith.constant 0 : i32
    return %arg0, %c0_i32, %c0_i32_0 : i32, i32, i32
  }
  func.func @transform_1(%arg0: i32) -> (i32, i32, i32, i32) {
    %c0_i32 = arith.constant 0 : i32
    %c0_i32_0 = arith.constant 0 : i32
    %c0_i32_1 = arith.constant 0 : i32
    %c0_i32_2 = arith.constant 0 : i32
    return %arg0, %c0_i32, %c0_i32_0, %c0_i32_1 : i32, i32, i32, i32
  }
  func.func @transform_2(%arg0: i32) -> (i32, i32) {
    %c0_i32 = arith.constant 0 : i32
    %c0_i32_0 = arith.constant 0 : i32
    %c0_i32_1 = arith.constant 0 : i32
    return %c0_i32, %c0_i32_0 : i32, i32
  }
  func.func @transform_3(%arg0: i32) -> (i32, i32) {
    %c0_i32 = arith.constant 0 : i32
    %c0_i32_0 = arith.constant 0 : i32
    %c0_i32_1 = arith.constant 0 : i32
    return %c0_i32, %c0_i32_0 : i32, i32
  }
  func.func @transform_4(%arg0: i32) -> (i32, i32) {
    %c0_i32 = arith.constant 0 : i32
    %c0_i32_0 = arith.constant 0 : i32
    %c0_i32_1 = arith.constant 0 : i32
    return %c0_i32, %c0_i32_0 : i32, i32
  }
  func.func @transform_5(%arg0: i32) -> (i32, i32) {
    %c0_i32 = arith.constant 0 : i32
    %c0_i32_0 = arith.constant 0 : i32
    %c0_i32_1 = arith.constant 0 : i32
    return %c0_i32, %c0_i32_0 : i32, i32
  }
  func.func @transform_6(%arg0: i32) -> (i32, i32) {
    %c0_i32 = arith.constant 0 : i32
    %c0_i32_0 = arith.constant 0 : i32
    %c0_i32_1 = arith.constant 0 : i32
    return %c0_i32, %c0_i32_0 : i32, i32
  }
  func.func @transform_7(%arg0: i32) -> (i32, i32) {
    %c0_i32 = arith.constant 0 : i32
    %c0_i32_0 = arith.constant 0 : i32
    %c0_i32_1 = arith.constant 0 : i32
    return %c0_i32, %c0_i32_0 : i32, i32
  }
  func.func @transform_8(%arg0: i32) -> (i32, i32) {
    %c0_i32 = arith.constant 0 : i32
    %c0_i32_0 = arith.constant 0 : i32
    %c0_i32_1 = arith.constant 0 : i32
    return %c0_i32, %c0_i32_0 : i32, i32
  }
  func.func @transform_9(%arg0: i32) -> (i32, i32, i32) {
    %c0_i32 = arith.constant 0 : i32
    %c0_i32_0 = arith.constant 0 : i32
    %c0_i32_1 = arith.constant 0 : i32
    return %arg0, %c0_i32, %c0_i32_0 : i32, i32, i32
  }
}

module attributes {stable_mosaic.version = 11 : i64} {
  func.func @_pool_kernel(%arg0: i32, %arg1: memref<1x16x32xbf16, #tpu.memory_space<vmem>>, %arg2: memref<1x2x16x16xbf16, #tpu.memory_space<vmem>>, %arg3: memref<1x4x16xf32, #tpu.memory_space<vmem>>, %arg4: memref<4x32xbf16, #tpu.memory_space<vmem>>, %arg5: memref<4x1xf32, #tpu.memory_space<vmem>>, %arg6: memref<1x4x32xbf16, #tpu.memory_space<vmem>>, %arg7: memref<1x2x4x4xbf16, #tpu.memory_space<vmem>>) attributes {dimension_semantics = [#tpu.dimension_semantics<parallel>], iteration_bounds = array<i64: 2>, scalar_prefetch = 0 : i64, scratch_operands = 0 : i64, tpu.core_type = #tpu.core_type<tc>, window_params = [{transform_indices = @transform_0, window_bounds = array<i64: 1, 16, 32>}, {transform_indices = @transform_1, window_bounds = array<i64: 1, 2, 16, 16>}, {transform_indices = @transform_2, window_bounds = array<i64: 1, 4, 16>}, {pipeline_mode = #tpu.pipeline_mode<synchronous>, transform_indices = @transform_3, window_bounds = array<i64: 4, 32>}, {pipeline_mode = #tpu.pipeline_mode<synchronous>, transform_indices = @transform_4, window_bounds = array<i64: 4, 1>}, {transform_indices = @transform_5, window_bounds = array<i64: 1, 4, 32>}, {transform_indices = @transform_6, window_bounds = array<i64: 1, 2, 4, 4>}]} {
    %c0 = arith.constant 0 : index
    %c0_0 = arith.constant 0 : index
    %c0_1 = arith.constant 0 : index
    %0 = vector.load %arg1[%c0, %c0_0, %c0_1] : memref<1x16x32xbf16, #tpu.memory_space<vmem>>, vector<1x16x32xbf16>
    %1 = vector.shape_cast %0 : vector<1x16x32xbf16> to vector<16x32xbf16>
    %c0_2 = arith.constant 0 : index
    %c0_3 = arith.constant 0 : index
    %2 = vector.load %arg4[%c0_2, %c0_3] : memref<4x32xbf16, #tpu.memory_space<vmem>>, vector<4x32xbf16>
    %cst = arith.constant dense<0.000000e+00> : vector<4x16xf32>
    %3 = tpu.matmul %2, %1, %cst {dimension_numbers = #tpu.dot_dimension_numbers<[1], [1], [0], [0], [0, 0, 1, 0], [], []>} : vector<4x32xbf16>, vector<16x32xbf16>, vector<4x16xf32> -> vector<4x16xf32>
    %c0_4 = arith.constant 0 : index
    %c0_5 = arith.constant 0 : index
    %4 = vector.load %arg5[%c0_4, %c0_5] : memref<4x1xf32, #tpu.memory_space<vmem>>, vector<4x1xf32>
    %5 = vector.broadcast %4 : vector<4x1xf32> to vector<4x16xf32>
    %6 = arith.addf %3, %5 : vector<4x16xf32>
    %c0_6 = arith.constant 0 : index
    %c0_7 = arith.constant 0 : index
    %c0_8 = arith.constant 0 : index
    %7 = vector.load %arg3[%c0_6, %c0_7, %c0_8] : memref<1x4x16xf32, #tpu.memory_space<vmem>>, vector<1x4x16xf32>
    %8 = vector.shape_cast %7 : vector<1x4x16xf32> to vector<4x16xf32>
    %9 = arith.addf %6, %8 : vector<4x16xf32>
    %cst_9 = arith.constant dense<0xFF800000> : vector<4xf32>
    %10 = vector.multi_reduction <maximumf>, %9, %cst_9 [1] : vector<4x16xf32> to vector<4xf32>
    %11 = vector.shape_cast %10 : vector<4xf32> to vector<4x1xf32>
    %12 = vector.broadcast %11 : vector<4x1xf32> to vector<4x16xf32>
    %13 = arith.subf %9, %12 : vector<4x16xf32>
    %14 = math.exp %13 : vector<4x16xf32>
    %cst_10 = arith.constant dense<0.000000e+00> : vector<4xf32>
    %15 = vector.multi_reduction <add>, %14, %cst_10 [1] : vector<4x16xf32> to vector<4xf32>
    %16 = vector.shape_cast %15 : vector<4xf32> to vector<4x1xf32>
    %17 = tpu.reciprocal %16 {approx = true} : vector<4x1xf32> -> vector<4x1xf32>
    %18 = vector.broadcast %17 : vector<4x1xf32> to vector<4x16xf32>
    %19 = arith.mulf %14, %18 : vector<4x16xf32>
    %20 = arith.truncf %19 : vector<4x16xf32> to vector<4x16xbf16>
    %cst_11 = arith.constant dense<0.000000e+00> : vector<4x32xf32>
    %21 = tpu.matmul %20, %1, %cst_11 {dimension_numbers = #tpu.dot_dimension_numbers<[1], [0], [0], [1], [0, 0, 1, 1], [], []>} : vector<4x16xbf16>, vector<16x32xbf16>, vector<4x32xf32> -> vector<4x32xf32>
    %22 = arith.truncf %21 : vector<4x32xf32> to vector<4x32xbf16>
    %c0_12 = arith.constant 0 : index
    %c0_13 = arith.constant 0 : index
    %c0_14 = arith.constant 0 : index
    %23 = vector.load %arg6[%c0_12, %c0_13, %c0_14] : memref<1x4x32xbf16, #tpu.memory_space<vmem>>, vector<1x4x32xbf16>
    %24 = vector.shape_cast %23 : vector<1x4x32xbf16> to vector<4x32xbf16>
    %25 = vector.shape_cast %22 : vector<4x32xbf16> to vector<1x4x32xbf16>
    tpu.vector_store %arg6[%c0_12, %c0_13, %c0_14], %25 {strides = array<i32>} : memref<1x4x32xbf16, #tpu.memory_space<vmem>>, vector<1x4x32xbf16>,
    %26 = arith.truncf %19 : vector<4x16xf32> to vector<4x16xbf16>
    %c0_15 = arith.constant 0 : index
    %c0_16 = arith.constant 0 : index
    %c0_17 = arith.constant 0 : index
    %c0_18 = arith.constant 0 : index
    %27 = vector.load %arg2[%c0_15, %c0_16, %c0_17, %c0_18] : memref<1x2x16x16xbf16, #tpu.memory_space<vmem>>, vector<1x1x16x16xbf16>
    %28 = vector.shape_cast %27 : vector<1x1x16x16xbf16> to vector<16x16xbf16>
    %cst_19 = arith.constant dense<0.000000e+00> : vector<4x16xf32>
    %29 = tpu.matmul %26, %28, %cst_19 {dimension_numbers = #tpu.dot_dimension_numbers<[1], [0], [0], [1], [0, 0, 1, 1], [], []>} : vector<4x16xbf16>, vector<16x16xbf16>, vector<4x16xf32> -> vector<4x16xf32>
    %30 = arith.truncf %29 : vector<4x16xf32> to vector<4x16xbf16>
    %cst_20 = arith.constant dense<0.000000e+00> : vector<4x4xf32>
    %31 = tpu.matmul %30, %26, %cst_20 {dimension_numbers = #tpu.dot_dimension_numbers<[1], [1], [0], [0], [0, 0, 1, 0], [], []>} : vector<4x16xbf16>, vector<4x16xbf16>, vector<4x4xf32> -> vector<4x4xf32>
    %32 = arith.truncf %31 : vector<4x4xf32> to vector<4x4xbf16>
    %c0_21 = arith.constant 0 : index
    %c0_22 = arith.constant 0 : index
    %c0_23 = arith.constant 0 : index
    %c0_24 = arith.constant 0 : index
    %33 = vector.load %arg7[%c0_21, %c0_22, %c0_23, %c0_24] : memref<1x2x4x4xbf16, #tpu.memory_space<vmem>>, vector<1x1x4x4xbf16>
    %34 = vector.shape_cast %33 : vector<1x1x4x4xbf16> to vector<4x4xbf16>
    %35 = vector.shape_cast %32 : vector<4x4xbf16> to vector<1x1x4x4xbf16>
    tpu.vector_store %arg7[%c0_21, %c0_22, %c0_23, %c0_24], %35 {strides = array<i32>} : memref<1x2x4x4xbf16, #tpu.memory_space<vmem>>, vector<1x1x4x4xbf16>,
    %c0_25 = arith.constant 0 : index
    %c1 = arith.constant 1 : index
    %c0_26 = arith.constant 0 : index
    %c0_27 = arith.constant 0 : index
    %36 = vector.load %arg2[%c0_25, %c1, %c0_26, %c0_27] : memref<1x2x16x16xbf16, #tpu.memory_space<vmem>>, vector<1x1x16x16xbf16>
    %37 = vector.shape_cast %36 : vector<1x1x16x16xbf16> to vector<16x16xbf16>
    %cst_28 = arith.constant dense<0.000000e+00> : vector<4x16xf32>
    %38 = tpu.matmul %26, %37, %cst_28 {dimension_numbers = #tpu.dot_dimension_numbers<[1], [0], [0], [1], [0, 0, 1, 1], [], []>} : vector<4x16xbf16>, vector<16x16xbf16>, vector<4x16xf32> -> vector<4x16xf32>
    %39 = arith.truncf %38 : vector<4x16xf32> to vector<4x16xbf16>
    %cst_29 = arith.constant dense<0.000000e+00> : vector<4x4xf32>
    %40 = tpu.matmul %39, %26, %cst_29 {dimension_numbers = #tpu.dot_dimension_numbers<[1], [1], [0], [0], [0, 0, 1, 0], [], []>} : vector<4x16xbf16>, vector<4x16xbf16>, vector<4x4xf32> -> vector<4x4xf32>
    %41 = arith.truncf %40 : vector<4x4xf32> to vector<4x4xbf16>
    %c0_30 = arith.constant 0 : index
    %c1_31 = arith.constant 1 : index
    %c0_32 = arith.constant 0 : index
    %c0_33 = arith.constant 0 : index
    %42 = vector.load %arg7[%c0_30, %c1_31, %c0_32, %c0_33] : memref<1x2x4x4xbf16, #tpu.memory_space<vmem>>, vector<1x1x4x4xbf16>
    %43 = vector.shape_cast %42 : vector<1x1x4x4xbf16> to vector<4x4xbf16>
    %44 = vector.shape_cast %41 : vector<4x4xbf16> to vector<1x1x4x4xbf16>
    tpu.vector_store %arg7[%c0_30, %c1_31, %c0_32, %c0_33], %44 {strides = array<i32>} : memref<1x2x4x4xbf16, #tpu.memory_space<vmem>>, vector<1x1x4x4xbf16>,
    return
  }
  func.func @transform_0(%arg0: i32) -> (i32, i32, i32) {
    %c0_i32 = arith.constant 0 : i32
    %c0_i32_0 = arith.constant 0 : i32
    %c0_i32_1 = arith.constant 0 : i32
    return %arg0, %c0_i32, %c0_i32_0 : i32, i32, i32
  }
  func.func @transform_1(%arg0: i32) -> (i32, i32, i32, i32) {
    %c0_i32 = arith.constant 0 : i32
    %c0_i32_0 = arith.constant 0 : i32
    %c0_i32_1 = arith.constant 0 : i32
    %c0_i32_2 = arith.constant 0 : i32
    return %arg0, %c0_i32, %c0_i32_0, %c0_i32_1 : i32, i32, i32, i32
  }
  func.func @transform_2(%arg0: i32) -> (i32, i32, i32) {
    %c0_i32 = arith.constant 0 : i32
    %c0_i32_0 = arith.constant 0 : i32
    %c0_i32_1 = arith.constant 0 : i32
    return %arg0, %c0_i32, %c0_i32_0 : i32, i32, i32
  }
  func.func @transform_3(%arg0: i32) -> (i32, i32) {
    %c0_i32 = arith.constant 0 : i32
    %c0_i32_0 = arith.constant 0 : i32
    %c0_i32_1 = arith.constant 0 : i32
    return %c0_i32, %c0_i32_0 : i32, i32
  }
  func.func @transform_4(%arg0: i32) -> (i32, i32) {
    %c0_i32 = arith.constant 0 : i32
    %c0_i32_0 = arith.constant 0 : i32
    %c0_i32_1 = arith.constant 0 : i32
    return %c0_i32, %c0_i32_0 : i32, i32
  }
  func.func @transform_5(%arg0: i32) -> (i32, i32, i32) {
    %c0_i32 = arith.constant 0 : i32
    %c0_i32_0 = arith.constant 0 : i32
    %c0_i32_1 = arith.constant 0 : i32
    return %arg0, %c0_i32, %c0_i32_0 : i32, i32, i32
  }
  func.func @transform_6(%arg0: i32) -> (i32, i32, i32, i32) {
    %c0_i32 = arith.constant 0 : i32
    %c0_i32_0 = arith.constant 0 : i32
    %c0_i32_1 = arith.constant 0 : i32
    %c0_i32_2 = arith.constant 0 : i32
    return %arg0, %c0_i32, %c0_i32_0, %c0_i32_1 : i32, i32, i32, i32
  }
}

module attributes {stable_mosaic.version = 11 : i64} {
  func.func @_attn_global_kernel(%arg0: i32, %arg1: memref<1x4x32xbf16, #tpu.memory_space<vmem>>, %arg2: memref<1x2x4x4xbf16, #tpu.memory_space<vmem>>, %arg3: memref<1x32xf32, #tpu.memory_space<vmem>>, %arg4: memref<1x32xf32, #tpu.memory_space<vmem>>, %arg5: memref<16x32xbf16, #tpu.memory_space<vmem>>, %arg6: memref<1x32xf32, #tpu.memory_space<vmem>>, %arg7: memref<16x16xbf16, #tpu.memory_space<vmem>>, %arg8: memref<1x16xf32, #tpu.memory_space<vmem>>, %arg9: memref<2x2xf32, #tpu.memory_space<smem>>, %arg10: memref<1x4x32xbf16, #tpu.memory_space<vmem>>) attributes {dimension_semantics = [#tpu.dimension_semantics<parallel>], iteration_bounds = array<i64: 2>, scalar_prefetch = 0 : i64, scratch_operands = 0 : i64, tpu.core_type = #tpu.core_type<tc>, window_params = [{transform_indices = @transform_0, window_bounds = array<i64: 1, 4, 32>}, {transform_indices = @transform_1, window_bounds = array<i64: 1, 2, 4, 4>}, {pipeline_mode = #tpu.pipeline_mode<synchronous>, transform_indices = @transform_2, window_bounds = array<i64: 1, 32>}, {pipeline_mode = #tpu.pipeline_mode<synchronous>, transform_indices = @transform_3, window_bounds = array<i64: 1, 32>}, {pipeline_mode = #tpu.pipeline_mode<synchronous>, transform_indices = @transform_4, window_bounds = array<i64: 16, 32>}, {pipeline_mode = #tpu.pipeline_mode<synchronous>, transform_indices = @transform_5, window_bounds = array<i64: 1, 32>}, {pipeline_mode = #tpu.pipeline_mode<synchronous>, transform_indices = @transform_6, window_bounds = array<i64: 16, 16>}, {pipeline_mode = #tpu.pipeline_mode<synchronous>, transform_indices = @transform_7, window_bounds = array<i64: 1, 16>}, {transform_indices = @transform_8, window_bounds = array<i64: 2, 2>}, {transform_indices = @transform_9, window_bounds = array<i64: 1, 4, 32>}]} {
    %c0 = arith.constant 0 : index
    %c0_0 = arith.constant 0 : index
    %c0_1 = arith.constant 0 : index
    %0 = vector.load %arg1[%c0, %c0_0, %c0_1] : memref<1x4x32xbf16, #tpu.memory_space<vmem>>, vector<1x4x32xbf16>
    %1 = vector.shape_cast %0 : vector<1x4x32xbf16> to vector<4x32xbf16>
    %2 = arith.extf %1 : vector<4x32xbf16> to vector<4x32xf32>
    %c0_2 = arith.constant 0 : index
    %c0_3 = arith.constant 0 : index
    %3 = vector.load %arg3[%c0_2, %c0_3] : memref<1x32xf32, #tpu.memory_space<vmem>>, vector<1x32xf32>
    %c0_4 = arith.constant 0 : index
    %c0_5 = arith.constant 0 : index
    %4 = vector.load %arg4[%c0_4, %c0_5] : memref<1x32xf32, #tpu.memory_space<vmem>>, vector<1x32xf32>
    %cst = arith.constant dense<0.000000e+00> : vector<4xf32>
    %5 = vector.multi_reduction <add>, %2, %cst [1] : vector<4x32xf32> to vector<4xf32>
    %6 = vector.shape_cast %5 : vector<4xf32> to vector<4x1xf32>
    %cst_6 = arith.constant 3.200000e+01 : f32
    %7 = vector.broadcast %cst_6 : f32 to vector<4x1xf32>
    %8 = arith.divf %6, %7 : vector<4x1xf32>
    %9 = vector.broadcast %8 : vector<4x1xf32> to vector<4x32xf32>
    %10 = arith.subf %2, %9 : vector<4x32xf32>
    %11 = arith.mulf %10, %10 : vector<4x32xf32>
    %cst_7 = arith.constant dense<0.000000e+00> : vector<4xf32>
    %12 = vector.multi_reduction <add>, %11, %cst_7 [1] : vector<4x32xf32> to vector<4xf32>
    %13 = vector.shape_cast %12 : vector<4xf32> to vector<4x1xf32>
    %cst_8 = arith.constant 3.200000e+01 : f32
    %14 = vector.broadcast %cst_8 : f32 to vector<4x1xf32>
    %15 = arith.divf %13, %14 : vector<4x1xf32>
    %16 = vector.broadcast %8 : vector<4x1xf32> to vector<4x32xf32>
    %17 = arith.subf %2, %16 : vector<4x32xf32>
    %cst_9 = arith.constant 9.99999974E-6 : f32
    %18 = vector.broadcast %cst_9 : f32 to vector<4x1xf32>
    %19 = arith.addf %15, %18 : vector<4x1xf32>
    %20 = math.rsqrt %19 : vector<4x1xf32>
    %21 = vector.broadcast %20 : vector<4x1xf32> to vector<4x32xf32>
    %22 = arith.mulf %17, %21 : vector<4x32xf32>
    %23 = vector.broadcast %3 : vector<1x32xf32> to vector<4x32xf32>
    %24 = arith.mulf %22, %23 : vector<4x32xf32>
    %25 = vector.broadcast %4 : vector<1x32xf32> to vector<4x32xf32>
    %26 = arith.addf %24, %25 : vector<4x32xf32>
    %27 = vector.extract_strided_slice %26 {offsets = [0, 0], sizes = [4, 16], strides = [1, 1]} : vector<4x32xf32> to vector<4x16xf32>
    %28 = vector.extract_strided_slice %26 {offsets = [0, 16], sizes = [4, 16], strides = [1, 1]} : vector<4x32xf32> to vector<4x16xf32>
    %29 = vector.shape_cast %27 : vector<4x16xf32> to vector<1x4x16xf32>
    %30 = vector.shape_cast %28 : vector<4x16xf32> to vector<1x4x16xf32>
    %31 = tpu.concatenate %29, %30 in 0 : vector<1x4x16xf32>, vector<1x4x16xf32> -> vector<2x4x16xf32>
    %c0_10 = arith.constant 0 : index
    %c0_11 = arith.constant 0 : index
    %c0_12 = arith.constant 0 : index
    %c0_13 = arith.constant 0 : index
    %32 = vector.load %arg2[%c0_10, %c0_11, %c0_12, %c0_13] : memref<1x2x4x4xbf16, #tpu.memory_space<vmem>>, vector<1x2x4x4xbf16>
    %33 = vector.shape_cast %32 : vector<1x2x4x4xbf16> to vector<2x4x4xbf16>
    %34 = arith.truncf %31 : vector<2x4x16xf32> to vector<2x4x16xbf16>
    "tpu.trace_start"() <{level = 10 : i32, message = "hmk,hkn->hmn"}> : () -> ()
    %cst_14 = arith.constant dense<0.000000e+00> : vector<2x4x16xf32>
    %35 = tpu.matmul %33, %34, %cst_14 {dimension_numbers = #tpu.dot_dimension_numbers<[2], [1], [1], [2], [0, 0, 0, 1, 1, 2], [0], [0]>} : vector<2x4x4xbf16>, vector<2x4x16xbf16>, vector<2x4x16xf32> -> vector<2x4x16xf32>
    "tpu.trace_stop"() : () -> ()
    %36 = arith.addf %35, %31 : vector<2x4x16xf32>
    %37 = vector.shape_cast %36 : vector<2x4x16xf32> to vector<8x16xf32>
    %c0_15 = arith.constant 0 : index
    %c0_16 = arith.constant 0 : index
    %38 = vector.load %arg5[%c0_15, %c0_16] : memref<16x32xbf16, #tpu.memory_space<vmem>>, vector<16x32xbf16>
    %39 = arith.truncf %37 : vector<8x16xf32> to vector<8x16xbf16>
    %cst_17 = arith.constant dense<0.000000e+00> : vector<8x32xf32>
    %40 = tpu.matmul %39, %38, %cst_17 {dimension_numbers = #tpu.dot_dimension_numbers<[1], [0], [0], [1], [0, 0, 1, 1], [], []>} : vector<8x16xbf16>, vector<16x32xbf16>, vector<8x32xf32> -> vector<8x32xf32>
    %c0_18 = arith.constant 0 : index
    %c0_19 = arith.constant 0 : index
    %41 = vector.load %arg6[%c0_18, %c0_19] : memref<1x32xf32, #tpu.memory_space<vmem>>, vector<1x32xf32>
    %42 = vector.broadcast %41 : vector<1x32xf32> to vector<8x32xf32>
    %43 = arith.addf %40, %42 : vector<8x32xf32>
    %44 = vector.shape_cast %43 : vector<8x32xf32> to vector<2x4x32xf32>
    %45 = vector.extract_strided_slice %44 {offsets = [0, 0, 0], sizes = [2, 4, 16], strides = [1, 1, 1]} : vector<2x4x32xf32> to vector<2x4x16xf32>
    %46 = vector.extract_strided_slice %44 {offsets = [0, 0, 16], sizes = [2, 4, 16], strides = [1, 1, 1]} : vector<2x4x32xf32> to vector<2x4x16xf32>
    %47 = arith.truncf %45 : vector<2x4x16xf32> to vector<2x4x16xbf16>
    %48 = arith.truncf %46 : vector<2x4x16xf32> to vector<2x4x16xbf16>
    "tpu.trace_start"() <{level = 10 : i32, message = "hmk,hnk->hmn"}> : () -> ()
    %cst_20 = arith.constant dense<0.000000e+00> : vector<2x4x4xf32>
    %49 = tpu.matmul %47, %48, %cst_20 {dimension_numbers = #tpu.dot_dimension_numbers<[2], [2], [1], [1], [0, 0, 0, 1, 1, 1], [0], [0]>} : vector<2x4x16xbf16>, vector<2x4x16xbf16>, vector<2x4x4xf32> -> vector<2x4x4xf32>
    "tpu.trace_stop"() : () -> ()
    %cst_21 = arith.constant 0.176776692 : f32
    %50 = vector.broadcast %cst_21 : f32 to vector<2x4x4xf32>
    %51 = arith.mulf %49, %50 : vector<2x4x4xf32>
    %c0_22 = arith.constant 0 : index
    %c0_23 = arith.constant 0 : index
    %52 = memref.load %arg9[%c0_22, %c0_23] : memref<2x2xf32, #tpu.memory_space<smem>>
    %53 = vector.extract_strided_slice %51 {offsets = [0, 0, 0], sizes = [1, 4, 4], strides = [1, 1, 1]} : vector<2x4x4xf32> to vector<1x4x4xf32>
    %54 = vector.shape_cast %53 : vector<1x4x4xf32> to vector<4x4xf32>
    %55 = vector.broadcast %52 : f32 to vector<4x4xf32>
    %56 = arith.mulf %55, %54 : vector<4x4xf32>
    %c0_24 = arith.constant 0 : index
    %c1 = arith.constant 1 : index
    %57 = memref.load %arg9[%c0_24, %c1] : memref<2x2xf32, #tpu.memory_space<smem>>
    %58 = vector.extract_strided_slice %51 {offsets = [1, 0, 0], sizes = [1, 4, 4], strides = [1, 1, 1]} : vector<2x4x4xf32> to vector<1x4x4xf32>
    %59 = vector.shape_cast %58 : vector<1x4x4xf32> to vector<4x4xf32>
    %60 = vector.broadcast %57 : f32 to vector<4x4xf32>
    %61 = arith.mulf %60, %59 : vector<4x4xf32>
    %62 = arith.addf %56, %61 : vector<4x4xf32>
    %c1_25 = arith.constant 1 : index
    %c0_26 = arith.constant 0 : index
    %63 = memref.load %arg9[%c1_25, %c0_26] : memref<2x2xf32, #tpu.memory_space<smem>>
    %64 = vector.extract_strided_slice %51 {offsets = [0, 0, 0], sizes = [1, 4, 4], strides = [1, 1, 1]} : vector<2x4x4xf32> to vector<1x4x4xf32>
    %65 = vector.shape_cast %64 : vector<1x4x4xf32> to vector<4x4xf32>
    %66 = vector.broadcast %63 : f32 to vector<4x4xf32>
    %67 = arith.mulf %66, %65 : vector<4x4xf32>
    %c1_27 = arith.constant 1 : index
    %c1_28 = arith.constant 1 : index
    %68 = memref.load %arg9[%c1_27, %c1_28] : memref<2x2xf32, #tpu.memory_space<smem>>
    %69 = vector.extract_strided_slice %51 {offsets = [1, 0, 0], sizes = [1, 4, 4], strides = [1, 1, 1]} : vector<2x4x4xf32> to vector<1x4x4xf32>
    %70 = vector.shape_cast %69 : vector<1x4x4xf32> to vector<4x4xf32>
    %71 = vector.broadcast %68 : f32 to vector<4x4xf32>
    %72 = arith.mulf %71, %70 : vector<4x4xf32>
    %73 = arith.addf %67, %72 : vector<4x4xf32>
    %74 = vector.shape_cast %62 : vector<4x4xf32> to vector<1x4x4xf32>
    %75 = vector.shape_cast %73 : vector<4x4xf32> to vector<1x4x4xf32>
    %76 = tpu.concatenate %74, %75 in 0 : vector<1x4x4xf32>, vector<1x4x4xf32> -> vector<2x4x4xf32>
    %cst_29 = arith.constant dense<0xFF800000> : vector<2x4xf32>
    %77 = vector.multi_reduction <maximumf>, %76, %cst_29 [2] : vector<2x4x4xf32> to vector<2x4xf32>
    %78 = vector.shape_cast %77 : vector<2x4xf32> to vector<2x4x1xf32>
    %79 = vector.broadcast %78 : vector<2x4x1xf32> to vector<2x4x4xf32>
    %80 = arith.subf %76, %79 : vector<2x4x4xf32>
    %81 = math.exp %80 : vector<2x4x4xf32>
    %cst_30 = arith.constant dense<0.000000e+00> : vector<2x4xf32>
    %82 = vector.multi_reduction <add>, %81, %cst_30 [2] : vector<2x4x4xf32> to vector<2x4xf32>
    %83 = vector.shape_cast %82 : vector<2x4xf32> to vector<2x4x1xf32>
    %84 = tpu.reciprocal %83 {approx = true} : vector<2x4x1xf32> -> vector<2x4x1xf32>
    %85 = vector.broadcast %84 : vector<2x4x1xf32> to vector<2x4x4xf32>
    %86 = arith.mulf %81, %85 : vector<2x4x4xf32>
    %87 = arith.truncf %86 : vector<2x4x4xf32> to vector<2x4x4xbf16>
    %88 = arith.truncf %31 : vector<2x4x16xf32> to vector<2x4x16xbf16>
    "tpu.trace_start"() <{level = 10 : i32, message = "hmk,hkn->hmn"}> : () -> ()
    %cst_31 = arith.constant dense<0.000000e+00> : vector<2x4x16xf32>
    %89 = tpu.matmul %87, %88, %cst_31 {dimension_numbers = #tpu.dot_dimension_numbers<[2], [1], [1], [2], [0, 0, 0, 1, 1, 2], [0], [0]>} : vector<2x4x4xbf16>, vector<2x4x16xbf16>, vector<2x4x16xf32> -> vector<2x4x16xf32>
    "tpu.trace_stop"() : () -> ()
    %90 = arith.addf %89, %31 : vector<2x4x16xf32>
    %91 = vector.shape_cast %90 : vector<2x4x16xf32> to vector<8x16xf32>
    %c0_32 = arith.constant 0 : index
    %c0_33 = arith.constant 0 : index
    %92 = vector.load %arg7[%c0_32, %c0_33] : memref<16x16xbf16, #tpu.memory_space<vmem>>, vector<16x16xbf16>
    %93 = arith.truncf %91 : vector<8x16xf32> to vector<8x16xbf16>
    %cst_34 = arith.constant dense<0.000000e+00> : vector<8x16xf32>
    %94 = tpu.matmul %93, %92, %cst_34 {dimension_numbers = #tpu.dot_dimension_numbers<[1], [0], [0], [1], [0, 0, 1, 1], [], []>} : vector<8x16xbf16>, vector<16x16xbf16>, vector<8x16xf32> -> vector<8x16xf32>
    %c0_35 = arith.constant 0 : index
    %c0_36 = arith.constant 0 : index
    %95 = vector.load %arg8[%c0_35, %c0_36] : memref<1x16xf32, #tpu.memory_space<vmem>>, vector<1x16xf32>
    %96 = vector.broadcast %95 : vector<1x16xf32> to vector<8x16xf32>
    %97 = arith.addf %94, %96 : vector<8x16xf32>
    %98 = vector.shape_cast %97 : vector<8x16xf32> to vector<2x4x16xf32>
    %cst_37 = arith.constant 5.000000e-01 : f32
    %99 = vector.broadcast %cst_37 : f32 to vector<2x4x16xf32>
    %100 = arith.mulf %99, %98 : vector<2x4x16xf32>
    %cst_38 = arith.constant 4.471500e-02 : f32
    %101 = vector.broadcast %cst_38 : f32 to vector<2x4x16xf32>
    %102 = arith.mulf %101, %98 : vector<2x4x16xf32>
    %103 = arith.mulf %102, %98 : vector<2x4x16xf32>
    %104 = arith.mulf %103, %98 : vector<2x4x16xf32>
    %105 = arith.addf %98, %104 : vector<2x4x16xf32>
    %cst_39 = arith.constant 0.797884583 : f32
    %106 = vector.broadcast %cst_39 : f32 to vector<2x4x16xf32>
    %107 = arith.mulf %106, %105 : vector<2x4x16xf32>
    %108 = math.tanh %107 : vector<2x4x16xf32>
    %cst_40 = arith.constant 1.000000e+00 : f32
    %109 = vector.broadcast %cst_40 : f32 to vector<2x4x16xf32>
    %110 = arith.addf %109, %108 : vector<2x4x16xf32>
    %111 = arith.mulf %100, %110 : vector<2x4x16xf32>
    %112 = arith.addf %111, %31 : vector<2x4x16xf32>
    %113 = vector.extract_strided_slice %112 {offsets = [0, 0, 0], sizes = [1, 4, 16], strides = [1, 1, 1]} : vector<2x4x16xf32> to vector<1x4x16xf32>
    %114 = vector.shape_cast %113 : vector<1x4x16xf32> to vector<4x16xf32>
    %115 = vector.extract_strided_slice %112 {offsets = [1, 0, 0], sizes = [1, 4, 16], strides = [1, 1, 1]} : vector<2x4x16xf32> to vector<1x4x16xf32>
    %116 = vector.shape_cast %115 : vector<1x4x16xf32> to vector<4x16xf32>
    %117 = tpu.concatenate %114, %116 in 1 : vector<4x16xf32>, vector<4x16xf32> -> vector<4x32xf32>
    %118 = arith.truncf %117 : vector<4x32xf32> to vector<4x32xbf16>
    %c0_41 = arith.constant 0 : index
    %c0_42 = arith.constant 0 : index
    %c0_43 = arith.constant 0 : index
    %119 = vector.load %arg10[%c0_41, %c0_42, %c0_43] : memref<1x4x32xbf16, #tpu.memory_space<vmem>>, vector<1x4x32xbf16>
    %120 = vector.shape_cast %119 : vector<1x4x32xbf16> to vector<4x32xbf16>
    %121 = vector.shape_cast %118 : vector<4x32xbf16> to vector<1x4x32xbf16>
    tpu.vector_store %arg10[%c0_41, %c0_42, %c0_43], %121 {strides = array<i32>} : memref<1x4x32xbf16, #tpu.memory_space<vmem>>, vector<1x4x32xbf16>,
    return
  }
  func.func @transform_0(%arg0: i32) -> (i32, i32, i32) {
    %c0_i32 = arith.constant 0 : i32
    %c0_i32_0 = arith.constant 0 : i32
    %c0_i32_1 = arith.constant 0 : i32
    return %arg0, %c0_i32, %c0_i32_0 : i32, i32, i32
  }
  func.func @transform_1(%arg0: i32) -> (i32, i32, i32, i32) {
    %c0_i32 = arith.constant 0 : i32
    %c0_i32_0 = arith.constant 0 : i32
    %c0_i32_1 = arith.constant 0 : i32
    %c0_i32_2 = arith.constant 0 : i32
    return %arg0, %c0_i32, %c0_i32_0, %c0_i32_1 : i32, i32, i32, i32
  }
  func.func @transform_2(%arg0: i32) -> (i32, i32) {
    %c0_i32 = arith.constant 0 : i32
    %c0_i32_0 = arith.constant 0 : i32
    %c0_i32_1 = arith.constant 0 : i32
    return %c0_i32, %c0_i32_0 : i32, i32
  }
  func.func @transform_3(%arg0: i32) -> (i32, i32) {
    %c0_i32 = arith.constant 0 : i32
    %c0_i32_0 = arith.constant 0 : i32
    %c0_i32_1 = arith.constant 0 : i32
    return %c0_i32, %c0_i32_0 : i32, i32
  }
  func.func @transform_4(%arg0: i32) -> (i32, i32) {
    %c0_i32 = arith.constant 0 : i32
    %c0_i32_0 = arith.constant 0 : i32
    %c0_i32_1 = arith.constant 0 : i32
    return %c0_i32, %c0_i32_0 : i32, i32
  }
  func.func @transform_5(%arg0: i32) -> (i32, i32) {
    %c0_i32 = arith.constant 0 : i32
    %c0_i32_0 = arith.constant 0 : i32
    %c0_i32_1 = arith.constant 0 : i32
    return %c0_i32, %c0_i32_0 : i32, i32
  }
  func.func @transform_6(%arg0: i32) -> (i32, i32) {
    %c0_i32 = arith.constant 0 : i32
    %c0_i32_0 = arith.constant 0 : i32
    %c0_i32_1 = arith.constant 0 : i32
    return %c0_i32, %c0_i32_0 : i32, i32
  }
  func.func @transform_7(%arg0: i32) -> (i32, i32) {
    %c0_i32 = arith.constant 0 : i32
    %c0_i32_0 = arith.constant 0 : i32
    %c0_i32_1 = arith.constant 0 : i32
    return %c0_i32, %c0_i32_0 : i32, i32
  }
  func.func @transform_8(%arg0: i32) -> (i32, i32) {
    %c0_i32 = arith.constant 0 : i32
    %c0_i32_0 = arith.constant 0 : i32
    %c0_i32_1 = arith.constant 0 : i32
    return %c0_i32, %c0_i32_0 : i32, i32
  }
  func.func @transform_9(%arg0: i32) -> (i32, i32, i32) {
    %c0_i32 = arith.constant 0 : i32
    %c0_i32_0 = arith.constant 0 : i32
    %c0_i32_1 = arith.constant 0 : i32
    return %arg0, %c0_i32, %c0_i32_0 : i32, i32, i32
  }
}

module attributes {stable_mosaic.version = 11 : i64} {
  func.func @_final_pool_predict_kernel(%arg0: i32, %arg1: memref<1x4x32xbf16, #tpu.memory_space<vmem>>, %arg2: memref<1x32xbf16, #tpu.memory_space<vmem>>, %arg3: memref<32x10xbf16, #tpu.memory_space<vmem>>, %arg4: memref<1x10xf32, #tpu.memory_space<vmem>>, %arg5: memref<1x1x32xf32, #tpu.memory_space<vmem>>, %arg6: memref<1x1x10xf32, #tpu.memory_space<vmem>>) attributes {dimension_semantics = [#tpu.dimension_semantics<parallel>], iteration_bounds = array<i64: 2>, scalar_prefetch = 0 : i64, scratch_operands = 0 : i64, tpu.core_type = #tpu.core_type<tc>, window_params = [{transform_indices = @transform_0, window_bounds = array<i64: 1, 4, 32>}, {pipeline_mode = #tpu.pipeline_mode<synchronous>, transform_indices = @transform_1, window_bounds = array<i64: 1, 32>}, {pipeline_mode = #tpu.pipeline_mode<synchronous>, transform_indices = @transform_2, window_bounds = array<i64: 32, 10>}, {pipeline_mode = #tpu.pipeline_mode<synchronous>, transform_indices = @transform_3, window_bounds = array<i64: 1, 10>}, {transform_indices = @transform_4, window_bounds = array<i64: 1, 1, 32>}, {transform_indices = @transform_5, window_bounds = array<i64: 1, 1, 10>}]} {
    %c0 = arith.constant 0 : index
    %c0_0 = arith.constant 0 : index
    %c0_1 = arith.constant 0 : index
    %0 = vector.load %arg1[%c0, %c0_0, %c0_1] : memref<1x4x32xbf16, #tpu.memory_space<vmem>>, vector<1x4x32xbf16>
    %1 = vector.shape_cast %0 : vector<1x4x32xbf16> to vector<4x32xbf16>
    %c0_2 = arith.constant 0 : index
    %c0_3 = arith.constant 0 : index
    %2 = vector.load %arg2[%c0_2, %c0_3] : memref<1x32xbf16, #tpu.memory_space<vmem>>, vector<1x32xbf16>
    %cst = arith.constant dense<0.000000e+00> : vector<1x4xf32>
    %3 = tpu.matmul %2, %1, %cst {dimension_numbers = #tpu.dot_dimension_numbers<[1], [1], [0], [0], [0, 0, 1, 0], [], []>} : vector<1x32xbf16>, vector<4x32xbf16>, vector<1x4xf32> -> vector<1x4xf32>
    %cst_4 = arith.constant 5.000000e-01 : f32
    %4 = vector.broadcast %cst_4 : f32 to vector<1x4xf32>
    %5 = arith.mulf %3, %4 : vector<1x4xf32>
    %cst_5 = arith.constant dense<0xFF800000> : vector<1xf32>
    %6 = vector.multi_reduction <maximumf>, %5, %cst_5 [1] : vector<1x4xf32> to vector<1xf32>
    %7 = vector.shape_cast %6 : vector<1xf32> to vector<1x1xf32>
    %8 = vector.broadcast %7 : vector<1x1xf32> to vector<1x4xf32>
    %9 = arith.subf %5, %8 : vector<1x4xf32>
    %10 = math.exp %9 : vector<1x4xf32>
    %cst_6 = arith.constant dense<0.000000e+00> : vector<1xf32>
    %11 = vector.multi_reduction <add>, %10, %cst_6 [1] : vector<1x4xf32> to vector<1xf32>
    %12 = vector.shape_cast %11 : vector<1xf32> to vector<1x1xf32>
    %13 = tpu.reciprocal %12 {approx = true} : vector<1x1xf32> -> vector<1x1xf32>
    %14 = vector.broadcast %13 : vector<1x1xf32> to vector<1x4xf32>
    %15 = arith.mulf %10, %14 : vector<1x4xf32>
    %16 = arith.truncf %15 : vector<1x4xf32> to vector<1x4xbf16>
    %cst_7 = arith.constant dense<0.000000e+00> : vector<1x32xf32>
    %17 = tpu.matmul %16, %1, %cst_7 {dimension_numbers = #tpu.dot_dimension_numbers<[1], [0], [0], [1], [0, 0, 1, 1], [], []>} : vector<1x4xbf16>, vector<4x32xbf16>, vector<1x32xf32> -> vector<1x32xf32>
    %c0_8 = arith.constant 0 : index
    %c0_9 = arith.constant 0 : index
    %c0_10 = arith.constant 0 : index
    %18 = vector.load %arg5[%c0_8, %c0_9, %c0_10] : memref<1x1x32xf32, #tpu.memory_space<vmem>>, vector<1x1x32xf32>
    %19 = vector.shape_cast %18 : vector<1x1x32xf32> to vector<1x32xf32>
    %20 = vector.shape_cast %17 : vector<1x32xf32> to vector<1x1x32xf32>
    tpu.vector_store %arg5[%c0_8, %c0_9, %c0_10], %20 {strides = array<i32>} : memref<1x1x32xf32, #tpu.memory_space<vmem>>, vector<1x1x32xf32>,
    %c0_11 = arith.constant 0 : index
    %c0_12 = arith.constant 0 : index
    %21 = vector.load %arg3[%c0_11, %c0_12] : memref<32x10xbf16, #tpu.memory_space<vmem>>, vector<32x10xbf16>
    %22 = arith.truncf %17 : vector<1x32xf32> to vector<1x32xbf16>
    %cst_13 = arith.constant dense<0.000000e+00> : vector<1x10xf32>
    %23 = tpu.matmul %22, %21, %cst_13 {dimension_numbers = #tpu.dot_dimension_numbers<[1], [0], [0], [1], [0, 0, 1, 1], [], []>} : vector<1x32xbf16>, vector<32x10xbf16>, vector<1x10xf32> -> vector<1x10xf32>
    %c0_14 = arith.constant 0 : index
    %c0_15 = arith.constant 0 : index
    %24 = vector.load %arg4[%c0_14, %c0_15] : memref<1x10xf32, #tpu.memory_space<vmem>>, vector<1x10xf32>
    %25 = arith.addf %23, %24 : vector<1x10xf32>
    %c0_16 = arith.constant 0 : index
    %c0_17 = arith.constant 0 : index
    %c0_18 = arith.constant 0 : index
    %26 = vector.load %arg6[%c0_16, %c0_17, %c0_18] : memref<1x1x10xf32, #tpu.memory_space<vmem>>, vector<1x1x10xf32>
    %27 = vector.shape_cast %26 : vector<1x1x10xf32> to vector<1x10xf32>
    %28 = vector.shape_cast %25 : vector<1x10xf32> to vector<1x1x10xf32>
    tpu.vector_store %arg6[%c0_16, %c0_17, %c0_18], %28 {strides = array<i32>} : memref<1x1x10xf32, #tpu.memory_space<vmem>>, vector<1x1x10xf32>,
    return
  }
  func.func @transform_0(%arg0: i32) -> (i32, i32, i32) {
    %c0_i32 = arith.constant 0 : i32
    %c0_i32_0 = arith.constant 0 : i32
    %c0_i32_1 = arith.constant 0 : i32
    return %arg0, %c0_i32, %c0_i32_0 : i32, i32, i32
  }
  func.func @transform_1(%arg0: i32) -> (i32, i32) {
    %c0_i32 = arith.constant 0 : i32
    %c0_i32_0 = arith.constant 0 : i32
    %c0_i32_1 = arith.constant 0 : i32
    return %c0_i32, %c0_i32_0 : i32, i32
  }
  func.func @transform_2(%arg0: i32) -> (i32, i32) {
    %c0_i32 = arith.constant 0 : i32
    %c0_i32_0 = arith.constant 0 : i32
    %c0_i32_1 = arith.constant 0 : i32
    return %c0_i32, %c0_i32_0 : i32, i32
  }
  func.func @transform_3(%arg0: i32) -> (i32, i32) {
    %c0_i32 = arith.constant 0 : i32
    %c0_i32_0 = arith.constant 0 : i32
    %c0_i32_1 = arith.constant 0 : i32
    return %c0_i32, %c0_i32_0 : i32, i32
  }
  func.func @transform_4(%arg0: i32) -> (i32, i32, i32) {
    %c0_i32 = arith.constant 0 : i32
    %c0_i32_0 = arith.constant 0 : i32
    %c0_i32_1 = arith.constant 0 : i32
    return %arg0, %c0_i32, %c0_i32_0 : i32, i32, i32
  }
  func.func @transform_5(%arg0: i32) -> (i32, i32, i32) {
    %c0_i32 = arith.constant 0 : i32
    %c0_i32_0 = arith.constant 0 : i32
    %c0_i32_1 = arith.constant 0 : i32
    return %arg0, %c0_i32, %c0_i32_0 : i32, i32, i32
  }
}

</mosaic_0001>

<llo_original>
// kernel: _lambda_.12
$region0: #{_lambda_.12}
  #allocation0 [shape = 'u32[]', space=smem, size = 0x4, offset = 0x4, fixed_abs, tag = 'smem constant byte address 0x4 - core index']
  #allocation1 [shape = 'u32[144,128]{1,0:T(1,128)}', space=vmem, size = 0x12000, scoped, tag = 'internal scratch']
  %s0 = inlined_call_operand.vmem [shape: bf16[32,8], index: 0, kind: input, shape index: {}]
  %s1 = inlined_call_operand.vmem [shape: bf16[8,32], index: 1, kind: input, shape index: {}]
  %s2 = inlined_call_operand.vmem [shape: f32[1,32], index: 2, kind: input, shape index: {}]
  %s3 = inlined_call_operand.vmem [shape: bf16[32,32], index: 3, kind: output, shape index: {}]
  %s4 = sld [smem:[#allocation0]]
  $region22: #{_lambda_.12} parent=0
    _
  %s6 = ssub.s32 1, %s4
  %s7 = scalar_select 0, %s6, %s4
  // Predicated region
  $region2: #{_lambda_.12} parent=0 // pred_check
    _
  $region3: #{_lambda_.12} parent=0 // pred_check_branch
    %9 = sbr.rel (0) target = $region5
  $region4: #{_lambda_.12} parent=0 // pred_region
    _
  $region5: #{_lambda_.12} parent=0 // pred_fallthru
    _
  // Predicated region
  $region6: #{_lambda_.12} parent=0 // pred_check
    _
  $region7: #{_lambda_.12} parent=0 // pred_check_branch
    %11 = sbr.rel (0) target = $region9
  $region8: #{_lambda_.12} parent=0 // pred_region
    _
  $region9: #{_lambda_.12} parent=0 // pred_fallthru
    _
  // Predicated region
  $region10: #{_lambda_.12} parent=0 // pred_check
    _
  $region11: #{_lambda_.12} parent=0 // pred_check_branch
    %13 = sbr.rel (0) target = $region13
  $region12: #{_lambda_.12} parent=0 // pred_region
    _
  $region13: #{_lambda_.12} parent=0 // pred_fallthru
    _
  %v15 = vld [vmem:[%s0] sm:$0xf]
  %v16 = vld [vmem:[%s0 + $0x4] sm:$0xf]
  %v17 = vld [vmem:[%s0 + $0x8] sm:$0xf]
  %v18 = vld [vmem:[%s0 + $0xc] sm:$0xf]
  %v19 = vld [vmem:[%s1] sm:$0xf]
  %v20 = vld [vmem:[%s2] sm:$0x1]
  %v22 = vlaneseq
  %v23 = vshrl.u32 %v22, 7
  %v24 = vsub.s32 0, %v23
  %v25 = vrot.slane %v20, %v24
  %v31 = vunpack.c.l.b16 %v15
  %v32 = vunpack.c.l.b16 %v16
  %v33 = vunpack.c.l.b16 %v17
  %v34 = vunpack.c.l.b16 %v18
  %v35 = vpack.c.b16 %v32, %v31
  %v36 = vpack.c.b16 %v34, %v33
  %vm37 = vcmask 64512
  %v39 = vsel %vm37, %v35, 0
  %v42 = vsel %vm37, %v36, 0
  %vm44 = vcmask 1043456
  %v46 = vsel %vm44, %v19, 0
  %48 = vmatprep.subr.bf16.mxu0 0
  %49 = vmatpush1.bf16.msra.mxu0 %v46
  %50 = vmatprep.subr.bf16.mxu0 0
  %51 = vmatpush1.bf16.msra.mxu0 0
  %52 = vmatprep.subr.bf16.mxu0 0
  %53 = vmatpush1.bf16.msra.mxu0 0
  %54 = vmatprep.subr.bf16.mxu0 0
  %55 = vmatpush1.bf16.msra.mxu0 0
  %56 = vmatprep.subr.bf16.mxu0 0
  %57 = vmatpush1.bf16.msra.mxu0 0
  %58 = vmatprep.subr.bf16.mxu0 0
  %59 = vmatpush1.bf16.msra.mxu0 0
  %60 = vmatprep.subr.bf16.mxu0 0
  %61 = vmatpush1.bf16.msra.mxu0 0
  %62 = vmatprep.subr.bf16.mxu0 0
  %63 = vmatpush1.bf16.msra.mxu0 0
  %64 = vmatprep.subr.bf16.mxu0 0
  %65 = vmatpush1.bf16.msra.mxu0 0
  %66 = vmatprep.subr.bf16.mxu0 0
  %67 = vmatpush1.bf16.msra.mxu0 0
  %68 = vmatprep.subr.bf16.mxu0 0
  %69 = vmatpush1.bf16.msra.mxu0 0
  %70 = vmatprep.subr.bf16.mxu0 0
  %71 = vmatpush1.bf16.msra.mxu0 0
  %72 = vmatprep.subr.bf16.mxu0 0
  %73 = vmatpush1.bf16.msra.mxu0 0
  %74 = vmatprep.subr.bf16.mxu0 0
  %75 = vmatpush1.bf16.msra.mxu0 0
  %76 = vmatprep.subr.bf16.mxu0 0
  %77 = vmatpush1.bf16.msra.mxu0 0
  %78 = vmatprep.subr.bf16.mxu0 0
  %79 = vmatpush1.bf16.msra.mxu0 0
  %80 = vmatprep.mubr.bf16.mxu0 0
  %81 = vmatmul.mubr.bf16.gmra.mrb[0].mxu0 %v39
  %v82 = vpop.f32.mrb[0].mxu0
  %v83 = vadd.f32 %v25, %v82
  %v84 = vpop.f32.mrb[0].mxu0
  %v85 = vpop.f32.mrb[0].mxu0
  %v86 = vadd.f32 %v25, %v85
  %v87 = vpop.f32.mrb[0].mxu0
  %88 = vmatprep.mubr.bf16.mxu0 0
  %89 = vmatmul.mubr.bf16.gmra.mrb[0].mxu0 %v42
  %v90 = vpop.f32.mrb[0].mxu0
  %v91 = vadd.f32 %v25, %v90
  %v92 = vpop.f32.mrb[0].mxu0
  %v93 = vpop.f32.mrb[0].mxu0
  %v94 = vadd.f32 %v25, %v93
  %v95 = vpop.f32.mrb[0].mxu0
  %96 = vdwg.mxu0
  %v97 = vpack.c.bf16 %v86, %v83
  %v98 = vpack.c.bf16 %v94, %v91
  %v101 = vunpack.c.l.b16 %v97
  %v102 = vunpack.c.h.b16 %v97
  %v103 = vunpack.c.l.b16 %v98
  %v104 = vunpack.c.h.b16 %v98
  %v105 = vpack.c.b16 %v101, %v101
  %v106 = vpack.c.b16 %v102, %v102
  %v107 = vpack.c.b16 %v103, %v103
  %v108 = vpack.c.b16 %v104, %v104
  %vm113 = vcmask 257024
  %114 = vst.msk [vmem:[%s3] sm:$0xf] %vm113, %v105
  %115 = vst.msk [vmem:[%s3 + $0x4] sm:$0xf] %vm113, %v106
  %116 = vst.msk [vmem:[%s3 + $0x8] sm:$0xf] %vm113, %v107
  %117 = vst.msk [vmem:[%s3 + $0xc] sm:$0xf] %vm113, %v108
  // Predicated region
  $region14: #{_lambda_.12} parent=0 // pred_check
    _
  $region15: #{_lambda_.12} parent=0 // pred_check_branch
    %119 = sbr.rel (0) target = $region17
  $region16: #{_lambda_.12} parent=0 // pred_region
    _
  $region17: #{_lambda_.12} parent=0 // pred_fallthru
    _
  // Predicated region
  $region18: #{_lambda_.12} parent=0 // pred_check
    _
  $region19: #{_lambda_.12} parent=0 // pred_check_branch
    %121 = sbr.rel (0) target = $region21
  $region20: #{_lambda_.12} parent=0 // pred_region
    _
  $region21: #{_lambda_.12} parent=0 // pred_fallthru
    _

// kernel: _lambda_.11
$region0: #{_lambda_.11}
  #allocation0 [shape = 'u32[]', space=smem, size = 0x4, offset = 0x4, fixed_abs, tag = 'smem constant byte address 0x4 - core index']
  #allocation1 [shape = 'u32[144,128]{1,0:T(1,128)}', space=vmem, size = 0x12000, scoped, tag = 'internal scratch']
  %s0 = inlined_call_operand.vmem [shape: f32[128,8], index: 0, kind: input, shape index: {}]
  %s1 = inlined_call_operand.vmem [shape: f32[2,8], index: 1, kind: input, shape index: {}]
  %s2 = inlined_call_operand.vmem [shape: f32[1,8], index: 2, kind: input, shape index: {}]
  %s3 = inlined_call_operand.vmem [shape: f32[1,8], index: 3, kind: input, shape index: {}]
  %s4 = inlined_call_operand.vmem [shape: f32[128,8], index: 4, kind: output, shape index: {}]
  %s5 = sld [smem:[#allocation0]]
  $region26: #{_lambda_.11} parent=0
    _
  %s7 = ssub.s32 1, %s5
  %s8 = scalar_select 0, %s7, %s5
  // Predicated region
  $region2: #{_lambda_.11} parent=0 // pred_check
    _
  $region3: #{_lambda_.11} parent=0 // pred_check_branch
    %10 = sbr.rel (0) target = $region5
  $region4: #{_lambda_.11} parent=0 // pred_region
    _
  $region5: #{_lambda_.11} parent=0 // pred_fallthru
    _
  // Predicated region
  $region6: #{_lambda_.11} parent=0 // pred_check
    _
  $region7: #{_lambda_.11} parent=0 // pred_check_branch
    %12 = sbr.rel (0) target = $region9
  $region8: #{_lambda_.11} parent=0 // pred_region
    _
  $region9: #{_lambda_.11} parent=0 // pred_fallthru
    _
  // Predicated region
  $region10: #{_lambda_.11} parent=0 // pred_check
    _
  $region11: #{_lambda_.11} parent=0 // pred_check_branch
    %14 = sbr.rel (0) target = $region13
  $region12: #{_lambda_.11} parent=0 // pred_region
    _
  $region13: #{_lambda_.11} parent=0 // pred_fallthru
    _
  // Predicated region
  $region14: #{_lambda_.11} parent=0 // pred_check
    _
  $region15: #{_lambda_.11} parent=0 // pred_check_branch
    %16 = sbr.rel (0) target = $region17
  $region16: #{_lambda_.11} parent=0 // pred_region
    _
  $region17: #{_lambda_.11} parent=0 // pred_fallthru
    _
  %v17 = vld [vmem:[%s0] sm:$0xff]
  %v18 = vld [vmem:[%s0 + $0x8] sm:$0xff]
  %v19 = vld [vmem:[%s0 + $0x10] sm:$0xff]
  %v20 = vld [vmem:[%s0 + $0x18] sm:$0xff]
  %v21 = vld [vmem:[%s0 + $0x20] sm:$0xff]
  %v22 = vld [vmem:[%s0 + $0x28] sm:$0xff]
  %v23 = vld [vmem:[%s0 + $0x30] sm:$0xff]
  %v24 = vld [vmem:[%s0 + $0x38] sm:$0xff]
  %v25 = vld [vmem:[%s0 + $0x40] sm:$0xff]
  %v26 = vld [vmem:[%s0 + $0x48] sm:$0xff]
  %v27 = vld [vmem:[%s0 + $0x50] sm:$0xff]
  %v28 = vld [vmem:[%s0 + $0x58] sm:$0xff]
  %v29 = vld [vmem:[%s0 + $0x60] sm:$0xff]
  %v30 = vld [vmem:[%s0 + $0x68] sm:$0xff]
  %v31 = vld [vmem:[%s0 + $0x70] sm:$0xff]
  %v32 = vld [vmem:[%s0 + $0x78] sm:$0xff]
  %v33 = vld [vmem:[%s1] sm:$0x3]
  %v34 = vmul.f32 %v33, 0.0078125
  %v35 = vmul.f32 %v34, %v34
  %v37 = vrot.slane %v35, 7
  %v39 = vsub.f32 %v34, %v37
  %v40 = vld [vmem:[%s2] sm:$0x1]
  %v41 = vadd.f32 %v39, 1e-05
  %v42 = vrsqrt.pop %v41
  %v45 = vunpack.c.l.s4 1966171168
  %v46 = vunpack.c.0.s8 %v45
  %v47 = vlaneseq
  %v48 = vshrl.u32 %v47, 7
  %v49 = vsub.s32 %v46, %v48
  %v50 = vrot.slane %v42, %v49
  %v51 = vcombine.high %v50, %v50
  %v53 = vunpack.c.l.s4 1966171168
  %v54 = vunpack.c.0.s8 %v53
  %v55 = vlaneseq
  %v56 = vshrl.u32 %v55, 7
  %v57 = vsub.s32 %v54, %v56
  %v58 = vrot.slane %v51, %v57
  %v60 = vmul.f32 %v40, %v58
  %v61 = vld [vmem:[%s3] sm:$0x1]
  %v62 = vmul.f32 %v34, %v60
  %v63 = vsub.f32 %v61, %v62
  %v65 = vlaneseq
  %v66 = vshrl.u32 %v65, 7
  %v67 = vsub.s32 0, %v66
  %v68 = vrot.slane %v60, %v67
  %v70 = vmul.f32 %v17, %v68
  %v71 = vmul.f32 %v18, %v68
  %v72 = vmul.f32 %v19, %v68
  %v73 = vmul.f32 %v20, %v68
  %v74 = vmul.f32 %v21, %v68
  %v75 = vmul.f32 %v22, %v68
  %v76 = vmul.f32 %v23, %v68
  %v77 = vmul.f32 %v24, %v68
  %v78 = vmul.f32 %v25, %v68
  %v79 = vmul.f32 %v26, %v68
  %v80 = vmul.f32 %v27, %v68
  %v81 = vmul.f32 %v28, %v68
  %v82 = vmul.f32 %v29, %v68
  %v83 = vmul.f32 %v30, %v68
  %v84 = vmul.f32 %v31, %v68
  %v85 = vmul.f32 %v32, %v68
  %v87 = vlaneseq
  %v88 = vshrl.u32 %v87, 7
  %v89 = vsub.s32 0, %v88
  %v90 = vrot.slane %v63, %v89
  %v92 = vadd.f32 %v70, %v90
  %v93 = vadd.f32 %v71, %v90
  %v94 = vadd.f32 %v72, %v90
  %v95 = vadd.f32 %v73, %v90
  %v96 = vadd.f32 %v74, %v90
  %v97 = vadd.f32 %v75, %v90
  %v98 = vadd.f32 %v76, %v90
  %v99 = vadd.f32 %v77, %v90
  %v100 = vadd.f32 %v78, %v90
  %v101 = vadd.f32 %v79, %v90
  %v102 = vadd.f32 %v80, %v90
  %v103 = vadd.f32 %v81, %v90
  %v104 = vadd.f32 %v82, %v90
  %v105 = vadd.f32 %v83, %v90
  %v106 = vadd.f32 %v84, %v90
  %v107 = vadd.f32 %v85, %v90
  %v108 = vmul.f32 %v92, 0.5
  %v109 = vmul.f32 %v93, 0.5
  %v110 = vmul.f32 %v94, 0.5
  %v111 = vmul.f32 %v95, 0.5
  %v112 = vmul.f32 %v96, 0.5
  %v113 = vmul.f32 %v97, 0.5
  %v114 = vmul.f32 %v98, 0.5
  %v115 = vmul.f32 %v99, 0.5
  %v116 = vmul.f32 %v100, 0.5
  %v117 = vmul.f32 %v101, 0.5
  %v118 = vmul.f32 %v102, 0.5
  %v119 = vmul.f32 %v103, 0.5
  %v120 = vmul.f32 %v104, 0.5
  %v121 = vmul.f32 %v105, 0.5
  %v122 = vmul.f32 %v106, 0.5
  %v123 = vmul.f32 %v107, 0.5
  %v124 = vmul.f32 %v92, 0.044715
  %v125 = vmul.f32 %v93, 0.044715
  %v126 = vmul.f32 %v94, 0.044715
  %v127 = vmul.f32 %v95, 0.044715
  %v128 = vmul.f32 %v96, 0.044715
  %v129 = vmul.f32 %v97, 0.044715
  %v130 = vmul.f32 %v98, 0.044715
  %v131 = vmul.f32 %v99, 0.044715
  %v132 = vmul.f32 %v100, 0.044715
  %v133 = vmul.f32 %v101, 0.044715
  %v134 = vmul.f32 %v102, 0.044715
  %v135 = vmul.f32 %v103, 0.044715
  %v136 = vmul.f32 %v104, 0.044715
  %v137 = vmul.f32 %v105, 0.044715
  %v138 = vmul.f32 %v106, 0.044715
  %v139 = vmul.f32 %v107, 0.044715
  %v140 = vmul.f32 %v124, %v92
  %v141 = vmul.f32 %v125, %v93
  %v142 = vmul.f32 %v126, %v94
  %v143 = vmul.f32 %v127, %v95
  %v144 = vmul.f32 %v128, %v96
  %v145 = vmul.f32 %v129, %v97
  %v146 = vmul.f32 %v130, %v98
  %v147 = vmul.f32 %v131, %v99
  %v148 = vmul.f32 %v132, %v100
  %v149 = vmul.f32 %v133, %v101
  %v150 = vmul.f32 %v134, %v102
  %v151 = vmul.f32 %v135, %v103
  %v152 = vmul.f32 %v136, %v104
  %v153 = vmul.f32 %v137, %v105
  %v154 = vmul.f32 %v138, %v106
  %v155 = vmul.f32 %v139, %v107
  %v156 = vmul.f32 %v140, %v92
  %v157 = vmul.f32 %v141, %v93
  %v158 = vmul.f32 %v142, %v94
  %v159 = vmul.f32 %v143, %v95
  %v160 = vmul.f32 %v144, %v96
  %v161 = vmul.f32 %v145, %v97
  %v162 = vmul.f32 %v146, %v98
  %v163 = vmul.f32 %v147, %v99
  %v164 = vmul.f32 %v148, %v100
  %v165 = vmul.f32 %v149, %v101
  %v166 = vmul.f32 %v150, %v102
  %v167 = vmul.f32 %v151, %v103
  %v168 = vmul.f32 %v152, %v104
  %v169 = vmul.f32 %v153, %v105
  %v170 = vmul.f32 %v154, %v106
  %v171 = vmul.f32 %v155, %v107
  %v172 = vadd.f32 %v92, %v156
  %v173 = vadd.f32 %v93, %v157
  %v174 = vadd.f32 %v94, %v158
  %v175 = vadd.f32 %v95, %v159
  %v176 = vadd.f32 %v96, %v160
  %v177 = vadd.f32 %v97, %v161
  %v178 = vadd.f32 %v98, %v162
  %v179 = vadd.f32 %v99, %v163
  %v180 = vadd.f32 %v100, %v164
  %v181 = vadd.f32 %v101, %v165
  %v182 = vadd.f32 %v102, %v166
  %v183 = vadd.f32 %v103, %v167
  %v184 = vadd.f32 %v104, %v168
  %v185 = vadd.f32 %v105, %v169
  %v186 = vadd.f32 %v106, %v170
  %v187 = vadd.f32 %v107, %v171
  %v188 = vmul.f32 %v172, 0.7978846
  %v189 = vmul.f32 %v173, 0.7978846
  %v190 = vmul.f32 %v174, 0.7978846
  %v191 = vmul.f32 %v175, 0.7978846
  %v192 = vmul.f32 %v176, 0.7978846
  %v193 = vmul.f32 %v177, 0.7978846
  %v194 = vmul.f32 %v178, 0.7978846
  %v195 = vmul.f32 %v179, 0.7978846
  %v196 = vmul.f32 %v180, 0.7978846
  %v197 = vmul.f32 %v181, 0.7978846
  %v198 = vmul.f32 %v182, 0.7978846
  %v199 = vmul.f32 %v183, 0.7978846
  %v200 = vmul.f32 %v184, 0.7978846
  %v201 = vmul.f32 %v185, 0.7978846
  %v202 = vmul.f32 %v186, 0.7978846
  %v203 = vmul.f32 %v187, 0.7978846
  %v204 = vtanh.pop %v188
  %v205 = vtanh.pop %v189
  %v206 = vtanh.pop %v190
  %v207 = vtanh.pop %v191
  %v208 = vtanh.pop %v192
  %v209 = vtanh.pop %v193
  %v210 = vtanh.pop %v194
  %v211 = vtanh.pop %v195
  %v212 = vtanh.pop %v196
  %v213 = vtanh.pop %v197
  %v214 = vtanh.pop %v198
  %v215 = vtanh.pop %v199
  %v216 = vtanh.pop %v200
  %v217 = vtanh.pop %v201
  %v218 = vtanh.pop %v202
  %v219 = vtanh.pop %v203
  %v220 = vadd.f32 %v204, 1.0
  %v221 = vadd.f32 %v205, 1.0
  %v222 = vadd.f32 %v206, 1.0
  %v223 = vadd.f32 %v207, 1.0
  %v224 = vadd.f32 %v208, 1.0
  %v225 = vadd.f32 %v209, 1.0
  %v226 = vadd.f32 %v210, 1.0
  %v227 = vadd.f32 %v211, 1.0
  %v228 = vadd.f32 %v212, 1.0
  %v229 = vadd.f32 %v213, 1.0
  %v230 = vadd.f32 %v214, 1.0
  %v231 = vadd.f32 %v215, 1.0
  %v232 = vadd.f32 %v216, 1.0
  %v233 = vadd.f32 %v217, 1.0
  %v234 = vadd.f32 %v218, 1.0
  %v235 = vadd.f32 %v219, 1.0
  %v236 = vmul.f32 %v108, %v220
  %v237 = vmul.f32 %v109, %v221
  %v238 = vmul.f32 %v110, %v222
  %v239 = vmul.f32 %v111, %v223
  %v240 = vmul.f32 %v112, %v224
  %v241 = vmul.f32 %v113, %v225
  %v242 = vmul.f32 %v114, %v226
  %v243 = vmul.f32 %v115, %v227
  %v244 = vmul.f32 %v116, %v228
  %v245 = vmul.f32 %v117, %v229
  %v246 = vmul.f32 %v118, %v230
  %v247 = vmul.f32 %v119, %v231
  %v248 = vmul.f32 %v120, %v232
  %v249 = vmul.f32 %v121, %v233
  %v250 = vmul.f32 %v122, %v234
  %v251 = vmul.f32 %v123, %v235
  %vm252 = vcmask 64512
  %253 = vst.msk [vmem:[%s4] sm:$0xff] %vm252, %v236
  %254 = vst.msk [vmem:[%s4 + $0x8] sm:$0xff] %vm252, %v237
  %255 = vst.msk [vmem:[%s4 + $0x10] sm:$0xff] %vm252, %v238
  %256 = vst.msk [vmem:[%s4 + $0x18] sm:$0xff] %vm252, %v239
  %257 = vst.msk [vmem:[%s4 + $0x20] sm:$0xff] %vm252, %v240
  %258 = vst.msk [vmem:[%s4 + $0x28] sm:$0xff] %vm252, %v241
  %259 = vst.msk [vmem:[%s4 + $0x30] sm:$0xff] %vm252, %v242
  %260 = vst.msk [vmem:[%s4 + $0x38] sm:$0xff] %vm252, %v243
  %261 = vst.msk [vmem:[%s4 + $0x40] sm:$0xff] %vm252, %v244
  %262 = vst.msk [vmem:[%s4 + $0x48] sm:$0xff] %vm252, %v245
  %263 = vst.msk [vmem:[%s4 + $0x50] sm:$0xff] %vm252, %v246
  %264 = vst.msk [vmem:[%s4 + $0x58] sm:$0xff] %vm252, %v247
  %265 = vst.msk [vmem:[%s4 + $0x60] sm:$0xff] %vm252, %v248
  %266 = vst.msk [vmem:[%s4 + $0x68] sm:$0xff] %vm252, %v249
  %267 = vst.msk [vmem:[%s4 + $0x70] sm:$0xff] %vm252, %v250
  %268 = vst.msk [vmem:[%s4 + $0x78] sm:$0xff] %vm252, %v251
  // Predicated region
  $region18: #{_lambda_.11} parent=0 // pred_check
    _
  $region19: #{_lambda_.11} parent=0 // pred_check_branch
    %270 = sbr.rel (0) target = $region21
  $region20: #{_lambda_.11} parent=0 // pred_region
    _
  $region21: #{_lambda_.11} parent=0 // pred_fallthru
    _
  // Predicated region
  $region22: #{_lambda_.11} parent=0 // pred_check
    _
  $region23: #{_lambda_.11} parent=0 // pred_check_branch
    %272 = sbr.rel (0) target = $region25
  $region24: #{_lambda_.11} parent=0 // pred_region
    _
  $region25: #{_lambda_.11} parent=0 // pred_fallthru
    _

// kernel: _lambda_.10
$region0: #{_lambda_.10}
  #allocation0 [shape = 'u32[]', space=smem, size = 0x4, offset = 0x4, fixed_abs, tag = 'smem constant byte address 0x4 - core index']
  #allocation1 [shape = 'u32[144,128]{1,0:T(1,128)}', space=vmem, size = 0x12000, scoped, tag = 'internal scratch']
  %s0 = inlined_call_operand.vmem [shape: bf16[128,32], index: 0, kind: input, shape index: {}]
  %s1 = inlined_call_operand.vmem [shape: bf16[32,8], index: 1, kind: input, shape index: {}]
  %s2 = inlined_call_operand.vmem [shape: f32[1,8], index: 2, kind: input, shape index: {}]
  %s3 = inlined_call_operand.vmem [shape: f32[128,8], index: 3, kind: output, shape index: {0}]
  %s4 = inlined_call_operand.vmem [shape: f32[2,8], index: 4, kind: output, shape index: {1}]
  %5 = xla_tuple %s3, %s4
  %s6 = sld [smem:[#allocation0]]
  $region34: #{_lambda_.10} parent=0
    _
  %s8 = ssub.s32 1, %s6
  %s9 = scalar_select 0, %s8, %s6
  // Predicated region
  $region2: #{_lambda_.10} parent=0 // pred_check
    _
  $region3: #{_lambda_.10} parent=0 // pred_check_branch
    %11 = sbr.rel (0) target = $region5
  $region4: #{_lambda_.10} parent=0 // pred_region
    _
  $region5: #{_lambda_.10} parent=0 // pred_fallthru
    _
  // Predicated region
  $region6: #{_lambda_.10} parent=0 // pred_check
    _
  $region7: #{_lambda_.10} parent=0 // pred_check_branch
    %13 = sbr.rel (0) target = $region9
  $region8: #{_lambda_.10} parent=0 // pred_region
    _
  $region9: #{_lambda_.10} parent=0 // pred_fallthru
    _
  // Predicated region
  $region10: #{_lambda_.10} parent=0 // pred_check
    _
  $region11: #{_lambda_.10} parent=0 // pred_check_branch
    %15 = sbr.rel (0) target = $region13
  $region12: #{_lambda_.10} parent=0 // pred_region
    _
  $region13: #{_lambda_.10} parent=0 // pred_fallthru
    _
  %v17 = vld [vmem:[%s0] sm:$0xf]
  %v18 = vld [vmem:[%s0 + $0x4] sm:$0xf]
  %v19 = vld [vmem:[%s0 + $0x8] sm:$0xf]
  %v20 = vld [vmem:[%s0 + $0xc] sm:$0xf]
  %v21 = vld [vmem:[%s0 + $0x10] sm:$0xf]
  %v22 = vld [vmem:[%s0 + $0x14] sm:$0xf]
  %v23 = vld [vmem:[%s0 + $0x18] sm:$0xf]
  %v24 = vld [vmem:[%s0 + $0x1c] sm:$0xf]
  %v25 = vld [vmem:[%s0 + $0x20] sm:$0xf]
  %v26 = vld [vmem:[%s0 + $0x24] sm:$0xf]
  %v27 = vld [vmem:[%s0 + $0x28] sm:$0xf]
  %v28 = vld [vmem:[%s0 + $0x2c] sm:$0xf]
  %v29 = vld [vmem:[%s0 + $0x30] sm:$0xf]
  %v30 = vld [vmem:[%s0 + $0x34] sm:$0xf]
  %v31 = vld [vmem:[%s0 + $0x38] sm:$0xf]
  %v32 = vld [vmem:[%s0 + $0x3c] sm:$0xf]
  %v33 = vld [vmem:[%s1] sm:$0xf]
  %v34 = vld [vmem:[%s1 + $0x4] sm:$0xf]
  %v35 = vld [vmem:[%s1 + $0x8] sm:$0xf]
  %v36 = vld [vmem:[%s1 + $0xc] sm:$0xf]
  %v37 = vld [vmem:[%s2] sm:$0x1]
  %v39 = vlaneseq
  %v40 = vshrl.u32 %v39, 7
  %v41 = vsub.s32 0, %v40
  %v42 = vrot.slane %v37, %v41
  %v60 = vunpack.c.l.b16 %v17
  %v61 = vunpack.c.l.b16 %v18
  %v62 = vunpack.c.l.b16 %v19
  %v63 = vunpack.c.l.b16 %v20
  %v64 = vunpack.c.l.b16 %v21
  %v65 = vunpack.c.l.b16 %v22
  %v66 = vunpack.c.l.b16 %v23
  %v67 = vunpack.c.l.b16 %v24
  %v68 = vunpack.c.l.b16 %v25
  %v69 = vunpack.c.l.b16 %v26
  %v70 = vunpack.c.l.b16 %v27
  %v71 = vunpack.c.l.b16 %v28
  %v72 = vunpack.c.l.b16 %v29
  %v73 = vunpack.c.l.b16 %v30
  %v74 = vunpack.c.l.b16 %v31
  %v75 = vunpack.c.l.b16 %v32
  %v76 = vpack.c.b16 %v61, %v60
  %v77 = vpack.c.b16 %v63, %v62
  %v78 = vpack.c.b16 %v65, %v64
  %v79 = vpack.c.b16 %v67, %v66
  %v80 = vpack.c.b16 %v69, %v68
  %v81 = vpack.c.b16 %v71, %v70
  %v82 = vpack.c.b16 %v73, %v72
  %v83 = vpack.c.b16 %v75, %v74
  %v88 = vunpack.c.l.b16 %v33
  %v89 = vunpack.c.l.b16 %v34
  %v90 = vunpack.c.l.b16 %v35
  %v91 = vunpack.c.l.b16 %v36
  %v92 = vpack.c.b16 %v89, %v88
  %v93 = vpack.c.b16 %v91, %v90
  %vm96 = vcmask 261120
  %v98 = vsel %vm96, %v76, 0
  %v101 = vsel %vm96, %v77, 0
  %v104 = vsel %vm96, %v78, 0
  %v107 = vsel %vm96, %v79, 0
  %v110 = vsel %vm96, %v80, 0
  %v113 = vsel %vm96, %v81, 0
  %v116 = vsel %vm96, %v82, 0
  %v119 = vsel %vm96, %v83, 0
  %121 = vmatprep.subr.bf16.mxu0 0
  %122 = vmatpush1.bf16.msra.mxu0 %v92
  %123 = vmatprep.subr.bf16.mxu0 0
  %124 = vmatpush1.bf16.msra.mxu0 %v93
  %125 = vmatprep.subr.bf16.mxu0 0
  %126 = vmatpush1.bf16.msra.mxu0 0
  %127 = vmatprep.subr.bf16.mxu0 0
  %128 = vmatpush1.bf16.msra.mxu0 0
  %129 = vmatprep.subr.bf16.mxu0 0
  %130 = vmatpush1.bf16.msra.mxu0 0
  %131 = vmatprep.subr.bf16.mxu0 0
  %132 = vmatpush1.bf16.msra.mxu0 0
  %133 = vmatprep.subr.bf16.mxu0 0
  %134 = vmatpush1.bf16.msra.mxu0 0
  %135 = vmatprep.subr.bf16.mxu0 0
  %136 = vmatpush1.bf16.msra.mxu0 0
  %137 = vmatprep.subr.bf16.mxu0 0
  %138 = vmatpush1.bf16.msra.mxu0 0
  %139 = vmatprep.subr.bf16.mxu0 0
  %140 = vmatpush1.bf16.msra.mxu0 0
  %141 = vmatprep.subr.bf16.mxu0 0
  %142 = vmatpush1.bf16.msra.mxu0 0
  %143 = vmatprep.subr.bf16.mxu0 0
  %144 = vmatpush1.bf16.msra.mxu0 0
  %145 = vmatprep.subr.bf16.mxu0 0
  %146 = vmatpush1.bf16.msra.mxu0 0
  %147 = vmatprep.subr.bf16.mxu0 0
  %148 = vmatpush1.bf16.msra.mxu0 0
  %149 = vmatprep.subr.bf16.mxu0 0
  %150 = vmatpush1.bf16.msra.mxu0 0
  %151 = vmatprep.subr.bf16.mxu0 0
  %152 = vmatpush1.bf16.msra.mxu0 0
  %153 = vmatprep.mubr.bf16.mxu0 0
  %154 = vmatmul.mubr.bf16.gmra.mrb[0].mxu0 %v98
  %v155 = vpop.f32.mrb[0].mxu0
  %v156 = vadd.f32 %v42, %v155
  %v157 = vpop.f32.mrb[0].mxu0
  %v158 = vpop.f32.mrb[0].mxu0
  %v159 = vadd.f32 %v42, %v158
  %v160 = vpop.f32.mrb[0].mxu0
  %161 = vmatprep.mubr.bf16.mxu0 0
  %162 = vmatmul.mubr.bf16.gmra.mrb[0].mxu0 %v101
  %v163 = vpop.f32.mrb[0].mxu0
  %v164 = vadd.f32 %v42, %v163
  %v165 = vpop.f32.mrb[0].mxu0
  %v166 = vpop.f32.mrb[0].mxu0
  %v167 = vadd.f32 %v42, %v166
  %v168 = vpop.f32.mrb[0].mxu0
  %169 = vmatprep.mubr.bf16.mxu0 0
  %170 = vmatmul.mubr.bf16.gmra.mrb[0].mxu0 %v104
  %v171 = vpop.f32.mrb[0].mxu0
  %v172 = vadd.f32 %v42, %v171
  %v173 = vpop.f32.mrb[0].mxu0
  %v174 = vpop.f32.mrb[0].mxu0
  %v175 = vadd.f32 %v42, %v174
  %v176 = vpop.f32.mrb[0].mxu0
  %177 = vmatprep.mubr.bf16.mxu0 0
  %178 = vmatmul.mubr.bf16.gmra.mrb[0].mxu0 %v107
  %v179 = vpop.f32.mrb[0].mxu0
  %v180 = vadd.f32 %v42, %v179
  %v181 = vpop.f32.mrb[0].mxu0
  %v182 = vpop.f32.mrb[0].mxu0
  %v183 = vadd.f32 %v42, %v182
  %v184 = vpop.f32.mrb[0].mxu0
  %185 = vmatprep.mubr.bf16.mxu0 0
  %186 = vmatmul.mubr.bf16.gmra.mrb[0].mxu0 %v110
  %v187 = vpop.f32.mrb[0].mxu0
  %v188 = vadd.f32 %v42, %v187
  %v189 = vpop.f32.mrb[0].mxu0
  %v190 = vpop.f32.mrb[0].mxu0
  %v191 = vadd.f32 %v42, %v190
  %v192 = vpop.f32.mrb[0].mxu0
  %193 = vmatprep.mubr.bf16.mxu0 0
  %194 = vmatmul.mubr.bf16.gmra.mrb[0].mxu0 %v113
  %v195 = vpop.f32.mrb[0].mxu0
  %v196 = vadd.f32 %v42, %v195
  %v197 = vpop.f32.mrb[0].mxu0
  %v198 = vpop.f32.mrb[0].mxu0
  %v199 = vadd.f32 %v42, %v198
  %v200 = vpop.f32.mrb[0].mxu0
  %201 = vmatprep.mubr.bf16.mxu0 0
  %202 = vmatmul.mubr.bf16.gmra.mrb[0].mxu0 %v116
  %v203 = vpop.f32.mrb[0].mxu0
  %v204 = vadd.f32 %v42, %v203
  %v205 = vpop.f32.mrb[0].mxu0
  %v206 = vpop.f32.mrb[0].mxu0
  %v207 = vadd.f32 %v42, %v206
  %v208 = vpop.f32.mrb[0].mxu0
  %209 = vmatprep.mubr.bf16.mxu0 0
  %210 = vmatmul.mubr.bf16.gmra.mrb[0].mxu0 %v119
  %v211 = vpop.f32.mrb[0].mxu0
  %v212 = vadd.f32 %v42, %v211
  %v213 = vpop.f32.mrb[0].mxu0
  %v214 = vpop.f32.mrb[0].mxu0
  %v215 = vadd.f32 %v42, %v214
  %v216 = vpop.f32.mrb[0].mxu0
  %217 = vdwg.mxu0
  %vm218 = vcmask 64512
  %219 = vst.msk [vmem:[%s3] sm:$0xff] %vm218, %v156
  %220 = vst.msk [vmem:[%s3 + $0x8] sm:$0xff] %vm218, %v159
  %221 = vst.msk [vmem:[%s3 + $0x10] sm:$0xff] %vm218, %v164
  %222 = vst.msk [vmem:[%s3 + $0x18] sm:$0xff] %vm218, %v167
  %223 = vst.msk [vmem:[%s3 + $0x20] sm:$0xff] %vm218, %v172
  %224 = vst.msk [vmem:[%s3 + $0x28] sm:$0xff] %vm218, %v175
  %225 = vst.msk [vmem:[%s3 + $0x30] sm:$0xff] %vm218, %v180
  %226 = vst.msk [vmem:[%s3 + $0x38] sm:$0xff] %vm218, %v183
  %227 = vst.msk [vmem:[%s3 + $0x40] sm:$0xff] %vm218, %v188
  %228 = vst.msk [vmem:[%s3 + $0x48] sm:$0xff] %vm218, %v191
  %229 = vst.msk [vmem:[%s3 + $0x50] sm:$0xff] %vm218, %v196
  %230 = vst.msk [vmem:[%s3 + $0x58] sm:$0xff] %vm218, %v199
  %231 = vst.msk [vmem:[%s3 + $0x60] sm:$0xff] %vm218, %v204
  %232 = vst.msk [vmem:[%s3 + $0x68] sm:$0xff] %vm218, %v207
  %233 = vst.msk [vmem:[%s3 + $0x70] sm:$0xff] %vm218, %v212
  %234 = vst.msk [vmem:[%s3 + $0x78] sm:$0xff] %vm218, %v215
  %v235 = vsel %vm218, %v156, 0.0
  %v236 = vsel %vm218, %v159, 0.0
  %v237 = vadd.f32 %v235, %v236
  %v238 = vsel %vm218, %v164, 0.0
  %v239 = vadd.f32 %v237, %v238
  %v240 = vsel %vm218, %v167, 0.0
  %v241 = vadd.f32 %v239, %v240
  %v242 = vsel %vm218, %v172, 0.0
  %v243 = vadd.f32 %v241, %v242
  %v244 = vsel %vm218, %v175, 0.0
  %v245 = vadd.f32 %v243, %v244
  %v246 = vsel %vm218, %v180, 0.0
  %v247 = vadd.f32 %v245, %v246
  %v248 = vsel %vm218, %v183, 0.0
  %v249 = vadd.f32 %v247, %v248
  %v250 = vsel %vm218, %v188, 0.0
  %v251 = vadd.f32 %v249, %v250
  %v252 = vsel %vm218, %v191, 0.0
  %v253 = vadd.f32 %v251, %v252
  %v254 = vsel %vm218, %v196, 0.0
  %v255 = vadd.f32 %v253, %v254
  %v256 = vsel %vm218, %v199, 0.0
  %v257 = vadd.f32 %v255, %v256
  %v258 = vsel %vm218, %v204, 0.0
  %v259 = vadd.f32 %v257, %v258
  %v260 = vsel %vm218, %v207, 0.0
  %v261 = vadd.f32 %v259, %v260
  %v262 = vsel %vm218, %v212, 0.0
  %v263 = vadd.f32 %v261, %v262
  %v264 = vsel %vm218, %v215, 0.0
  %v265 = vadd.f32 %v263, %v264
  %v266 = vrot.slane %v265, 4
  %v267 = vadd.f32 %v265, %v266
  %v268 = vrot.slane %v267, 2
  %v269 = vadd.f32 %v267, %v268
  %v270 = vrot.slane %v269, 1
  %v271 = vadd.f32 %v269, %v270
  %v272 = vmul.f32 %v156, %v156
  %v273 = vmul.f32 %v159, %v159
  %v274 = vmul.f32 %v164, %v164
  %v275 = vmul.f32 %v167, %v167
  %v276 = vmul.f32 %v172, %v172
  %v277 = vmul.f32 %v175, %v175
  %v278 = vmul.f32 %v180, %v180
  %v279 = vmul.f32 %v183, %v183
  %v280 = vmul.f32 %v188, %v188
  %v281 = vmul.f32 %v191, %v191
  %v282 = vmul.f32 %v196, %v196
  %v283 = vmul.f32 %v199, %v199
  %v284 = vmul.f32 %v204, %v204
  %v285 = vmul.f32 %v207, %v207
  %v286 = vmul.f32 %v212, %v212
  %v287 = vmul.f32 %v215, %v215
  %v288 = vsel %vm218, %v272, 0.0
  %v289 = vsel %vm218, %v273, 0.0
  %v290 = vadd.f32 %v288, %v289
  %v291 = vsel %vm218, %v274, 0.0
  %v292 = vadd.f32 %v290, %v291
  %v293 = vsel %vm218, %v275, 0.0
  %v294 = vadd.f32 %v292, %v293
  %v295 = vsel %vm218, %v276, 0.0
  %v296 = vadd.f32 %v294, %v295
  %v297 = vsel %vm218, %v277, 0.0
  %v298 = vadd.f32 %v296, %v297
  %v299 = vsel %vm218, %v278, 0.0
  %v300 = vadd.f32 %v298, %v299
  %v301 = vsel %vm218, %v279, 0.0
  %v302 = vadd.f32 %v300, %v301
  %v303 = vsel %vm218, %v280, 0.0
  %v304 = vadd.f32 %v302, %v303
  %v305 = vsel %vm218, %v281, 0.0
  %v306 = vadd.f32 %v304, %v305
  %v307 = vsel %vm218, %v282, 0.0
  %v308 = vadd.f32 %v306, %v307
  %v309 = vsel %vm218, %v283, 0.0
  %v310 = vadd.f32 %v308, %v309
  %v311 = vsel %vm218, %v284, 0.0
  %v312 = vadd.f32 %v310, %v311
  %v313 = vsel %vm218, %v285, 0.0
  %v314 = vadd.f32 %v312, %v313
  %v315 = vsel %vm218, %v286, 0.0
  %v316 = vadd.f32 %v314, %v315
  %v317 = vsel %vm218, %v287, 0.0
  %v318 = vadd.f32 %v316, %v317
  %v319 = vrot.slane %v318, 4
  %v320 = vadd.f32 %v318, %v319
  %v321 = vrot.slane %v320, 2
  %v322 = vadd.f32 %v320, %v321
  %v323 = vrot.slane %v322, 1
  %v324 = vadd.f32 %v322, %v323
  %vm325 = vcmask 1040384
  %v326 = vsel %vm325, %v271, %v324
  %p327 = scmp.eq.s32.totalorder 0, 0
  // Predicated region
  $region14: #{_lambda_.10} parent=0 // pred_check
    %p328 = pneg %p327
  $region15: #{_lambda_.10} parent=0 // pred_check_branch
    %330 = sbr.rel (%p328) target = $region17
  $region16: #{_lambda_.10} parent=0 // pred_region
    %vm331 = vcmask 58368
    %332 = vst.msk [vmem:[%s4] sm:$0x3] %vm331, 0.0
  $region17: #{_lambda_.10} parent=0 // pred_fallthru
    _
  %v333 = vld [vmem:[%s4] sm:$0x3]
  %v334 = vadd.f32 %v333, %v326
  %vm335 = vcmask 58368
  %336 = vst.msk [vmem:[%s4] sm:$0x3] %vm335, %v334
  // Predicated region
  $region18: #{_lambda_.10} parent=0 // pred_check
    _
  $region19: #{_lambda_.10} parent=0 // pred_check_branch
    %338 = sbr.rel (0) target = $region21
  $region20: #{_lambda_.10} parent=0 // pred_region
    _
  $region21: #{_lambda_.10} parent=0 // pred_fallthru
    _
  // Predicated region
  $region22: #{_lambda_.10} parent=0 // pred_check
    _
  $region23: #{_lambda_.10} parent=0 // pred_check_branch
    %340 = sbr.rel (0) target = $region25
  $region24: #{_lambda_.10} parent=0 // pred_region
    _
  $region25: #{_lambda_.10} parent=0 // pred_fallthru
    _
  // Predicated region
  $region26: #{_lambda_.10} parent=0 // pred_check
    _
  $region27: #{_lambda_.10} parent=0 // pred_check_branch
    %342 = sbr.rel (0) target = $region29
  $region28: #{_lambda_.10} parent=0 // pred_region
    _
  $region29: #{_lambda_.10} parent=0 // pred_fallthru
    _
  // Predicated region
  $region30: #{_lambda_.10} parent=0 // pred_check
    _
  $region31: #{_lambda_.10} parent=0 // pred_check_branch
    %344 = sbr.rel (0) target = $region33
  $region32: #{_lambda_.10} parent=0 // pred_region
    _
  $region33: #{_lambda_.10} parent=0 // pred_fallthru
    _

// kernel: _lambda_.13
$region0: #{_lambda_.13}
  #allocation0 [shape = 'u32[]', space=smem, size = 0x4, offset = 0x4, fixed_abs, tag = 'smem constant byte address 0x4 - core index']
  #allocation1 [shape = 'u32[144,128]{1,0:T(1,128)}', space=vmem, size = 0x12000, scoped, tag = 'internal scratch']
  %s0 = inlined_call_operand.vmem [shape: bf16[2,16,32], index: 0, kind: input, shape index: {}]
  %s1 = inlined_call_operand.vmem [shape: bf16[2,2,16,16], index: 1, kind: input, shape index: {}]
  %s2 = inlined_call_operand.vmem [shape: f32[2,2,16,1], index: 2, kind: input, shape index: {}]
  %s3 = inlined_call_operand.vmem [shape: f32[1,32], index: 3, kind: input, shape index: {}]
  %s4 = inlined_call_operand.vmem [shape: f32[1,32], index: 4, kind: input, shape index: {}]
  %s5 = inlined_call_operand.vmem [shape: bf16[16,48], index: 5, kind: input, shape index: {}]
  %s6 = inlined_call_operand.vmem [shape: f32[1,48], index: 6, kind: input, shape index: {}]
  %s7 = inlined_call_operand.vmem [shape: bf16[32,32], index: 7, kind: input, shape index: {}]
  %s8 = inlined_call_operand.vmem [shape: bf16[2,16,32], index: 8, kind: output, shape index: {}]
  %s9 = sld [smem:[#allocation0]]
  $region65: #{_lambda_.13} parent=0
    _
  %s11 = ssub.s32 1, %s9
  %s12 = scalar_select 0, %s11, %s9
  loop: start=0, step=1, limit=4
  $region2: #{_lambda_.13} parent=0 // loop_pre_header
    _
  $region3: #{_lambda_.13} parent=0 // loop_header
    %s14 = sphi 0, %s18
    %p15 = scmp.ge.s32.totalorder %s14, 4
    %s24 = sphi 0, %s26
    %s27 = sphi 0, %s24
    %s28 = sphi 0, %s27
    %s44 = sphi 0, %s28
    %s50 = sphi 0, %s52
    %s53 = sphi 0, %s50
    %s54 = sphi 0, %s53
    %s70 = sphi 0, %s54
    %s76 = sphi 0, %s78
    %s79 = sphi 0, %s76
    %s80 = sphi 0, %s79
    %s96 = sphi 0, %s80
    %s100 = sphi 0, %s100
    %s102 = sphi 0, %s100
    %s103 = sphi 0, %s102
    %s117 = sphi 0, %s103
    %s121 = sphi 0, %s121
    %s123 = sphi 0, %s121
    %s124 = sphi 0, %s123
    %s138 = sphi 0, %s124
    %s142 = sphi 0, %s142
    %s144 = sphi 0, %s142
    %s145 = sphi 0, %s144
    %s159 = sphi 0, %s145
    %s163 = sphi 0, %s163
    %s165 = sphi 0, %s163
    %s166 = sphi 0, %s165
    %s180 = sphi 0, %s166
    %s184 = sphi 0, %s184
    %s186 = sphi 0, %s184
    %s187 = sphi 0, %s186
    %s201 = sphi 0, %s187
    %s207 = sphi 0, %s209
    %s210 = sphi 0, %s207
    %s211 = sphi 0, %s210
    %s227 = sphi 0, %s211
  $region4: #{_lambda_.13} parent=0 // loop_header_branch
    %17 = sbr.rel (%p15) target = $region8
  $region5: #{_lambda_.13} parent=0 // loop_body
    %s19 = ssub.s32 %s14, 1
    %s20 = ssub.s32 %s14, 2
    %s21 = sadd.s32 %s14, 1
    %s22 = ssub.s32 %s14, %s21
    %p23 = scmp.eq.s32.totalorder %s22, 0
    %s25 = sadd.s32 %s24, 1
    %s26 = scalar_select %p23, %s24, %s25
    %p29 = pneg %p23
    %p30 = scmp.eq.s32.totalorder %s14, 1
    %p31 = por %p29, %p30
    %p32 = scmp.ne.s32.totalorder %s24, %s27
    %p33 = scmp.eq.s32.totalorder %s14, 0
    %p34 = por %p32, %p33
    %p35 = scmp.ne.s32.totalorder %s24, %s27
    %p36 = scmp.eq.s32.totalorder %s19, 1
    %p37 = por %p35, %p36
    %p38 = scmp.ne.s32.totalorder %s27, %s28
    %p39 = scmp.eq.s32.totalorder %s19, 0
    %p40 = por %p38, %p39
    %p41 = scmp.ne.s32.totalorder %s27, %s28
    %p42 = scmp.eq.s32.totalorder %s20, 1
    %p43 = por %p41, %p42
    %p45 = scmp.ne.s32.totalorder %s28, %s44
    %p46 = scmp.eq.s32.totalorder %s20, 0
    %p47 = por %p45, %p46
    %s48 = ssub.s32 %s14, %s21
    %p49 = scmp.eq.s32.totalorder %s48, 0
    %s51 = sadd.s32 %s50, 1
    %s52 = scalar_select %p49, %s50, %s51
    %p55 = pneg %p49
    %p56 = scmp.eq.s32.totalorder %s14, 1
    %p57 = por %p55, %p56
    %p58 = scmp.ne.s32.totalorder %s50, %s53
    %p59 = scmp.eq.s32.totalorder %s14, 0
    %p60 = por %p58, %p59
    %p61 = scmp.ne.s32.totalorder %s50, %s53
    %p62 = scmp.eq.s32.totalorder %s19, 1
    %p63 = por %p61, %p62
    %p64 = scmp.ne.s32.totalorder %s53, %s54
    %p65 = scmp.eq.s32.totalorder %s19, 0
    %p66 = por %p64, %p65
    %p67 = scmp.ne.s32.totalorder %s53, %s54
    %p68 = scmp.eq.s32.totalorder %s20, 1
    %p69 = por %p67, %p68
    %p71 = scmp.ne.s32.totalorder %s54, %s70
    %p72 = scmp.eq.s32.totalorder %s20, 0
    %p73 = por %p71, %p72
    %s74 = ssub.s32 %s14, %s21
    %p75 = scmp.eq.s32.totalorder %s74, 0
    %s77 = sadd.s32 %s76, 1
    %s78 = scalar_select %p75, %s76, %s77
    %p81 = pneg %p75
    %p82 = scmp.eq.s32.totalorder %s14, 1
    %p83 = por %p81, %p82
    %p84 = scmp.ne.s32.totalorder %s76, %s79
    %p85 = scmp.eq.s32.totalorder %s14, 0
    %p86 = por %p84, %p85
    %p87 = scmp.ne.s32.totalorder %s76, %s79
    %p88 = scmp.eq.s32.totalorder %s19, 1
    %p89 = por %p87, %p88
    %p90 = scmp.ne.s32.totalorder %s79, %s80
    %p91 = scmp.eq.s32.totalorder %s19, 0
    %p92 = por %p90, %p91
    %p93 = scmp.ne.s32.totalorder %s79, %s80
    %p94 = scmp.eq.s32.totalorder %s20, 1
    %p95 = por %p93, %p94
    %p97 = scmp.ne.s32.totalorder %s80, %s96
    %p98 = scmp.eq.s32.totalorder %s20, 0
    %p99 = por %p97, %p98
    %s101 = sadd.s32 %s100, 1
    %p104 = scmp.eq.s32.totalorder %s14, 1
    %p105 = scmp.ne.s32.totalorder %s100, %s102
    %p106 = scmp.eq.s32.totalorder %s14, 0
    %p107 = por %p105, %p106
    %p108 = scmp.ne.s32.totalorder %s100, %s102
    %p109 = scmp.eq.s32.totalorder %s19, 1
    %p110 = por %p108, %p109
    %p111 = scmp.ne.s32.totalorder %s102, %s103
    %p112 = scmp.eq.s32.totalorder %s19, 0
    %p113 = por %p111, %p112
    %p114 = scmp.ne.s32.totalorder %s102, %s103
    %p115 = scmp.eq.s32.totalorder %s20, 1
    %p116 = por %p114, %p115
    %p118 = scmp.ne.s32.totalorder %s103, %s117
    %p119 = scmp.eq.s32.totalorder %s20, 0
    %p120 = por %p118, %p119
    %s122 = sadd.s32 %s121, 1
    %p125 = scmp.eq.s32.totalorder %s14, 1
    %p126 = scmp.ne.s32.totalorder %s121, %s123
    %p127 = scmp.eq.s32.totalorder %s14, 0
    %p128 = por %p126, %p127
    %p129 = scmp.ne.s32.totalorder %s121, %s123
    %p130 = scmp.eq.s32.totalorder %s19, 1
    %p131 = por %p129, %p130
    %p132 = scmp.ne.s32.totalorder %s123, %s124
    %p133 = scmp.eq.s32.totalorder %s19, 0
    %p134 = por %p132, %p133
    %p135 = scmp.ne.s32.totalorder %s123, %s124
    %p136 = scmp.eq.s32.totalorder %s20, 1
    %p137 = por %p135, %p136
    %p139 = scmp.ne.s32.totalorder %s124, %s138
    %p140 = scmp.eq.s32.totalorder %s20, 0
    %p141 = por %p139, %p140
    %s143 = sadd.s32 %s142, 1
    %p146 = scmp.eq.s32.totalorder %s14, 1
    %p147 = scmp.ne.s32.totalorder %s142, %s144
    %p148 = scmp.eq.s32.totalorder %s14, 0
    %p149 = por %p147, %p148
    %p150 = scmp.ne.s32.totalorder %s142, %s144
    %p151 = scmp.eq.s32.totalorder %s19, 1
    %p152 = por %p150, %p151
    %p153 = scmp.ne.s32.totalorder %s144, %s145
    %p154 = scmp.eq.s32.totalorder %s19, 0
    %p155 = por %p153, %p154
    %p156 = scmp.ne.s32.totalorder %s144, %s145
    %p157 = scmp.eq.s32.totalorder %s20, 1
    %p158 = por %p156, %p157
    %p160 = scmp.ne.s32.totalorder %s145, %s159
    %p161 = scmp.eq.s32.totalorder %s20, 0
    %p162 = por %p160, %p161
    %s164 = sadd.s32 %s163, 1
    %p167 = scmp.eq.s32.totalorder %s14, 1
    %p168 = scmp.ne.s32.totalorder %s163, %s165
    %p169 = scmp.eq.s32.totalorder %s14, 0
    %p170 = por %p168, %p169
    %p171 = scmp.ne.s32.totalorder %s163, %s165
    %p172 = scmp.eq.s32.totalorder %s19, 1
    %p173 = por %p171, %p172
    %p174 = scmp.ne.s32.totalorder %s165, %s166
    %p175 = scmp.eq.s32.totalorder %s19, 0
    %p176 = por %p174, %p175
    %p177 = scmp.ne.s32.totalorder %s165, %s166
    %p178 = scmp.eq.s32.totalorder %s20, 1
    %p179 = por %p177, %p178
    %p181 = scmp.ne.s32.totalorder %s166, %s180
    %p182 = scmp.eq.s32.totalorder %s20, 0
    %p183 = por %p181, %p182
    %s185 = sadd.s32 %s184, 1
    %p188 = scmp.eq.s32.totalorder %s14, 1
    %p189 = scmp.ne.s32.totalorder %s184, %s186
    %p190 = scmp.eq.s32.totalorder %s14, 0
    %p191 = por %p189, %p190
    %p192 = scmp.ne.s32.totalorder %s184, %s186
    %p193 = scmp.eq.s32.totalorder %s19, 1
    %p194 = por %p192, %p193
    %p195 = scmp.ne.s32.totalorder %s186, %s187
    %p196 = scmp.eq.s32.totalorder %s19, 0
    %p197 = por %p195, %p196
    %p198 = scmp.ne.s32.totalorder %s186, %s187
    %p199 = scmp.eq.s32.totalorder %s20, 1
    %p200 = por %p198, %p199
    %p202 = scmp.ne.s32.totalorder %s187, %s201
    %p203 = scmp.eq.s32.totalorder %s20, 0
    %p204 = por %p202, %p203
    %s205 = ssub.s32 %s14, %s21
    %p206 = scmp.eq.s32.totalorder %s205, 0
    %s208 = sadd.s32 %s207, 1
    %s209 = scalar_select %p206, %s207, %s208
    %p212 = pneg %p206
    %p213 = scmp.eq.s32.totalorder %s14, 1
    %p214 = por %p212, %p213
    %p215 = scmp.ne.s32.totalorder %s207, %s210
    %p216 = scmp.eq.s32.totalorder %s14, 0
    %p217 = por %p215, %p216
    %p218 = scmp.ne.s32.totalorder %s207, %s210
    %p219 = scmp.eq.s32.totalorder %s19, 1
    %p220 = por %p218, %p219
    %p221 = scmp.ne.s32.totalorder %s210, %s211
    %p222 = scmp.eq.s32.totalorder %s19, 0
    %p223 = por %p221, %p222
    %p224 = scmp.ne.s32.totalorder %s210, %s211
    %p225 = scmp.eq.s32.totalorder %s20, 1
    %p226 = por %p224, %p225
    %p228 = scmp.ne.s32.totalorder %s211, %s227
    %p229 = scmp.eq.s32.totalorder %s20, 0
    %p230 = por %p228, %p229
    %p231 = scmp.le.s32.totalorder 1, %s14
    %p232 = scmp.lt.s32.totalorder %s14, 3
    %p233 = pnand %p231, %p232
    %p234 = pneg %p233
    // Predicated region
    $region9: #{_lambda_.13} parent=5 // pred_check
      _
    $region10: #{_lambda_.13} parent=5 // pred_check_branch
      %236 = sbr.rel (%p233) target = $region12
    $region11: #{_lambda_.13} parent=5 // pred_region
      %s237 = ssub.s32 %s14, 1
      // Predicated region
      $region13: #{_lambda_.13} parent=11 // pred_check
        %p238 = pneg %p113
      $region14: #{_lambda_.13} parent=11 // pred_check_branch
        %240 = sbr.rel (%p238) target = $region16
      $region15: #{_lambda_.13} parent=11 // pred_region
        _
      $region16: #{_lambda_.13} parent=11 // pred_fallthru
        _
      // Predicated region
      $region17: #{_lambda_.13} parent=11 // pred_check
        %p241 = pneg %p134
      $region18: #{_lambda_.13} parent=11 // pred_check_branch
        %243 = sbr.rel (%p241) target = $region20
      $region19: #{_lambda_.13} parent=11 // pred_region
        _
      $region20: #{_lambda_.13} parent=11 // pred_fallthru
        _
      // Predicated region
      $region21: #{_lambda_.13} parent=11 // pred_check
        %p244 = pneg %p155
      $region22: #{_lambda_.13} parent=11 // pred_check_branch
        %246 = sbr.rel (%p244) target = $region24
      $region23: #{_lambda_.13} parent=11 // pred_region
        _
      $region24: #{_lambda_.13} parent=11 // pred_fallthru
        _
      // Predicated region
      $region25: #{_lambda_.13} parent=11 // pred_check
        %p247 = pneg %p176
      $region26: #{_lambda_.13} parent=11 // pred_check_branch
        %249 = sbr.rel (%p247) target = $region28
      $region27: #{_lambda_.13} parent=11 // pred_region
        _
      $region28: #{_lambda_.13} parent=11 // pred_fallthru
        _
      // Predicated region
      $region29: #{_lambda_.13} parent=11 // pred_check
        %p250 = pneg %p197
      $region30: #{_lambda_.13} parent=11 // pred_check_branch
        %252 = sbr.rel (%p250) target = $region32
      $region31: #{_lambda_.13} parent=11 // pred_region
        _
      $region32: #{_lambda_.13} parent=11 // pred_fallthru
        _
    $region12: #{_lambda_.13} parent=5 // pred_fallthru
      _
    %p253 = scmp.lt.s32.totalorder %s14, 2
    // Predicated region
    $region33: #{_lambda_.13} parent=5 // pred_check
      %p254 = pneg %p253
    $region34: #{_lambda_.13} parent=5 // pred_check_branch
      %256 = sbr.rel (%p254) target = $region36
    $region35: #{_lambda_.13} parent=5 // pred_region
      // Predicated region
      $region37: #{_lambda_.13} parent=35 // pred_check
        %p257 = pneg %p34
      $region38: #{_lambda_.13} parent=35 // pred_check_branch
        %259 = sbr.rel (%p257) target = $region40
      $region39: #{_lambda_.13} parent=35 // pred_region
        %p260 = scmp.lt.s32.totalorder %s14, 1
        %s261 = scalar_select %p260, %s14, 1
        %s262 = smul.addr %s261, 2
        %s263 = smul.addr %s262, 4
        %s264 = scalar_lea.vmem %s0, %s263
      $region40: #{_lambda_.13} parent=35 // pred_fallthru
        _
      // Predicated region
      $region41: #{_lambda_.13} parent=35 // pred_check
        %p265 = pneg %p60
      $region42: #{_lambda_.13} parent=35 // pred_check_branch
        %267 = sbr.rel (%p265) target = $region44
      $region43: #{_lambda_.13} parent=35 // pred_region
        %p268 = scmp.lt.s32.totalorder %s14, 1
        %s269 = scalar_select %p268, %s14, 1
        %s270 = smul.addr %s269, 4
        %s271 = smul.addr %s270, 4
        %s272 = scalar_lea.vmem %s1, %s271
      $region44: #{_lambda_.13} parent=35 // pred_fallthru
        _
      // Predicated region
      $region45: #{_lambda_.13} parent=35 // pred_check
        %p273 = pneg %p86
      $region46: #{_lambda_.13} parent=35 // pred_check_branch
        %275 = sbr.rel (%p273) target = $region48
      $region47: #{_lambda_.13} parent=35 // pred_region
        %p276 = scmp.lt.s32.totalorder %s14, 1
        %s277 = scalar_select %p276, %s14, 1
        %s278 = smul.addr %s277, 4
        %s279 = smul.addr %s278, 8
        %s280 = scalar_lea.vmem %s2, %s279
      $region48: #{_lambda_.13} parent=35 // pred_fallthru
        _
    $region36: #{_lambda_.13} parent=5 // pred_fallthru
      _
    %p281 = scmp.le.s32.totalorder 1, %s14
    %p282 = scmp.lt.s32.totalorder %s14, 3
    %p283 = pnand %p281, %p282
    %p284 = pneg %p283
    // Predicated region
    $region49: #{_lambda_.13} parent=5 // pred_check
      _
    $region50: #{_lambda_.13} parent=5 // pred_check_branch
      %286 = sbr.rel (%p283) target = $region52
    $region51: #{_lambda_.13} parent=5 // pred_region
      %s287 = ssub.s32 %s14, 1
      %p288 = scmp.lt.s32.totalorder %s19, 1
      %s289 = scalar_select %p288, %s19, 1
      %s290 = smul.addr %s289, 2
      %s291 = smul.addr %s290, 4
      %s292 = scalar_lea.vmem %s0, %s291
      %p293 = pneg %p40
      %p294 = pneg %p37
      %p295 = scmp.lt.s32.totalorder %s19, 1
      %s296 = scalar_select %p295, %s19, 1
      %s297 = smul.addr %s296, 4
      %s298 = smul.addr %s297, 4
      %s299 = scalar_lea.vmem %s1, %s298
      %p300 = pneg %p66
      %p301 = pneg %p63
      %p302 = scmp.lt.s32.totalorder %s19, 1
      %s303 = scalar_select %p302, %s19, 1
      %s304 = smul.addr %s303, 4
      %s305 = smul.addr %s304, 8
      %s306 = scalar_lea.vmem %s2, %s305
      %p307 = pneg %p92
      %p308 = pneg %p89
      %p309 = pneg %p113
      %p310 = pneg %p110
      %p311 = pneg %p134
      %p312 = pneg %p131
      %p313 = pneg %p155
      %p314 = pneg %p152
      %p315 = pneg %p176
      %p316 = pneg %p173
      %p317 = pneg %p197
      %p318 = pneg %p194
      %p319 = pneg %p223
      %p320 = pneg %p220
      %p321 = scmp.lt.s32.totalorder %s19, 1
      %s322 = scalar_select %p321, %s19, 1
      %s323 = smul.addr %s322, 2
      %s324 = smul.addr %s323, 4
      %s325 = scalar_lea.vmem %s8, %s324
      %p326 = scmp.lt.s32.totalorder %s19, 1
      %s327 = scalar_select %p326, %s19, 1
      %s328 = smul.addr %s327, 2
      %s329 = smul.addr %s328, 4
      %s330 = scalar_lea.vmem %s0, %s329
      %p331 = scmp.lt.s32.totalorder %s19, 1
      %s332 = scalar_select %p331, %s19, 1
      %s333 = smul.addr %s332, 4
      %s334 = smul.addr %s333, 4
      %s335 = scalar_lea.vmem %s1, %s334
      %p336 = scmp.lt.s32.totalorder %s19, 1
      %s337 = scalar_select %p336, %s19, 1
      %s338 = smul.addr %s337, 4
      %s339 = smul.addr %s338, 8
      %s340 = scalar_lea.vmem %s2, %s339
      %p341 = scmp.lt.s32.totalorder %s19, 1
      %s342 = scalar_select %p341, %s19, 1
      %s343 = smul.addr %s342, 2
      %s344 = smul.addr %s343, 4
      %s345 = scalar_lea.vmem %s8, %s344
      %v347 = vld [vmem:[%s330] sm:$0xf]
      %v348 = vld [vmem:[%s330 + $0x4] sm:$0xf]
      %v349 = vunpack.c.l.bf16 %v347
      %v350 = vunpack.c.l.bf16 %v348
      %v351 = vld [vmem:[%s3] sm:$0x1]
      %v352 = vld [vmem:[%s4] sm:$0x1]
      %vm353 = vcmask 261120
      %v354 = vsel %vm353, %v349, 0.0
      %355 = vadd.xlane.f32.xlu0 %v354
      %v356 = vpop.xlane.xlu0 %355
      %v357 = vsel %vm353, %v350, 0.0
      %358 = vadd.xlane.f32.xlu0 %v357
      %v359 = vpop.xlane.xlu0 %358
      %v360 = vrcp.pop 32.0
      %v361 = vmul.f32 %v356, %v360
      %v362 = vmul.f32 %v359, %v360
      %v363 = vsub.f32 %v349, %v361
      %v364 = vsub.f32 %v350, %v362
      %v365 = vmul.f32 %v363, %v363
      %v366 = vmul.f32 %v364, %v364
      %v367 = vsel %vm353, %v365, 0.0
      %368 = vadd.xlane.f32.xlu0 %v367
      %v369 = vpop.xlane.xlu0 %368
      %v370 = vsel %vm353, %v366, 0.0
      %371 = vadd.xlane.f32.xlu0 %v370
      %v372 = vpop.xlane.xlu0 %371
      %v373 = vmul.f32 %v369, %v360
      %v374 = vmul.f32 %v372, %v360
      %v375 = vadd.f32 %v373, 1e-05
      %v376 = vadd.f32 %v374, 1e-05
      %v377 = vrsqrt.pop %v375
      %v378 = vrsqrt.pop %v376
      %v379 = vmul.f32 %v363, %v377
      %v380 = vmul.f32 %v364, %v378
      %v382 = vlaneseq
      %v383 = vshrl.u32 %v382, 7
      %v384 = vsub.s32 0, %v383
      %v385 = vrot.slane %v351, %v384
      %v387 = vmul.f32 %v379, %v385
      %v388 = vmul.f32 %v380, %v385
      %v390 = vlaneseq
      %v391 = vshrl.u32 %v390, 7
      %v392 = vsub.s32 0, %v391
      %v393 = vrot.slane %v352, %v392
      %v395 = vadd.f32 %v387, %v393
      %v396 = vadd.f32 %v388, %v393
      %399 = vrot.lane.b32.xlu0 %v395, 112
      %v400 = vpop.permute.xlu0 %399
      %401 = vrot.lane.b32.xlu0 %v396, 112
      %v402 = vpop.permute.xlu0 %401
      %v405 = vld [vmem:[%s335] sm:$0xf]
      %v406 = vld [vmem:[%s335 + $0x4] sm:$0xf]
      %v407 = vld [vmem:[%s335 + $0x8] sm:$0xf]
      %v408 = vld [vmem:[%s335 + $0xc] sm:$0xf]
      %v409 = vpack.c.bf16 %v396, %v395
      %v410 = vpack.c.bf16 %v402, %v400
      %v413 = vunpack.c.l.b16 %v405
      %v414 = vunpack.c.l.b16 %v406
      %v415 = vpack.c.b16 %v414, %v413
      %vm416 = vcmask 130048
      %v418 = vsel %vm416, %v415, 0
      %420 = vmatprep.subr.bf16.mxu0 0
      %421 = vmatpush1.bf16.msra.mxu0 %v409
      %422 = vmatprep.subr.bf16.mxu0 0
      %423 = vmatpush1.bf16.msra.mxu0 0
      %424 = vmatprep.subr.bf16.mxu0 0
      %425 = vmatpush1.bf16.msra.mxu0 0
      %426 = vmatprep.subr.bf16.mxu0 0
      %427 = vmatpush1.bf16.msra.mxu0 0
      %428 = vmatprep.subr.bf16.mxu0 0
      %429 = vmatpush1.bf16.msra.mxu0 0
      %430 = vmatprep.subr.bf16.mxu0 0
      %431 = vmatpush1.bf16.msra.mxu0 0
      %432 = vmatprep.subr.bf16.mxu0 0
      %433 = vmatpush1.bf16.msra.mxu0 0
      %434 = vmatprep.subr.bf16.mxu0 0
      %435 = vmatpush1.bf16.msra.mxu0 0
      %436 = vmatprep.subr.bf16.mxu0 0
      %437 = vmatpush1.bf16.msra.mxu0 0
      %438 = vmatprep.subr.bf16.mxu0 0
      %439 = vmatpush1.bf16.msra.mxu0 0
      %440 = vmatprep.subr.bf16.mxu0 0
      %441 = vmatpush1.bf16.msra.mxu0 0
      %442 = vmatprep.subr.bf16.mxu0 0
      %443 = vmatpush1.bf16.msra.mxu0 0
      %444 = vmatprep.subr.bf16.mxu0 0
      %445 = vmatpush1.bf16.msra.mxu0 0
      %446 = vmatprep.subr.bf16.mxu0 0
      %447 = vmatpush1.bf16.msra.mxu0 0
      %448 = vmatprep.subr.bf16.mxu0 0
      %449 = vmatpush1.bf16.msra.mxu0 0
      %450 = vmatprep.subr.bf16.mxu0 0
      %451 = vmatpush1.bf16.msra.mxu0 0
      %452 = vmatprep.mubr.bf16.mxu0 0
      %453 = vmatmul.mubr.bf16.gmra.mrb[0].mxu0 %v418
      %v454 = vpop.f32.mrb[0].mxu0
      %v455 = vadd.f32 %v395, %v454
      %v456 = vpop.f32.mrb[0].mxu0
      %v457 = vpop.f32.mrb[0].mxu0
      %v458 = vadd.f32 %v396, %v457
      %v459 = vpop.f32.mrb[0].mxu0
      %460 = vdwg.mxu0
      %v463 = vunpack.c.l.b16 %v407
      %v464 = vunpack.c.l.b16 %v408
      %v465 = vpack.c.b16 %v464, %v463
      %v467 = vsel %vm416, %v465, 0
      %469 = vmatprep.subr.bf16.mxu0 0
      %470 = vmatpush1.bf16.msra.mxu0 %v410
      %471 = vmatprep.subr.bf16.mxu0 0
      %472 = vmatpush1.bf16.msra.mxu0 0
      %473 = vmatprep.subr.bf16.mxu0 0
      %474 = vmatpush1.bf16.msra.mxu0 0
      %475 = vmatprep.subr.bf16.mxu0 0
      %476 = vmatpush1.bf16.msra.mxu0 0
      %477 = vmatprep.subr.bf16.mxu0 0
      %478 = vmatpush1.bf16.msra.mxu0 0
      %479 = vmatprep.subr.bf16.mxu0 0
      %480 = vmatpush1.bf16.msra.mxu0 0
      %481 = vmatprep.subr.bf16.mxu0 0
      %482 = vmatpush1.bf16.msra.mxu0 0
      %483 = vmatprep.subr.bf16.mxu0 0
      %484 = vmatpush1.bf16.msra.mxu0 0
      %485 = vmatprep.subr.bf16.mxu0 0
      %486 = vmatpush1.bf16.msra.mxu0 0
      %487 = vmatprep.subr.bf16.mxu0 0
      %488 = vmatpush1.bf16.msra.mxu0 0
      %489 = vmatprep.subr.bf16.mxu0 0
      %490 = vmatpush1.bf16.msra.mxu0 0
      %491 = vmatprep.subr.bf16.mxu0 0
      %492 = vmatpush1.bf16.msra.mxu0 0
      %493 = vmatprep.subr.bf16.mxu0 0
      %494 = vmatpush1.bf16.msra.mxu0 0
      %495 = vmatprep.subr.bf16.mxu0 0
      %496 = vmatpush1.bf16.msra.mxu0 0
      %497 = vmatprep.subr.bf16.mxu0 0
      %498 = vmatpush1.bf16.msra.mxu0 0
      %499 = vmatprep.subr.bf16.mxu0 0
      %500 = vmatpush1.bf16.msra.mxu0 0
      %501 = vmatprep.mubr.bf16.mxu0 0
      %502 = vmatmul.mubr.bf16.gmra.mrb[0].mxu0 %v467
      %v503 = vpop.f32.mrb[0].mxu0
      %v504 = vadd.f32 %v400, %v503
      %v505 = vpop.f32.mrb[0].mxu0
      %v506 = vpop.f32.mrb[0].mxu0
      %v507 = vadd.f32 %v402, %v506
      %v508 = vpop.f32.mrb[0].mxu0
      %509 = vdwg.mxu0
      %v510 = vld [vmem:[%s5] sm:$0xf]
      %v511 = vld [vmem:[%s5 + $0x4] sm:$0xf]
      %v512 = vpack.c.bf16 %v458, %v455
      %v513 = vpack.c.bf16 %v507, %v504
      %v514 = vld [vmem:[%s6] sm:$0x1]
      %v516 = vlaneseq
      %v517 = vshrl.u32 %v516, 7
      %v518 = vsub.s32 0, %v517
      %v519 = vrot.slane %v514, %v518
      %v523 = vunpack.c.l.b16 %v510
      %v524 = vunpack.c.l.b16 %v511
      %v525 = vpack.c.b16 %v524, %v523
      %v528 = vsel %vm416, %v512, 0
      %v531 = vsel %vm416, %v513, 0
      %533 = vmatprep.subr.bf16.mxu0 0
      %534 = vmatpush1.bf16.msra.mxu0 %v525
      %535 = vmatprep.subr.bf16.mxu0 0
      %536 = vmatpush1.bf16.msra.mxu0 0
      %537 = vmatprep.subr.bf16.mxu0 0
      %538 = vmatpush1.bf16.msra.mxu0 0
      %539 = vmatprep.subr.bf16.mxu0 0
      %540 = vmatpush1.bf16.msra.mxu0 0
      %541 = vmatprep.subr.bf16.mxu0 0
      %542 = vmatpush1.bf16.msra.mxu0 0
      %543 = vmatprep.subr.bf16.mxu0 0
      %544 = vmatpush1.bf16.msra.mxu0 0
      %545 = vmatprep.subr.bf16.mxu0 0
      %546 = vmatpush1.bf16.msra.mxu0 0
      %547 = vmatprep.subr.bf16.mxu0 0
      %548 = vmatpush1.bf16.msra.mxu0 0
      %549 = vmatprep.subr.bf16.mxu0 0
      %550 = vmatpush1.bf16.msra.mxu0 0
      %551 = vmatprep.subr.bf16.mxu0 0
      %552 = vmatpush1.bf16.msra.mxu0 0
      %553 = vmatprep.subr.bf16.mxu0 0
      %554 = vmatpush1.bf16.msra.mxu0 0
      %555 = vmatprep.subr.bf16.mxu0 0
      %556 = vmatpush1.bf16.msra.mxu0 0
      %557 = vmatprep.subr.bf16.mxu0 0
      %558 = vmatpush1.bf16.msra.mxu0 0
      %559 = vmatprep.subr.bf16.mxu0 0
      %560 = vmatpush1.bf16.msra.mxu0 0
      %561 = vmatprep.subr.bf16.mxu0 0
      %562 = vmatpush1.bf16.msra.mxu0 0
      %563 = vmatprep.subr.bf16.mxu0 0
      %564 = vmatpush1.bf16.msra.mxu0 0
      %565 = vmatprep.mubr.bf16.mxu0 0
      %566 = vmatmul.mubr.bf16.gmra.mrb[0].mxu0 %v528
      %v567 = vpop.f32.mrb[0].mxu0
      %v568 = vadd.f32 %v519, %v567
      %v569 = vpop.f32.mrb[0].mxu0
      %v570 = vpop.f32.mrb[0].mxu0
      %v571 = vadd.f32 %v519, %v570
      %v572 = vpop.f32.mrb[0].mxu0
      %573 = vmatprep.mubr.bf16.mxu0 0
      %574 = vmatmul.mubr.bf16.gmra.mrb[0].mxu0 %v531
      %v575 = vpop.f32.mrb[0].mxu0
      %v576 = vadd.f32 %v519, %v575
      %v577 = vpop.f32.mrb[0].mxu0
      %v578 = vpop.f32.mrb[0].mxu0
      %v579 = vadd.f32 %v519, %v578
      %v580 = vpop.f32.mrb[0].mxu0
      %581 = vdwg.mxu0
      %v582 = vpack.c.bf16 %v571, %v568
      %v583 = vpack.c.bf16 %v579, %v576
      %585 = vrot.lane.b32.xlu0 %v582, 112
      %v586 = vpop.permute.xlu0 %585
      %v588 = vsel %vm416, %v582, 0
      %v591 = vsel %vm416, %v586, 0
      %593 = vmatprep.subr.bf16.mxu0 0
      %594 = vmatpush1.bf16.xpose.msra.mxu0 %v591
      %595 = vmatprep.subr.bf16.mxu0 0
      %596 = vmatpush1.bf16.xpose.msra.mxu0 0
      %597 = vmatprep.subr.bf16.mxu0 0
      %598 = vmatpush1.bf16.xpose.msra.mxu0 0
      %599 = vmatprep.subr.bf16.mxu0 0
      %600 = vmatpush1.bf16.xpose.msra.mxu0 0
      %601 = vmatprep.subr.bf16.mxu0 0
      %602 = vmatpush1.bf16.xpose.msra.mxu0 0
      %603 = vmatprep.subr.bf16.mxu0 0
      %604 = vmatpush1.bf16.xpose.msra.mxu0 0
      %605 = vmatprep.subr.bf16.mxu0 0
      %606 = vmatpush1.bf16.xpose.msra.mxu0 0
      %607 = vmatprep.subr.bf16.mxu0 0
      %608 = vmatpush1.bf16.xpose.msra.mxu0 0
      %609 = vmatprep.subr.bf16.mxu0 0
      %610 = vmatpush1.bf16.xpose.msra.mxu0 0
      %611 = vmatprep.subr.bf16.mxu0 0
      %612 = vmatpush1.bf16.xpose.msra.mxu0 0
      %613 = vmatprep.subr.bf16.mxu0 0
      %614 = vmatpush1.bf16.xpose.msra.mxu0 0
      %615 = vmatprep.subr.bf16.mxu0 0
      %616 = vmatpush1.bf16.xpose.msra.mxu0 0
      %617 = vmatprep.subr.bf16.mxu0 0
      %618 = vmatpush1.bf16.xpose.msra.mxu0 0
      %619 = vmatprep.subr.bf16.mxu0 0
      %620 = vmatpush1.bf16.xpose.msra.mxu0 0
      %621 = vmatprep.subr.bf16.mxu0 0
      %622 = vmatpush1.bf16.xpose.msra.mxu0 0
      %623 = vmatprep.subr.bf16.mxu0 0
      %624 = vmatpush1.bf16.xpose.msra.mxu0 0
      %625 = vmatprep.mubr.bf16.mxu0 0
      %626 = vmatmul.mubr.bf16.gmra.mrb[0].mxu0 %v588
      %v627 = vpop.f32.mrb[0].mxu0
      %v628 = vadd.f32 0.0, %v627
      %v629 = vpop.f32.mrb[0].mxu0
      %v630 = vpop.f32.mrb[0].mxu0
      %v631 = vadd.f32 0.0, %v630
      %v632 = vpop.f32.mrb[0].mxu0
      %633 = vdwg.mxu0
      %635 = vrot.lane.b32.xlu0 %v583, 112
      %v636 = vpop.permute.xlu0 %635
      %v638 = vsel %vm416, %v583, 0
      %v641 = vsel %vm416, %v636, 0
      %643 = vmatprep.subr.bf16.mxu0 0
      %644 = vmatpush1.bf16.xpose.msra.mxu0 %v641
      %645 = vmatprep.subr.bf16.mxu0 0
      %646 = vmatpush1.bf16.xpose.msra.mxu0 0
      %647 = vmatprep.subr.bf16.mxu0 0
      %648 = vmatpush1.bf16.xpose.msra.mxu0 0
      %649 = vmatprep.subr.bf16.mxu0 0
      %650 = vmatpush1.bf16.xpose.msra.mxu0 0
      %651 = vmatprep.subr.bf16.mxu0 0
      %652 = vmatpush1.bf16.xpose.msra.mxu0 0
      %653 = vmatprep.subr.bf16.mxu0 0
      %654 = vmatpush1.bf16.xpose.msra.mxu0 0
      %655 = vmatprep.subr.bf16.mxu0 0
      %656 = vmatpush1.bf16.xpose.msra.mxu0 0
      %657 = vmatprep.subr.bf16.mxu0 0
      %658 = vmatpush1.bf16.xpose.msra.mxu0 0
      %659 = vmatprep.subr.bf16.mxu0 0
      %660 = vmatpush1.bf16.xpose.msra.mxu0 0
      %661 = vmatprep.subr.bf16.mxu0 0
      %662 = vmatpush1.bf16.xpose.msra.mxu0 0
      %663 = vmatprep.subr.bf16.mxu0 0
      %664 = vmatpush1.bf16.xpose.msra.mxu0 0
      %665 = vmatprep.subr.bf16.mxu0 0
      %666 = vmatpush1.bf16.xpose.msra.mxu0 0
      %667 = vmatprep.subr.bf16.mxu0 0
      %668 = vmatpush1.bf16.xpose.msra.mxu0 0
      %669 = vmatprep.subr.bf16.mxu0 0
      %670 = vmatpush1.bf16.xpose.msra.mxu0 0
      %671 = vmatprep.subr.bf16.mxu0 0
      %672 = vmatpush1.bf16.xpose.msra.mxu0 0
      %673 = vmatprep.subr.bf16.mxu0 0
      %674 = vmatpush1.bf16.xpose.msra.mxu0 0
      %675 = vmatprep.mubr.bf16.mxu0 0
      %676 = vmatmul.mubr.bf16.gmra.mrb[0].mxu0 %v638
      %v677 = vpop.f32.mrb[0].mxu0
      %v678 = vadd.f32 0.0, %v677
      %v679 = vpop.f32.mrb[0].mxu0
      %v680 = vpop.f32.mrb[0].mxu0
      %v681 = vadd.f32 0.0, %v680
      %v682 = vpop.f32.mrb[0].mxu0
      %683 = vdwg.mxu0
      %v684 = vmul.f32 %v628, 0.17677669
      %v685 = vmul.f32 %v631, 0.17677669
      %v686 = vmul.f32 %v678, 0.17677669
      %v687 = vmul.f32 %v681, 0.17677669
      %v688 = vunpack.c.l.bf16 %v405
      %v689 = vunpack.c.l.bf16 %v406
      %v690 = vunpack.c.l.bf16 %v407
      %v691 = vunpack.c.l.bf16 %v408
      %v692 = vld [vmem:[%s340] sm:$0xff]
      %v693 = vld [vmem:[%s340 + $0x8] sm:$0xff]
      %v694 = vld [vmem:[%s340 + $0x10] sm:$0xff]
      %v695 = vld [vmem:[%s340 + $0x18] sm:$0xff]
      %697 = vset.pattern.permute.xlu0 0
      %698 = vperm.xlu0 %697, %v692
      %v699 = vpop.permute.xlu0 %698
      %702 = vset.pattern.permute.xlu0 0
      %703 = vperm.xlu0 %702, %v693
      %v704 = vpop.permute.xlu0 %703
      %707 = vset.pattern.permute.xlu0 0
      %708 = vperm.xlu0 %707, %v694
      %v709 = vpop.permute.xlu0 %708
      %712 = vset.pattern.permute.xlu0 0
      %713 = vperm.xlu0 %712, %v695
      %v714 = vpop.permute.xlu0 %713
      %vm716 = vcmp.ge.f32.partialorder %v688, %v699
      %vm717 = vcmp.ge.f32.partialorder %v689, %v704
      %vm718 = vcmp.ge.f32.partialorder %v690, %v709
      %vm719 = vcmp.ge.f32.partialorder %v691, %v714
      %v720 = vsel %vm716, %v684, -1e+30
      %v721 = vsel %vm717, %v685, -1e+30
      %v722 = vsel %vm718, %v686, -1e+30
      %v723 = vsel %vm719, %v687, -1e+30
      %v724 = vsel %vm416, %v720, -inf
      %725 = vmax.xlane.f32.xlu0 %v724
      %v726 = vpop.xlane.xlu0 %725
      %v727 = vsel %vm416, %v721, -inf
      %728 = vmax.xlane.f32.xlu0 %v727
      %v729 = vpop.xlane.xlu0 %728
      %v730 = vsel %vm416, %v722, -inf
      %731 = vmax.xlane.f32.xlu0 %v730
      %v732 = vpop.xlane.xlu0 %731
      %v733 = vsel %vm416, %v723, -inf
      %734 = vmax.xlane.f32.xlu0 %v733
      %v735 = vpop.xlane.xlu0 %734
      %v736 = vsub.f32 %v720, %v726
      %v737 = vsub.f32 %v721, %v729
      %v738 = vsub.f32 %v722, %v732
      %v739 = vsub.f32 %v723, %v735
      %v740 = vmul.f32 %v736, 1.442695
      %v741 = vpow.pop %v740
      %v742 = vmul.f32 %v737, 1.442695
      %v743 = vpow.pop %v742
      %v744 = vmul.f32 %v738, 1.442695
      %v745 = vpow.pop %v744
      %v746 = vmul.f32 %v739, 1.442695
      %v747 = vpow.pop %v746
      %v748 = vsel %vm416, %v741, 0.0
      %749 = vadd.xlane.f32.xlu0 %v748
      %v750 = vpop.xlane.xlu0 %749
      %v751 = vsel %vm416, %v743, 0.0
      %752 = vadd.xlane.f32.xlu0 %v751
      %v753 = vpop.xlane.xlu0 %752
      %v754 = vsel %vm416, %v745, 0.0
      %755 = vadd.xlane.f32.xlu0 %v754
      %v756 = vpop.xlane.xlu0 %755
      %v757 = vsel %vm416, %v747, 0.0
      %758 = vadd.xlane.f32.xlu0 %v757
      %v759 = vpop.xlane.xlu0 %758
      %v760 = vrcp.pop %v750
      %v761 = vrcp.pop %v753
      %v762 = vrcp.pop %v756
      %v763 = vrcp.pop %v759
      %v764 = vmul.f32 %v741, %v760
      %v765 = vmul.f32 %v743, %v761
      %v766 = vmul.f32 %v745, %v762
      %v767 = vmul.f32 %v747, %v763
      %v768 = vpack.c.bf16 %v765, %v764
      %v769 = vpack.c.bf16 %v767, %v766
      %770 = vrot.lane.b32.xlu0 %v582, 96
      %v771 = vpop.permute.xlu0 %770
      %v774 = vsel %vm416, %v768, 0
      %776 = vmatprep.subr.bf16.mxu0 0
      %777 = vmatpush1.bf16.msra.mxu0 %v771
      %778 = vmatprep.subr.bf16.mxu0 0
      %779 = vmatpush1.bf16.msra.mxu0 0
      %780 = vmatprep.subr.bf16.mxu0 0
      %781 = vmatpush1.bf16.msra.mxu0 0
      %782 = vmatprep.subr.bf16.mxu0 0
      %783 = vmatpush1.bf16.msra.mxu0 0
      %784 = vmatprep.subr.bf16.mxu0 0
      %785 = vmatpush1.bf16.msra.mxu0 0
      %786 = vmatprep.subr.bf16.mxu0 0
      %787 = vmatpush1.bf16.msra.mxu0 0
      %788 = vmatprep.subr.bf16.mxu0 0
      %789 = vmatpush1.bf16.msra.mxu0 0
      %790 = vmatprep.subr.bf16.mxu0 0
      %791 = vmatpush1.bf16.msra.mxu0 0
      %792 = vmatprep.subr.bf16.mxu0 0
      %793 = vmatpush1.bf16.msra.mxu0 0
      %794 = vmatprep.subr.bf16.mxu0 0
      %795 = vmatpush1.bf16.msra.mxu0 0
      %796 = vmatprep.subr.bf16.mxu0 0
      %797 = vmatpush1.bf16.msra.mxu0 0
      %798 = vmatprep.subr.bf16.mxu0 0
      %799 = vmatpush1.bf16.msra.mxu0 0
      %800 = vmatprep.subr.bf16.mxu0 0
      %801 = vmatpush1.bf16.msra.mxu0 0
      %802 = vmatprep.subr.bf16.mxu0 0
      %803 = vmatpush1.bf16.msra.mxu0 0
      %804 = vmatprep.subr.bf16.mxu0 0
      %805 = vmatpush1.bf16.msra.mxu0 0
      %806 = vmatprep.subr.bf16.mxu0 0
      %807 = vmatpush1.bf16.msra.mxu0 0
      %808 = vmatprep.mubr.bf16.mxu0 0
      %809 = vmatmul.mubr.bf16.gmra.mrb[0].mxu0 %v774
      %v810 = vpop.f32.mrb[0].mxu0
      %v811 = vadd.f32 0.0, %v810
      %v812 = vpop.f32.mrb[0].mxu0
      %v813 = vpop.f32.mrb[0].mxu0
      %v814 = vadd.f32 0.0, %v813
      %v815 = vpop.f32.mrb[0].mxu0
      %816 = vdwg.mxu0
      %817 = vrot.lane.b32.xlu0 %v583, 96
      %v818 = vpop.permute.xlu0 %817
      %v821 = vsel %vm416, %v769, 0
      %823 = vmatprep.subr.bf16.mxu0 0
      %824 = vmatpush1.bf16.msra.mxu0 %v818
      %825 = vmatprep.subr.bf16.mxu0 0
      %826 = vmatpush1.bf16.msra.mxu0 0
      %827 = vmatprep.subr.bf16.mxu0 0
      %828 = vmatpush1.bf16.msra.mxu0 0
      %829 = vmatprep.subr.bf16.mxu0 0
      %830 = vmatpush1.bf16.msra.mxu0 0
      %831 = vmatprep.subr.bf16.mxu0 0
      %832 = vmatpush1.bf16.msra.mxu0 0
      %833 = vmatprep.subr.bf16.mxu0 0
      %834 = vmatpush1.bf16.msra.mxu0 0
      %835 = vmatprep.subr.bf16.mxu0 0
      %836 = vmatpush1.bf16.msra.mxu0 0
      %837 = vmatprep.subr.bf16.mxu0 0
      %838 = vmatpush1.bf16.msra.mxu0 0
      %839 = vmatprep.subr.bf16.mxu0 0
      %840 = vmatpush1.bf16.msra.mxu0 0
      %841 = vmatprep.subr.bf16.mxu0 0
      %842 = vmatpush1.bf16.msra.mxu0 0
      %843 = vmatprep.subr.bf16.mxu0 0
      %844 = vmatpush1.bf16.msra.mxu0 0
      %845 = vmatprep.subr.bf16.mxu0 0
      %846 = vmatpush1.bf16.msra.mxu0 0
      %847 = vmatprep.subr.bf16.mxu0 0
      %848 = vmatpush1.bf16.msra.mxu0 0
      %849 = vmatprep.subr.bf16.mxu0 0
      %850 = vmatpush1.bf16.msra.mxu0 0
      %851 = vmatprep.subr.bf16.mxu0 0
      %852 = vmatpush1.bf16.msra.mxu0 0
      %853 = vmatprep.subr.bf16.mxu0 0
      %854 = vmatpush1.bf16.msra.mxu0 0
      %855 = vmatprep.mubr.bf16.mxu0 0
      %856 = vmatmul.mubr.bf16.gmra.mrb[0].mxu0 %v821
      %v857 = vpop.f32.mrb[0].mxu0
      %v858 = vadd.f32 0.0, %v857
      %v859 = vpop.f32.mrb[0].mxu0
      %v860 = vpop.f32.mrb[0].mxu0
      %v861 = vadd.f32 0.0, %v860
      %v862 = vpop.f32.mrb[0].mxu0
      %863 = vdwg.mxu0
      %v864 = vmul.f32 %v811, 0.5
      %v865 = vmul.f32 %v814, 0.5
      %v866 = vmul.f32 %v858, 0.5
      %v867 = vmul.f32 %v861, 0.5
      %v868 = vmul.f32 %v811, 0.044715
      %v869 = vmul.f32 %v814, 0.044715
      %v870 = vmul.f32 %v858, 0.044715
      %v871 = vmul.f32 %v861, 0.044715
      %v872 = vmul.f32 %v868, %v811
      %v873 = vmul.f32 %v869, %v814
      %v874 = vmul.f32 %v870, %v858
      %v875 = vmul.f32 %v871, %v861
      %v876 = vmul.f32 %v872, %v811
      %v877 = vmul.f32 %v873, %v814
      %v878 = vmul.f32 %v874, %v858
      %v879 = vmul.f32 %v875, %v861
      %v880 = vadd.f32 %v811, %v876
      %v881 = vadd.f32 %v814, %v877
      %v882 = vadd.f32 %v858, %v878
      %v883 = vadd.f32 %v861, %v879
      %v884 = vmul.f32 %v880, 0.7978846
      %v885 = vmul.f32 %v881, 0.7978846
      %v886 = vmul.f32 %v882, 0.7978846
      %v887 = vmul.f32 %v883, 0.7978846
      %v888 = vtanh.pop %v884
      %v889 = vtanh.pop %v885
      %v890 = vtanh.pop %v886
      %v891 = vtanh.pop %v887
      %v892 = vadd.f32 %v888, 1.0
      %v893 = vadd.f32 %v889, 1.0
      %v894 = vadd.f32 %v890, 1.0
      %v895 = vadd.f32 %v891, 1.0
      %v896 = vmul.f32 %v864, %v892
      %v897 = vmul.f32 %v865, %v893
      %v898 = vmul.f32 %v866, %v894
      %v899 = vmul.f32 %v867, %v895
      %902 = vrot.lane.b32.xlu0 %v898, 16
      %v903 = vpop.permute.xlu0 %902
      %904 = vrot.lane.b32.xlu0 %v899, 16
      %v905 = vpop.permute.xlu0 %904
      %v908 = vsel %vm416, %v896, %v903
      %v909 = vsel %vm416, %v897, %v905
      %v910 = vld [vmem:[%s7] sm:$0xf]
      %v911 = vld [vmem:[%s7 + $0x4] sm:$0xf]
      %v912 = vld [vmem:[%s7 + $0x8] sm:$0xf]
      %v913 = vld [vmem:[%s7 + $0xc] sm:$0xf]
      %v914 = vpack.c.bf16 %v909, %v908
      %v919 = vunpack.c.l.b16 %v910
      %v920 = vunpack.c.l.b16 %v911
      %v921 = vunpack.c.l.b16 %v912
      %v922 = vunpack.c.l.b16 %v913
      %v923 = vpack.c.b16 %v920, %v919
      %v924 = vpack.c.b16 %v922, %v921
      %v928 = vsel %vm353, %v914, 0
      %930 = vmatprep.subr.bf16.mxu0 0
      %931 = vmatpush1.bf16.msra.mxu0 %v923
      %932 = vmatprep.subr.bf16.mxu0 0
      %933 = vmatpush1.bf16.msra.mxu0 %v924
      %934 = vmatprep.subr.bf16.mxu0 0
      %935 = vmatpush1.bf16.msra.mxu0 0
      %936 = vmatprep.subr.bf16.mxu0 0
      %937 = vmatpush1.bf16.msra.mxu0 0
      %938 = vmatprep.subr.bf16.mxu0 0
      %939 = vmatpush1.bf16.msra.mxu0 0
      %940 = vmatprep.subr.bf16.mxu0 0
      %941 = vmatpush1.bf16.msra.mxu0 0
      %942 = vmatprep.subr.bf16.mxu0 0
      %943 = vmatpush1.bf16.msra.mxu0 0
      %944 = vmatprep.subr.bf16.mxu0 0
      %945 = vmatpush1.bf16.msra.mxu0 0
      %946 = vmatprep.subr.bf16.mxu0 0
      %947 = vmatpush1.bf16.msra.mxu0 0
      %948 = vmatprep.subr.bf16.mxu0 0
      %949 = vmatpush1.bf16.msra.mxu0 0
      %950 = vmatprep.subr.bf16.mxu0 0
      %951 = vmatpush1.bf16.msra.mxu0 0
      %952 = vmatprep.subr.bf16.mxu0 0
      %953 = vmatpush1.bf16.msra.mxu0 0
      %954 = vmatprep.subr.bf16.mxu0 0
      %955 = vmatpush1.bf16.msra.mxu0 0
      %956 = vmatprep.subr.bf16.mxu0 0
      %957 = vmatpush1.bf16.msra.mxu0 0
      %958 = vmatprep.subr.bf16.mxu0 0
      %959 = vmatpush1.bf16.msra.mxu0 0
      %960 = vmatprep.subr.bf16.mxu0 0
      %961 = vmatpush1.bf16.msra.mxu0 0
      %962 = vmatprep.mubr.bf16.mxu0 0
      %963 = vmatmul.mubr.bf16.gmra.mrb[0].mxu0 %v928
      %v964 = vpop.f32.mrb[0].mxu0
      %v965 = vadd.f32 0.0, %v964
      %v966 = vpop.f32.mrb[0].mxu0
      %v967 = vpop.f32.mrb[0].mxu0
      %v968 = vadd.f32 0.0, %v967
      %v969 = vpop.f32.mrb[0].mxu0
      %970 = vdwg.mxu0
      %v971 = vadd.f32 %v395, %v965
      %v972 = vadd.f32 %v396, %v968
      %v973 = vpack.c.bf16 %v972, %v971
      %v975 = vunpack.c.l.b16 %v973
      %v976 = vunpack.c.h.b16 %v973
      %v977 = vpack.c.b16 %v975, %v975
      %v978 = vpack.c.b16 %v976, %v976
      %vm981 = vcmask 257024
      %982 = vst.msk [vmem:[%s345] sm:$0xf] %vm981, %v977
      %983 = vst.msk [vmem:[%s345 + $0x4] sm:$0xf] %vm981, %v978
      %p984 = scmp.lt.s32.totalorder %s19, 1
      %s985 = scalar_select %p984, %s19, 1
      %s986 = smul.addr %s985, 2
      %s987 = smul.addr %s986, 4
      %s988 = scalar_lea.vmem %s8, %s987
      // Predicated region
      $region53: #{_lambda_.13} parent=51 // pred_check
        %p989 = pneg %p220
      $region54: #{_lambda_.13} parent=51 // pred_check_branch
        %991 = sbr.rel (%p989) target = $region56
      $region55: #{_lambda_.13} parent=51 // pred_region
        _
      $region56: #{_lambda_.13} parent=51 // pred_fallthru
        _
    $region52: #{_lambda_.13} parent=5 // pred_fallthru
      _
    %p992 = scmp.le.s32.totalorder 2, %s14
    // Predicated region
    $region57: #{_lambda_.13} parent=5 // pred_check
      %p993 = pneg %p992
    $region58: #{_lambda_.13} parent=5 // pred_check_branch
      %995 = sbr.rel (%p993) target = $region60
    $region59: #{_lambda_.13} parent=5 // pred_region
      %s996 = ssub.s32 %s14, 2
      // Predicated region
      $region61: #{_lambda_.13} parent=59 // pred_check
        %p997 = pneg %p226
      $region62: #{_lambda_.13} parent=59 // pred_check_branch
        %999 = sbr.rel (%p997) target = $region64
      $region63: #{_lambda_.13} parent=59 // pred_region
        %p1000 = scmp.lt.s32.totalorder %s20, 1
        %s1001 = scalar_select %p1000, %s20, 1
        %s1002 = smul.addr %s1001, 2
        %s1003 = smul.addr %s1002, 4
        %s1004 = scalar_lea.vmem %s8, %s1003
      $region64: #{_lambda_.13} parent=59 // pred_fallthru
        _
    $region60: #{_lambda_.13} parent=5 // pred_fallthru
      _
  $region6: #{_lambda_.13} parent=0 // loop_footer
    %s18 = sadd.s32 1, %s14
  $region7: #{_lambda_.13} parent=0 // loop_footer_branch
    %13 = sbr.rel target = $region3
  $region8: #{_lambda_.13} parent=0 // loop_exit
    _

// kernel: _lambda_.14
$region0: #{_lambda_.14}
  #allocation0 [shape = 'u32[]', space=smem, size = 0x4, offset = 0x4, fixed_abs, tag = 'smem constant byte address 0x4 - core index']
  #allocation1 [shape = 'u32[144,128]{1,0:T(1,128)}', space=vmem, size = 0x12000, scoped, tag = 'internal scratch']
  %s0 = inlined_call_operand.vmem [shape: bf16[2,16,32], index: 0, kind: input, shape index: {}]
  %s1 = inlined_call_operand.vmem [shape: bf16[2,2,16,16], index: 1, kind: input, shape index: {}]
  %s2 = inlined_call_operand.vmem [shape: f32[2,16,16], index: 2, kind: input, shape index: {}]
  %s3 = inlined_call_operand.vmem [shape: bf16[16,32], index: 3, kind: input, shape index: {}]
  %s4 = inlined_call_operand.vmem [shape: f32[16,1], index: 4, kind: input, shape index: {}]
  %s5 = inlined_call_operand.vmem [shape: bf16[2,16,32], index: 5, kind: output, shape index: {0}]
  %s6 = inlined_call_operand.vmem [shape: bf16[2,2,16,16], index: 6, kind: output, shape index: {1}]
  %7 = xla_tuple %s5, %s6
  %s8 = sld [smem:[#allocation0]]
  $region61: #{_lambda_.14} parent=0
    _
  %s10 = ssub.s32 1, %s8
  %s11 = scalar_select 0, %s10, %s8
  loop: start=0, step=1, limit=4
  $region2: #{_lambda_.14} parent=0 // loop_pre_header
    _
  $region3: #{_lambda_.14} parent=0 // loop_header
    %s13 = sphi 0, %s17
    %p14 = scmp.ge.s32.totalorder %s13, 4
    %s23 = sphi 0, %s25
    %s26 = sphi 0, %s23
    %s27 = sphi 0, %s26
    %s43 = sphi 0, %s27
    %s49 = sphi 0, %s51
    %s52 = sphi 0, %s49
    %s53 = sphi 0, %s52
    %s69 = sphi 0, %s53
    %s75 = sphi 0, %s77
    %s78 = sphi 0, %s75
    %s79 = sphi 0, %s78
    %s95 = sphi 0, %s79
    %s99 = sphi 0, %s99
    %s101 = sphi 0, %s99
    %s102 = sphi 0, %s101
    %s116 = sphi 0, %s102
    %s120 = sphi 0, %s120
    %s122 = sphi 0, %s120
    %s123 = sphi 0, %s122
    %s137 = sphi 0, %s123
    %s143 = sphi 0, %s145
    %s146 = sphi 0, %s143
    %s147 = sphi 0, %s146
    %s163 = sphi 0, %s147
    %s169 = sphi 0, %s171
    %s172 = sphi 0, %s169
    %s173 = sphi 0, %s172
    %s189 = sphi 0, %s173
  $region4: #{_lambda_.14} parent=0 // loop_header_branch
    %16 = sbr.rel (%p14) target = $region8
  $region5: #{_lambda_.14} parent=0 // loop_body
    %s18 = ssub.s32 %s13, 1
    %s19 = ssub.s32 %s13, 2
    %s20 = sadd.s32 %s13, 1
    %s21 = ssub.s32 %s13, %s20
    %p22 = scmp.eq.s32.totalorder %s21, 0
    %s24 = sadd.s32 %s23, 1
    %s25 = scalar_select %p22, %s23, %s24
    %p28 = pneg %p22
    %p29 = scmp.eq.s32.totalorder %s13, 1
    %p30 = por %p28, %p29
    %p31 = scmp.ne.s32.totalorder %s23, %s26
    %p32 = scmp.eq.s32.totalorder %s13, 0
    %p33 = por %p31, %p32
    %p34 = scmp.ne.s32.totalorder %s23, %s26
    %p35 = scmp.eq.s32.totalorder %s18, 1
    %p36 = por %p34, %p35
    %p37 = scmp.ne.s32.totalorder %s26, %s27
    %p38 = scmp.eq.s32.totalorder %s18, 0
    %p39 = por %p37, %p38
    %p40 = scmp.ne.s32.totalorder %s26, %s27
    %p41 = scmp.eq.s32.totalorder %s19, 1
    %p42 = por %p40, %p41
    %p44 = scmp.ne.s32.totalorder %s27, %s43
    %p45 = scmp.eq.s32.totalorder %s19, 0
    %p46 = por %p44, %p45
    %s47 = ssub.s32 %s13, %s20
    %p48 = scmp.eq.s32.totalorder %s47, 0
    %s50 = sadd.s32 %s49, 1
    %s51 = scalar_select %p48, %s49, %s50
    %p54 = pneg %p48
    %p55 = scmp.eq.s32.totalorder %s13, 1
    %p56 = por %p54, %p55
    %p57 = scmp.ne.s32.totalorder %s49, %s52
    %p58 = scmp.eq.s32.totalorder %s13, 0
    %p59 = por %p57, %p58
    %p60 = scmp.ne.s32.totalorder %s49, %s52
    %p61 = scmp.eq.s32.totalorder %s18, 1
    %p62 = por %p60, %p61
    %p63 = scmp.ne.s32.totalorder %s52, %s53
    %p64 = scmp.eq.s32.totalorder %s18, 0
    %p65 = por %p63, %p64
    %p66 = scmp.ne.s32.totalorder %s52, %s53
    %p67 = scmp.eq.s32.totalorder %s19, 1
    %p68 = por %p66, %p67
    %p70 = scmp.ne.s32.totalorder %s53, %s69
    %p71 = scmp.eq.s32.totalorder %s19, 0
    %p72 = por %p70, %p71
    %s73 = ssub.s32 %s13, %s20
    %p74 = scmp.eq.s32.totalorder %s73, 0
    %s76 = sadd.s32 %s75, 1
    %s77 = scalar_select %p74, %s75, %s76
    %p80 = pneg %p74
    %p81 = scmp.eq.s32.totalorder %s13, 1
    %p82 = por %p80, %p81
    %p83 = scmp.ne.s32.totalorder %s75, %s78
    %p84 = scmp.eq.s32.totalorder %s13, 0
    %p85 = por %p83, %p84
    %p86 = scmp.ne.s32.totalorder %s75, %s78
    %p87 = scmp.eq.s32.totalorder %s18, 1
    %p88 = por %p86, %p87
    %p89 = scmp.ne.s32.totalorder %s78, %s79
    %p90 = scmp.eq.s32.totalorder %s18, 0
    %p91 = por %p89, %p90
    %p92 = scmp.ne.s32.totalorder %s78, %s79
    %p93 = scmp.eq.s32.totalorder %s19, 1
    %p94 = por %p92, %p93
    %p96 = scmp.ne.s32.totalorder %s79, %s95
    %p97 = scmp.eq.s32.totalorder %s19, 0
    %p98 = por %p96, %p97
    %s100 = sadd.s32 %s99, 1
    %p103 = scmp.eq.s32.totalorder %s13, 1
    %p104 = scmp.ne.s32.totalorder %s99, %s101
    %p105 = scmp.eq.s32.totalorder %s13, 0
    %p106 = por %p104, %p105
    %p107 = scmp.ne.s32.totalorder %s99, %s101
    %p108 = scmp.eq.s32.totalorder %s18, 1
    %p109 = por %p107, %p108
    %p110 = scmp.ne.s32.totalorder %s101, %s102
    %p111 = scmp.eq.s32.totalorder %s18, 0
    %p112 = por %p110, %p111
    %p113 = scmp.ne.s32.totalorder %s101, %s102
    %p114 = scmp.eq.s32.totalorder %s19, 1
    %p115 = por %p113, %p114
    %p117 = scmp.ne.s32.totalorder %s102, %s116
    %p118 = scmp.eq.s32.totalorder %s19, 0
    %p119 = por %p117, %p118
    %s121 = sadd.s32 %s120, 1
    %p124 = scmp.eq.s32.totalorder %s13, 1
    %p125 = scmp.ne.s32.totalorder %s120, %s122
    %p126 = scmp.eq.s32.totalorder %s13, 0
    %p127 = por %p125, %p126
    %p128 = scmp.ne.s32.totalorder %s120, %s122
    %p129 = scmp.eq.s32.totalorder %s18, 1
    %p130 = por %p128, %p129
    %p131 = scmp.ne.s32.totalorder %s122, %s123
    %p132 = scmp.eq.s32.totalorder %s18, 0
    %p133 = por %p131, %p132
    %p134 = scmp.ne.s32.totalorder %s122, %s123
    %p135 = scmp.eq.s32.totalorder %s19, 1
    %p136 = por %p134, %p135
    %p138 = scmp.ne.s32.totalorder %s123, %s137
    %p139 = scmp.eq.s32.totalorder %s19, 0
    %p140 = por %p138, %p139
    %s141 = ssub.s32 %s13, %s20
    %p142 = scmp.eq.s32.totalorder %s141, 0
    %s144 = sadd.s32 %s143, 1
    %s145 = scalar_select %p142, %s143, %s144
    %p148 = pneg %p142
    %p149 = scmp.eq.s32.totalorder %s13, 1
    %p150 = por %p148, %p149
    %p151 = scmp.ne.s32.totalorder %s143, %s146
    %p152 = scmp.eq.s32.totalorder %s13, 0
    %p153 = por %p151, %p152
    %p154 = scmp.ne.s32.totalorder %s143, %s146
    %p155 = scmp.eq.s32.totalorder %s18, 1
    %p156 = por %p154, %p155
    %p157 = scmp.ne.s32.totalorder %s146, %s147
    %p158 = scmp.eq.s32.totalorder %s18, 0
    %p159 = por %p157, %p158
    %p160 = scmp.ne.s32.totalorder %s146, %s147
    %p161 = scmp.eq.s32.totalorder %s19, 1
    %p162 = por %p160, %p161
    %p164 = scmp.ne.s32.totalorder %s147, %s163
    %p165 = scmp.eq.s32.totalorder %s19, 0
    %p166 = por %p164, %p165
    %s167 = ssub.s32 %s13, %s20
    %p168 = scmp.eq.s32.totalorder %s167, 0
    %s170 = sadd.s32 %s169, 1
    %s171 = scalar_select %p168, %s169, %s170
    %p174 = pneg %p168
    %p175 = scmp.eq.s32.totalorder %s13, 1
    %p176 = por %p174, %p175
    %p177 = scmp.ne.s32.totalorder %s169, %s172
    %p178 = scmp.eq.s32.totalorder %s13, 0
    %p179 = por %p177, %p178
    %p180 = scmp.ne.s32.totalorder %s169, %s172
    %p181 = scmp.eq.s32.totalorder %s18, 1
    %p182 = por %p180, %p181
    %p183 = scmp.ne.s32.totalorder %s172, %s173
    %p184 = scmp.eq.s32.totalorder %s18, 0
    %p185 = por %p183, %p184
    %p186 = scmp.ne.s32.totalorder %s172, %s173
    %p187 = scmp.eq.s32.totalorder %s19, 1
    %p188 = por %p186, %p187
    %p190 = scmp.ne.s32.totalorder %s173, %s189
    %p191 = scmp.eq.s32.totalorder %s19, 0
    %p192 = por %p190, %p191
    %p193 = scmp.le.s32.totalorder 1, %s13
    %p194 = scmp.lt.s32.totalorder %s13, 3
    %p195 = pnand %p193, %p194
    %p196 = pneg %p195
    // Predicated region
    $region9: #{_lambda_.14} parent=5 // pred_check
      _
    $region10: #{_lambda_.14} parent=5 // pred_check_branch
      %198 = sbr.rel (%p195) target = $region12
    $region11: #{_lambda_.14} parent=5 // pred_region
      %s199 = ssub.s32 %s13, 1
      // Predicated region
      $region13: #{_lambda_.14} parent=11 // pred_check
        %p200 = pneg %p112
      $region14: #{_lambda_.14} parent=11 // pred_check_branch
        %202 = sbr.rel (%p200) target = $region16
      $region15: #{_lambda_.14} parent=11 // pred_region
        _
      $region16: #{_lambda_.14} parent=11 // pred_fallthru
        _
      // Predicated region
      $region17: #{_lambda_.14} parent=11 // pred_check
        %p203 = pneg %p133
      $region18: #{_lambda_.14} parent=11 // pred_check_branch
        %205 = sbr.rel (%p203) target = $region20
      $region19: #{_lambda_.14} parent=11 // pred_region
        _
      $region20: #{_lambda_.14} parent=11 // pred_fallthru
        _
    $region12: #{_lambda_.14} parent=5 // pred_fallthru
      _
    %p206 = scmp.lt.s32.totalorder %s13, 2
    // Predicated region
    $region21: #{_lambda_.14} parent=5 // pred_check
      %p207 = pneg %p206
    $region22: #{_lambda_.14} parent=5 // pred_check_branch
      %209 = sbr.rel (%p207) target = $region24
    $region23: #{_lambda_.14} parent=5 // pred_region
      // Predicated region
      $region25: #{_lambda_.14} parent=23 // pred_check
        %p210 = pneg %p33
      $region26: #{_lambda_.14} parent=23 // pred_check_branch
        %212 = sbr.rel (%p210) target = $region28
      $region27: #{_lambda_.14} parent=23 // pred_region
        %p213 = scmp.lt.s32.totalorder %s13, 1
        %s214 = scalar_select %p213, %s13, 1
        %s215 = smul.addr %s214, 2
        %s216 = smul.addr %s215, 4
        %s217 = scalar_lea.vmem %s0, %s216
      $region28: #{_lambda_.14} parent=23 // pred_fallthru
        _
      // Predicated region
      $region29: #{_lambda_.14} parent=23 // pred_check
        %p218 = pneg %p59
      $region30: #{_lambda_.14} parent=23 // pred_check_branch
        %220 = sbr.rel (%p218) target = $region32
      $region31: #{_lambda_.14} parent=23 // pred_region
        %p221 = scmp.lt.s32.totalorder %s13, 1
        %s222 = scalar_select %p221, %s13, 1
        %s223 = smul.addr %s222, 4
        %s224 = smul.addr %s223, 4
        %s225 = scalar_lea.vmem %s1, %s224
      $region32: #{_lambda_.14} parent=23 // pred_fallthru
        _
      // Predicated region
      $region33: #{_lambda_.14} parent=23 // pred_check
        %p226 = pneg %p85
      $region34: #{_lambda_.14} parent=23 // pred_check_branch
        %228 = sbr.rel (%p226) target = $region36
      $region35: #{_lambda_.14} parent=23 // pred_region
        %p229 = scmp.lt.s32.totalorder %s13, 1
        %s230 = scalar_select %p229, %s13, 1
        %s231 = smul.addr %s230, 2
        %s232 = smul.addr %s231, 8
        %s233 = scalar_lea.vmem %s2, %s232
      $region36: #{_lambda_.14} parent=23 // pred_fallthru
        _
    $region24: #{_lambda_.14} parent=5 // pred_fallthru
      _
    %p234 = scmp.le.s32.totalorder 1, %s13
    %p235 = scmp.lt.s32.totalorder %s13, 3
    %p236 = pnand %p234, %p235
    %p237 = pneg %p236
    // Predicated region
    $region37: #{_lambda_.14} parent=5 // pred_check
      _
    $region38: #{_lambda_.14} parent=5 // pred_check_branch
      %239 = sbr.rel (%p236) target = $region40
    $region39: #{_lambda_.14} parent=5 // pred_region
      %s240 = ssub.s32 %s13, 1
      %p241 = scmp.lt.s32.totalorder %s18, 1
      %s242 = scalar_select %p241, %s18, 1
      %s243 = smul.addr %s242, 2
      %s244 = smul.addr %s243, 4
      %s245 = scalar_lea.vmem %s0, %s244
      %p246 = pneg %p39
      %p247 = pneg %p36
      %p248 = scmp.lt.s32.totalorder %s18, 1
      %s249 = scalar_select %p248, %s18, 1
      %s250 = smul.addr %s249, 4
      %s251 = smul.addr %s250, 4
      %s252 = scalar_lea.vmem %s1, %s251
      %p253 = pneg %p65
      %p254 = pneg %p62
      %p255 = scmp.lt.s32.totalorder %s18, 1
      %s256 = scalar_select %p255, %s18, 1
      %s257 = smul.addr %s256, 2
      %s258 = smul.addr %s257, 8
      %s259 = scalar_lea.vmem %s2, %s258
      %p260 = pneg %p91
      %p261 = pneg %p88
      %p262 = pneg %p112
      %p263 = pneg %p109
      %p264 = pneg %p133
      %p265 = pneg %p130
      %p266 = pneg %p159
      %p267 = pneg %p156
      %p268 = scmp.lt.s32.totalorder %s18, 1
      %s269 = scalar_select %p268, %s18, 1
      %s270 = smul.addr %s269, 2
      %s271 = smul.addr %s270, 4
      %s272 = scalar_lea.vmem %s5, %s271
      %p273 = pneg %p185
      %p274 = pneg %p182
      %p275 = scmp.lt.s32.totalorder %s18, 1
      %s276 = scalar_select %p275, %s18, 1
      %s277 = smul.addr %s276, 4
      %s278 = smul.addr %s277, 4
      %s279 = scalar_lea.vmem %s6, %s278
      %p280 = scmp.lt.s32.totalorder %s18, 1
      %s281 = scalar_select %p280, %s18, 1
      %s282 = smul.addr %s281, 2
      %s283 = smul.addr %s282, 4
      %s284 = scalar_lea.vmem %s0, %s283
      %p285 = scmp.lt.s32.totalorder %s18, 1
      %s286 = scalar_select %p285, %s18, 1
      %s287 = smul.addr %s286, 4
      %s288 = smul.addr %s287, 4
      %s289 = scalar_lea.vmem %s1, %s288
      %p290 = scmp.lt.s32.totalorder %s18, 1
      %s291 = scalar_select %p290, %s18, 1
      %s292 = smul.addr %s291, 2
      %s293 = smul.addr %s292, 8
      %s294 = scalar_lea.vmem %s2, %s293
      %p295 = scmp.lt.s32.totalorder %s18, 1
      %s296 = scalar_select %p295, %s18, 1
      %s297 = smul.addr %s296, 2
      %s298 = smul.addr %s297, 4
      %s299 = scalar_lea.vmem %s5, %s298
      %p300 = scmp.lt.s32.totalorder %s18, 1
      %s301 = scalar_select %p300, %s18, 1
      %s302 = smul.addr %s301, 4
      %s303 = smul.addr %s302, 4
      %s304 = scalar_lea.vmem %s6, %s303
      %v306 = vld [vmem:[%s284] sm:$0xf]
      %v307 = vld [vmem:[%s284 + $0x4] sm:$0xf]
      %v308 = vld [vmem:[%s3] sm:$0xf]
      %v309 = vld [vmem:[%s3 + $0x4] sm:$0xf]
      %v310 = vld [vmem:[%s4] sm:$0xff]
      %v311 = vld [vmem:[%s4 + $0x8] sm:$0xff]
      %313 = vset.pattern.permute.xlu0 0
      %314 = vperm.xlu0 %313, %v310
      %v315 = vpop.permute.xlu0 %314
      %318 = vset.pattern.permute.xlu0 0
      %319 = vperm.xlu0 %318, %v311
      %v320 = vpop.permute.xlu0 %319
      %v324 = vunpack.c.l.b16 %v308
      %v325 = vunpack.c.l.b16 %v309
      %v326 = vpack.c.b16 %v325, %v324
      %v329 = vunpack.c.l.b16 %v306
      %v330 = vunpack.c.l.b16 %v307
      %v331 = vpack.c.b16 %v330, %v329
      %vm332 = vcmask 261120
      %v334 = vsel %vm332, %v326, 0
      %v337 = vsel %vm332, %v331, 0
      %339 = vmatprep.subr.bf16.mxu0 0
      %340 = vmatpush1.bf16.xpose.msra.mxu0 %v337
      %341 = vmatprep.subr.bf16.mxu0 0
      %342 = vmatpush1.bf16.xpose.msra.mxu0 0
      %343 = vmatprep.subr.bf16.mxu0 0
      %344 = vmatpush1.bf16.xpose.msra.mxu0 0
      %345 = vmatprep.subr.bf16.mxu0 0
      %346 = vmatpush1.bf16.xpose.msra.mxu0 0
      %347 = vmatprep.subr.bf16.mxu0 0
      %348 = vmatpush1.bf16.xpose.msra.mxu0 0
      %349 = vmatprep.subr.bf16.mxu0 0
      %350 = vmatpush1.bf16.xpose.msra.mxu0 0
      %351 = vmatprep.subr.bf16.mxu0 0
      %352 = vmatpush1.bf16.xpose.msra.mxu0 0
      %353 = vmatprep.subr.bf16.mxu0 0
      %354 = vmatpush1.bf16.xpose.msra.mxu0 0
      %355 = vmatprep.subr.bf16.mxu0 0
      %356 = vmatpush1.bf16.xpose.msra.mxu0 0
      %357 = vmatprep.subr.bf16.mxu0 0
      %358 = vmatpush1.bf16.xpose.msra.mxu0 0
      %359 = vmatprep.subr.bf16.mxu0 0
      %360 = vmatpush1.bf16.xpose.msra.mxu0 0
      %361 = vmatprep.subr.bf16.mxu0 0
      %362 = vmatpush1.bf16.xpose.msra.mxu0 0
      %363 = vmatprep.subr.bf16.mxu0 0
      %364 = vmatpush1.bf16.xpose.msra.mxu0 0
      %365 = vmatprep.subr.bf16.mxu0 0
      %366 = vmatpush1.bf16.xpose.msra.mxu0 0
      %367 = vmatprep.subr.bf16.mxu0 0
      %368 = vmatpush1.bf16.xpose.msra.mxu0 0
      %369 = vmatprep.subr.bf16.mxu0 0
      %370 = vmatpush1.bf16.xpose.msra.mxu0 0
      %371 = vmatprep.mubr.bf16.mxu0 0
      %372 = vmatmul.mubr.bf16.gmra.mrb[0].mxu0 %v334
      %v373 = vpop.f32.mrb[0].mxu0
      %v374 = vadd.f32 %v315, %v373
      %v375 = vpop.f32.mrb[0].mxu0
      %v376 = vpop.f32.mrb[0].mxu0
      %v377 = vadd.f32 %v320, %v376
      %v378 = vpop.f32.mrb[0].mxu0
      %379 = vdwg.mxu0
      %v380 = vld [vmem:[%s294] sm:$0xff]
      %v381 = vld [vmem:[%s294 + $0x8] sm:$0xff]
      %v382 = vadd.f32 %v374, %v380
      %v383 = vadd.f32 %v377, %v381
      %vm384 = vcmask 130048
      %v385 = vsel %vm384, %v382, -inf
      %386 = vmax.xlane.f32.xlu0 %v385
      %v387 = vpop.xlane.xlu0 %386
      %v388 = vsel %vm384, %v383, -inf
      %389 = vmax.xlane.f32.xlu0 %v388
      %v390 = vpop.xlane.xlu0 %389
      %v391 = vsub.f32 %v382, %v387
      %v392 = vsub.f32 %v383, %v390
      %v393 = vmul.f32 %v391, 1.442695
      %v394 = vpow.pop %v393
      %v395 = vmul.f32 %v392, 1.442695
      %v396 = vpow.pop %v395
      %v397 = vsel %vm384, %v394, 0.0
      %398 = vadd.xlane.f32.xlu0 %v397
      %v399 = vpop.xlane.xlu0 %398
      %v400 = vsel %vm384, %v396, 0.0
      %401 = vadd.xlane.f32.xlu0 %v400
      %v402 = vpop.xlane.xlu0 %401
      %v403 = vrcp.pop %v399
      %v404 = vrcp.pop %v402
      %v405 = vmul.f32 %v394, %v403
      %v406 = vmul.f32 %v396, %v404
      %v407 = vpack.c.bf16 %v406, %v405
      %v410 = vsel %vm384, %v407, 0
      %412 = vmatprep.subr.bf16.mxu0 0
      %413 = vmatpush1.bf16.msra.mxu0 %v331
      %414 = vmatprep.subr.bf16.mxu0 0
      %415 = vmatpush1.bf16.msra.mxu0 0
      %416 = vmatprep.subr.bf16.mxu0 0
      %417 = vmatpush1.bf16.msra.mxu0 0
      %418 = vmatprep.subr.bf16.mxu0 0
      %419 = vmatpush1.bf16.msra.mxu0 0
      %420 = vmatprep.subr.bf16.mxu0 0
      %421 = vmatpush1.bf16.msra.mxu0 0
      %422 = vmatprep.subr.bf16.mxu0 0
      %423 = vmatpush1.bf16.msra.mxu0 0
      %424 = vmatprep.subr.bf16.mxu0 0
      %425 = vmatpush1.bf16.msra.mxu0 0
      %426 = vmatprep.subr.bf16.mxu0 0
      %427 = vmatpush1.bf16.msra.mxu0 0
      %428 = vmatprep.subr.bf16.mxu0 0
      %429 = vmatpush1.bf16.msra.mxu0 0
      %430 = vmatprep.subr.bf16.mxu0 0
      %431 = vmatpush1.bf16.msra.mxu0 0
      %432 = vmatprep.subr.bf16.mxu0 0
      %433 = vmatpush1.bf16.msra.mxu0 0
      %434 = vmatprep.subr.bf16.mxu0 0
      %435 = vmatpush1.bf16.msra.mxu0 0
      %436 = vmatprep.subr.bf16.mxu0 0
      %437 = vmatpush1.bf16.msra.mxu0 0
      %438 = vmatprep.subr.bf16.mxu0 0
      %439 = vmatpush1.bf16.msra.mxu0 0
      %440 = vmatprep.subr.bf16.mxu0 0
      %441 = vmatpush1.bf16.msra.mxu0 0
      %442 = vmatprep.subr.bf16.mxu0 0
      %443 = vmatpush1.bf16.msra.mxu0 0
      %444 = vmatprep.mubr.bf16.mxu0 0
      %445 = vmatmul.mubr.bf16.gmra.mrb[0].mxu0 %v410
      %v446 = vpop.f32.mrb[0].mxu0
      %v447 = vadd.f32 0.0, %v446
      %v448 = vpop.f32.mrb[0].mxu0
      %v449 = vpop.f32.mrb[0].mxu0
      %v450 = vadd.f32 0.0, %v449
      %v451 = vpop.f32.mrb[0].mxu0
      %452 = vdwg.mxu0
      %v453 = vpack.c.bf16 %v450, %v447
      %v455 = vunpack.c.l.b16 %v453
      %v456 = vunpack.c.h.b16 %v453
      %v457 = vpack.c.b16 %v455, %v455
      %v458 = vpack.c.b16 %v456, %v456
      %vm461 = vcmask 257024
      %462 = vst.msk [vmem:[%s299] sm:$0xf] %vm461, %v457
      %463 = vst.msk [vmem:[%s299 + $0x4] sm:$0xf] %vm461, %v458
      %v464 = vld [vmem:[%s289] sm:$0xf]
      %v465 = vld [vmem:[%s289 + $0x4] sm:$0xf]
      %v468 = vunpack.c.l.b16 %v464
      %v469 = vunpack.c.l.b16 %v465
      %v470 = vpack.c.b16 %v469, %v468
      %472 = vmatprep.subr.bf16.mxu0 0
      %473 = vmatpush1.bf16.msra.mxu0 %v470
      %474 = vmatprep.subr.bf16.mxu0 0
      %475 = vmatpush1.bf16.msra.mxu0 0
      %476 = vmatprep.subr.bf16.mxu0 0
      %477 = vmatpush1.bf16.msra.mxu0 0
      %478 = vmatprep.subr.bf16.mxu0 0
      %479 = vmatpush1.bf16.msra.mxu0 0
      %480 = vmatprep.subr.bf16.mxu0 0
      %481 = vmatpush1.bf16.msra.mxu0 0
      %482 = vmatprep.subr.bf16.mxu0 0
      %483 = vmatpush1.bf16.msra.mxu0 0
      %484 = vmatprep.subr.bf16.mxu0 0
      %485 = vmatpush1.bf16.msra.mxu0 0
      %486 = vmatprep.subr.bf16.mxu0 0
      %487 = vmatpush1.bf16.msra.mxu0 0
      %488 = vmatprep.subr.bf16.mxu0 0
      %489 = vmatpush1.bf16.msra.mxu0 0
      %490 = vmatprep.subr.bf16.mxu0 0
      %491 = vmatpush1.bf16.msra.mxu0 0
      %492 = vmatprep.subr.bf16.mxu0 0
      %493 = vmatpush1.bf16.msra.mxu0 0
      %494 = vmatprep.subr.bf16.mxu0 0
      %495 = vmatpush1.bf16.msra.mxu0 0
      %496 = vmatprep.subr.bf16.mxu0 0
      %497 = vmatpush1.bf16.msra.mxu0 0
      %498 = vmatprep.subr.bf16.mxu0 0
      %499 = vmatpush1.bf16.msra.mxu0 0
      %500 = vmatprep.subr.bf16.mxu0 0
      %501 = vmatpush1.bf16.msra.mxu0 0
      %502 = vmatprep.subr.bf16.mxu0 0
      %503 = vmatpush1.bf16.msra.mxu0 0
      %504 = vmatprep.mubr.bf16.mxu0 0
      %505 = vmatmul.mubr.bf16.gmra.mrb[0].mxu0 %v410
      %v506 = vpop.f32.mrb[0].mxu0
      %v507 = vadd.f32 0.0, %v506
      %v508 = vpop.f32.mrb[0].mxu0
      %v509 = vpop.f32.mrb[0].mxu0
      %v510 = vadd.f32 0.0, %v509
      %v511 = vpop.f32.mrb[0].mxu0
      %512 = vdwg.mxu0
      %v513 = vpack.c.bf16 %v510, %v507
      %v515 = vsel %vm384, %v513, 0
      %517 = vmatprep.subr.bf16.mxu0 0
      %518 = vmatpush1.bf16.xpose.msra.mxu0 %v410
      %519 = vmatprep.subr.bf16.mxu0 0
      %520 = vmatpush1.bf16.xpose.msra.mxu0 0
      %521 = vmatprep.subr.bf16.mxu0 0
      %522 = vmatpush1.bf16.xpose.msra.mxu0 0
      %523 = vmatprep.subr.bf16.mxu0 0
      %524 = vmatpush1.bf16.xpose.msra.mxu0 0
      %525 = vmatprep.subr.bf16.mxu0 0
      %526 = vmatpush1.bf16.xpose.msra.mxu0 0
      %527 = vmatprep.subr.bf16.mxu0 0
      %528 = vmatpush1.bf16.xpose.msra.mxu0 0
      %529 = vmatprep.subr.bf16.mxu0 0
      %530 = vmatpush1.bf16.xpose.msra.mxu0 0
      %531 = vmatprep.subr.bf16.mxu0 0
      %532 = vmatpush1.bf16.xpose.msra.mxu0 0
      %533 = vmatprep.subr.bf16.mxu0 0
      %534 = vmatpush1.bf16.xpose.msra.mxu0 0
      %535 = vmatprep.subr.bf16.mxu0 0
      %536 = vmatpush1.bf16.xpose.msra.mxu0 0
      %537 = vmatprep.subr.bf16.mxu0 0
      %538 = vmatpush1.bf16.xpose.msra.mxu0 0
      %539 = vmatprep.subr.bf16.mxu0 0
      %540 = vmatpush1.bf16.xpose.msra.mxu0 0
      %541 = vmatprep.subr.bf16.mxu0 0
      %542 = vmatpush1.bf16.xpose.msra.mxu0 0
      %543 = vmatprep.subr.bf16.mxu0 0
      %544 = vmatpush1.bf16.xpose.msra.mxu0 0
      %545 = vmatprep.subr.bf16.mxu0 0
      %546 = vmatpush1.bf16.xpose.msra.mxu0 0
      %547 = vmatprep.subr.bf16.mxu0 0
      %548 = vmatpush1.bf16.xpose.msra.mxu0 0
      %549 = vmatprep.mubr.bf16.mxu0 0
      %550 = vmatmul.mubr.bf16.gmra.mrb[0].mxu0 %v515
      %v551 = vpop.f32.mrb[0].mxu0
      %v552 = vadd.f32 0.0, %v551
      %v553 = vpop.f32.mrb[0].mxu0
      %v554 = vpop.f32.mrb[0].mxu0
      %v555 = vadd.f32 0.0, %v554
      %v556 = vpop.f32.mrb[0].mxu0
      %557 = vdwg.mxu0
      %v558 = vpack.c.bf16 %v555, %v552
      %v560 = vunpack.c.l.b16 %v558
      %v561 = vunpack.c.h.b16 %v558
      %v562 = vpack.c.b16 %v560, %v560
      %v563 = vpack.c.b16 %v561, %v561
      %vm566 = vcmask 125952
      %567 = vst.msk [vmem:[%s304] sm:$0xf] %vm566, %v562
      %568 = vst.msk [vmem:[%s304 + $0x4] sm:$0xf] %vm566, %v563
      %s569 = scalar_lea.vmem %s289, 8
      %v570 = vld [vmem:[%s569] sm:$0xf]
      %v571 = vld [vmem:[%s569 + $0x4] sm:$0xf]
      %v574 = vunpack.c.l.b16 %v570
      %v575 = vunpack.c.l.b16 %v571
      %v576 = vpack.c.b16 %v575, %v574
      %578 = vmatprep.subr.bf16.mxu0 0
      %579 = vmatpush1.bf16.msra.mxu0 %v576
      %580 = vmatprep.subr.bf16.mxu0 0
      %581 = vmatpush1.bf16.msra.mxu0 0
      %582 = vmatprep.subr.bf16.mxu0 0
      %583 = vmatpush1.bf16.msra.mxu0 0
      %584 = vmatprep.subr.bf16.mxu0 0
      %585 = vmatpush1.bf16.msra.mxu0 0
      %586 = vmatprep.subr.bf16.mxu0 0
      %587 = vmatpush1.bf16.msra.mxu0 0
      %588 = vmatprep.subr.bf16.mxu0 0
      %589 = vmatpush1.bf16.msra.mxu0 0
      %590 = vmatprep.subr.bf16.mxu0 0
      %591 = vmatpush1.bf16.msra.mxu0 0
      %592 = vmatprep.subr.bf16.mxu0 0
      %593 = vmatpush1.bf16.msra.mxu0 0
      %594 = vmatprep.subr.bf16.mxu0 0
      %595 = vmatpush1.bf16.msra.mxu0 0
      %596 = vmatprep.subr.bf16.mxu0 0
      %597 = vmatpush1.bf16.msra.mxu0 0
      %598 = vmatprep.subr.bf16.mxu0 0
      %599 = vmatpush1.bf16.msra.mxu0 0
      %600 = vmatprep.subr.bf16.mxu0 0
      %601 = vmatpush1.bf16.msra.mxu0 0
      %602 = vmatprep.subr.bf16.mxu0 0
      %603 = vmatpush1.bf16.msra.mxu0 0
      %604 = vmatprep.subr.bf16.mxu0 0
      %605 = vmatpush1.bf16.msra.mxu0 0
      %606 = vmatprep.subr.bf16.mxu0 0
      %607 = vmatpush1.bf16.msra.mxu0 0
      %608 = vmatprep.subr.bf16.mxu0 0
      %609 = vmatpush1.bf16.msra.mxu0 0
      %610 = vmatprep.mubr.bf16.mxu0 0
      %611 = vmatmul.mubr.bf16.gmra.mrb[0].mxu0 %v410
      %v612 = vpop.f32.mrb[0].mxu0
      %v613 = vadd.f32 0.0, %v612
      %v614 = vpop.f32.mrb[0].mxu0
      %v615 = vpop.f32.mrb[0].mxu0
      %v616 = vadd.f32 0.0, %v615
      %v617 = vpop.f32.mrb[0].mxu0
      %618 = vdwg.mxu0
      %v619 = vpack.c.bf16 %v616, %v613
      %v621 = vsel %vm384, %v619, 0
      %623 = vmatprep.subr.bf16.mxu0 0
      %624 = vmatpush1.bf16.xpose.msra.mxu0 %v410
      %625 = vmatprep.subr.bf16.mxu0 0
      %626 = vmatpush1.bf16.xpose.msra.mxu0 0
      %627 = vmatprep.subr.bf16.mxu0 0
      %628 = vmatpush1.bf16.xpose.msra.mxu0 0
      %629 = vmatprep.subr.bf16.mxu0 0
      %630 = vmatpush1.bf16.xpose.msra.mxu0 0
      %631 = vmatprep.subr.bf16.mxu0 0
      %632 = vmatpush1.bf16.xpose.msra.mxu0 0
      %633 = vmatprep.subr.bf16.mxu0 0
      %634 = vmatpush1.bf16.xpose.msra.mxu0 0
      %635 = vmatprep.subr.bf16.mxu0 0
      %636 = vmatpush1.bf16.xpose.msra.mxu0 0
      %637 = vmatprep.subr.bf16.mxu0 0
      %638 = vmatpush1.bf16.xpose.msra.mxu0 0
      %639 = vmatprep.subr.bf16.mxu0 0
      %640 = vmatpush1.bf16.xpose.msra.mxu0 0
      %641 = vmatprep.subr.bf16.mxu0 0
      %642 = vmatpush1.bf16.xpose.msra.mxu0 0
      %643 = vmatprep.subr.bf16.mxu0 0
      %644 = vmatpush1.bf16.xpose.msra.mxu0 0
      %645 = vmatprep.subr.bf16.mxu0 0
      %646 = vmatpush1.bf16.xpose.msra.mxu0 0
      %647 = vmatprep.subr.bf16.mxu0 0
      %648 = vmatpush1.bf16.xpose.msra.mxu0 0
      %649 = vmatprep.subr.bf16.mxu0 0
      %650 = vmatpush1.bf16.xpose.msra.mxu0 0
      %651 = vmatprep.subr.bf16.mxu0 0
      %652 = vmatpush1.bf16.xpose.msra.mxu0 0
      %653 = vmatprep.subr.bf16.mxu0 0
      %654 = vmatpush1.bf16.xpose.msra.mxu0 0
      %655 = vmatprep.mubr.bf16.mxu0 0
      %656 = vmatmul.mubr.bf16.gmra.mrb[0].mxu0 %v621
      %v657 = vpop.f32.mrb[0].mxu0
      %v658 = vadd.f32 0.0, %v657
      %v659 = vpop.f32.mrb[0].mxu0
      %v660 = vpop.f32.mrb[0].mxu0
      %v661 = vadd.f32 0.0, %v660
      %v662 = vpop.f32.mrb[0].mxu0
      %663 = vdwg.mxu0
      %v664 = vpack.c.bf16 %v661, %v658
      %v666 = vunpack.c.l.b16 %v664
      %v667 = vunpack.c.h.b16 %v664
      %v668 = vpack.c.b16 %v666, %v666
      %v669 = vpack.c.b16 %v667, %v667
      %s672 = scalar_lea.vmem %s304, 8
      %673 = vst.msk [vmem:[%s672] sm:$0xf] %vm566, %v668
      %674 = vst.msk [vmem:[%s672 + $0x4] sm:$0xf] %vm566, %v669
      %p675 = scmp.lt.s32.totalorder %s18, 1
      %s676 = scalar_select %p675, %s18, 1
      %s677 = smul.addr %s676, 2
      %s678 = smul.addr %s677, 4
      %s679 = scalar_lea.vmem %s5, %s678
      %p680 = scmp.lt.s32.totalorder %s18, 1
      %s681 = scalar_select %p680, %s18, 1
      %s682 = smul.addr %s681, 4
      %s683 = smul.addr %s682, 4
      %s684 = scalar_lea.vmem %s6, %s683
      // Predicated region
      $region41: #{_lambda_.14} parent=39 // pred_check
        %p685 = pneg %p156
      $region42: #{_lambda_.14} parent=39 // pred_check_branch
        %687 = sbr.rel (%p685) target = $region44
      $region43: #{_lambda_.14} parent=39 // pred_region
        _
      $region44: #{_lambda_.14} parent=39 // pred_fallthru
        _
      // Predicated region
      $region45: #{_lambda_.14} parent=39 // pred_check
        %p688 = pneg %p182
      $region46: #{_lambda_.14} parent=39 // pred_check_branch
        %690 = sbr.rel (%p688) target = $region48
      $region47: #{_lambda_.14} parent=39 // pred_region
        _
      $region48: #{_lambda_.14} parent=39 // pred_fallthru
        _
    $region40: #{_lambda_.14} parent=5 // pred_fallthru
      _
    %p691 = scmp.le.s32.totalorder 2, %s13
    // Predicated region
    $region49: #{_lambda_.14} parent=5 // pred_check
      %p692 = pneg %p691
    $region50: #{_lambda_.14} parent=5 // pred_check_branch
      %694 = sbr.rel (%p692) target = $region52
    $region51: #{_lambda_.14} parent=5 // pred_region
      %s695 = ssub.s32 %s13, 2
      // Predicated region
      $region53: #{_lambda_.14} parent=51 // pred_check
        %p696 = pneg %p162
      $region54: #{_lambda_.14} parent=51 // pred_check_branch
        %698 = sbr.rel (%p696) target = $region56
      $region55: #{_lambda_.14} parent=51 // pred_region
        %p699 = scmp.lt.s32.totalorder %s19, 1
        %s700 = scalar_select %p699, %s19, 1
        %s701 = smul.addr %s700, 2
        %s702 = smul.addr %s701, 4
        %s703 = scalar_lea.vmem %s5, %s702
      $region56: #{_lambda_.14} parent=51 // pred_fallthru
        _
      // Predicated region
      $region57: #{_lambda_.14} parent=51 // pred_check
        %p704 = pneg %p188
      $region58: #{_lambda_.14} parent=51 // pred_check_branch
        %706 = sbr.rel (%p704) target = $region60
      $region59: #{_lambda_.14} parent=51 // pred_region
        %p707 = scmp.lt.s32.totalorder %s19, 1
        %s708 = scalar_select %p707, %s19, 1
        %s709 = smul.addr %s708, 4
        %s710 = smul.addr %s709, 4
        %s711 = scalar_lea.vmem %s6, %s710
      $region60: #{_lambda_.14} parent=51 // pred_fallthru
        _
    $region52: #{_lambda_.14} parent=5 // pred_fallthru
      _
  $region6: #{_lambda_.14} parent=0 // loop_footer
    %s17 = sadd.s32 1, %s13
  $region7: #{_lambda_.14} parent=0 // loop_footer_branch
    %12 = sbr.rel target = $region3
  $region8: #{_lambda_.14} parent=0 // loop_exit
    _

// kernel: _lambda_.16
$region0: #{_lambda_.16}
  #allocation0 [shape = 'u32[]', space=smem, size = 0x4, offset = 0x4, fixed_abs, tag = 'smem constant byte address 0x4 - core index']
  #allocation1 [shape = 'u32[144,128]{1,0:T(1,128)}', space=vmem, size = 0x12000, scoped, tag = 'internal scratch']
  %s0 = inlined_call_operand.vmem [shape: bf16[2,16,32], index: 0, kind: input, shape index: {}]
  %s1 = inlined_call_operand.vmem [shape: bf16[2,2,16,16], index: 1, kind: input, shape index: {}]
  %s2 = inlined_call_operand.vmem [shape: f32[2,4,16], index: 2, kind: input, shape index: {}]
  %s3 = inlined_call_operand.vmem [shape: bf16[4,32], index: 3, kind: input, shape index: {}]
  %s4 = inlined_call_operand.vmem [shape: f32[4,1], index: 4, kind: input, shape index: {}]
  %s5 = inlined_call_operand.vmem [shape: bf16[2,4,32], index: 5, kind: output, shape index: {0}]
  %s6 = inlined_call_operand.vmem [shape: bf16[2,2,4,4], index: 6, kind: output, shape index: {1}]
  %7 = xla_tuple %s5, %s6
  %s8 = sld [smem:[#allocation0]]
  $region61: #{_lambda_.16} parent=0
    _
  %s10 = ssub.s32 1, %s8
  %s11 = scalar_select 0, %s10, %s8
  loop: start=0, step=1, limit=4
  $region2: #{_lambda_.16} parent=0 // loop_pre_header
    _
  $region3: #{_lambda_.16} parent=0 // loop_header
    %s13 = sphi 0, %s17
    %p14 = scmp.ge.s32.totalorder %s13, 4
    %s23 = sphi 0, %s25
    %s26 = sphi 0, %s23
    %s27 = sphi 0, %s26
    %s43 = sphi 0, %s27
    %s49 = sphi 0, %s51
    %s52 = sphi 0, %s49
    %s53 = sphi 0, %s52
    %s69 = sphi 0, %s53
    %s75 = sphi 0, %s77
    %s78 = sphi 0, %s75
    %s79 = sphi 0, %s78
    %s95 = sphi 0, %s79
    %s99 = sphi 0, %s99
    %s101 = sphi 0, %s99
    %s102 = sphi 0, %s101
    %s116 = sphi 0, %s102
    %s120 = sphi 0, %s120
    %s122 = sphi 0, %s120
    %s123 = sphi 0, %s122
    %s137 = sphi 0, %s123
    %s143 = sphi 0, %s145
    %s146 = sphi 0, %s143
    %s147 = sphi 0, %s146
    %s163 = sphi 0, %s147
    %s169 = sphi 0, %s171
    %s172 = sphi 0, %s169
    %s173 = sphi 0, %s172
    %s189 = sphi 0, %s173
  $region4: #{_lambda_.16} parent=0 // loop_header_branch
    %16 = sbr.rel (%p14) target = $region8
  $region5: #{_lambda_.16} parent=0 // loop_body
    %s18 = ssub.s32 %s13, 1
    %s19 = ssub.s32 %s13, 2
    %s20 = sadd.s32 %s13, 1
    %s21 = ssub.s32 %s13, %s20
    %p22 = scmp.eq.s32.totalorder %s21, 0
    %s24 = sadd.s32 %s23, 1
    %s25 = scalar_select %p22, %s23, %s24
    %p28 = pneg %p22
    %p29 = scmp.eq.s32.totalorder %s13, 1
    %p30 = por %p28, %p29
    %p31 = scmp.ne.s32.totalorder %s23, %s26
    %p32 = scmp.eq.s32.totalorder %s13, 0
    %p33 = por %p31, %p32
    %p34 = scmp.ne.s32.totalorder %s23, %s26
    %p35 = scmp.eq.s32.totalorder %s18, 1
    %p36 = por %p34, %p35
    %p37 = scmp.ne.s32.totalorder %s26, %s27
    %p38 = scmp.eq.s32.totalorder %s18, 0
    %p39 = por %p37, %p38
    %p40 = scmp.ne.s32.totalorder %s26, %s27
    %p41 = scmp.eq.s32.totalorder %s19, 1
    %p42 = por %p40, %p41
    %p44 = scmp.ne.s32.totalorder %s27, %s43
    %p45 = scmp.eq.s32.totalorder %s19, 0
    %p46 = por %p44, %p45
    %s47 = ssub.s32 %s13, %s20
    %p48 = scmp.eq.s32.totalorder %s47, 0
    %s50 = sadd.s32 %s49, 1
    %s51 = scalar_select %p48, %s49, %s50
    %p54 = pneg %p48
    %p55 = scmp.eq.s32.totalorder %s13, 1
    %p56 = por %p54, %p55
    %p57 = scmp.ne.s32.totalorder %s49, %s52
    %p58 = scmp.eq.s32.totalorder %s13, 0
    %p59 = por %p57, %p58
    %p60 = scmp.ne.s32.totalorder %s49, %s52
    %p61 = scmp.eq.s32.totalorder %s18, 1
    %p62 = por %p60, %p61
    %p63 = scmp.ne.s32.totalorder %s52, %s53
    %p64 = scmp.eq.s32.totalorder %s18, 0
    %p65 = por %p63, %p64
    %p66 = scmp.ne.s32.totalorder %s52, %s53
    %p67 = scmp.eq.s32.totalorder %s19, 1
    %p68 = por %p66, %p67
    %p70 = scmp.ne.s32.totalorder %s53, %s69
    %p71 = scmp.eq.s32.totalorder %s19, 0
    %p72 = por %p70, %p71
    %s73 = ssub.s32 %s13, %s20
    %p74 = scmp.eq.s32.totalorder %s73, 0
    %s76 = sadd.s32 %s75, 1
    %s77 = scalar_select %p74, %s75, %s76
    %p80 = pneg %p74
    %p81 = scmp.eq.s32.totalorder %s13, 1
    %p82 = por %p80, %p81
    %p83 = scmp.ne.s32.totalorder %s75, %s78
    %p84 = scmp.eq.s32.totalorder %s13, 0
    %p85 = por %p83, %p84
    %p86 = scmp.ne.s32.totalorder %s75, %s78
    %p87 = scmp.eq.s32.totalorder %s18, 1
    %p88 = por %p86, %p87
    %p89 = scmp.ne.s32.totalorder %s78, %s79
    %p90 = scmp.eq.s32.totalorder %s18, 0
    %p91 = por %p89, %p90
    %p92 = scmp.ne.s32.totalorder %s78, %s79
    %p93 = scmp.eq.s32.totalorder %s19, 1
    %p94 = por %p92, %p93
    %p96 = scmp.ne.s32.totalorder %s79, %s95
    %p97 = scmp.eq.s32.totalorder %s19, 0
    %p98 = por %p96, %p97
    %s100 = sadd.s32 %s99, 1
    %p103 = scmp.eq.s32.totalorder %s13, 1
    %p104 = scmp.ne.s32.totalorder %s99, %s101
    %p105 = scmp.eq.s32.totalorder %s13, 0
    %p106 = por %p104, %p105
    %p107 = scmp.ne.s32.totalorder %s99, %s101
    %p108 = scmp.eq.s32.totalorder %s18, 1
    %p109 = por %p107, %p108
    %p110 = scmp.ne.s32.totalorder %s101, %s102
    %p111 = scmp.eq.s32.totalorder %s18, 0
    %p112 = por %p110, %p111
    %p113 = scmp.ne.s32.totalorder %s101, %s102
    %p114 = scmp.eq.s32.totalorder %s19, 1
    %p115 = por %p113, %p114
    %p117 = scmp.ne.s32.totalorder %s102, %s116
    %p118 = scmp.eq.s32.totalorder %s19, 0
    %p119 = por %p117, %p118
    %s121 = sadd.s32 %s120, 1
    %p124 = scmp.eq.s32.totalorder %s13, 1
    %p125 = scmp.ne.s32.totalorder %s120, %s122
    %p126 = scmp.eq.s32.totalorder %s13, 0
    %p127 = por %p125, %p126
    %p128 = scmp.ne.s32.totalorder %s120, %s122
    %p129 = scmp.eq.s32.totalorder %s18, 1
    %p130 = por %p128, %p129
    %p131 = scmp.ne.s32.totalorder %s122, %s123
    %p132 = scmp.eq.s32.totalorder %s18, 0
    %p133 = por %p131, %p132
    %p134 = scmp.ne.s32.totalorder %s122, %s123
    %p135 = scmp.eq.s32.totalorder %s19, 1
    %p136 = por %p134, %p135
    %p138 = scmp.ne.s32.totalorder %s123, %s137
    %p139 = scmp.eq.s32.totalorder %s19, 0
    %p140 = por %p138, %p139
    %s141 = ssub.s32 %s13, %s20
    %p142 = scmp.eq.s32.totalorder %s141, 0
    %s144 = sadd.s32 %s143, 1
    %s145 = scalar_select %p142, %s143, %s144
    %p148 = pneg %p142
    %p149 = scmp.eq.s32.totalorder %s13, 1
    %p150 = por %p148, %p149
    %p151 = scmp.ne.s32.totalorder %s143, %s146
    %p152 = scmp.eq.s32.totalorder %s13, 0
    %p153 = por %p151, %p152
    %p154 = scmp.ne.s32.totalorder %s143, %s146
    %p155 = scmp.eq.s32.totalorder %s18, 1
    %p156 = por %p154, %p155
    %p157 = scmp.ne.s32.totalorder %s146, %s147
    %p158 = scmp.eq.s32.totalorder %s18, 0
    %p159 = por %p157, %p158
    %p160 = scmp.ne.s32.totalorder %s146, %s147
    %p161 = scmp.eq.s32.totalorder %s19, 1
    %p162 = por %p160, %p161
    %p164 = scmp.ne.s32.totalorder %s147, %s163
    %p165 = scmp.eq.s32.totalorder %s19, 0
    %p166 = por %p164, %p165
    %s167 = ssub.s32 %s13, %s20
    %p168 = scmp.eq.s32.totalorder %s167, 0
    %s170 = sadd.s32 %s169, 1
    %s171 = scalar_select %p168, %s169, %s170
    %p174 = pneg %p168
    %p175 = scmp.eq.s32.totalorder %s13, 1
    %p176 = por %p174, %p175
    %p177 = scmp.ne.s32.totalorder %s169, %s172
    %p178 = scmp.eq.s32.totalorder %s13, 0
    %p179 = por %p177, %p178
    %p180 = scmp.ne.s32.totalorder %s169, %s172
    %p181 = scmp.eq.s32.totalorder %s18, 1
    %p182 = por %p180, %p181
    %p183 = scmp.ne.s32.totalorder %s172, %s173
    %p184 = scmp.eq.s32.totalorder %s18, 0
    %p185 = por %p183, %p184
    %p186 = scmp.ne.s32.totalorder %s172, %s173
    %p187 = scmp.eq.s32.totalorder %s19, 1
    %p188 = por %p186, %p187
    %p190 = scmp.ne.s32.totalorder %s173, %s189
    %p191 = scmp.eq.s32.totalorder %s19, 0
    %p192 = por %p190, %p191
    %p193 = scmp.le.s32.totalorder 1, %s13
    %p194 = scmp.lt.s32.totalorder %s13, 3
    %p195 = pnand %p193, %p194
    %p196 = pneg %p195
    // Predicated region
    $region9: #{_lambda_.16} parent=5 // pred_check
      _
    $region10: #{_lambda_.16} parent=5 // pred_check_branch
      %198 = sbr.rel (%p195) target = $region12
    $region11: #{_lambda_.16} parent=5 // pred_region
      %s199 = ssub.s32 %s13, 1
      // Predicated region
      $region13: #{_lambda_.16} parent=11 // pred_check
        %p200 = pneg %p112
      $region14: #{_lambda_.16} parent=11 // pred_check_branch
        %202 = sbr.rel (%p200) target = $region16
      $region15: #{_lambda_.16} parent=11 // pred_region
        _
      $region16: #{_lambda_.16} parent=11 // pred_fallthru
        _
      // Predicated region
      $region17: #{_lambda_.16} parent=11 // pred_check
        %p203 = pneg %p133
      $region18: #{_lambda_.16} parent=11 // pred_check_branch
        %205 = sbr.rel (%p203) target = $region20
      $region19: #{_lambda_.16} parent=11 // pred_region
        _
      $region20: #{_lambda_.16} parent=11 // pred_fallthru
        _
    $region12: #{_lambda_.16} parent=5 // pred_fallthru
      _
    %p206 = scmp.lt.s32.totalorder %s13, 2
    // Predicated region
    $region21: #{_lambda_.16} parent=5 // pred_check
      %p207 = pneg %p206
    $region22: #{_lambda_.16} parent=5 // pred_check_branch
      %209 = sbr.rel (%p207) target = $region24
    $region23: #{_lambda_.16} parent=5 // pred_region
      // Predicated region
      $region25: #{_lambda_.16} parent=23 // pred_check
        %p210 = pneg %p33
      $region26: #{_lambda_.16} parent=23 // pred_check_branch
        %212 = sbr.rel (%p210) target = $region28
      $region27: #{_lambda_.16} parent=23 // pred_region
        %p213 = scmp.lt.s32.totalorder %s13, 1
        %s214 = scalar_select %p213, %s13, 1
        %s215 = smul.addr %s214, 2
        %s216 = smul.addr %s215, 4
        %s217 = scalar_lea.vmem %s0, %s216
      $region28: #{_lambda_.16} parent=23 // pred_fallthru
        _
      // Predicated region
      $region29: #{_lambda_.16} parent=23 // pred_check
        %p218 = pneg %p59
      $region30: #{_lambda_.16} parent=23 // pred_check_branch
        %220 = sbr.rel (%p218) target = $region32
      $region31: #{_lambda_.16} parent=23 // pred_region
        %p221 = scmp.lt.s32.totalorder %s13, 1
        %s222 = scalar_select %p221, %s13, 1
        %s223 = smul.addr %s222, 4
        %s224 = smul.addr %s223, 4
        %s225 = scalar_lea.vmem %s1, %s224
      $region32: #{_lambda_.16} parent=23 // pred_fallthru
        _
      // Predicated region
      $region33: #{_lambda_.16} parent=23 // pred_check
        %p226 = pneg %p85
      $region34: #{_lambda_.16} parent=23 // pred_check_branch
        %228 = sbr.rel (%p226) target = $region36
      $region35: #{_lambda_.16} parent=23 // pred_region
        %p229 = scmp.lt.s32.totalorder %s13, 1
        %s230 = scalar_select %p229, %s13, 1
        %s231 = smul.addr %s230, 4
        %s232 = scalar_lea.vmem %s2, %s231
      $region36: #{_lambda_.16} parent=23 // pred_fallthru
        _
    $region24: #{_lambda_.16} parent=5 // pred_fallthru
      _
    %p233 = scmp.le.s32.totalorder 1, %s13
    %p234 = scmp.lt.s32.totalorder %s13, 3
    %p235 = pnand %p233, %p234
    %p236 = pneg %p235
    // Predicated region
    $region37: #{_lambda_.16} parent=5 // pred_check
      _
    $region38: #{_lambda_.16} parent=5 // pred_check_branch
      %238 = sbr.rel (%p235) target = $region40
    $region39: #{_lambda_.16} parent=5 // pred_region
      %s239 = ssub.s32 %s13, 1
      %p240 = scmp.lt.s32.totalorder %s18, 1
      %s241 = scalar_select %p240, %s18, 1
      %s242 = smul.addr %s241, 2
      %s243 = smul.addr %s242, 4
      %s244 = scalar_lea.vmem %s0, %s243
      %p245 = pneg %p39
      %p246 = pneg %p36
      %p247 = scmp.lt.s32.totalorder %s18, 1
      %s248 = scalar_select %p247, %s18, 1
      %s249 = smul.addr %s248, 4
      %s250 = smul.addr %s249, 4
      %s251 = scalar_lea.vmem %s1, %s250
      %p252 = pneg %p65
      %p253 = pneg %p62
      %p254 = scmp.lt.s32.totalorder %s18, 1
      %s255 = scalar_select %p254, %s18, 1
      %s256 = smul.addr %s255, 4
      %s257 = scalar_lea.vmem %s2, %s256
      %p258 = pneg %p91
      %p259 = pneg %p88
      %p260 = pneg %p112
      %p261 = pneg %p109
      %p262 = pneg %p133
      %p263 = pneg %p130
      %p264 = pneg %p159
      %p265 = pneg %p156
      %p266 = scmp.lt.s32.totalorder %s18, 1
      %s267 = scalar_select %p266, %s18, 1
      %s268 = smul.addr %s267, 2
      %s269 = scalar_lea.vmem %s5, %s268
      %p270 = pneg %p185
      %p271 = pneg %p182
      %p272 = scmp.lt.s32.totalorder %s18, 1
      %s273 = scalar_select %p272, %s18, 1
      %s274 = smul.addr %s273, 2
      %s275 = smul.addr %s274, 2
      %s276 = scalar_lea.vmem %s6, %s275
      %p277 = scmp.lt.s32.totalorder %s18, 1
      %s278 = scalar_select %p277, %s18, 1
      %s279 = smul.addr %s278, 2
      %s280 = smul.addr %s279, 4
      %s281 = scalar_lea.vmem %s0, %s280
      %p282 = scmp.lt.s32.totalorder %s18, 1
      %s283 = scalar_select %p282, %s18, 1
      %s284 = smul.addr %s283, 4
      %s285 = smul.addr %s284, 4
      %s286 = scalar_lea.vmem %s1, %s285
      %p287 = scmp.lt.s32.totalorder %s18, 1
      %s288 = scalar_select %p287, %s18, 1
      %s289 = smul.addr %s288, 4
      %s290 = scalar_lea.vmem %s2, %s289
      %p291 = scmp.lt.s32.totalorder %s18, 1
      %s292 = scalar_select %p291, %s18, 1
      %s293 = smul.addr %s292, 2
      %s294 = scalar_lea.vmem %s5, %s293
      %p295 = scmp.lt.s32.totalorder %s18, 1
      %s296 = scalar_select %p295, %s18, 1
      %s297 = smul.addr %s296, 2
      %s298 = smul.addr %s297, 2
      %s299 = scalar_lea.vmem %s6, %s298
      %v301 = vld [vmem:[%s281] sm:$0xf]
      %v302 = vld [vmem:[%s281 + $0x4] sm:$0xf]
      %v303 = vld [vmem:[%s3] sm:$0x3]
      %v304 = vld [vmem:[%s4] sm:$0xf]
      %306 = vset.pattern.permute.xlu0 0
      %307 = vperm.xlu0 %306, %v304
      %v308 = vpop.permute.xlu0 %307
      %v312 = vunpack.c.l.b16 %v301
      %v313 = vunpack.c.l.b16 %v302
      %v314 = vpack.c.b16 %v313, %v312
      %vm315 = vcmask 261120
      %v317 = vsel %vm315, %v303, 0
      %v320 = vsel %vm315, %v314, 0
      %322 = vmatprep.subr.bf16.mxu0 0
      %323 = vmatpush1.bf16.xpose.msra.mxu0 %v320
      %324 = vmatprep.subr.bf16.mxu0 0
      %325 = vmatpush1.bf16.xpose.msra.mxu0 0
      %326 = vmatprep.subr.bf16.mxu0 0
      %327 = vmatpush1.bf16.xpose.msra.mxu0 0
      %328 = vmatprep.subr.bf16.mxu0 0
      %329 = vmatpush1.bf16.xpose.msra.mxu0 0
      %330 = vmatprep.subr.bf16.mxu0 0
      %331 = vmatpush1.bf16.xpose.msra.mxu0 0
      %332 = vmatprep.subr.bf16.mxu0 0
      %333 = vmatpush1.bf16.xpose.msra.mxu0 0
      %334 = vmatprep.subr.bf16.mxu0 0
      %335 = vmatpush1.bf16.xpose.msra.mxu0 0
      %336 = vmatprep.subr.bf16.mxu0 0
      %337 = vmatpush1.bf16.xpose.msra.mxu0 0
      %338 = vmatprep.subr.bf16.mxu0 0
      %339 = vmatpush1.bf16.xpose.msra.mxu0 0
      %340 = vmatprep.subr.bf16.mxu0 0
      %341 = vmatpush1.bf16.xpose.msra.mxu0 0
      %342 = vmatprep.subr.bf16.mxu0 0
      %343 = vmatpush1.bf16.xpose.msra.mxu0 0
      %344 = vmatprep.subr.bf16.mxu0 0
      %345 = vmatpush1.bf16.xpose.msra.mxu0 0
      %346 = vmatprep.subr.bf16.mxu0 0
      %347 = vmatpush1.bf16.xpose.msra.mxu0 0
      %348 = vmatprep.subr.bf16.mxu0 0
      %349 = vmatpush1.bf16.xpose.msra.mxu0 0
      %350 = vmatprep.subr.bf16.mxu0 0
      %351 = vmatpush1.bf16.xpose.msra.mxu0 0
      %352 = vmatprep.subr.bf16.mxu0 0
      %353 = vmatpush1.bf16.xpose.msra.mxu0 0
      %354 = vmatprep.mubr.bf16.mxu0 0
      %355 = vmatmul.mubr.bf16.gmra.mrb[0].mxu0 %v317
      %v356 = vpop.f32.mrb[0].mxu0
      %v357 = vadd.f32 %v308, %v356
      %v358 = vpop.f32.mrb[0].mxu0
      %v359 = vpop.f32.mrb[0].mxu0
      %v360 = vpop.f32.mrb[0].mxu0
      %361 = vdwg.mxu0
      %v362 = vld [vmem:[%s290] sm:$0xf]
      %v363 = vadd.f32 %v357, %v362
      %vm364 = vcmask 125952
      %v365 = vsel %vm364, %v363, -inf
      %366 = vmax.xlane.f32.xlu0 %v365
      %v367 = vpop.xlane.xlu0 %366
      %v368 = vsub.f32 %v363, %v367
      %v369 = vmul.f32 %v368, 1.442695
      %v370 = vpow.pop %v369
      %v371 = vsel %vm364, %v370, 0.0
      %372 = vadd.xlane.f32.xlu0 %v371
      %v373 = vpop.xlane.xlu0 %372
      %v374 = vrcp.pop %v373
      %v375 = vmul.f32 %v370, %v374
      %v376 = vpack.c.bf16 %v375, %v375
      %vm378 = vcmask 130048
      %v380 = vsel %vm378, %v376, 0
      %382 = vmatprep.subr.bf16.mxu0 0
      %383 = vmatpush1.bf16.msra.mxu0 %v314
      %384 = vmatprep.subr.bf16.mxu0 0
      %385 = vmatpush1.bf16.msra.mxu0 0
      %386 = vmatprep.subr.bf16.mxu0 0
      %387 = vmatpush1.bf16.msra.mxu0 0
      %388 = vmatprep.subr.bf16.mxu0 0
      %389 = vmatpush1.bf16.msra.mxu0 0
      %390 = vmatprep.subr.bf16.mxu0 0
      %391 = vmatpush1.bf16.msra.mxu0 0
      %392 = vmatprep.subr.bf16.mxu0 0
      %393 = vmatpush1.bf16.msra.mxu0 0
      %394 = vmatprep.subr.bf16.mxu0 0
      %395 = vmatpush1.bf16.msra.mxu0 0
      %396 = vmatprep.subr.bf16.mxu0 0
      %397 = vmatpush1.bf16.msra.mxu0 0
      %398 = vmatprep.subr.bf16.mxu0 0
      %399 = vmatpush1.bf16.msra.mxu0 0
      %400 = vmatprep.subr.bf16.mxu0 0
      %401 = vmatpush1.bf16.msra.mxu0 0
      %402 = vmatprep.subr.bf16.mxu0 0
      %403 = vmatpush1.bf16.msra.mxu0 0
      %404 = vmatprep.subr.bf16.mxu0 0
      %405 = vmatpush1.bf16.msra.mxu0 0
      %406 = vmatprep.subr.bf16.mxu0 0
      %407 = vmatpush1.bf16.msra.mxu0 0
      %408 = vmatprep.subr.bf16.mxu0 0
      %409 = vmatpush1.bf16.msra.mxu0 0
      %410 = vmatprep.subr.bf16.mxu0 0
      %411 = vmatpush1.bf16.msra.mxu0 0
      %412 = vmatprep.subr.bf16.mxu0 0
      %413 = vmatpush1.bf16.msra.mxu0 0
      %414 = vmatprep.mubr.bf16.mxu0 0
      %415 = vmatmul.mubr.bf16.gmra.mrb[0].mxu0 %v380
      %v416 = vpop.f32.mrb[0].mxu0
      %v417 = vadd.f32 0.0, %v416
      %v418 = vpop.f32.mrb[0].mxu0
      %v419 = vpop.f32.mrb[0].mxu0
      %v420 = vpop.f32.mrb[0].mxu0
      %421 = vdwg.mxu0
      %v422 = vpack.c.bf16 %v417, %v417
      %vm423 = vcmask 254976
      %424 = vst.msk [vmem:[%s294] sm:$0x3] %vm423, %v422
      %v425 = vld [vmem:[%s286] sm:$0xf]
      %v426 = vld [vmem:[%s286 + $0x4] sm:$0xf]
      %v429 = vunpack.c.l.b16 %v425
      %v430 = vunpack.c.l.b16 %v426
      %v431 = vpack.c.b16 %v430, %v429
      %433 = vmatprep.subr.bf16.mxu0 0
      %434 = vmatpush1.bf16.msra.mxu0 %v431
      %435 = vmatprep.subr.bf16.mxu0 0
      %436 = vmatpush1.bf16.msra.mxu0 0
      %437 = vmatprep.subr.bf16.mxu0 0
      %438 = vmatpush1.bf16.msra.mxu0 0
      %439 = vmatprep.subr.bf16.mxu0 0
      %440 = vmatpush1.bf16.msra.mxu0 0
      %441 = vmatprep.subr.bf16.mxu0 0
      %442 = vmatpush1.bf16.msra.mxu0 0
      %443 = vmatprep.subr.bf16.mxu0 0
      %444 = vmatpush1.bf16.msra.mxu0 0
      %445 = vmatprep.subr.bf16.mxu0 0
      %446 = vmatpush1.bf16.msra.mxu0 0
      %447 = vmatprep.subr.bf16.mxu0 0
      %448 = vmatpush1.bf16.msra.mxu0 0
      %449 = vmatprep.subr.bf16.mxu0 0
      %450 = vmatpush1.bf16.msra.mxu0 0
      %451 = vmatprep.subr.bf16.mxu0 0
      %452 = vmatpush1.bf16.msra.mxu0 0
      %453 = vmatprep.subr.bf16.mxu0 0
      %454 = vmatpush1.bf16.msra.mxu0 0
      %455 = vmatprep.subr.bf16.mxu0 0
      %456 = vmatpush1.bf16.msra.mxu0 0
      %457 = vmatprep.subr.bf16.mxu0 0
      %458 = vmatpush1.bf16.msra.mxu0 0
      %459 = vmatprep.subr.bf16.mxu0 0
      %460 = vmatpush1.bf16.msra.mxu0 0
      %461 = vmatprep.subr.bf16.mxu0 0
      %462 = vmatpush1.bf16.msra.mxu0 0
      %463 = vmatprep.subr.bf16.mxu0 0
      %464 = vmatpush1.bf16.msra.mxu0 0
      %465 = vmatprep.mubr.bf16.mxu0 0
      %466 = vmatmul.mubr.bf16.gmra.mrb[0].mxu0 %v380
      %v467 = vpop.f32.mrb[0].mxu0
      %v468 = vadd.f32 0.0, %v467
      %v469 = vpop.f32.mrb[0].mxu0
      %v470 = vpop.f32.mrb[0].mxu0
      %v471 = vpop.f32.mrb[0].mxu0
      %472 = vdwg.mxu0
      %v473 = vpack.c.bf16 %v468, %v468
      %v475 = vsel %vm378, %v473, 0
      %477 = vmatprep.subr.bf16.mxu0 0
      %478 = vmatpush1.bf16.xpose.msra.mxu0 %v380
      %479 = vmatprep.subr.bf16.mxu0 0
      %480 = vmatpush1.bf16.xpose.msra.mxu0 0
      %481 = vmatprep.subr.bf16.mxu0 0
      %482 = vmatpush1.bf16.xpose.msra.mxu0 0
      %483 = vmatprep.subr.bf16.mxu0 0
      %484 = vmatpush1.bf16.xpose.msra.mxu0 0
      %485 = vmatprep.subr.bf16.mxu0 0
      %486 = vmatpush1.bf16.xpose.msra.mxu0 0
      %487 = vmatprep.subr.bf16.mxu0 0
      %488 = vmatpush1.bf16.xpose.msra.mxu0 0
      %489 = vmatprep.subr.bf16.mxu0 0
      %490 = vmatpush1.bf16.xpose.msra.mxu0 0
      %491 = vmatprep.subr.bf16.mxu0 0
      %492 = vmatpush1.bf16.xpose.msra.mxu0 0
      %493 = vmatprep.subr.bf16.mxu0 0
      %494 = vmatpush1.bf16.xpose.msra.mxu0 0
      %495 = vmatprep.subr.bf16.mxu0 0
      %496 = vmatpush1.bf16.xpose.msra.mxu0 0
      %497 = vmatprep.subr.bf16.mxu0 0
      %498 = vmatpush1.bf16.xpose.msra.mxu0 0
      %499 = vmatprep.subr.bf16.mxu0 0
      %500 = vmatpush1.bf16.xpose.msra.mxu0 0
      %501 = vmatprep.subr.bf16.mxu0 0
      %502 = vmatpush1.bf16.xpose.msra.mxu0 0
      %503 = vmatprep.subr.bf16.mxu0 0
      %504 = vmatpush1.bf16.xpose.msra.mxu0 0
      %505 = vmatprep.subr.bf16.mxu0 0
      %506 = vmatpush1.bf16.xpose.msra.mxu0 0
      %507 = vmatprep.subr.bf16.mxu0 0
      %508 = vmatpush1.bf16.xpose.msra.mxu0 0
      %509 = vmatprep.mubr.bf16.mxu0 0
      %510 = vmatmul.mubr.bf16.gmra.mrb[0].mxu0 %v475
      %v511 = vpop.f32.mrb[0].mxu0
      %v512 = vadd.f32 0.0, %v511
      %v513 = vpop.f32.mrb[0].mxu0
      %v514 = vpop.f32.mrb[0].mxu0
      %v515 = vpop.f32.mrb[0].mxu0
      %516 = vdwg.mxu0
      %v517 = vpack.c.bf16 %v512, %v512
      %vm518 = vcmask 25600
      %519 = vst.msk [vmem:[%s299] sm:$0x3] %vm518, %v517
      %s520 = scalar_lea.vmem %s286, 8
      %v521 = vld [vmem:[%s520] sm:$0xf]
      %v522 = vld [vmem:[%s520 + $0x4] sm:$0xf]
      %v525 = vunpack.c.l.b16 %v521
      %v526 = vunpack.c.l.b16 %v522
      %v527 = vpack.c.b16 %v526, %v525
      %529 = vmatprep.subr.bf16.mxu0 0
      %530 = vmatpush1.bf16.msra.mxu0 %v527
      %531 = vmatprep.subr.bf16.mxu0 0
      %532 = vmatpush1.bf16.msra.mxu0 0
      %533 = vmatprep.subr.bf16.mxu0 0
      %534 = vmatpush1.bf16.msra.mxu0 0
      %535 = vmatprep.subr.bf16.mxu0 0
      %536 = vmatpush1.bf16.msra.mxu0 0
      %537 = vmatprep.subr.bf16.mxu0 0
      %538 = vmatpush1.bf16.msra.mxu0 0
      %539 = vmatprep.subr.bf16.mxu0 0
      %540 = vmatpush1.bf16.msra.mxu0 0
      %541 = vmatprep.subr.bf16.mxu0 0
      %542 = vmatpush1.bf16.msra.mxu0 0
      %543 = vmatprep.subr.bf16.mxu0 0
      %544 = vmatpush1.bf16.msra.mxu0 0
      %545 = vmatprep.subr.bf16.mxu0 0
      %546 = vmatpush1.bf16.msra.mxu0 0
      %547 = vmatprep.subr.bf16.mxu0 0
      %548 = vmatpush1.bf16.msra.mxu0 0
      %549 = vmatprep.subr.bf16.mxu0 0
      %550 = vmatpush1.bf16.msra.mxu0 0
      %551 = vmatprep.subr.bf16.mxu0 0
      %552 = vmatpush1.bf16.msra.mxu0 0
      %553 = vmatprep.subr.bf16.mxu0 0
      %554 = vmatpush1.bf16.msra.mxu0 0
      %555 = vmatprep.subr.bf16.mxu0 0
      %556 = vmatpush1.bf16.msra.mxu0 0
      %557 = vmatprep.subr.bf16.mxu0 0
      %558 = vmatpush1.bf16.msra.mxu0 0
      %559 = vmatprep.subr.bf16.mxu0 0
      %560 = vmatpush1.bf16.msra.mxu0 0
      %561 = vmatprep.mubr.bf16.mxu0 0
      %562 = vmatmul.mubr.bf16.gmra.mrb[0].mxu0 %v380
      %v563 = vpop.f32.mrb[0].mxu0
      %v564 = vadd.f32 0.0, %v563
      %v565 = vpop.f32.mrb[0].mxu0
      %v566 = vpop.f32.mrb[0].mxu0
      %v567 = vpop.f32.mrb[0].mxu0
      %568 = vdwg.mxu0
      %v569 = vpack.c.bf16 %v564, %v564
      %v571 = vsel %vm378, %v569, 0
      %573 = vmatprep.subr.bf16.mxu0 0
      %574 = vmatpush1.bf16.xpose.msra.mxu0 %v380
      %575 = vmatprep.subr.bf16.mxu0 0
      %576 = vmatpush1.bf16.xpose.msra.mxu0 0
      %577 = vmatprep.subr.bf16.mxu0 0
      %578 = vmatpush1.bf16.xpose.msra.mxu0 0
      %579 = vmatprep.subr.bf16.mxu0 0
      %580 = vmatpush1.bf16.xpose.msra.mxu0 0
      %581 = vmatprep.subr.bf16.mxu0 0
      %582 = vmatpush1.bf16.xpose.msra.mxu0 0
      %583 = vmatprep.subr.bf16.mxu0 0
      %584 = vmatpush1.bf16.xpose.msra.mxu0 0
      %585 = vmatprep.subr.bf16.mxu0 0
      %586 = vmatpush1.bf16.xpose.msra.mxu0 0
      %587 = vmatprep.subr.bf16.mxu0 0
      %588 = vmatpush1.bf16.xpose.msra.mxu0 0
      %589 = vmatprep.subr.bf16.mxu0 0
      %590 = vmatpush1.bf16.xpose.msra.mxu0 0
      %591 = vmatprep.subr.bf16.mxu0 0
      %592 = vmatpush1.bf16.xpose.msra.mxu0 0
      %593 = vmatprep.subr.bf16.mxu0 0
      %594 = vmatpush1.bf16.xpose.msra.mxu0 0
      %595 = vmatprep.subr.bf16.mxu0 0
      %596 = vmatpush1.bf16.xpose.msra.mxu0 0
      %597 = vmatprep.subr.bf16.mxu0 0
      %598 = vmatpush1.bf16.xpose.msra.mxu0 0
      %599 = vmatprep.subr.bf16.mxu0 0
      %600 = vmatpush1.bf16.xpose.msra.mxu0 0
      %601 = vmatprep.subr.bf16.mxu0 0
      %602 = vmatpush1.bf16.xpose.msra.mxu0 0
      %603 = vmatprep.subr.bf16.mxu0 0
      %604 = vmatpush1.bf16.xpose.msra.mxu0 0
      %605 = vmatprep.mubr.bf16.mxu0 0
      %606 = vmatmul.mubr.bf16.gmra.mrb[0].mxu0 %v571
      %v607 = vpop.f32.mrb[0].mxu0
      %v608 = vadd.f32 0.0, %v607
      %v609 = vpop.f32.mrb[0].mxu0
      %v610 = vpop.f32.mrb[0].mxu0
      %v611 = vpop.f32.mrb[0].mxu0
      %612 = vdwg.mxu0
      %v613 = vpack.c.bf16 %v608, %v608
      %s614 = scalar_lea.vmem %s299, 2
      %615 = vst.msk [vmem:[%s614] sm:$0x3] %vm518, %v613
      %p616 = scmp.lt.s32.totalorder %s18, 1
      %s617 = scalar_select %p616, %s18, 1
      %s618 = smul.addr %s617, 2
      %s619 = scalar_lea.vmem %s5, %s618
      %p620 = scmp.lt.s32.totalorder %s18, 1
      %s621 = scalar_select %p620, %s18, 1
      %s622 = smul.addr %s621, 2
      %s623 = smul.addr %s622, 2
      %s624 = scalar_lea.vmem %s6, %s623
      // Predicated region
      $region41: #{_lambda_.16} parent=39 // pred_check
        %p625 = pneg %p156
      $region42: #{_lambda_.16} parent=39 // pred_check_branch
        %627 = sbr.rel (%p625) target = $region44
      $region43: #{_lambda_.16} parent=39 // pred_region
        _
      $region44: #{_lambda_.16} parent=39 // pred_fallthru
        _
      // Predicated region
      $region45: #{_lambda_.16} parent=39 // pred_check
        %p628 = pneg %p182
      $region46: #{_lambda_.16} parent=39 // pred_check_branch
        %630 = sbr.rel (%p628) target = $region48
      $region47: #{_lambda_.16} parent=39 // pred_region
        _
      $region48: #{_lambda_.16} parent=39 // pred_fallthru
        _
    $region40: #{_lambda_.16} parent=5 // pred_fallthru
      _
    %p631 = scmp.le.s32.totalorder 2, %s13
    // Predicated region
    $region49: #{_lambda_.16} parent=5 // pred_check
      %p632 = pneg %p631
    $region50: #{_lambda_.16} parent=5 // pred_check_branch
      %634 = sbr.rel (%p632) target = $region52
    $region51: #{_lambda_.16} parent=5 // pred_region
      %s635 = ssub.s32 %s13, 2
      // Predicated region
      $region53: #{_lambda_.16} parent=51 // pred_check
        %p636 = pneg %p162
      $region54: #{_lambda_.16} parent=51 // pred_check_branch
        %638 = sbr.rel (%p636) target = $region56
      $region55: #{_lambda_.16} parent=51 // pred_region
        %p639 = scmp.lt.s32.totalorder %s19, 1
        %s640 = scalar_select %p639, %s19, 1
        %s641 = smul.addr %s640, 2
        %s642 = scalar_lea.vmem %s5, %s641
      $region56: #{_lambda_.16} parent=51 // pred_fallthru
        _
      // Predicated region
      $region57: #{_lambda_.16} parent=51 // pred_check
        %p643 = pneg %p188
      $region58: #{_lambda_.16} parent=51 // pred_check_branch
        %645 = sbr.rel (%p643) target = $region60
      $region59: #{_lambda_.16} parent=51 // pred_region
        %p646 = scmp.lt.s32.totalorder %s19, 1
        %s647 = scalar_select %p646, %s19, 1
        %s648 = smul.addr %s647, 2
        %s649 = smul.addr %s648, 2
        %s650 = scalar_lea.vmem %s6, %s649
      $region60: #{_lambda_.16} parent=51 // pred_fallthru
        _
    $region52: #{_lambda_.16} parent=5 // pred_fallthru
      _
  $region6: #{_lambda_.16} parent=0 // loop_footer
    %s17 = sadd.s32 1, %s13
  $region7: #{_lambda_.16} parent=0 // loop_footer_branch
    %12 = sbr.rel target = $region3
  $region8: #{_lambda_.16} parent=0 // loop_exit
    _

// kernel: _lambda_.17
$region0: #{_lambda_.17}
  #allocation0 [shape = 'u32[]', space=smem, size = 0x4, offset = 0x4, fixed_abs, tag = 'smem constant byte address 0x4 - core index']
  #allocation1 [shape = 'u32[144,128]{1,0:T(1,128)}', space=vmem, size = 0x12000, scoped, tag = 'internal scratch']
  %s0 = inlined_call_operand.vmem [shape: bf16[2,4,32], index: 0, kind: input, shape index: {}]
  %s1 = inlined_call_operand.vmem [shape: bf16[2,2,4,4], index: 1, kind: input, shape index: {}]
  %s2 = inlined_call_operand.vmem [shape: f32[1,32], index: 2, kind: input, shape index: {}]
  %s3 = inlined_call_operand.vmem [shape: f32[1,32], index: 3, kind: input, shape index: {}]
  %s4 = inlined_call_operand.vmem [shape: bf16[16,32], index: 4, kind: input, shape index: {}]
  %s5 = inlined_call_operand.vmem [shape: f32[1,32], index: 5, kind: input, shape index: {}]
  %s6 = inlined_call_operand.vmem [shape: bf16[16,16], index: 6, kind: input, shape index: {}]
  %s7 = inlined_call_operand.vmem [shape: f32[1,16], index: 7, kind: input, shape index: {}]
  %s8 = inlined_call_operand.vmem [shape: f32[2,2], index: 8, kind: input, shape index: {}]
  %s9 = inlined_call_operand.vmem [shape: bf16[2,4,32], index: 9, kind: output, shape index: {}]
  %s10 = sld [smem:[#allocation0]]
  $region73: #{_lambda_.17} parent=0
    _
  %s12 = ssub.s32 1, %s10
  %s13 = scalar_select 0, %s12, %s10
  $region1: #{_lambda_.17} parent=0
    #allocation2 [shape = 'u8[1024]{0}', space=smem, size = 0x400, scoped, tag = 'input window, operand 8, single buffered']
    #allocation3 [shape = 's32[2]{0}', space=sflag, size = 0x8, scoped, tag = 'scoped memory for _lambda_.17']
    %14 = vsyncpa [#allocation3], 0
    loop: start=0, step=1, limit=4
    $region2: #{_lambda_.17} parent=1 // loop_pre_header
      _
    $region3: #{_lambda_.17} parent=1 // loop_header
      %s16 = sphi 0, %s20
      %p17 = scmp.ge.s32.totalorder %s16, 4
      %s26 = sphi 0, %s28
      %s29 = sphi 0, %s26
      %s30 = sphi 0, %s29
      %s46 = sphi 0, %s30
      %s52 = sphi 0, %s54
      %s55 = sphi 0, %s52
      %s56 = sphi 0, %s55
      %s72 = sphi 0, %s56
      %s76 = sphi 0, %s76
      %s78 = sphi 0, %s76
      %s79 = sphi 0, %s78
      %s93 = sphi 0, %s79
      %s97 = sphi 0, %s97
      %s99 = sphi 0, %s97
      %s100 = sphi 0, %s99
      %s114 = sphi 0, %s100
      %s118 = sphi 0, %s118
      %s120 = sphi 0, %s118
      %s121 = sphi 0, %s120
      %s135 = sphi 0, %s121
      %s139 = sphi 0, %s139
      %s141 = sphi 0, %s139
      %s142 = sphi 0, %s141
      %s156 = sphi 0, %s142
      %s160 = sphi 0, %s160
      %s162 = sphi 0, %s160
      %s163 = sphi 0, %s162
      %s177 = sphi 0, %s163
      %s181 = sphi 0, %s181
      %s183 = sphi 0, %s181
      %s184 = sphi 0, %s183
      %s198 = sphi 0, %s184
      %s202 = sphi 0, %s202
      %s204 = sphi 0, %s202
      %s205 = sphi 0, %s204
      %s219 = sphi 0, %s205
      %s225 = sphi 0, %s227
      %s228 = sphi 0, %s225
      %s229 = sphi 0, %s228
      %s245 = sphi 0, %s229
    $region4: #{_lambda_.17} parent=1 // loop_header_branch
      %19 = sbr.rel (%p17) target = $region8
    $region5: #{_lambda_.17} parent=1 // loop_body
      %s21 = ssub.s32 %s16, 1
      %s22 = ssub.s32 %s16, 2
      %s23 = sadd.s32 %s16, 1
      %s24 = ssub.s32 %s16, %s23
      %p25 = scmp.eq.s32.totalorder %s24, 0
      %s27 = sadd.s32 %s26, 1
      %s28 = scalar_select %p25, %s26, %s27
      %p31 = pneg %p25
      %p32 = scmp.eq.s32.totalorder %s16, 1
      %p33 = por %p31, %p32
      %p34 = scmp.ne.s32.totalorder %s26, %s29
      %p35 = scmp.eq.s32.totalorder %s16, 0
      %p36 = por %p34, %p35
      %p37 = scmp.ne.s32.totalorder %s26, %s29
      %p38 = scmp.eq.s32.totalorder %s21, 1
      %p39 = por %p37, %p38
      %p40 = scmp.ne.s32.totalorder %s29, %s30
      %p41 = scmp.eq.s32.totalorder %s21, 0
      %p42 = por %p40, %p41
      %p43 = scmp.ne.s32.totalorder %s29, %s30
      %p44 = scmp.eq.s32.totalorder %s22, 1
      %p45 = por %p43, %p44
      %p47 = scmp.ne.s32.totalorder %s30, %s46
      %p48 = scmp.eq.s32.totalorder %s22, 0
      %p49 = por %p47, %p48
      %s50 = ssub.s32 %s16, %s23
      %p51 = scmp.eq.s32.totalorder %s50, 0
      %s53 = sadd.s32 %s52, 1
      %s54 = scalar_select %p51, %s52, %s53
      %p57 = pneg %p51
      %p58 = scmp.eq.s32.totalorder %s16, 1
      %p59 = por %p57, %p58
      %p60 = scmp.ne.s32.totalorder %s52, %s55
      %p61 = scmp.eq.s32.totalorder %s16, 0
      %p62 = por %p60, %p61
      %p63 = scmp.ne.s32.totalorder %s52, %s55
      %p64 = scmp.eq.s32.totalorder %s21, 1
      %p65 = por %p63, %p64
      %p66 = scmp.ne.s32.totalorder %s55, %s56
      %p67 = scmp.eq.s32.totalorder %s21, 0
      %p68 = por %p66, %p67
      %p69 = scmp.ne.s32.totalorder %s55, %s56
      %p70 = scmp.eq.s32.totalorder %s22, 1
      %p71 = por %p69, %p70
      %p73 = scmp.ne.s32.totalorder %s56, %s72
      %p74 = scmp.eq.s32.totalorder %s22, 0
      %p75 = por %p73, %p74
      %s77 = sadd.s32 %s76, 1
      %p80 = scmp.eq.s32.totalorder %s16, 1
      %p81 = scmp.ne.s32.totalorder %s76, %s78
      %p82 = scmp.eq.s32.totalorder %s16, 0
      %p83 = por %p81, %p82
      %p84 = scmp.ne.s32.totalorder %s76, %s78
      %p85 = scmp.eq.s32.totalorder %s21, 1
      %p86 = por %p84, %p85
      %p87 = scmp.ne.s32.totalorder %s78, %s79
      %p88 = scmp.eq.s32.totalorder %s21, 0
      %p89 = por %p87, %p88
      %p90 = scmp.ne.s32.totalorder %s78, %s79
      %p91 = scmp.eq.s32.totalorder %s22, 1
      %p92 = por %p90, %p91
      %p94 = scmp.ne.s32.totalorder %s79, %s93
      %p95 = scmp.eq.s32.totalorder %s22, 0
      %p96 = por %p94, %p95
      %s98 = sadd.s32 %s97, 1
      %p101 = scmp.eq.s32.totalorder %s16, 1
      %p102 = scmp.ne.s32.totalorder %s97, %s99
      %p103 = scmp.eq.s32.totalorder %s16, 0
      %p104 = por %p102, %p103
      %p105 = scmp.ne.s32.totalorder %s97, %s99
      %p106 = scmp.eq.s32.totalorder %s21, 1
      %p107 = por %p105, %p106
      %p108 = scmp.ne.s32.totalorder %s99, %s100
      %p109 = scmp.eq.s32.totalorder %s21, 0
      %p110 = por %p108, %p109
      %p111 = scmp.ne.s32.totalorder %s99, %s100
      %p112 = scmp.eq.s32.totalorder %s22, 1
      %p113 = por %p111, %p112
      %p115 = scmp.ne.s32.totalorder %s100, %s114
      %p116 = scmp.eq.s32.totalorder %s22, 0
      %p117 = por %p115, %p116
      %s119 = sadd.s32 %s118, 1
      %p122 = scmp.eq.s32.totalorder %s16, 1
      %p123 = scmp.ne.s32.totalorder %s118, %s120
      %p124 = scmp.eq.s32.totalorder %s16, 0
      %p125 = por %p123, %p124
      %p126 = scmp.ne.s32.totalorder %s118, %s120
      %p127 = scmp.eq.s32.totalorder %s21, 1
      %p128 = por %p126, %p127
      %p129 = scmp.ne.s32.totalorder %s120, %s121
      %p130 = scmp.eq.s32.totalorder %s21, 0
      %p131 = por %p129, %p130
      %p132 = scmp.ne.s32.totalorder %s120, %s121
      %p133 = scmp.eq.s32.totalorder %s22, 1
      %p134 = por %p132, %p133
      %p136 = scmp.ne.s32.totalorder %s121, %s135
      %p137 = scmp.eq.s32.totalorder %s22, 0
      %p138 = por %p136, %p137
      %s140 = sadd.s32 %s139, 1
      %p143 = scmp.eq.s32.totalorder %s16, 1
      %p144 = scmp.ne.s32.totalorder %s139, %s141
      %p145 = scmp.eq.s32.totalorder %s16, 0
      %p146 = por %p144, %p145
      %p147 = scmp.ne.s32.totalorder %s139, %s141
      %p148 = scmp.eq.s32.totalorder %s21, 1
      %p149 = por %p147, %p148
      %p150 = scmp.ne.s32.totalorder %s141, %s142
      %p151 = scmp.eq.s32.totalorder %s21, 0
      %p152 = por %p150, %p151
      %p153 = scmp.ne.s32.totalorder %s141, %s142
      %p154 = scmp.eq.s32.totalorder %s22, 1
      %p155 = por %p153, %p154
      %p157 = scmp.ne.s32.totalorder %s142, %s156
      %p158 = scmp.eq.s32.totalorder %s22, 0
      %p159 = por %p157, %p158
      %s161 = sadd.s32 %s160, 1
      %p164 = scmp.eq.s32.totalorder %s16, 1
      %p165 = scmp.ne.s32.totalorder %s160, %s162
      %p166 = scmp.eq.s32.totalorder %s16, 0
      %p167 = por %p165, %p166
      %p168 = scmp.ne.s32.totalorder %s160, %s162
      %p169 = scmp.eq.s32.totalorder %s21, 1
      %p170 = por %p168, %p169
      %p171 = scmp.ne.s32.totalorder %s162, %s163
      %p172 = scmp.eq.s32.totalorder %s21, 0
      %p173 = por %p171, %p172
      %p174 = scmp.ne.s32.totalorder %s162, %s163
      %p175 = scmp.eq.s32.totalorder %s22, 1
      %p176 = por %p174, %p175
      %p178 = scmp.ne.s32.totalorder %s163, %s177
      %p179 = scmp.eq.s32.totalorder %s22, 0
      %p180 = por %p178, %p179
      %s182 = sadd.s32 %s181, 1
      %p185 = scmp.eq.s32.totalorder %s16, 1
      %p186 = scmp.ne.s32.totalorder %s181, %s183
      %p187 = scmp.eq.s32.totalorder %s16, 0
      %p188 = por %p186, %p187
      %p189 = scmp.ne.s32.totalorder %s181, %s183
      %p190 = scmp.eq.s32.totalorder %s21, 1
      %p191 = por %p189, %p190
      %p192 = scmp.ne.s32.totalorder %s183, %s184
      %p193 = scmp.eq.s32.totalorder %s21, 0
      %p194 = por %p192, %p193
      %p195 = scmp.ne.s32.totalorder %s183, %s184
      %p196 = scmp.eq.s32.totalorder %s22, 1
      %p197 = por %p195, %p196
      %p199 = scmp.ne.s32.totalorder %s184, %s198
      %p200 = scmp.eq.s32.totalorder %s22, 0
      %p201 = por %p199, %p200
      %s203 = sadd.s32 %s202, 1
      %p206 = scmp.eq.s32.totalorder %s16, 1
      %p207 = scmp.ne.s32.totalorder %s202, %s204
      %p208 = scmp.eq.s32.totalorder %s16, 0
      %p209 = por %p207, %p208
      %p210 = scmp.ne.s32.totalorder %s202, %s204
      %p211 = scmp.eq.s32.totalorder %s21, 1
      %p212 = por %p210, %p211
      %p213 = scmp.ne.s32.totalorder %s204, %s205
      %p214 = scmp.eq.s32.totalorder %s21, 0
      %p215 = por %p213, %p214
      %p216 = scmp.ne.s32.totalorder %s204, %s205
      %p217 = scmp.eq.s32.totalorder %s22, 1
      %p218 = por %p216, %p217
      %p220 = scmp.ne.s32.totalorder %s205, %s219
      %p221 = scmp.eq.s32.totalorder %s22, 0
      %p222 = por %p220, %p221
      %s223 = ssub.s32 %s16, %s23
      %p224 = scmp.eq.s32.totalorder %s223, 0
      %s226 = sadd.s32 %s225, 1
      %s227 = scalar_select %p224, %s225, %s226
      %p230 = pneg %p224
      %p231 = scmp.eq.s32.totalorder %s16, 1
      %p232 = por %p230, %p231
      %p233 = scmp.ne.s32.totalorder %s225, %s228
      %p234 = scmp.eq.s32.totalorder %s16, 0
      %p235 = por %p233, %p234
      %p236 = scmp.ne.s32.totalorder %s225, %s228
      %p237 = scmp.eq.s32.totalorder %s21, 1
      %p238 = por %p236, %p237
      %p239 = scmp.ne.s32.totalorder %s228, %s229
      %p240 = scmp.eq.s32.totalorder %s21, 0
      %p241 = por %p239, %p240
      %p242 = scmp.ne.s32.totalorder %s228, %s229
      %p243 = scmp.eq.s32.totalorder %s22, 1
      %p244 = por %p242, %p243
      %p246 = scmp.ne.s32.totalorder %s229, %s245
      %p247 = scmp.eq.s32.totalorder %s22, 0
      %p248 = por %p246, %p247
      %p249 = scmp.le.s32.totalorder 1, %s16
      %p250 = scmp.lt.s32.totalorder %s16, 3
      %p251 = pnand %p249, %p250
      %p252 = pneg %p251
      // Predicated region
      $region9: #{_lambda_.17} parent=5 // pred_check
        _
      $region10: #{_lambda_.17} parent=5 // pred_check_branch
        %254 = sbr.rel (%p251) target = $region12
      $region11: #{_lambda_.17} parent=5 // pred_region
        %s255 = ssub.s32 %s16, 1
        // Predicated region
        $region13: #{_lambda_.17} parent=11 // pred_check
          %p256 = pneg %p89
        $region14: #{_lambda_.17} parent=11 // pred_check_branch
          %258 = sbr.rel (%p256) target = $region16
        $region15: #{_lambda_.17} parent=11 // pred_region
          _
        $region16: #{_lambda_.17} parent=11 // pred_fallthru
          _
        // Predicated region
        $region17: #{_lambda_.17} parent=11 // pred_check
          %p259 = pneg %p110
        $region18: #{_lambda_.17} parent=11 // pred_check_branch
          %261 = sbr.rel (%p259) target = $region20
        $region19: #{_lambda_.17} parent=11 // pred_region
          _
        $region20: #{_lambda_.17} parent=11 // pred_fallthru
          _
        // Predicated region
        $region21: #{_lambda_.17} parent=11 // pred_check
          %p262 = pneg %p131
        $region22: #{_lambda_.17} parent=11 // pred_check_branch
          %264 = sbr.rel (%p262) target = $region24
        $region23: #{_lambda_.17} parent=11 // pred_region
          _
        $region24: #{_lambda_.17} parent=11 // pred_fallthru
          _
        // Predicated region
        $region25: #{_lambda_.17} parent=11 // pred_check
          %p265 = pneg %p152
        $region26: #{_lambda_.17} parent=11 // pred_check_branch
          %267 = sbr.rel (%p265) target = $region28
        $region27: #{_lambda_.17} parent=11 // pred_region
          _
        $region28: #{_lambda_.17} parent=11 // pred_fallthru
          _
        // Predicated region
        $region29: #{_lambda_.17} parent=11 // pred_check
          %p268 = pneg %p173
        $region30: #{_lambda_.17} parent=11 // pred_check_branch
          %270 = sbr.rel (%p268) target = $region32
        $region31: #{_lambda_.17} parent=11 // pred_region
          _
        $region32: #{_lambda_.17} parent=11 // pred_fallthru
          _
        // Predicated region
        $region33: #{_lambda_.17} parent=11 // pred_check
          %p271 = pneg %p194
        $region34: #{_lambda_.17} parent=11 // pred_check_branch
          %273 = sbr.rel (%p271) target = $region36
        $region35: #{_lambda_.17} parent=11 // pred_region
          _
        $region36: #{_lambda_.17} parent=11 // pred_fallthru
          _
        // Predicated region
        $region37: #{_lambda_.17} parent=11 // pred_check
          %p274 = pneg %p215
        $region38: #{_lambda_.17} parent=11 // pred_check_branch
          %276 = sbr.rel (%p274) target = $region40
        $region39: #{_lambda_.17} parent=11 // pred_region
          %s278 = ssub.s32 32, 32
          %279 = vsyncadd [#allocation3], %s278
          %s281 = sshll.u32 %s8, 4
          %s282 = int_to_ptr.vmem [resolvable:$true] %s281
          %284 = dma.vmem_to_smem %s282, 32, [#allocation2], [#allocation3]
        $region40: #{_lambda_.17} parent=11 // pred_fallthru
          _
      $region12: #{_lambda_.17} parent=5 // pred_fallthru
        _
      %p285 = scmp.lt.s32.totalorder %s16, 2
      // Predicated region
      $region41: #{_lambda_.17} parent=5 // pred_check
        %p286 = pneg %p285
      $region42: #{_lambda_.17} parent=5 // pred_check_branch
        %288 = sbr.rel (%p286) target = $region44
      $region43: #{_lambda_.17} parent=5 // pred_region
        // Predicated region
        $region45: #{_lambda_.17} parent=43 // pred_check
          %p289 = pneg %p36
        $region46: #{_lambda_.17} parent=43 // pred_check_branch
          %291 = sbr.rel (%p289) target = $region48
        $region47: #{_lambda_.17} parent=43 // pred_region
          %p292 = scmp.lt.s32.totalorder %s16, 1
          %s293 = scalar_select %p292, %s16, 1
          %s294 = smul.addr %s293, 2
          %s295 = scalar_lea.vmem %s0, %s294
        $region48: #{_lambda_.17} parent=43 // pred_fallthru
          _
        // Predicated region
        $region49: #{_lambda_.17} parent=43 // pred_check
          %p296 = pneg %p62
        $region50: #{_lambda_.17} parent=43 // pred_check_branch
          %298 = sbr.rel (%p296) target = $region52
        $region51: #{_lambda_.17} parent=43 // pred_region
          %p299 = scmp.lt.s32.totalorder %s16, 1
          %s300 = scalar_select %p299, %s16, 1
          %s301 = smul.addr %s300, 2
          %s302 = smul.addr %s301, 2
          %s303 = scalar_lea.vmem %s1, %s302
        $region52: #{_lambda_.17} parent=43 // pred_fallthru
          _
      $region44: #{_lambda_.17} parent=5 // pred_fallthru
        _
      %p304 = scmp.le.s32.totalorder 1, %s16
      %p305 = scmp.lt.s32.totalorder %s16, 3
      %p306 = pnand %p304, %p305
      %p307 = pneg %p306
      // Predicated region
      $region53: #{_lambda_.17} parent=5 // pred_check
        _
      $region54: #{_lambda_.17} parent=5 // pred_check_branch
        %309 = sbr.rel (%p306) target = $region56
      $region55: #{_lambda_.17} parent=5 // pred_region
        %s310 = ssub.s32 %s16, 1
        // Predicated region
        $region57: #{_lambda_.17} parent=55 // pred_check
          %p311 = pneg %p215
        $region58: #{_lambda_.17} parent=55 // pred_check_branch
          %313 = sbr.rel (%p311) target = $region60
        $region59: #{_lambda_.17} parent=55 // pred_region
          %314 = dma.done [#allocation3], 32
        $region60: #{_lambda_.17} parent=55 // pred_fallthru
          _
        %315 = sfence
        %p316 = scmp.lt.s32.totalorder %s21, 1
        %s317 = scalar_select %p316, %s21, 1
        %s318 = smul.addr %s317, 2
        %s319 = scalar_lea.vmem %s0, %s318
        %p320 = pneg %p42
        %p321 = pneg %p39
        %p322 = scmp.lt.s32.totalorder %s21, 1
        %s323 = scalar_select %p322, %s21, 1
        %s324 = smul.addr %s323, 2
        %s325 = smul.addr %s324, 2
        %s326 = scalar_lea.vmem %s1, %s325
        %p327 = pneg %p68
        %p328 = pneg %p65
        %p329 = pneg %p89
        %p330 = pneg %p86
        %p331 = pneg %p110
        %p332 = pneg %p107
        %p333 = pneg %p131
        %p334 = pneg %p128
        %p335 = pneg %p152
        %p336 = pneg %p149
        %p337 = pneg %p173
        %p338 = pneg %p170
        %p339 = pneg %p194
        %p340 = pneg %p191
        %p341 = pneg %p215
        %p342 = pneg %p212
        %p343 = pneg %p241
        %p344 = pneg %p238
        %p345 = scmp.lt.s32.totalorder %s21, 1
        %s346 = scalar_select %p345, %s21, 1
        %s347 = smul.addr %s346, 2
        %s348 = scalar_lea.vmem %s9, %s347
        %p349 = scmp.lt.s32.totalorder %s21, 1
        %s350 = scalar_select %p349, %s21, 1
        %s351 = smul.addr %s350, 2
        %s352 = scalar_lea.vmem %s0, %s351
        %p353 = scmp.lt.s32.totalorder %s21, 1
        %s354 = scalar_select %p353, %s21, 1
        %s355 = smul.addr %s354, 2
        %s356 = smul.addr %s355, 2
        %s357 = scalar_lea.vmem %s1, %s356
        %p358 = scmp.lt.s32.totalorder %s21, 1
        %s359 = scalar_select %p358, %s21, 1
        %s360 = smul.addr %s359, 2
        %s361 = scalar_lea.vmem %s9, %s360
        %v363 = vld [vmem:[%s352] sm:$0x3]
        %v364 = vunpack.c.l.bf16 %v363
        %v365 = vld [vmem:[%s2] sm:$0x1]
        %v366 = vld [vmem:[%s3] sm:$0x1]
        %vm367 = vcmask 257024
        %v368 = vsel %vm367, %v364, 0.0
        %369 = vadd.xlane.f32.xlu0 %v368
        %v370 = vpop.xlane.xlu0 %369
        %v371 = vrcp.pop 32.0
        %v372 = vmul.f32 %v370, %v371
        %v373 = vsub.f32 %v364, %v372
        %v374 = vmul.f32 %v373, %v373
        %v375 = vsel %vm367, %v374, 0.0
        %376 = vadd.xlane.f32.xlu0 %v375
        %v377 = vpop.xlane.xlu0 %376
        %v378 = vmul.f32 %v377, %v371
        %v379 = vadd.f32 %v378, 1e-05
        %v380 = vrsqrt.pop %v379
        %v381 = vmul.f32 %v373, %v380
        %v383 = vlaneseq
        %v384 = vshrl.u32 %v383, 7
        %v385 = vsub.s32 0, %v384
        %v386 = vrot.slane %v365, %v385
        %v388 = vmul.f32 %v381, %v386
        %v390 = vlaneseq
        %v391 = vshrl.u32 %v390, 7
        %v392 = vsub.s32 0, %v391
        %v393 = vrot.slane %v366, %v392
        %v395 = vadd.f32 %v388, %v393
        %397 = vrot.lane.b32.xlu0 %v395, 112
        %v398 = vpop.permute.xlu0 %397
        %v400 = vld [vmem:[%s357] sm:$0x3]
        %v401 = vld [vmem:[%s357 + $0x2] sm:$0x3]
        %v402 = vpack.c.bf16 %v395, %v395
        %v403 = vpack.c.bf16 %v398, %v398
        %vm404 = vcmask 31744
        %v406 = vsel %vm404, %v400, 0
        %vm408 = vcmask 1041408
        %v410 = vsel %vm408, %v402, 0
        %412 = vmatprep.subr.bf16.mxu0 0
        %413 = vmatpush1.bf16.msra.mxu0 %v410
        %414 = vmatprep.subr.bf16.mxu0 0
        %415 = vmatpush1.bf16.msra.mxu0 0
        %416 = vmatprep.subr.bf16.mxu0 0
        %417 = vmatpush1.bf16.msra.mxu0 0
        %418 = vmatprep.subr.bf16.mxu0 0
        %419 = vmatpush1.bf16.msra.mxu0 0
        %420 = vmatprep.subr.bf16.mxu0 0
        %421 = vmatpush1.bf16.msra.mxu0 0
        %422 = vmatprep.subr.bf16.mxu0 0
        %423 = vmatpush1.bf16.msra.mxu0 0
        %424 = vmatprep.subr.bf16.mxu0 0
        %425 = vmatpush1.bf16.msra.mxu0 0
        %426 = vmatprep.subr.bf16.mxu0 0
        %427 = vmatpush1.bf16.msra.mxu0 0
        %428 = vmatprep.subr.bf16.mxu0 0
        %429 = vmatpush1.bf16.msra.mxu0 0
        %430 = vmatprep.subr.bf16.mxu0 0
        %431 = vmatpush1.bf16.msra.mxu0 0
        %432 = vmatprep.subr.bf16.mxu0 0
        %433 = vmatpush1.bf16.msra.mxu0 0
        %434 = vmatprep.subr.bf16.mxu0 0
        %435 = vmatpush1.bf16.msra.mxu0 0
        %436 = vmatprep.subr.bf16.mxu0 0
        %437 = vmatpush1.bf16.msra.mxu0 0
        %438 = vmatprep.subr.bf16.mxu0 0
        %439 = vmatpush1.bf16.msra.mxu0 0
        %440 = vmatprep.subr.bf16.mxu0 0
        %441 = vmatpush1.bf16.msra.mxu0 0
        %442 = vmatprep.subr.bf16.mxu0 0
        %443 = vmatpush1.bf16.msra.mxu0 0
        %444 = vmatprep.mubr.bf16.mxu0 0
        %445 = vmatmul.mubr.bf16.gmra.mrb[0].mxu0 %v406
        %v446 = vpop.f32.mrb[0].mxu0
        %v447 = vadd.f32 %v395, %v446
        %v448 = vpop.f32.mrb[0].mxu0
        %v449 = vpop.f32.mrb[0].mxu0
        %v450 = vpop.f32.mrb[0].mxu0
        %451 = vdwg.mxu0
        %v453 = vsel %vm404, %v401, 0
        %v456 = vsel %vm408, %v403, 0
        %458 = vmatprep.subr.bf16.mxu0 0
        %459 = vmatpush1.bf16.msra.mxu0 %v456
        %460 = vmatprep.subr.bf16.mxu0 0
        %461 = vmatpush1.bf16.msra.mxu0 0
        %462 = vmatprep.subr.bf16.mxu0 0
        %463 = vmatpush1.bf16.msra.mxu0 0
        %464 = vmatprep.subr.bf16.mxu0 0
        %465 = vmatpush1.bf16.msra.mxu0 0
        %466 = vmatprep.subr.bf16.mxu0 0
        %467 = vmatpush1.bf16.msra.mxu0 0
        %468 = vmatprep.subr.bf16.mxu0 0
        %469 = vmatpush1.bf16.msra.mxu0 0
        %470 = vmatprep.subr.bf16.mxu0 0
        %471 = vmatpush1.bf16.msra.mxu0 0
        %472 = vmatprep.subr.bf16.mxu0 0
        %473 = vmatpush1.bf16.msra.mxu0 0
        %474 = vmatprep.subr.bf16.mxu0 0
        %475 = vmatpush1.bf16.msra.mxu0 0
        %476 = vmatprep.subr.bf16.mxu0 0
        %477 = vmatpush1.bf16.msra.mxu0 0
        %478 = vmatprep.subr.bf16.mxu0 0
        %479 = vmatpush1.bf16.msra.mxu0 0
        %480 = vmatprep.subr.bf16.mxu0 0
        %481 = vmatpush1.bf16.msra.mxu0 0
        %482 = vmatprep.subr.bf16.mxu0 0
        %483 = vmatpush1.bf16.msra.mxu0 0
        %484 = vmatprep.subr.bf16.mxu0 0
        %485 = vmatpush1.bf16.msra.mxu0 0
        %486 = vmatprep.subr.bf16.mxu0 0
        %487 = vmatpush1.bf16.msra.mxu0 0
        %488 = vmatprep.subr.bf16.mxu0 0
        %489 = vmatpush1.bf16.msra.mxu0 0
        %490 = vmatprep.mubr.bf16.mxu0 0
        %491 = vmatmul.mubr.bf16.gmra.mrb[0].mxu0 %v453
        %v492 = vpop.f32.mrb[0].mxu0
        %v493 = vadd.f32 %v398, %v492
        %v494 = vpop.f32.mrb[0].mxu0
        %v495 = vpop.f32.mrb[0].mxu0
        %v496 = vpop.f32.mrb[0].mxu0
        %497 = vdwg.mxu0
        %v498 = vld [vmem:[%s4] sm:$0xf]
        %v499 = vld [vmem:[%s4 + $0x4] sm:$0xf]
        %v502 = vcombine.low %v447, %v493
        %v504 = vpack.c.bf16 %v502, %v502
        %v505 = vld [vmem:[%s5] sm:$0x1]
        %v507 = vlaneseq
        %v508 = vshrl.u32 %v507, 7
        %v509 = vsub.s32 0, %v508
        %v510 = vrot.slane %v505, %v509
        %v514 = vunpack.c.l.b16 %v498
        %v515 = vunpack.c.l.b16 %v499
        %v516 = vpack.c.b16 %v515, %v514
        %vm518 = vcmask 130048
        %v520 = vsel %vm518, %v504, 0
        %522 = vmatprep.subr.bf16.mxu0 0
        %523 = vmatpush1.bf16.msra.mxu0 %v516
        %524 = vmatprep.subr.bf16.mxu0 0
        %525 = vmatpush1.bf16.msra.mxu0 0
        %526 = vmatprep.subr.bf16.mxu0 0
        %527 = vmatpush1.bf16.msra.mxu0 0
        %528 = vmatprep.subr.bf16.mxu0 0
        %529 = vmatpush1.bf16.msra.mxu0 0
        %530 = vmatprep.subr.bf16.mxu0 0
        %531 = vmatpush1.bf16.msra.mxu0 0
        %532 = vmatprep.subr.bf16.mxu0 0
        %533 = vmatpush1.bf16.msra.mxu0 0
        %534 = vmatprep.subr.bf16.mxu0 0
        %535 = vmatpush1.bf16.msra.mxu0 0
        %536 = vmatprep.subr.bf16.mxu0 0
        %537 = vmatpush1.bf16.msra.mxu0 0
        %538 = vmatprep.subr.bf16.mxu0 0
        %539 = vmatpush1.bf16.msra.mxu0 0
        %540 = vmatprep.subr.bf16.mxu0 0
        %541 = vmatpush1.bf16.msra.mxu0 0
        %542 = vmatprep.subr.bf16.mxu0 0
        %543 = vmatpush1.bf16.msra.mxu0 0
        %544 = vmatprep.subr.bf16.mxu0 0
        %545 = vmatpush1.bf16.msra.mxu0 0
        %546 = vmatprep.subr.bf16.mxu0 0
        %547 = vmatpush1.bf16.msra.mxu0 0
        %548 = vmatprep.subr.bf16.mxu0 0
        %549 = vmatpush1.bf16.msra.mxu0 0
        %550 = vmatprep.subr.bf16.mxu0 0
        %551 = vmatpush1.bf16.msra.mxu0 0
        %552 = vmatprep.subr.bf16.mxu0 0
        %553 = vmatpush1.bf16.msra.mxu0 0
        %554 = vmatprep.mubr.bf16.mxu0 0
        %555 = vmatmul.mubr.bf16.gmra.mrb[0].mxu0 %v520
        %v556 = vpop.f32.mrb[0].mxu0
        %v557 = vadd.f32 %v510, %v556
        %v558 = vpop.f32.mrb[0].mxu0
        %v559 = vpop.f32.mrb[0].mxu0
        %v560 = vpop.f32.mrb[0].mxu0
        %561 = vdwg.mxu0
        %v563 = vcombine.high %v557, %v557
        %v565 = vpack.c.bf16 %v557, %v557
        %v566 = vpack.c.bf16 %v563, %v563
        %568 = vrot.lane.b32.xlu0 %v565, 112
        %v569 = vpop.permute.xlu0 %568
        %v571 = vsel %vm518, %v565, 0
        %v574 = vsel %vm518, %v569, 0
        %576 = vmatprep.subr.bf16.mxu0 0
        %577 = vmatpush1.bf16.xpose.msra.mxu0 %v574
        %578 = vmatprep.subr.bf16.mxu0 0
        %579 = vmatpush1.bf16.xpose.msra.mxu0 0
        %580 = vmatprep.subr.bf16.mxu0 0
        %581 = vmatpush1.bf16.xpose.msra.mxu0 0
        %582 = vmatprep.subr.bf16.mxu0 0
        %583 = vmatpush1.bf16.xpose.msra.mxu0 0
        %584 = vmatprep.subr.bf16.mxu0 0
        %585 = vmatpush1.bf16.xpose.msra.mxu0 0
        %586 = vmatprep.subr.bf16.mxu0 0
        %587 = vmatpush1.bf16.xpose.msra.mxu0 0
        %588 = vmatprep.subr.bf16.mxu0 0
        %589 = vmatpush1.bf16.xpose.msra.mxu0 0
        %590 = vmatprep.subr.bf16.mxu0 0
        %591 = vmatpush1.bf16.xpose.msra.mxu0 0
        %592 = vmatprep.subr.bf16.mxu0 0
        %593 = vmatpush1.bf16.xpose.msra.mxu0 0
        %594 = vmatprep.subr.bf16.mxu0 0
        %595 = vmatpush1.bf16.xpose.msra.mxu0 0
        %596 = vmatprep.subr.bf16.mxu0 0
        %597 = vmatpush1.bf16.xpose.msra.mxu0 0
        %598 = vmatprep.subr.bf16.mxu0 0
        %599 = vmatpush1.bf16.xpose.msra.mxu0 0
        %600 = vmatprep.subr.bf16.mxu0 0
        %601 = vmatpush1.bf16.xpose.msra.mxu0 0
        %602 = vmatprep.subr.bf16.mxu0 0
        %603 = vmatpush1.bf16.xpose.msra.mxu0 0
        %604 = vmatprep.subr.bf16.mxu0 0
        %605 = vmatpush1.bf16.xpose.msra.mxu0 0
        %606 = vmatprep.subr.bf16.mxu0 0
        %607 = vmatpush1.bf16.xpose.msra.mxu0 0
        %608 = vmatprep.mubr.bf16.mxu0 0
        %609 = vmatmul.mubr.bf16.gmra.mrb[0].mxu0 %v571
        %v610 = vpop.f32.mrb[0].mxu0
        %v611 = vadd.f32 0.0, %v610
        %v612 = vpop.f32.mrb[0].mxu0
        %v613 = vpop.f32.mrb[0].mxu0
        %v614 = vpop.f32.mrb[0].mxu0
        %615 = vdwg.mxu0
        %617 = vrot.lane.b32.xlu0 %v566, 112
        %v618 = vpop.permute.xlu0 %617
        %v620 = vsel %vm518, %v566, 0
        %v623 = vsel %vm518, %v618, 0
        %625 = vmatprep.subr.bf16.mxu0 0
        %626 = vmatpush1.bf16.xpose.msra.mxu0 %v623
        %627 = vmatprep.subr.bf16.mxu0 0
        %628 = vmatpush1.bf16.xpose.msra.mxu0 0
        %629 = vmatprep.subr.bf16.mxu0 0
        %630 = vmatpush1.bf16.xpose.msra.mxu0 0
        %631 = vmatprep.subr.bf16.mxu0 0
        %632 = vmatpush1.bf16.xpose.msra.mxu0 0
        %633 = vmatprep.subr.bf16.mxu0 0
        %634 = vmatpush1.bf16.xpose.msra.mxu0 0
        %635 = vmatprep.subr.bf16.mxu0 0
        %636 = vmatpush1.bf16.xpose.msra.mxu0 0
        %637 = vmatprep.subr.bf16.mxu0 0
        %638 = vmatpush1.bf16.xpose.msra.mxu0 0
        %639 = vmatprep.subr.bf16.mxu0 0
        %640 = vmatpush1.bf16.xpose.msra.mxu0 0
        %641 = vmatprep.subr.bf16.mxu0 0
        %642 = vmatpush1.bf16.xpose.msra.mxu0 0
        %643 = vmatprep.subr.bf16.mxu0 0
        %644 = vmatpush1.bf16.xpose.msra.mxu0 0
        %645 = vmatprep.subr.bf16.mxu0 0
        %646 = vmatpush1.bf16.xpose.msra.mxu0 0
        %647 = vmatprep.subr.bf16.mxu0 0
        %648 = vmatpush1.bf16.xpose.msra.mxu0 0
        %649 = vmatprep.subr.bf16.mxu0 0
        %650 = vmatpush1.bf16.xpose.msra.mxu0 0
        %651 = vmatprep.subr.bf16.mxu0 0
        %652 = vmatpush1.bf16.xpose.msra.mxu0 0
        %653 = vmatprep.subr.bf16.mxu0 0
        %654 = vmatpush1.bf16.xpose.msra.mxu0 0
        %655 = vmatprep.subr.bf16.mxu0 0
        %656 = vmatpush1.bf16.xpose.msra.mxu0 0
        %657 = vmatprep.mubr.bf16.mxu0 0
        %658 = vmatmul.mubr.bf16.gmra.mrb[0].mxu0 %v620
        %v659 = vpop.f32.mrb[0].mxu0
        %v660 = vadd.f32 0.0, %v659
        %v661 = vpop.f32.mrb[0].mxu0
        %v662 = vpop.f32.mrb[0].mxu0
        %v663 = vpop.f32.mrb[0].mxu0
        %664 = vdwg.mxu0
        %v665 = vmul.f32 %v611, 0.17677669
        %v666 = vmul.f32 %v660, 0.17677669
        %s667 = sld [smem:[#allocation2]]
        %v668 = vstv %s667
        %v669 = vmul.f32 %v668, %v665
        %s670 = sld [smem:[#allocation2 + $0x1]]
        %v671 = vstv %s670
        %v672 = vmul.f32 %v671, %v666
        %v673 = vadd.f32 %v669, %v672
        %s674 = sld [smem:[#allocation2 + $0x80]]
        %v675 = vstv %s674
        %v676 = vmul.f32 %v675, %v665
        %s677 = sld [smem:[#allocation2 + $0x81]]
        %v678 = vstv %s677
        %v679 = vmul.f32 %v678, %v666
        %v680 = vadd.f32 %v676, %v679
        %vm681 = vcmask 27648
        %v682 = vsel %vm681, %v673, -inf
        %683 = vmax.xlane.f32.xlu0 %v682
        %v684 = vpop.xlane.xlu0 %683
        %v685 = vsel %vm681, %v680, -inf
        %686 = vmax.xlane.f32.xlu0 %v685
        %v687 = vpop.xlane.xlu0 %686
        %v688 = vsub.f32 %v673, %v684
        %v689 = vsub.f32 %v680, %v687
        %v690 = vmul.f32 %v688, 1.442695
        %v691 = vpow.pop %v690
        %v692 = vmul.f32 %v689, 1.442695
        %v693 = vpow.pop %v692
        %v694 = vsel %vm681, %v691, 0.0
        %695 = vadd.xlane.f32.xlu0 %v694
        %v696 = vpop.xlane.xlu0 %695
        %v697 = vsel %vm681, %v693, 0.0
        %698 = vadd.xlane.f32.xlu0 %v697
        %v699 = vpop.xlane.xlu0 %698
        %v700 = vrcp.pop %v696
        %v701 = vrcp.pop %v699
        %v702 = vmul.f32 %v691, %v700
        %v703 = vmul.f32 %v693, %v701
        %v704 = vpack.c.bf16 %v702, %v702
        %v705 = vpack.c.bf16 %v703, %v703
        %v707 = vsel %vm404, %v704, 0
        %709 = vmatprep.subr.bf16.mxu0 0
        %710 = vmatpush1.bf16.msra.mxu0 %v410
        %711 = vmatprep.subr.bf16.mxu0 0
        %712 = vmatpush1.bf16.msra.mxu0 0
        %713 = vmatprep.subr.bf16.mxu0 0
        %714 = vmatpush1.bf16.msra.mxu0 0
        %715 = vmatprep.subr.bf16.mxu0 0
        %716 = vmatpush1.bf16.msra.mxu0 0
        %717 = vmatprep.subr.bf16.mxu0 0
        %718 = vmatpush1.bf16.msra.mxu0 0
        %719 = vmatprep.subr.bf16.mxu0 0
        %720 = vmatpush1.bf16.msra.mxu0 0
        %721 = vmatprep.subr.bf16.mxu0 0
        %722 = vmatpush1.bf16.msra.mxu0 0
        %723 = vmatprep.subr.bf16.mxu0 0
        %724 = vmatpush1.bf16.msra.mxu0 0
        %725 = vmatprep.subr.bf16.mxu0 0
        %726 = vmatpush1.bf16.msra.mxu0 0
        %727 = vmatprep.subr.bf16.mxu0 0
        %728 = vmatpush1.bf16.msra.mxu0 0
        %729 = vmatprep.subr.bf16.mxu0 0
        %730 = vmatpush1.bf16.msra.mxu0 0
        %731 = vmatprep.subr.bf16.mxu0 0
        %732 = vmatpush1.bf16.msra.mxu0 0
        %733 = vmatprep.subr.bf16.mxu0 0
        %734 = vmatpush1.bf16.msra.mxu0 0
        %735 = vmatprep.subr.bf16.mxu0 0
        %736 = vmatpush1.bf16.msra.mxu0 0
        %737 = vmatprep.subr.bf16.mxu0 0
        %738 = vmatpush1.bf16.msra.mxu0 0
        %739 = vmatprep.subr.bf16.mxu0 0
        %740 = vmatpush1.bf16.msra.mxu0 0
        %741 = vmatprep.mubr.bf16.mxu0 0
        %742 = vmatmul.mubr.bf16.gmra.mrb[0].mxu0 %v707
        %v743 = vpop.f32.mrb[0].mxu0
        %v744 = vadd.f32 %v395, %v743
        %v745 = vpop.f32.mrb[0].mxu0
        %v746 = vpop.f32.mrb[0].mxu0
        %v747 = vpop.f32.mrb[0].mxu0
        %748 = vdwg.mxu0
        %v750 = vsel %vm404, %v705, 0
        %752 = vmatprep.subr.bf16.mxu0 0
        %753 = vmatpush1.bf16.msra.mxu0 %v456
        %754 = vmatprep.subr.bf16.mxu0 0
        %755 = vmatpush1.bf16.msra.mxu0 0
        %756 = vmatprep.subr.bf16.mxu0 0
        %757 = vmatpush1.bf16.msra.mxu0 0
        %758 = vmatprep.subr.bf16.mxu0 0
        %759 = vmatpush1.bf16.msra.mxu0 0
        %760 = vmatprep.subr.bf16.mxu0 0
        %761 = vmatpush1.bf16.msra.mxu0 0
        %762 = vmatprep.subr.bf16.mxu0 0
        %763 = vmatpush1.bf16.msra.mxu0 0
        %764 = vmatprep.subr.bf16.mxu0 0
        %765 = vmatpush1.bf16.msra.mxu0 0
        %766 = vmatprep.subr.bf16.mxu0 0
        %767 = vmatpush1.bf16.msra.mxu0 0
        %768 = vmatprep.subr.bf16.mxu0 0
        %769 = vmatpush1.bf16.msra.mxu0 0
        %770 = vmatprep.subr.bf16.mxu0 0
        %771 = vmatpush1.bf16.msra.mxu0 0
        %772 = vmatprep.subr.bf16.mxu0 0
        %773 = vmatpush1.bf16.msra.mxu0 0
        %774 = vmatprep.subr.bf16.mxu0 0
        %775 = vmatpush1.bf16.msra.mxu0 0
        %776 = vmatprep.subr.bf16.mxu0 0
        %777 = vmatpush1.bf16.msra.mxu0 0
        %778 = vmatprep.subr.bf16.mxu0 0
        %779 = vmatpush1.bf16.msra.mxu0 0
        %780 = vmatprep.subr.bf16.mxu0 0
        %781 = vmatpush1.bf16.msra.mxu0 0
        %782 = vmatprep.subr.bf16.mxu0 0
        %783 = vmatpush1.bf16.msra.mxu0 0
        %784 = vmatprep.mubr.bf16.mxu0 0
        %785 = vmatmul.mubr.bf16.gmra.mrb[0].mxu0 %v750
        %v786 = vpop.f32.mrb[0].mxu0
        %v787 = vadd.f32 %v398, %v786
        %v788 = vpop.f32.mrb[0].mxu0
        %v789 = vpop.f32.mrb[0].mxu0
        %v790 = vpop.f32.mrb[0].mxu0
        %791 = vdwg.mxu0
        %v792 = vld [vmem:[%s6] sm:$0xf]
        %v793 = vld [vmem:[%s6 + $0x4] sm:$0xf]
        %v796 = vcombine.low %v744, %v787
        %v798 = vpack.c.bf16 %v796, %v796
        %v799 = vld [vmem:[%s7] sm:$0x1]
        %v801 = vlaneseq
        %v802 = vshrl.u32 %v801, 7
        %v803 = vsub.s32 0, %v802
        %v804 = vrot.slane %v799, %v803
        %v808 = vunpack.c.l.b16 %v792
        %v809 = vunpack.c.l.b16 %v793
        %v810 = vpack.c.b16 %v809, %v808
        %v813 = vsel %vm518, %v798, 0
        %815 = vmatprep.subr.bf16.mxu0 0
        %816 = vmatpush1.bf16.msra.mxu0 %v810
        %817 = vmatprep.subr.bf16.mxu0 0
        %818 = vmatpush1.bf16.msra.mxu0 0
        %819 = vmatprep.subr.bf16.mxu0 0
        %820 = vmatpush1.bf16.msra.mxu0 0
        %821 = vmatprep.subr.bf16.mxu0 0
        %822 = vmatpush1.bf16.msra.mxu0 0
        %823 = vmatprep.subr.bf16.mxu0 0
        %824 = vmatpush1.bf16.msra.mxu0 0
        %825 = vmatprep.subr.bf16.mxu0 0
        %826 = vmatpush1.bf16.msra.mxu0 0
        %827 = vmatprep.subr.bf16.mxu0 0
        %828 = vmatpush1.bf16.msra.mxu0 0
        %829 = vmatprep.subr.bf16.mxu0 0
        %830 = vmatpush1.bf16.msra.mxu0 0
        %831 = vmatprep.subr.bf16.mxu0 0
        %832 = vmatpush1.bf16.msra.mxu0 0
        %833 = vmatprep.subr.bf16.mxu0 0
        %834 = vmatpush1.bf16.msra.mxu0 0
        %835 = vmatprep.subr.bf16.mxu0 0
        %836 = vmatpush1.bf16.msra.mxu0 0
        %837 = vmatprep.subr.bf16.mxu0 0
        %838 = vmatpush1.bf16.msra.mxu0 0
        %839 = vmatprep.subr.bf16.mxu0 0
        %840 = vmatpush1.bf16.msra.mxu0 0
        %841 = vmatprep.subr.bf16.mxu0 0
        %842 = vmatpush1.bf16.msra.mxu0 0
        %843 = vmatprep.subr.bf16.mxu0 0
        %844 = vmatpush1.bf16.msra.mxu0 0
        %845 = vmatprep.subr.bf16.mxu0 0
        %846 = vmatpush1.bf16.msra.mxu0 0
        %847 = vmatprep.mubr.bf16.mxu0 0
        %848 = vmatmul.mubr.bf16.gmra.mrb[0].mxu0 %v813
        %v849 = vpop.f32.mrb[0].mxu0
        %v850 = vadd.f32 %v804, %v849
        %v851 = vpop.f32.mrb[0].mxu0
        %v852 = vpop.f32.mrb[0].mxu0
        %v853 = vpop.f32.mrb[0].mxu0
        %854 = vdwg.mxu0
        %v856 = vcombine.high %v850, %v850
        %v858 = vmul.f32 %v850, 0.5
        %v859 = vmul.f32 %v856, 0.5
        %v860 = vmul.f32 %v850, 0.044715
        %v861 = vmul.f32 %v856, 0.044715
        %v862 = vmul.f32 %v860, %v850
        %v863 = vmul.f32 %v861, %v856
        %v864 = vmul.f32 %v862, %v850
        %v865 = vmul.f32 %v863, %v856
        %v866 = vadd.f32 %v850, %v864
        %v867 = vadd.f32 %v856, %v865
        %v868 = vmul.f32 %v866, 0.7978846
        %v869 = vmul.f32 %v867, 0.7978846
        %v870 = vtanh.pop %v868
        %v871 = vtanh.pop %v869
        %v872 = vadd.f32 %v870, 1.0
        %v873 = vadd.f32 %v871, 1.0
        %v874 = vmul.f32 %v858, %v872
        %v875 = vmul.f32 %v859, %v873
        %v876 = vadd.f32 %v874, %v395
        %v877 = vadd.f32 %v875, %v398
        %879 = vrot.lane.b32.xlu0 %v877, 16
        %v880 = vpop.permute.xlu0 %879
        %v882 = vsel %vm518, %v876, %v880
        %v883 = vpack.c.bf16 %v882, %v882
        %vm884 = vcmask 254976
        %885 = vst.msk [vmem:[%s361] sm:$0x3] %vm884, %v883
        %p886 = scmp.lt.s32.totalorder %s21, 1
        %s887 = scalar_select %p886, %s21, 1
        %s888 = smul.addr %s887, 2
        %s889 = scalar_lea.vmem %s9, %s888
        // Predicated region
        $region61: #{_lambda_.17} parent=55 // pred_check
          %p890 = pneg %p238
        $region62: #{_lambda_.17} parent=55 // pred_check_branch
          %892 = sbr.rel (%p890) target = $region64
        $region63: #{_lambda_.17} parent=55 // pred_region
          _
        $region64: #{_lambda_.17} parent=55 // pred_fallthru
          _
      $region56: #{_lambda_.17} parent=5 // pred_fallthru
        _
      %p893 = scmp.le.s32.totalorder 2, %s16
      // Predicated region
      $region65: #{_lambda_.17} parent=5 // pred_check
        %p894 = pneg %p893
      $region66: #{_lambda_.17} parent=5 // pred_check_branch
        %896 = sbr.rel (%p894) target = $region68
      $region67: #{_lambda_.17} parent=5 // pred_region
        %s897 = ssub.s32 %s16, 2
        // Predicated region
        $region69: #{_lambda_.17} parent=67 // pred_check
          %p898 = pneg %p244
        $region70: #{_lambda_.17} parent=67 // pred_check_branch
          %900 = sbr.rel (%p898) target = $region72
        $region71: #{_lambda_.17} parent=67 // pred_region
          %p901 = scmp.lt.s32.totalorder %s22, 1
          %s902 = scalar_select %p901, %s22, 1
          %s903 = smul.addr %s902, 2
          %s904 = scalar_lea.vmem %s9, %s903
        $region72: #{_lambda_.17} parent=67 // pred_fallthru
          _
      $region68: #{_lambda_.17} parent=5 // pred_fallthru
        _
    $region6: #{_lambda_.17} parent=1 // loop_footer
      %s20 = sadd.s32 1, %s16
    $region7: #{_lambda_.17} parent=1 // loop_footer_branch
      %15 = sbr.rel target = $region3
    $region8: #{_lambda_.17} parent=1 // loop_exit
      _
    %905 = vsyncpa [#allocation3], 1
    %s906 = scalar_lea.sflag [#allocation3], 1
    %907 = vsyncpa %s906, 1

// kernel: _lambda_.15
$region0: #{_lambda_.15}
  #allocation0 [shape = 'u32[]', space=smem, size = 0x4, offset = 0x4, fixed_abs, tag = 'smem constant byte address 0x4 - core index']
  #allocation1 [shape = 'u32[144,128]{1,0:T(1,128)}', space=vmem, size = 0x12000, scoped, tag = 'internal scratch']
  %s0 = inlined_call_operand.vmem [shape: bf16[2,16,32], index: 0, kind: input, shape index: {}]
  %s1 = inlined_call_operand.vmem [shape: bf16[2,2,16,16], index: 1, kind: input, shape index: {}]
  %s2 = inlined_call_operand.vmem [shape: f32[1,32], index: 2, kind: input, shape index: {}]
  %s3 = inlined_call_operand.vmem [shape: f32[1,32], index: 3, kind: input, shape index: {}]
  %s4 = inlined_call_operand.vmem [shape: bf16[16,32], index: 4, kind: input, shape index: {}]
  %s5 = inlined_call_operand.vmem [shape: f32[1,32], index: 5, kind: input, shape index: {}]
  %s6 = inlined_call_operand.vmem [shape: bf16[16,16], index: 6, kind: input, shape index: {}]
  %s7 = inlined_call_operand.vmem [shape: f32[1,16], index: 7, kind: input, shape index: {}]
  %s8 = inlined_call_operand.vmem [shape: f32[2,2], index: 8, kind: input, shape index: {}]
  %s9 = inlined_call_operand.vmem [shape: bf16[2,16,32], index: 9, kind: output, shape index: {}]
  %s10 = sld [smem:[#allocation0]]
  $region73: #{_lambda_.15} parent=0
    _
  %s12 = ssub.s32 1, %s10
  %s13 = scalar_select 0, %s12, %s10
  $region1: #{_lambda_.15} parent=0
    #allocation2 [shape = 'u8[1024]{0}', space=smem, size = 0x400, scoped, tag = 'input window, operand 8, single buffered']
    #allocation3 [shape = 's32[2]{0}', space=sflag, size = 0x8, scoped, tag = 'scoped memory for _lambda_.15']
    %14 = vsyncpa [#allocation3], 0
    loop: start=0, step=1, limit=4
    $region2: #{_lambda_.15} parent=1 // loop_pre_header
      _
    $region3: #{_lambda_.15} parent=1 // loop_header
      %s16 = sphi 0, %s20
      %p17 = scmp.ge.s32.totalorder %s16, 4
      %s26 = sphi 0, %s28
      %s29 = sphi 0, %s26
      %s30 = sphi 0, %s29
      %s46 = sphi 0, %s30
      %s52 = sphi 0, %s54
      %s55 = sphi 0, %s52
      %s56 = sphi 0, %s55
      %s72 = sphi 0, %s56
      %s76 = sphi 0, %s76
      %s78 = sphi 0, %s76
      %s79 = sphi 0, %s78
      %s93 = sphi 0, %s79
      %s97 = sphi 0, %s97
      %s99 = sphi 0, %s97
      %s100 = sphi 0, %s99
      %s114 = sphi 0, %s100
      %s118 = sphi 0, %s118
      %s120 = sphi 0, %s118
      %s121 = sphi 0, %s120
      %s135 = sphi 0, %s121
      %s139 = sphi 0, %s139
      %s141 = sphi 0, %s139
      %s142 = sphi 0, %s141
      %s156 = sphi 0, %s142
      %s160 = sphi 0, %s160
      %s162 = sphi 0, %s160
      %s163 = sphi 0, %s162
      %s177 = sphi 0, %s163
      %s181 = sphi 0, %s181
      %s183 = sphi 0, %s181
      %s184 = sphi 0, %s183
      %s198 = sphi 0, %s184
      %s202 = sphi 0, %s202
      %s204 = sphi 0, %s202
      %s205 = sphi 0, %s204
      %s219 = sphi 0, %s205
      %s225 = sphi 0, %s227
      %s228 = sphi 0, %s225
      %s229 = sphi 0, %s228
      %s245 = sphi 0, %s229
    $region4: #{_lambda_.15} parent=1 // loop_header_branch
      %19 = sbr.rel (%p17) target = $region8
    $region5: #{_lambda_.15} parent=1 // loop_body
      %s21 = ssub.s32 %s16, 1
      %s22 = ssub.s32 %s16, 2
      %s23 = sadd.s32 %s16, 1
      %s24 = ssub.s32 %s16, %s23
      %p25 = scmp.eq.s32.totalorder %s24, 0
      %s27 = sadd.s32 %s26, 1
      %s28 = scalar_select %p25, %s26, %s27
      %p31 = pneg %p25
      %p32 = scmp.eq.s32.totalorder %s16, 1
      %p33 = por %p31, %p32
      %p34 = scmp.ne.s32.totalorder %s26, %s29
      %p35 = scmp.eq.s32.totalorder %s16, 0
      %p36 = por %p34, %p35
      %p37 = scmp.ne.s32.totalorder %s26, %s29
      %p38 = scmp.eq.s32.totalorder %s21, 1
      %p39 = por %p37, %p38
      %p40 = scmp.ne.s32.totalorder %s29, %s30
      %p41 = scmp.eq.s32.totalorder %s21, 0
      %p42 = por %p40, %p41
      %p43 = scmp.ne.s32.totalorder %s29, %s30
      %p44 = scmp.eq.s32.totalorder %s22, 1
      %p45 = por %p43, %p44
      %p47 = scmp.ne.s32.totalorder %s30, %s46
      %p48 = scmp.eq.s32.totalorder %s22, 0
      %p49 = por %p47, %p48
      %s50 = ssub.s32 %s16, %s23
      %p51 = scmp.eq.s32.totalorder %s50, 0
      %s53 = sadd.s32 %s52, 1
      %s54 = scalar_select %p51, %s52, %s53
      %p57 = pneg %p51
      %p58 = scmp.eq.s32.totalorder %s16, 1
      %p59 = por %p57, %p58
      %p60 = scmp.ne.s32.totalorder %s52, %s55
      %p61 = scmp.eq.s32.totalorder %s16, 0
      %p62 = por %p60, %p61
      %p63 = scmp.ne.s32.totalorder %s52, %s55
      %p64 = scmp.eq.s32.totalorder %s21, 1
      %p65 = por %p63, %p64
      %p66 = scmp.ne.s32.totalorder %s55, %s56
      %p67 = scmp.eq.s32.totalorder %s21, 0
      %p68 = por %p66, %p67
      %p69 = scmp.ne.s32.totalorder %s55, %s56
      %p70 = scmp.eq.s32.totalorder %s22, 1
      %p71 = por %p69, %p70
      %p73 = scmp.ne.s32.totalorder %s56, %s72
      %p74 = scmp.eq.s32.totalorder %s22, 0
      %p75 = por %p73, %p74
      %s77 = sadd.s32 %s76, 1
      %p80 = scmp.eq.s32.totalorder %s16, 1
      %p81 = scmp.ne.s32.totalorder %s76, %s78
      %p82 = scmp.eq.s32.totalorder %s16, 0
      %p83 = por %p81, %p82
      %p84 = scmp.ne.s32.totalorder %s76, %s78
      %p85 = scmp.eq.s32.totalorder %s21, 1
      %p86 = por %p84, %p85
      %p87 = scmp.ne.s32.totalorder %s78, %s79
      %p88 = scmp.eq.s32.totalorder %s21, 0
      %p89 = por %p87, %p88
      %p90 = scmp.ne.s32.totalorder %s78, %s79
      %p91 = scmp.eq.s32.totalorder %s22, 1
      %p92 = por %p90, %p91
      %p94 = scmp.ne.s32.totalorder %s79, %s93
      %p95 = scmp.eq.s32.totalorder %s22, 0
      %p96 = por %p94, %p95
      %s98 = sadd.s32 %s97, 1
      %p101 = scmp.eq.s32.totalorder %s16, 1
      %p102 = scmp.ne.s32.totalorder %s97, %s99
      %p103 = scmp.eq.s32.totalorder %s16, 0
      %p104 = por %p102, %p103
      %p105 = scmp.ne.s32.totalorder %s97, %s99
      %p106 = scmp.eq.s32.totalorder %s21, 1
      %p107 = por %p105, %p106
      %p108 = scmp.ne.s32.totalorder %s99, %s100
      %p109 = scmp.eq.s32.totalorder %s21, 0
      %p110 = por %p108, %p109
      %p111 = scmp.ne.s32.totalorder %s99, %s100
      %p112 = scmp.eq.s32.totalorder %s22, 1
      %p113 = por %p111, %p112
      %p115 = scmp.ne.s32.totalorder %s100, %s114
      %p116 = scmp.eq.s32.totalorder %s22, 0
      %p117 = por %p115, %p116
      %s119 = sadd.s32 %s118, 1
      %p122 = scmp.eq.s32.totalorder %s16, 1
      %p123 = scmp.ne.s32.totalorder %s118, %s120
      %p124 = scmp.eq.s32.totalorder %s16, 0
      %p125 = por %p123, %p124
      %p126 = scmp.ne.s32.totalorder %s118, %s120
      %p127 = scmp.eq.s32.totalorder %s21, 1
      %p128 = por %p126, %p127
      %p129 = scmp.ne.s32.totalorder %s120, %s121
      %p130 = scmp.eq.s32.totalorder %s21, 0
      %p131 = por %p129, %p130
      %p132 = scmp.ne.s32.totalorder %s120, %s121
      %p133 = scmp.eq.s32.totalorder %s22, 1
      %p134 = por %p132, %p133
      %p136 = scmp.ne.s32.totalorder %s121, %s135
      %p137 = scmp.eq.s32.totalorder %s22, 0
      %p138 = por %p136, %p137
      %s140 = sadd.s32 %s139, 1
      %p143 = scmp.eq.s32.totalorder %s16, 1
      %p144 = scmp.ne.s32.totalorder %s139, %s141
      %p145 = scmp.eq.s32.totalorder %s16, 0
      %p146 = por %p144, %p145
      %p147 = scmp.ne.s32.totalorder %s139, %s141
      %p148 = scmp.eq.s32.totalorder %s21, 1
      %p149 = por %p147, %p148
      %p150 = scmp.ne.s32.totalorder %s141, %s142
      %p151 = scmp.eq.s32.totalorder %s21, 0
      %p152 = por %p150, %p151
      %p153 = scmp.ne.s32.totalorder %s141, %s142
      %p154 = scmp.eq.s32.totalorder %s22, 1
      %p155 = por %p153, %p154
      %p157 = scmp.ne.s32.totalorder %s142, %s156
      %p158 = scmp.eq.s32.totalorder %s22, 0
      %p159 = por %p157, %p158
      %s161 = sadd.s32 %s160, 1
      %p164 = scmp.eq.s32.totalorder %s16, 1
      %p165 = scmp.ne.s32.totalorder %s160, %s162
      %p166 = scmp.eq.s32.totalorder %s16, 0
      %p167 = por %p165, %p166
      %p168 = scmp.ne.s32.totalorder %s160, %s162
      %p169 = scmp.eq.s32.totalorder %s21, 1
      %p170 = por %p168, %p169
      %p171 = scmp.ne.s32.totalorder %s162, %s163
      %p172 = scmp.eq.s32.totalorder %s21, 0
      %p173 = por %p171, %p172
      %p174 = scmp.ne.s32.totalorder %s162, %s163
      %p175 = scmp.eq.s32.totalorder %s22, 1
      %p176 = por %p174, %p175
      %p178 = scmp.ne.s32.totalorder %s163, %s177
      %p179 = scmp.eq.s32.totalorder %s22, 0
      %p180 = por %p178, %p179
      %s182 = sadd.s32 %s181, 1
      %p185 = scmp.eq.s32.totalorder %s16, 1
      %p186 = scmp.ne.s32.totalorder %s181, %s183
      %p187 = scmp.eq.s32.totalorder %s16, 0
      %p188 = por %p186, %p187
      %p189 = scmp.ne.s32.totalorder %s181, %s183
      %p190 = scmp.eq.s32.totalorder %s21, 1
      %p191 = por %p189, %p190
      %p192 = scmp.ne.s32.totalorder %s183, %s184
      %p193 = scmp.eq.s32.totalorder %s21, 0
      %p194 = por %p192, %p193
      %p195 = scmp.ne.s32.totalorder %s183, %s184
      %p196 = scmp.eq.s32.totalorder %s22, 1
      %p197 = por %p195, %p196
      %p199 = scmp.ne.s32.totalorder %s184, %s198
      %p200 = scmp.eq.s32.totalorder %s22, 0
      %p201 = por %p199, %p200
      %s203 = sadd.s32 %s202, 1
      %p206 = scmp.eq.s32.totalorder %s16, 1
      %p207 = scmp.ne.s32.totalorder %s202, %s204
      %p208 = scmp.eq.s32.totalorder %s16, 0
      %p209 = por %p207, %p208
      %p210 = scmp.ne.s32.totalorder %s202, %s204
      %p211 = scmp.eq.s32.totalorder %s21, 1
      %p212 = por %p210, %p211
      %p213 = scmp.ne.s32.totalorder %s204, %s205
      %p214 = scmp.eq.s32.totalorder %s21, 0
      %p215 = por %p213, %p214
      %p216 = scmp.ne.s32.totalorder %s204, %s205
      %p217 = scmp.eq.s32.totalorder %s22, 1
      %p218 = por %p216, %p217
      %p220 = scmp.ne.s32.totalorder %s205, %s219
      %p221 = scmp.eq.s32.totalorder %s22, 0
      %p222 = por %p220, %p221
      %s223 = ssub.s32 %s16, %s23
      %p224 = scmp.eq.s32.totalorder %s223, 0
      %s226 = sadd.s32 %s225, 1
      %s227 = scalar_select %p224, %s225, %s226
      %p230 = pneg %p224
      %p231 = scmp.eq.s32.totalorder %s16, 1
      %p232 = por %p230, %p231
      %p233 = scmp.ne.s32.totalorder %s225, %s228
      %p234 = scmp.eq.s32.totalorder %s16, 0
      %p235 = por %p233, %p234
      %p236 = scmp.ne.s32.totalorder %s225, %s228
      %p237 = scmp.eq.s32.totalorder %s21, 1
      %p238 = por %p236, %p237
      %p239 = scmp.ne.s32.totalorder %s228, %s229
      %p240 = scmp.eq.s32.totalorder %s21, 0
      %p241 = por %p239, %p240
      %p242 = scmp.ne.s32.totalorder %s228, %s229
      %p243 = scmp.eq.s32.totalorder %s22, 1
      %p244 = por %p242, %p243
      %p246 = scmp.ne.s32.totalorder %s229, %s245
      %p247 = scmp.eq.s32.totalorder %s22, 0
      %p248 = por %p246, %p247
      %p249 = scmp.le.s32.totalorder 1, %s16
      %p250 = scmp.lt.s32.totalorder %s16, 3
      %p251 = pnand %p249, %p250
      %p252 = pneg %p251
      // Predicated region
      $region9: #{_lambda_.15} parent=5 // pred_check
        _
      $region10: #{_lambda_.15} parent=5 // pred_check_branch
        %254 = sbr.rel (%p251) target = $region12
      $region11: #{_lambda_.15} parent=5 // pred_region
        %s255 = ssub.s32 %s16, 1
        // Predicated region
        $region13: #{_lambda_.15} parent=11 // pred_check
          %p256 = pneg %p89
        $region14: #{_lambda_.15} parent=11 // pred_check_branch
          %258 = sbr.rel (%p256) target = $region16
        $region15: #{_lambda_.15} parent=11 // pred_region
          _
        $region16: #{_lambda_.15} parent=11 // pred_fallthru
          _
        // Predicated region
        $region17: #{_lambda_.15} parent=11 // pred_check
          %p259 = pneg %p110
        $region18: #{_lambda_.15} parent=11 // pred_check_branch
          %261 = sbr.rel (%p259) target = $region20
        $region19: #{_lambda_.15} parent=11 // pred_region
          _
        $region20: #{_lambda_.15} parent=11 // pred_fallthru
          _
        // Predicated region
        $region21: #{_lambda_.15} parent=11 // pred_check
          %p262 = pneg %p131
        $region22: #{_lambda_.15} parent=11 // pred_check_branch
          %264 = sbr.rel (%p262) target = $region24
        $region23: #{_lambda_.15} parent=11 // pred_region
          _
        $region24: #{_lambda_.15} parent=11 // pred_fallthru
          _
        // Predicated region
        $region25: #{_lambda_.15} parent=11 // pred_check
          %p265 = pneg %p152
        $region26: #{_lambda_.15} parent=11 // pred_check_branch
          %267 = sbr.rel (%p265) target = $region28
        $region27: #{_lambda_.15} parent=11 // pred_region
          _
        $region28: #{_lambda_.15} parent=11 // pred_fallthru
          _
        // Predicated region
        $region29: #{_lambda_.15} parent=11 // pred_check
          %p268 = pneg %p173
        $region30: #{_lambda_.15} parent=11 // pred_check_branch
          %270 = sbr.rel (%p268) target = $region32
        $region31: #{_lambda_.15} parent=11 // pred_region
          _
        $region32: #{_lambda_.15} parent=11 // pred_fallthru
          _
        // Predicated region
        $region33: #{_lambda_.15} parent=11 // pred_check
          %p271 = pneg %p194
        $region34: #{_lambda_.15} parent=11 // pred_check_branch
          %273 = sbr.rel (%p271) target = $region36
        $region35: #{_lambda_.15} parent=11 // pred_region
          _
        $region36: #{_lambda_.15} parent=11 // pred_fallthru
          _
        // Predicated region
        $region37: #{_lambda_.15} parent=11 // pred_check
          %p274 = pneg %p215
        $region38: #{_lambda_.15} parent=11 // pred_check_branch
          %276 = sbr.rel (%p274) target = $region40
        $region39: #{_lambda_.15} parent=11 // pred_region
          %s278 = ssub.s32 32, 32
          %279 = vsyncadd [#allocation3], %s278
          %s281 = sshll.u32 %s8, 4
          %s282 = int_to_ptr.vmem [resolvable:$true] %s281
          %284 = dma.vmem_to_smem %s282, 32, [#allocation2], [#allocation3]
        $region40: #{_lambda_.15} parent=11 // pred_fallthru
          _
      $region12: #{_lambda_.15} parent=5 // pred_fallthru
        _
      %p285 = scmp.lt.s32.totalorder %s16, 2
      // Predicated region
      $region41: #{_lambda_.15} parent=5 // pred_check
        %p286 = pneg %p285
      $region42: #{_lambda_.15} parent=5 // pred_check_branch
        %288 = sbr.rel (%p286) target = $region44
      $region43: #{_lambda_.15} parent=5 // pred_region
        // Predicated region
        $region45: #{_lambda_.15} parent=43 // pred_check
          %p289 = pneg %p36
        $region46: #{_lambda_.15} parent=43 // pred_check_branch
          %291 = sbr.rel (%p289) target = $region48
        $region47: #{_lambda_.15} parent=43 // pred_region
          %p292 = scmp.lt.s32.totalorder %s16, 1
          %s293 = scalar_select %p292, %s16, 1
          %s294 = smul.addr %s293, 2
          %s295 = smul.addr %s294, 4
          %s296 = scalar_lea.vmem %s0, %s295
        $region48: #{_lambda_.15} parent=43 // pred_fallthru
          _
        // Predicated region
        $region49: #{_lambda_.15} parent=43 // pred_check
          %p297 = pneg %p62
        $region50: #{_lambda_.15} parent=43 // pred_check_branch
          %299 = sbr.rel (%p297) target = $region52
        $region51: #{_lambda_.15} parent=43 // pred_region
          %p300 = scmp.lt.s32.totalorder %s16, 1
          %s301 = scalar_select %p300, %s16, 1
          %s302 = smul.addr %s301, 4
          %s303 = smul.addr %s302, 4
          %s304 = scalar_lea.vmem %s1, %s303
        $region52: #{_lambda_.15} parent=43 // pred_fallthru
          _
      $region44: #{_lambda_.15} parent=5 // pred_fallthru
        _
      %p305 = scmp.le.s32.totalorder 1, %s16
      %p306 = scmp.lt.s32.totalorder %s16, 3
      %p307 = pnand %p305, %p306
      %p308 = pneg %p307
      // Predicated region
      $region53: #{_lambda_.15} parent=5 // pred_check
        _
      $region54: #{_lambda_.15} parent=5 // pred_check_branch
        %310 = sbr.rel (%p307) target = $region56
      $region55: #{_lambda_.15} parent=5 // pred_region
        %s311 = ssub.s32 %s16, 1
        // Predicated region
        $region57: #{_lambda_.15} parent=55 // pred_check
          %p312 = pneg %p215
        $region58: #{_lambda_.15} parent=55 // pred_check_branch
          %314 = sbr.rel (%p312) target = $region60
        $region59: #{_lambda_.15} parent=55 // pred_region
          %315 = dma.done [#allocation3], 32
        $region60: #{_lambda_.15} parent=55 // pred_fallthru
          _
        %316 = sfence
        %p317 = scmp.lt.s32.totalorder %s21, 1
        %s318 = scalar_select %p317, %s21, 1
        %s319 = smul.addr %s318, 2
        %s320 = smul.addr %s319, 4
        %s321 = scalar_lea.vmem %s0, %s320
        %p322 = pneg %p42
        %p323 = pneg %p39
        %p324 = scmp.lt.s32.totalorder %s21, 1
        %s325 = scalar_select %p324, %s21, 1
        %s326 = smul.addr %s325, 4
        %s327 = smul.addr %s326, 4
        %s328 = scalar_lea.vmem %s1, %s327
        %p329 = pneg %p68
        %p330 = pneg %p65
        %p331 = pneg %p89
        %p332 = pneg %p86
        %p333 = pneg %p110
        %p334 = pneg %p107
        %p335 = pneg %p131
        %p336 = pneg %p128
        %p337 = pneg %p152
        %p338 = pneg %p149
        %p339 = pneg %p173
        %p340 = pneg %p170
        %p341 = pneg %p194
        %p342 = pneg %p191
        %p343 = pneg %p215
        %p344 = pneg %p212
        %p345 = pneg %p241
        %p346 = pneg %p238
        %p347 = scmp.lt.s32.totalorder %s21, 1
        %s348 = scalar_select %p347, %s21, 1
        %s349 = smul.addr %s348, 2
        %s350 = smul.addr %s349, 4
        %s351 = scalar_lea.vmem %s9, %s350
        %p352 = scmp.lt.s32.totalorder %s21, 1
        %s353 = scalar_select %p352, %s21, 1
        %s354 = smul.addr %s353, 2
        %s355 = smul.addr %s354, 4
        %s356 = scalar_lea.vmem %s0, %s355
        %p357 = scmp.lt.s32.totalorder %s21, 1
        %s358 = scalar_select %p357, %s21, 1
        %s359 = smul.addr %s358, 4
        %s360 = smul.addr %s359, 4
        %s361 = scalar_lea.vmem %s1, %s360
        %p362 = scmp.lt.s32.totalorder %s21, 1
        %s363 = scalar_select %p362, %s21, 1
        %s364 = smul.addr %s363, 2
        %s365 = smul.addr %s364, 4
        %s366 = scalar_lea.vmem %s9, %s365
        %v368 = vld [vmem:[%s356] sm:$0xf]
        %v369 = vld [vmem:[%s356 + $0x4] sm:$0xf]
        %v370 = vunpack.c.l.bf16 %v368
        %v371 = vunpack.c.l.bf16 %v369
        %v372 = vld [vmem:[%s2] sm:$0x1]
        %v373 = vld [vmem:[%s3] sm:$0x1]
        %vm374 = vcmask 261120
        %v375 = vsel %vm374, %v370, 0.0
        %376 = vadd.xlane.f32.xlu0 %v375
        %v377 = vpop.xlane.xlu0 %376
        %v378 = vsel %vm374, %v371, 0.0
        %379 = vadd.xlane.f32.xlu0 %v378
        %v380 = vpop.xlane.xlu0 %379
        %v381 = vrcp.pop 32.0
        %v382 = vmul.f32 %v377, %v381
        %v383 = vmul.f32 %v380, %v381
        %v384 = vsub.f32 %v370, %v382
        %v385 = vsub.f32 %v371, %v383
        %v386 = vmul.f32 %v384, %v384
        %v387 = vmul.f32 %v385, %v385
        %v388 = vsel %vm374, %v386, 0.0
        %389 = vadd.xlane.f32.xlu0 %v388
        %v390 = vpop.xlane.xlu0 %389
        %v391 = vsel %vm374, %v387, 0.0
        %392 = vadd.xlane.f32.xlu0 %v391
        %v393 = vpop.xlane.xlu0 %392
        %v394 = vmul.f32 %v390, %v381
        %v395 = vmul.f32 %v393, %v381
        %v396 = vadd.f32 %v394, 1e-05
        %v397 = vadd.f32 %v395, 1e-05
        %v398 = vrsqrt.pop %v396
        %v399 = vrsqrt.pop %v397
        %v400 = vmul.f32 %v384, %v398
        %v401 = vmul.f32 %v385, %v399
        %v403 = vlaneseq
        %v404 = vshrl.u32 %v403, 7
        %v405 = vsub.s32 0, %v404
        %v406 = vrot.slane %v372, %v405
        %v408 = vmul.f32 %v400, %v406
        %v409 = vmul.f32 %v401, %v406
        %v411 = vlaneseq
        %v412 = vshrl.u32 %v411, 7
        %v413 = vsub.s32 0, %v412
        %v414 = vrot.slane %v373, %v413
        %v416 = vadd.f32 %v408, %v414
        %v417 = vadd.f32 %v409, %v414
        %420 = vrot.lane.b32.xlu0 %v416, 112
        %v421 = vpop.permute.xlu0 %420
        %422 = vrot.lane.b32.xlu0 %v417, 112
        %v423 = vpop.permute.xlu0 %422
        %v426 = vld [vmem:[%s361] sm:$0xf]
        %v427 = vld [vmem:[%s361 + $0x4] sm:$0xf]
        %v428 = vld [vmem:[%s361 + $0x8] sm:$0xf]
        %v429 = vld [vmem:[%s361 + $0xc] sm:$0xf]
        %v430 = vpack.c.bf16 %v417, %v416
        %v431 = vpack.c.bf16 %v423, %v421
        %v434 = vunpack.c.l.b16 %v426
        %v435 = vunpack.c.l.b16 %v427
        %v436 = vpack.c.b16 %v435, %v434
        %vm437 = vcmask 130048
        %v439 = vsel %vm437, %v436, 0
        %441 = vmatprep.subr.bf16.mxu0 0
        %442 = vmatpush1.bf16.msra.mxu0 %v430
        %443 = vmatprep.subr.bf16.mxu0 0
        %444 = vmatpush1.bf16.msra.mxu0 0
        %445 = vmatprep.subr.bf16.mxu0 0
        %446 = vmatpush1.bf16.msra.mxu0 0
        %447 = vmatprep.subr.bf16.mxu0 0
        %448 = vmatpush1.bf16.msra.mxu0 0
        %449 = vmatprep.subr.bf16.mxu0 0
        %450 = vmatpush1.bf16.msra.mxu0 0
        %451 = vmatprep.subr.bf16.mxu0 0
        %452 = vmatpush1.bf16.msra.mxu0 0
        %453 = vmatprep.subr.bf16.mxu0 0
        %454 = vmatpush1.bf16.msra.mxu0 0
        %455 = vmatprep.subr.bf16.mxu0 0
        %456 = vmatpush1.bf16.msra.mxu0 0
        %457 = vmatprep.subr.bf16.mxu0 0
        %458 = vmatpush1.bf16.msra.mxu0 0
        %459 = vmatprep.subr.bf16.mxu0 0
        %460 = vmatpush1.bf16.msra.mxu0 0
        %461 = vmatprep.subr.bf16.mxu0 0
        %462 = vmatpush1.bf16.msra.mxu0 0
        %463 = vmatprep.subr.bf16.mxu0 0
        %464 = vmatpush1.bf16.msra.mxu0 0
        %465 = vmatprep.subr.bf16.mxu0 0
        %466 = vmatpush1.bf16.msra.mxu0 0
        %467 = vmatprep.subr.bf16.mxu0 0
        %468 = vmatpush1.bf16.msra.mxu0 0
        %469 = vmatprep.subr.bf16.mxu0 0
        %470 = vmatpush1.bf16.msra.mxu0 0
        %471 = vmatprep.subr.bf16.mxu0 0
        %472 = vmatpush1.bf16.msra.mxu0 0
        %473 = vmatprep.mubr.bf16.mxu0 0
        %474 = vmatmul.mubr.bf16.gmra.mrb[0].mxu0 %v439
        %v475 = vpop.f32.mrb[0].mxu0
        %v476 = vadd.f32 %v416, %v475
        %v477 = vpop.f32.mrb[0].mxu0
        %v478 = vpop.f32.mrb[0].mxu0
        %v479 = vadd.f32 %v417, %v478
        %v480 = vpop.f32.mrb[0].mxu0
        %481 = vdwg.mxu0
        %v484 = vunpack.c.l.b16 %v428
        %v485 = vunpack.c.l.b16 %v429
        %v486 = vpack.c.b16 %v485, %v484
        %v488 = vsel %vm437, %v486, 0
        %490 = vmatprep.subr.bf16.mxu0 0
        %491 = vmatpush1.bf16.msra.mxu0 %v431
        %492 = vmatprep.subr.bf16.mxu0 0
        %493 = vmatpush1.bf16.msra.mxu0 0
        %494 = vmatprep.subr.bf16.mxu0 0
        %495 = vmatpush1.bf16.msra.mxu0 0
        %496 = vmatprep.subr.bf16.mxu0 0
        %497 = vmatpush1.bf16.msra.mxu0 0
        %498 = vmatprep.subr.bf16.mxu0 0
        %499 = vmatpush1.bf16.msra.mxu0 0
        %500 = vmatprep.subr.bf16.mxu0 0
        %501 = vmatpush1.bf16.msra.mxu0 0
        %502 = vmatprep.subr.bf16.mxu0 0
        %503 = vmatpush1.bf16.msra.mxu0 0
        %504 = vmatprep.subr.bf16.mxu0 0
        %505 = vmatpush1.bf16.msra.mxu0 0
        %506 = vmatprep.subr.bf16.mxu0 0
        %507 = vmatpush1.bf16.msra.mxu0 0
        %508 = vmatprep.subr.bf16.mxu0 0
        %509 = vmatpush1.bf16.msra.mxu0 0
        %510 = vmatprep.subr.bf16.mxu0 0
        %511 = vmatpush1.bf16.msra.mxu0 0
        %512 = vmatprep.subr.bf16.mxu0 0
        %513 = vmatpush1.bf16.msra.mxu0 0
        %514 = vmatprep.subr.bf16.mxu0 0
        %515 = vmatpush1.bf16.msra.mxu0 0
        %516 = vmatprep.subr.bf16.mxu0 0
        %517 = vmatpush1.bf16.msra.mxu0 0
        %518 = vmatprep.subr.bf16.mxu0 0
        %519 = vmatpush1.bf16.msra.mxu0 0
        %520 = vmatprep.subr.bf16.mxu0 0
        %521 = vmatpush1.bf16.msra.mxu0 0
        %522 = vmatprep.mubr.bf16.mxu0 0
        %523 = vmatmul.mubr.bf16.gmra.mrb[0].mxu0 %v488
        %v524 = vpop.f32.mrb[0].mxu0
        %v525 = vadd.f32 %v421, %v524
        %v526 = vpop.f32.mrb[0].mxu0
        %v527 = vpop.f32.mrb[0].mxu0
        %v528 = vadd.f32 %v423, %v527
        %v529 = vpop.f32.mrb[0].mxu0
        %530 = vdwg.mxu0
        %v531 = vld [vmem:[%s4] sm:$0xf]
        %v532 = vld [vmem:[%s4 + $0x4] sm:$0xf]
        %v533 = vpack.c.bf16 %v479, %v476
        %v534 = vpack.c.bf16 %v528, %v525
        %v535 = vld [vmem:[%s5] sm:$0x1]
        %v537 = vlaneseq
        %v538 = vshrl.u32 %v537, 7
        %v539 = vsub.s32 0, %v538
        %v540 = vrot.slane %v535, %v539
        %v544 = vunpack.c.l.b16 %v531
        %v545 = vunpack.c.l.b16 %v532
        %v546 = vpack.c.b16 %v545, %v544
        %v549 = vsel %vm437, %v533, 0
        %v552 = vsel %vm437, %v534, 0
        %554 = vmatprep.subr.bf16.mxu0 0
        %555 = vmatpush1.bf16.msra.mxu0 %v546
        %556 = vmatprep.subr.bf16.mxu0 0
        %557 = vmatpush1.bf16.msra.mxu0 0
        %558 = vmatprep.subr.bf16.mxu0 0
        %559 = vmatpush1.bf16.msra.mxu0 0
        %560 = vmatprep.subr.bf16.mxu0 0
        %561 = vmatpush1.bf16.msra.mxu0 0
        %562 = vmatprep.subr.bf16.mxu0 0
        %563 = vmatpush1.bf16.msra.mxu0 0
        %564 = vmatprep.subr.bf16.mxu0 0
        %565 = vmatpush1.bf16.msra.mxu0 0
        %566 = vmatprep.subr.bf16.mxu0 0
        %567 = vmatpush1.bf16.msra.mxu0 0
        %568 = vmatprep.subr.bf16.mxu0 0
        %569 = vmatpush1.bf16.msra.mxu0 0
        %570 = vmatprep.subr.bf16.mxu0 0
        %571 = vmatpush1.bf16.msra.mxu0 0
        %572 = vmatprep.subr.bf16.mxu0 0
        %573 = vmatpush1.bf16.msra.mxu0 0
        %574 = vmatprep.subr.bf16.mxu0 0
        %575 = vmatpush1.bf16.msra.mxu0 0
        %576 = vmatprep.subr.bf16.mxu0 0
        %577 = vmatpush1.bf16.msra.mxu0 0
        %578 = vmatprep.subr.bf16.mxu0 0
        %579 = vmatpush1.bf16.msra.mxu0 0
        %580 = vmatprep.subr.bf16.mxu0 0
        %581 = vmatpush1.bf16.msra.mxu0 0
        %582 = vmatprep.subr.bf16.mxu0 0
        %583 = vmatpush1.bf16.msra.mxu0 0
        %584 = vmatprep.subr.bf16.mxu0 0
        %585 = vmatpush1.bf16.msra.mxu0 0
        %586 = vmatprep.mubr.bf16.mxu0 0
        %587 = vmatmul.mubr.bf16.gmra.mrb[0].mxu0 %v549
        %v588 = vpop.f32.mrb[0].mxu0
        %v589 = vadd.f32 %v540, %v588
        %v590 = vpop.f32.mrb[0].mxu0
        %v591 = vpop.f32.mrb[0].mxu0
        %v592 = vadd.f32 %v540, %v591
        %v593 = vpop.f32.mrb[0].mxu0
        %594 = vmatprep.mubr.bf16.mxu0 0
        %595 = vmatmul.mubr.bf16.gmra.mrb[0].mxu0 %v552
        %v596 = vpop.f32.mrb[0].mxu0
        %v597 = vadd.f32 %v540, %v596
        %v598 = vpop.f32.mrb[0].mxu0
        %v599 = vpop.f32.mrb[0].mxu0
        %v600 = vadd.f32 %v540, %v599
        %v601 = vpop.f32.mrb[0].mxu0
        %602 = vdwg.mxu0
        %v603 = vpack.c.bf16 %v592, %v589
        %v604 = vpack.c.bf16 %v600, %v597
        %606 = vrot.lane.b32.xlu0 %v603, 112
        %v607 = vpop.permute.xlu0 %606
        %v609 = vsel %vm437, %v603, 0
        %v612 = vsel %vm437, %v607, 0
        %614 = vmatprep.subr.bf16.mxu0 0
        %615 = vmatpush1.bf16.xpose.msra.mxu0 %v612
        %616 = vmatprep.subr.bf16.mxu0 0
        %617 = vmatpush1.bf16.xpose.msra.mxu0 0
        %618 = vmatprep.subr.bf16.mxu0 0
        %619 = vmatpush1.bf16.xpose.msra.mxu0 0
        %620 = vmatprep.subr.bf16.mxu0 0
        %621 = vmatpush1.bf16.xpose.msra.mxu0 0
        %622 = vmatprep.subr.bf16.mxu0 0
        %623 = vmatpush1.bf16.xpose.msra.mxu0 0
        %624 = vmatprep.subr.bf16.mxu0 0
        %625 = vmatpush1.bf16.xpose.msra.mxu0 0
        %626 = vmatprep.subr.bf16.mxu0 0
        %627 = vmatpush1.bf16.xpose.msra.mxu0 0
        %628 = vmatprep.subr.bf16.mxu0 0
        %629 = vmatpush1.bf16.xpose.msra.mxu0 0
        %630 = vmatprep.subr.bf16.mxu0 0
        %631 = vmatpush1.bf16.xpose.msra.mxu0 0
        %632 = vmatprep.subr.bf16.mxu0 0
        %633 = vmatpush1.bf16.xpose.msra.mxu0 0
        %634 = vmatprep.subr.bf16.mxu0 0
        %635 = vmatpush1.bf16.xpose.msra.mxu0 0
        %636 = vmatprep.subr.bf16.mxu0 0
        %637 = vmatpush1.bf16.xpose.msra.mxu0 0
        %638 = vmatprep.subr.bf16.mxu0 0
        %639 = vmatpush1.bf16.xpose.msra.mxu0 0
        %640 = vmatprep.subr.bf16.mxu0 0
        %641 = vmatpush1.bf16.xpose.msra.mxu0 0
        %642 = vmatprep.subr.bf16.mxu0 0
        %643 = vmatpush1.bf16.xpose.msra.mxu0 0
        %644 = vmatprep.subr.bf16.mxu0 0
        %645 = vmatpush1.bf16.xpose.msra.mxu0 0
        %646 = vmatprep.mubr.bf16.mxu0 0
        %647 = vmatmul.mubr.bf16.gmra.mrb[0].mxu0 %v609
        %v648 = vpop.f32.mrb[0].mxu0
        %v649 = vadd.f32 0.0, %v648
        %v650 = vpop.f32.mrb[0].mxu0
        %v651 = vpop.f32.mrb[0].mxu0
        %v652 = vadd.f32 0.0, %v651
        %v653 = vpop.f32.mrb[0].mxu0
        %654 = vdwg.mxu0
        %656 = vrot.lane.b32.xlu0 %v604, 112
        %v657 = vpop.permute.xlu0 %656
        %v659 = vsel %vm437, %v604, 0
        %v662 = vsel %vm437, %v657, 0
        %664 = vmatprep.subr.bf16.mxu0 0
        %665 = vmatpush1.bf16.xpose.msra.mxu0 %v662
        %666 = vmatprep.subr.bf16.mxu0 0
        %667 = vmatpush1.bf16.xpose.msra.mxu0 0
        %668 = vmatprep.subr.bf16.mxu0 0
        %669 = vmatpush1.bf16.xpose.msra.mxu0 0
        %670 = vmatprep.subr.bf16.mxu0 0
        %671 = vmatpush1.bf16.xpose.msra.mxu0 0
        %672 = vmatprep.subr.bf16.mxu0 0
        %673 = vmatpush1.bf16.xpose.msra.mxu0 0
        %674 = vmatprep.subr.bf16.mxu0 0
        %675 = vmatpush1.bf16.xpose.msra.mxu0 0
        %676 = vmatprep.subr.bf16.mxu0 0
        %677 = vmatpush1.bf16.xpose.msra.mxu0 0
        %678 = vmatprep.subr.bf16.mxu0 0
        %679 = vmatpush1.bf16.xpose.msra.mxu0 0
        %680 = vmatprep.subr.bf16.mxu0 0
        %681 = vmatpush1.bf16.xpose.msra.mxu0 0
        %682 = vmatprep.subr.bf16.mxu0 0
        %683 = vmatpush1.bf16.xpose.msra.mxu0 0
        %684 = vmatprep.subr.bf16.mxu0 0
        %685 = vmatpush1.bf16.xpose.msra.mxu0 0
        %686 = vmatprep.subr.bf16.mxu0 0
        %687 = vmatpush1.bf16.xpose.msra.mxu0 0
        %688 = vmatprep.subr.bf16.mxu0 0
        %689 = vmatpush1.bf16.xpose.msra.mxu0 0
        %690 = vmatprep.subr.bf16.mxu0 0
        %691 = vmatpush1.bf16.xpose.msra.mxu0 0
        %692 = vmatprep.subr.bf16.mxu0 0
        %693 = vmatpush1.bf16.xpose.msra.mxu0 0
        %694 = vmatprep.subr.bf16.mxu0 0
        %695 = vmatpush1.bf16.xpose.msra.mxu0 0
        %696 = vmatprep.mubr.bf16.mxu0 0
        %697 = vmatmul.mubr.bf16.gmra.mrb[0].mxu0 %v659
        %v698 = vpop.f32.mrb[0].mxu0
        %v699 = vadd.f32 0.0, %v698
        %v700 = vpop.f32.mrb[0].mxu0
        %v701 = vpop.f32.mrb[0].mxu0
        %v702 = vadd.f32 0.0, %v701
        %v703 = vpop.f32.mrb[0].mxu0
        %704 = vdwg.mxu0
        %v705 = vmul.f32 %v649, 0.17677669
        %v706 = vmul.f32 %v652, 0.17677669
        %v707 = vmul.f32 %v699, 0.17677669
        %v708 = vmul.f32 %v702, 0.17677669
        %s709 = sld [smem:[#allocation2]]
        %v710 = vstv %s709
        %v711 = vmul.f32 %v710, %v705
        %v712 = vmul.f32 %v710, %v706
        %s713 = sld [smem:[#allocation2 + $0x1]]
        %v714 = vstv %s713
        %v715 = vmul.f32 %v714, %v707
        %v716 = vmul.f32 %v714, %v708
        %v717 = vadd.f32 %v711, %v715
        %v718 = vadd.f32 %v712, %v716
        %s719 = sld [smem:[#allocation2 + $0x80]]
        %v720 = vstv %s719
        %v721 = vmul.f32 %v720, %v705
        %v722 = vmul.f32 %v720, %v706
        %s723 = sld [smem:[#allocation2 + $0x81]]
        %v724 = vstv %s723
        %v725 = vmul.f32 %v724, %v707
        %v726 = vmul.f32 %v724, %v708
        %v727 = vadd.f32 %v721, %v725
        %v728 = vadd.f32 %v722, %v726
        %v729 = vsel %vm437, %v717, -inf
        %730 = vmax.xlane.f32.xlu0 %v729
        %v731 = vpop.xlane.xlu0 %730
        %v732 = vsel %vm437, %v718, -inf
        %733 = vmax.xlane.f32.xlu0 %v732
        %v734 = vpop.xlane.xlu0 %733
        %v735 = vsel %vm437, %v727, -inf
        %736 = vmax.xlane.f32.xlu0 %v735
        %v737 = vpop.xlane.xlu0 %736
        %v738 = vsel %vm437, %v728, -inf
        %739 = vmax.xlane.f32.xlu0 %v738
        %v740 = vpop.xlane.xlu0 %739
        %v741 = vsub.f32 %v717, %v731
        %v742 = vsub.f32 %v718, %v734
        %v743 = vsub.f32 %v727, %v737
        %v744 = vsub.f32 %v728, %v740
        %v745 = vmul.f32 %v741, 1.442695
        %v746 = vpow.pop %v745
        %v747 = vmul.f32 %v742, 1.442695
        %v748 = vpow.pop %v747
        %v749 = vmul.f32 %v743, 1.442695
        %v750 = vpow.pop %v749
        %v751 = vmul.f32 %v744, 1.442695
        %v752 = vpow.pop %v751
        %v753 = vsel %vm437, %v746, 0.0
        %754 = vadd.xlane.f32.xlu0 %v753
        %v755 = vpop.xlane.xlu0 %754
        %v756 = vsel %vm437, %v748, 0.0
        %757 = vadd.xlane.f32.xlu0 %v756
        %v758 = vpop.xlane.xlu0 %757
        %v759 = vsel %vm437, %v750, 0.0
        %760 = vadd.xlane.f32.xlu0 %v759
        %v761 = vpop.xlane.xlu0 %760
        %v762 = vsel %vm437, %v752, 0.0
        %763 = vadd.xlane.f32.xlu0 %v762
        %v764 = vpop.xlane.xlu0 %763
        %v765 = vrcp.pop %v755
        %v766 = vrcp.pop %v758
        %v767 = vrcp.pop %v761
        %v768 = vrcp.pop %v764
        %v769 = vmul.f32 %v746, %v765
        %v770 = vmul.f32 %v748, %v766
        %v771 = vmul.f32 %v750, %v767
        %v772 = vmul.f32 %v752, %v768
        %v773 = vpack.c.bf16 %v770, %v769
        %v774 = vpack.c.bf16 %v772, %v771
        %v776 = vsel %vm437, %v773, 0
        %778 = vmatprep.subr.bf16.mxu0 0
        %779 = vmatpush1.bf16.msra.mxu0 %v430
        %780 = vmatprep.subr.bf16.mxu0 0
        %781 = vmatpush1.bf16.msra.mxu0 0
        %782 = vmatprep.subr.bf16.mxu0 0
        %783 = vmatpush1.bf16.msra.mxu0 0
        %784 = vmatprep.subr.bf16.mxu0 0
        %785 = vmatpush1.bf16.msra.mxu0 0
        %786 = vmatprep.subr.bf16.mxu0 0
        %787 = vmatpush1.bf16.msra.mxu0 0
        %788 = vmatprep.subr.bf16.mxu0 0
        %789 = vmatpush1.bf16.msra.mxu0 0
        %790 = vmatprep.subr.bf16.mxu0 0
        %791 = vmatpush1.bf16.msra.mxu0 0
        %792 = vmatprep.subr.bf16.mxu0 0
        %793 = vmatpush1.bf16.msra.mxu0 0
        %794 = vmatprep.subr.bf16.mxu0 0
        %795 = vmatpush1.bf16.msra.mxu0 0
        %796 = vmatprep.subr.bf16.mxu0 0
        %797 = vmatpush1.bf16.msra.mxu0 0
        %798 = vmatprep.subr.bf16.mxu0 0
        %799 = vmatpush1.bf16.msra.mxu0 0
        %800 = vmatprep.subr.bf16.mxu0 0
        %801 = vmatpush1.bf16.msra.mxu0 0
        %802 = vmatprep.subr.bf16.mxu0 0
        %803 = vmatpush1.bf16.msra.mxu0 0
        %804 = vmatprep.subr.bf16.mxu0 0
        %805 = vmatpush1.bf16.msra.mxu0 0
        %806 = vmatprep.subr.bf16.mxu0 0
        %807 = vmatpush1.bf16.msra.mxu0 0
        %808 = vmatprep.subr.bf16.mxu0 0
        %809 = vmatpush1.bf16.msra.mxu0 0
        %810 = vmatprep.mubr.bf16.mxu0 0
        %811 = vmatmul.mubr.bf16.gmra.mrb[0].mxu0 %v776
        %v812 = vpop.f32.mrb[0].mxu0
        %v813 = vadd.f32 %v416, %v812
        %v814 = vpop.f32.mrb[0].mxu0
        %v815 = vpop.f32.mrb[0].mxu0
        %v816 = vadd.f32 %v417, %v815
        %v817 = vpop.f32.mrb[0].mxu0
        %818 = vdwg.mxu0
        %v820 = vsel %vm437, %v774, 0
        %822 = vmatprep.subr.bf16.mxu0 0
        %823 = vmatpush1.bf16.msra.mxu0 %v431
        %824 = vmatprep.subr.bf16.mxu0 0
        %825 = vmatpush1.bf16.msra.mxu0 0
        %826 = vmatprep.subr.bf16.mxu0 0
        %827 = vmatpush1.bf16.msra.mxu0 0
        %828 = vmatprep.subr.bf16.mxu0 0
        %829 = vmatpush1.bf16.msra.mxu0 0
        %830 = vmatprep.subr.bf16.mxu0 0
        %831 = vmatpush1.bf16.msra.mxu0 0
        %832 = vmatprep.subr.bf16.mxu0 0
        %833 = vmatpush1.bf16.msra.mxu0 0
        %834 = vmatprep.subr.bf16.mxu0 0
        %835 = vmatpush1.bf16.msra.mxu0 0
        %836 = vmatprep.subr.bf16.mxu0 0
        %837 = vmatpush1.bf16.msra.mxu0 0
        %838 = vmatprep.subr.bf16.mxu0 0
        %839 = vmatpush1.bf16.msra.mxu0 0
        %840 = vmatprep.subr.bf16.mxu0 0
        %841 = vmatpush1.bf16.msra.mxu0 0
        %842 = vmatprep.subr.bf16.mxu0 0
        %843 = vmatpush1.bf16.msra.mxu0 0
        %844 = vmatprep.subr.bf16.mxu0 0
        %845 = vmatpush1.bf16.msra.mxu0 0
        %846 = vmatprep.subr.bf16.mxu0 0
        %847 = vmatpush1.bf16.msra.mxu0 0
        %848 = vmatprep.subr.bf16.mxu0 0
        %849 = vmatpush1.bf16.msra.mxu0 0
        %850 = vmatprep.subr.bf16.mxu0 0
        %851 = vmatpush1.bf16.msra.mxu0 0
        %852 = vmatprep.subr.bf16.mxu0 0
        %853 = vmatpush1.bf16.msra.mxu0 0
        %854 = vmatprep.mubr.bf16.mxu0 0
        %855 = vmatmul.mubr.bf16.gmra.mrb[0].mxu0 %v820
        %v856 = vpop.f32.mrb[0].mxu0
        %v857 = vadd.f32 %v421, %v856
        %v858 = vpop.f32.mrb[0].mxu0
        %v859 = vpop.f32.mrb[0].mxu0
        %v860 = vadd.f32 %v423, %v859
        %v861 = vpop.f32.mrb[0].mxu0
        %862 = vdwg.mxu0
        %v863 = vld [vmem:[%s6] sm:$0xf]
        %v864 = vld [vmem:[%s6 + $0x4] sm:$0xf]
        %v865 = vpack.c.bf16 %v816, %v813
        %v866 = vpack.c.bf16 %v860, %v857
        %v867 = vld [vmem:[%s7] sm:$0x1]
        %v869 = vlaneseq
        %v870 = vshrl.u32 %v869, 7
        %v871 = vsub.s32 0, %v870
        %v872 = vrot.slane %v867, %v871
        %v876 = vunpack.c.l.b16 %v863
        %v877 = vunpack.c.l.b16 %v864
        %v878 = vpack.c.b16 %v877, %v876
        %v881 = vsel %vm437, %v865, 0
        %v884 = vsel %vm437, %v866, 0
        %886 = vmatprep.subr.bf16.mxu0 0
        %887 = vmatpush1.bf16.msra.mxu0 %v878
        %888 = vmatprep.subr.bf16.mxu0 0
        %889 = vmatpush1.bf16.msra.mxu0 0
        %890 = vmatprep.subr.bf16.mxu0 0
        %891 = vmatpush1.bf16.msra.mxu0 0
        %892 = vmatprep.subr.bf16.mxu0 0
        %893 = vmatpush1.bf16.msra.mxu0 0
        %894 = vmatprep.subr.bf16.mxu0 0
        %895 = vmatpush1.bf16.msra.mxu0 0
        %896 = vmatprep.subr.bf16.mxu0 0
        %897 = vmatpush1.bf16.msra.mxu0 0
        %898 = vmatprep.subr.bf16.mxu0 0
        %899 = vmatpush1.bf16.msra.mxu0 0
        %900 = vmatprep.subr.bf16.mxu0 0
        %901 = vmatpush1.bf16.msra.mxu0 0
        %902 = vmatprep.subr.bf16.mxu0 0
        %903 = vmatpush1.bf16.msra.mxu0 0
        %904 = vmatprep.subr.bf16.mxu0 0
        %905 = vmatpush1.bf16.msra.mxu0 0
        %906 = vmatprep.subr.bf16.mxu0 0
        %907 = vmatpush1.bf16.msra.mxu0 0
        %908 = vmatprep.subr.bf16.mxu0 0
        %909 = vmatpush1.bf16.msra.mxu0 0
        %910 = vmatprep.subr.bf16.mxu0 0
        %911 = vmatpush1.bf16.msra.mxu0 0
        %912 = vmatprep.subr.bf16.mxu0 0
        %913 = vmatpush1.bf16.msra.mxu0 0
        %914 = vmatprep.subr.bf16.mxu0 0
        %915 = vmatpush1.bf16.msra.mxu0 0
        %916 = vmatprep.subr.bf16.mxu0 0
        %917 = vmatpush1.bf16.msra.mxu0 0
        %918 = vmatprep.mubr.bf16.mxu0 0
        %919 = vmatmul.mubr.bf16.gmra.mrb[0].mxu0 %v881
        %v920 = vpop.f32.mrb[0].mxu0
        %v921 = vadd.f32 %v872, %v920
        %v922 = vpop.f32.mrb[0].mxu0
        %v923 = vpop.f32.mrb[0].mxu0
        %v924 = vadd.f32 %v872, %v923
        %v925 = vpop.f32.mrb[0].mxu0
        %926 = vmatprep.mubr.bf16.mxu0 0
        %927 = vmatmul.mubr.bf16.gmra.mrb[0].mxu0 %v884
        %v928 = vpop.f32.mrb[0].mxu0
        %v929 = vadd.f32 %v872, %v928
        %v930 = vpop.f32.mrb[0].mxu0
        %v931 = vpop.f32.mrb[0].mxu0
        %v932 = vadd.f32 %v872, %v931
        %v933 = vpop.f32.mrb[0].mxu0
        %934 = vdwg.mxu0
        %v935 = vmul.f32 %v921, 0.5
        %v936 = vmul.f32 %v924, 0.5
        %v937 = vmul.f32 %v929, 0.5
        %v938 = vmul.f32 %v932, 0.5
        %v939 = vmul.f32 %v921, 0.044715
        %v940 = vmul.f32 %v924, 0.044715
        %v941 = vmul.f32 %v929, 0.044715
        %v942 = vmul.f32 %v932, 0.044715
        %v943 = vmul.f32 %v939, %v921
        %v944 = vmul.f32 %v940, %v924
        %v945 = vmul.f32 %v941, %v929
        %v946 = vmul.f32 %v942, %v932
        %v947 = vmul.f32 %v943, %v921
        %v948 = vmul.f32 %v944, %v924
        %v949 = vmul.f32 %v945, %v929
        %v950 = vmul.f32 %v946, %v932
        %v951 = vadd.f32 %v921, %v947
        %v952 = vadd.f32 %v924, %v948
        %v953 = vadd.f32 %v929, %v949
        %v954 = vadd.f32 %v932, %v950
        %v955 = vmul.f32 %v951, 0.7978846
        %v956 = vmul.f32 %v952, 0.7978846
        %v957 = vmul.f32 %v953, 0.7978846
        %v958 = vmul.f32 %v954, 0.7978846
        %v959 = vtanh.pop %v955
        %v960 = vtanh.pop %v956
        %v961 = vtanh.pop %v957
        %v962 = vtanh.pop %v958
        %v963 = vadd.f32 %v959, 1.0
        %v964 = vadd.f32 %v960, 1.0
        %v965 = vadd.f32 %v961, 1.0
        %v966 = vadd.f32 %v962, 1.0
        %v967 = vmul.f32 %v935, %v963
        %v968 = vmul.f32 %v936, %v964
        %v969 = vmul.f32 %v937, %v965
        %v970 = vmul.f32 %v938, %v966
        %v971 = vadd.f32 %v967, %v416
        %v972 = vadd.f32 %v968, %v417
        %v973 = vadd.f32 %v969, %v421
        %v974 = vadd.f32 %v970, %v423
        %977 = vrot.lane.b32.xlu0 %v973, 16
        %v978 = vpop.permute.xlu0 %977
        %979 = vrot.lane.b32.xlu0 %v974, 16
        %v980 = vpop.permute.xlu0 %979
        %v983 = vsel %vm437, %v971, %v978
        %v984 = vsel %vm437, %v972, %v980
        %v985 = vpack.c.bf16 %v984, %v983
        %v987 = vunpack.c.l.b16 %v985
        %v988 = vunpack.c.h.b16 %v985
        %v989 = vpack.c.b16 %v987, %v987
        %v990 = vpack.c.b16 %v988, %v988
        %vm993 = vcmask 257024
        %994 = vst.msk [vmem:[%s366] sm:$0xf] %vm993, %v989
        %995 = vst.msk [vmem:[%s366 + $0x4] sm:$0xf] %vm993, %v990
        %p996 = scmp.lt.s32.totalorder %s21, 1
        %s997 = scalar_select %p996, %s21, 1
        %s998 = smul.addr %s997, 2
        %s999 = smul.addr %s998, 4
        %s1000 = scalar_lea.vmem %s9, %s999
        // Predicated region
        $region61: #{_lambda_.15} parent=55 // pred_check
          %p1001 = pneg %p238
        $region62: #{_lambda_.15} parent=55 // pred_check_branch
          %1003 = sbr.rel (%p1001) target = $region64
        $region63: #{_lambda_.15} parent=55 // pred_region
          _
        $region64: #{_lambda_.15} parent=55 // pred_fallthru
          _
      $region56: #{_lambda_.15} parent=5 // pred_fallthru
        _
      %p1004 = scmp.le.s32.totalorder 2, %s16
      // Predicated region
      $region65: #{_lambda_.15} parent=5 // pred_check
        %p1005 = pneg %p1004
      $region66: #{_lambda_.15} parent=5 // pred_check_branch
        %1007 = sbr.rel (%p1005) target = $region68
      $region67: #{_lambda_.15} parent=5 // pred_region
        %s1008 = ssub.s32 %s16, 2
        // Predicated region
        $region69: #{_lambda_.15} parent=67 // pred_check
          %p1009 = pneg %p244
        $region70: #{_lambda_.15} parent=67 // pred_check_branch
          %1011 = sbr.rel (%p1009) target = $region72
        $region71: #{_lambda_.15} parent=67 // pred_region
          %p1012 = scmp.lt.s32.totalorder %s22, 1
          %s1013 = scalar_select %p1012, %s22, 1
          %s1014 = smul.addr %s1013, 2
          %s1015 = smul.addr %s1014, 4
          %s1016 = scalar_lea.vmem %s9, %s1015
        $region72: #{_lambda_.15} parent=67 // pred_fallthru
          _
      $region68: #{_lambda_.15} parent=5 // pred_fallthru
        _
    $region6: #{_lambda_.15} parent=1 // loop_footer
      %s20 = sadd.s32 1, %s16
    $region7: #{_lambda_.15} parent=1 // loop_footer_branch
      %15 = sbr.rel target = $region3
    $region8: #{_lambda_.15} parent=1 // loop_exit
      _
    %1017 = vsyncpa [#allocation3], 1
    %s1018 = scalar_lea.sflag [#allocation3], 1
    %1019 = vsyncpa %s1018, 1

// kernel: _lambda_.19
$region0: #{_lambda_.19}
  #allocation0 [shape = 'u32[]', space=smem, size = 0x4, offset = 0x4, fixed_abs, tag = 'smem constant byte address 0x4 - core index']
  #allocation1 [shape = 'u32[144,128]{1,0:T(1,128)}', space=vmem, size = 0x12000, scoped, tag = 'internal scratch']
  %s0 = inlined_call_operand.vmem [shape: bf16[2,4,32], index: 0, kind: input, shape index: {}]
  %s1 = inlined_call_operand.vmem [shape: bf16[1,32], index: 1, kind: input, shape index: {}]
  %s2 = inlined_call_operand.vmem [shape: bf16[32,10], index: 2, kind: input, shape index: {}]
  %s3 = inlined_call_operand.vmem [shape: f32[1,10], index: 3, kind: input, shape index: {}]
  %s4 = inlined_call_operand.hbm [shape: f32[2,1,32], index: 4, kind: output, shape index: {0}]
  %s5 = inlined_call_operand.hbm [shape: f32[2,1,10], index: 5, kind: output, shape index: {1}]
  %6 = xla_tuple %s4, %s5
  %s7 = sld [smem:[#allocation0]]
  $region57: #{_lambda_.19} parent=0
    _
  %s9 = ssub.s32 1, %s7
  %s10 = scalar_select 0, %s9, %s7
  $region1: #{_lambda_.19} parent=0
    #allocation2 [shape = 'u8[1024]{0}', space=vmem, size = 0x400, scoped, tag = 'output window, operand 0']
    #allocation3 [shape = 's32[2]{0}', space=sflag, size = 0x8, scoped, tag = 'scoped memory for _lambda_.19']
    #allocation4 [shape = 'u8[1024]{0}', space=vmem, size = 0x400, scoped, tag = 'output window, operand 1']
    #allocation5 [shape = 's32[2]{0}', space=sflag, size = 0x8, scoped, tag = 'scoped memory for _lambda_.19']
    %11 = vsyncpa [#allocation3], 0
    %s12 = scalar_lea.sflag [#allocation3], 1
    %13 = vsyncpa %s12, 0
    %14 = vsyncpa [#allocation5], 0
    %s15 = scalar_lea.sflag [#allocation5], 1
    %16 = vsyncpa %s15, 0
    loop: start=0, step=1, limit=4
    $region2: #{_lambda_.19} parent=1 // loop_pre_header
      _
    $region3: #{_lambda_.19} parent=1 // loop_header
      %s18 = sphi 0, %s22
      %p19 = scmp.ge.s32.totalorder %s18, 4
      %s28 = sphi 0, %s30
      %s31 = sphi 0, %s28
      %s32 = sphi 0, %s31
      %s48 = sphi 0, %s32
      %s52 = sphi 0, %s52
      %s54 = sphi 0, %s52
      %s55 = sphi 0, %s54
      %s69 = sphi 0, %s55
      %s73 = sphi 0, %s73
      %s75 = sphi 0, %s73
      %s76 = sphi 0, %s75
      %s90 = sphi 0, %s76
      %s94 = sphi 0, %s94
      %s96 = sphi 0, %s94
      %s97 = sphi 0, %s96
      %s111 = sphi 0, %s97
      %s117 = sphi 0, %s119
      %s120 = sphi 0, %s117
      %s121 = sphi 0, %s120
      %s137 = sphi 0, %s121
      %s143 = sphi 0, %s145
      %s146 = sphi 0, %s143
      %s147 = sphi 0, %s146
      %s163 = sphi 0, %s147
    $region4: #{_lambda_.19} parent=1 // loop_header_branch
      %21 = sbr.rel (%p19) target = $region8
    $region5: #{_lambda_.19} parent=1 // loop_body
      %s23 = ssub.s32 %s18, 1
      %s24 = ssub.s32 %s18, 2
      %s25 = sadd.s32 %s18, 1
      %s26 = ssub.s32 %s18, %s25
      %p27 = scmp.eq.s32.totalorder %s26, 0
      %s29 = sadd.s32 %s28, 1
      %s30 = scalar_select %p27, %s28, %s29
      %p33 = pneg %p27
      %p34 = scmp.eq.s32.totalorder %s18, 1
      %p35 = por %p33, %p34
      %p36 = scmp.ne.s32.totalorder %s28, %s31
      %p37 = scmp.eq.s32.totalorder %s18, 0
      %p38 = por %p36, %p37
      %p39 = scmp.ne.s32.totalorder %s28, %s31
      %p40 = scmp.eq.s32.totalorder %s23, 1
      %p41 = por %p39, %p40
      %p42 = scmp.ne.s32.totalorder %s31, %s32
      %p43 = scmp.eq.s32.totalorder %s23, 0
      %p44 = por %p42, %p43
      %p45 = scmp.ne.s32.totalorder %s31, %s32
      %p46 = scmp.eq.s32.totalorder %s24, 1
      %p47 = por %p45, %p46
      %p49 = scmp.ne.s32.totalorder %s32, %s48
      %p50 = scmp.eq.s32.totalorder %s24, 0
      %p51 = por %p49, %p50
      %s53 = sadd.s32 %s52, 1
      %p56 = scmp.eq.s32.totalorder %s18, 1
      %p57 = scmp.ne.s32.totalorder %s52, %s54
      %p58 = scmp.eq.s32.totalorder %s18, 0
      %p59 = por %p57, %p58
      %p60 = scmp.ne.s32.totalorder %s52, %s54
      %p61 = scmp.eq.s32.totalorder %s23, 1
      %p62 = por %p60, %p61
      %p63 = scmp.ne.s32.totalorder %s54, %s55
      %p64 = scmp.eq.s32.totalorder %s23, 0
      %p65 = por %p63, %p64
      %p66 = scmp.ne.s32.totalorder %s54, %s55
      %p67 = scmp.eq.s32.totalorder %s24, 1
      %p68 = por %p66, %p67
      %p70 = scmp.ne.s32.totalorder %s55, %s69
      %p71 = scmp.eq.s32.totalorder %s24, 0
      %p72 = por %p70, %p71
      %s74 = sadd.s32 %s73, 1
      %p77 = scmp.eq.s32.totalorder %s18, 1
      %p78 = scmp.ne.s32.totalorder %s73, %s75
      %p79 = scmp.eq.s32.totalorder %s18, 0
      %p80 = por %p78, %p79
      %p81 = scmp.ne.s32.totalorder %s73, %s75
      %p82 = scmp.eq.s32.totalorder %s23, 1
      %p83 = por %p81, %p82
      %p84 = scmp.ne.s32.totalorder %s75, %s76
      %p85 = scmp.eq.s32.totalorder %s23, 0
      %p86 = por %p84, %p85
      %p87 = scmp.ne.s32.totalorder %s75, %s76
      %p88 = scmp.eq.s32.totalorder %s24, 1
      %p89 = por %p87, %p88
      %p91 = scmp.ne.s32.totalorder %s76, %s90
      %p92 = scmp.eq.s32.totalorder %s24, 0
      %p93 = por %p91, %p92
      %s95 = sadd.s32 %s94, 1
      %p98 = scmp.eq.s32.totalorder %s18, 1
      %p99 = scmp.ne.s32.totalorder %s94, %s96
      %p100 = scmp.eq.s32.totalorder %s18, 0
      %p101 = por %p99, %p100
      %p102 = scmp.ne.s32.totalorder %s94, %s96
      %p103 = scmp.eq.s32.totalorder %s23, 1
      %p104 = por %p102, %p103
      %p105 = scmp.ne.s32.totalorder %s96, %s97
      %p106 = scmp.eq.s32.totalorder %s23, 0
      %p107 = por %p105, %p106
      %p108 = scmp.ne.s32.totalorder %s96, %s97
      %p109 = scmp.eq.s32.totalorder %s24, 1
      %p110 = por %p108, %p109
      %p112 = scmp.ne.s32.totalorder %s97, %s111
      %p113 = scmp.eq.s32.totalorder %s24, 0
      %p114 = por %p112, %p113
      %s115 = ssub.s32 %s18, %s25
      %p116 = scmp.eq.s32.totalorder %s115, 0
      %s118 = sadd.s32 %s117, 1
      %s119 = scalar_select %p116, %s117, %s118
      %p122 = pneg %p116
      %p123 = scmp.eq.s32.totalorder %s18, 1
      %p124 = por %p122, %p123
      %p125 = scmp.ne.s32.totalorder %s117, %s120
      %p126 = scmp.eq.s32.totalorder %s18, 0
      %p127 = por %p125, %p126
      %p128 = scmp.ne.s32.totalorder %s117, %s120
      %p129 = scmp.eq.s32.totalorder %s23, 1
      %p130 = por %p128, %p129
      %p131 = scmp.ne.s32.totalorder %s120, %s121
      %p132 = scmp.eq.s32.totalorder %s23, 0
      %p133 = por %p131, %p132
      %p134 = scmp.ne.s32.totalorder %s120, %s121
      %p135 = scmp.eq.s32.totalorder %s24, 1
      %p136 = por %p134, %p135
      %p138 = scmp.ne.s32.totalorder %s121, %s137
      %p139 = scmp.eq.s32.totalorder %s24, 0
      %p140 = por %p138, %p139
      %s141 = ssub.s32 %s18, %s25
      %p142 = scmp.eq.s32.totalorder %s141, 0
      %s144 = sadd.s32 %s143, 1
      %s145 = scalar_select %p142, %s143, %s144
      %p148 = pneg %p142
      %p149 = scmp.eq.s32.totalorder %s18, 1
      %p150 = por %p148, %p149
      %p151 = scmp.ne.s32.totalorder %s143, %s146
      %p152 = scmp.eq.s32.totalorder %s18, 0
      %p153 = por %p151, %p152
      %p154 = scmp.ne.s32.totalorder %s143, %s146
      %p155 = scmp.eq.s32.totalorder %s23, 1
      %p156 = por %p154, %p155
      %p157 = scmp.ne.s32.totalorder %s146, %s147
      %p158 = scmp.eq.s32.totalorder %s23, 0
      %p159 = por %p157, %p158
      %p160 = scmp.ne.s32.totalorder %s146, %s147
      %p161 = scmp.eq.s32.totalorder %s24, 1
      %p162 = por %p160, %p161
      %p164 = scmp.ne.s32.totalorder %s147, %s163
      %p165 = scmp.eq.s32.totalorder %s24, 0
      %p166 = por %p164, %p165
      %p167 = scmp.le.s32.totalorder 1, %s18
      %p168 = scmp.lt.s32.totalorder %s18, 3
      %p169 = pnand %p167, %p168
      %p170 = pneg %p169
      // Predicated region
      $region9: #{_lambda_.19} parent=5 // pred_check
        _
      $region10: #{_lambda_.19} parent=5 // pred_check_branch
        %172 = sbr.rel (%p169) target = $region12
      $region11: #{_lambda_.19} parent=5 // pred_region
        %s173 = ssub.s32 %s18, 1
        // Predicated region
        $region13: #{_lambda_.19} parent=11 // pred_check
          %p174 = pneg %p65
        $region14: #{_lambda_.19} parent=11 // pred_check_branch
          %176 = sbr.rel (%p174) target = $region16
        $region15: #{_lambda_.19} parent=11 // pred_region
          _
        $region16: #{_lambda_.19} parent=11 // pred_fallthru
          _
        // Predicated region
        $region17: #{_lambda_.19} parent=11 // pred_check
          %p177 = pneg %p86
        $region18: #{_lambda_.19} parent=11 // pred_check_branch
          %179 = sbr.rel (%p177) target = $region20
        $region19: #{_lambda_.19} parent=11 // pred_region
          _
        $region20: #{_lambda_.19} parent=11 // pred_fallthru
          _
        // Predicated region
        $region21: #{_lambda_.19} parent=11 // pred_check
          %p180 = pneg %p107
        $region22: #{_lambda_.19} parent=11 // pred_check_branch
          %182 = sbr.rel (%p180) target = $region24
        $region23: #{_lambda_.19} parent=11 // pred_region
          _
        $region24: #{_lambda_.19} parent=11 // pred_fallthru
          _
      $region12: #{_lambda_.19} parent=5 // pred_fallthru
        _
      %p183 = scmp.lt.s32.totalorder %s18, 2
      // Predicated region
      $region25: #{_lambda_.19} parent=5 // pred_check
        %p184 = pneg %p183
      $region26: #{_lambda_.19} parent=5 // pred_check_branch
        %186 = sbr.rel (%p184) target = $region28
      $region27: #{_lambda_.19} parent=5 // pred_region
        // Predicated region
        $region29: #{_lambda_.19} parent=27 // pred_check
          %p187 = pneg %p38
        $region30: #{_lambda_.19} parent=27 // pred_check_branch
          %189 = sbr.rel (%p187) target = $region32
        $region31: #{_lambda_.19} parent=27 // pred_region
          %p190 = scmp.lt.s32.totalorder %s18, 1
          %s191 = scalar_select %p190, %s18, 1
          %s192 = smul.addr %s191, 2
          %s193 = scalar_lea.vmem %s0, %s192
        $region32: #{_lambda_.19} parent=27 // pred_fallthru
          _
      $region28: #{_lambda_.19} parent=5 // pred_fallthru
        _
      %p194 = scmp.le.s32.totalorder 1, %s18
      %p195 = scmp.lt.s32.totalorder %s18, 3
      %p196 = pnand %p194, %p195
      %p197 = pneg %p196
      // Predicated region
      $region33: #{_lambda_.19} parent=5 // pred_check
        _
      $region34: #{_lambda_.19} parent=5 // pred_check_branch
        %199 = sbr.rel (%p196) target = $region36
      $region35: #{_lambda_.19} parent=5 // pred_region
        %s200 = ssub.s32 %s18, 1
        %p201 = scmp.lt.s32.totalorder %s23, 1
        %s202 = scalar_select %p201, %s23, 1
        %s203 = smul.addr %s202, 2
        %s204 = scalar_lea.vmem %s0, %s203
        %p205 = pneg %p44
        %p206 = pneg %p41
        %p207 = pneg %p65
        %p208 = pneg %p62
        %p209 = pneg %p86
        %p210 = pneg %p83
        %p211 = pneg %p107
        %p212 = pneg %p104
        %p213 = pneg %p133
        %p214 = pneg %p130
        %s215 = sand.u32 %s120, 1
        %s216 = scalar_lea.sflag [#allocation3], %s215
        %s217 = sand.u32 %s120, 1
        %s218 = scalar_lea.vmem [#allocation2], %s217
        %p219 = pneg %p159
        %p220 = pneg %p156
        %s221 = sand.u32 %s146, 1
        %s222 = scalar_lea.sflag [#allocation5], %s221
        %s223 = sand.u32 %s146, 1
        %s224 = scalar_lea.vmem [#allocation4], %s223
        %p225 = scmp.lt.s32.totalorder %s23, 1
        %s226 = scalar_select %p225, %s23, 1
        %s227 = smul.addr %s226, 2
        %s228 = scalar_lea.vmem %s0, %s227
        %v230 = vld [vmem:[%s228] sm:$0x3]
        %v231 = vld [vmem:[%s1] sm:$0x1]
        %vm232 = vcmask 261120
        %v234 = vsel %vm232, %v231, 0
        %v237 = vsel %vm232, %v230, 0
        %239 = vmatprep.subr.bf16.mxu0 0
        %240 = vmatpush1.bf16.xpose.msra.mxu0 %v237
        %241 = vmatprep.subr.bf16.mxu0 0
        %242 = vmatpush1.bf16.xpose.msra.mxu0 0
        %243 = vmatprep.subr.bf16.mxu0 0
        %244 = vmatpush1.bf16.xpose.msra.mxu0 0
        %245 = vmatprep.subr.bf16.mxu0 0
        %246 = vmatpush1.bf16.xpose.msra.mxu0 0
        %247 = vmatprep.subr.bf16.mxu0 0
        %248 = vmatpush1.bf16.xpose.msra.mxu0 0
        %249 = vmatprep.subr.bf16.mxu0 0
        %250 = vmatpush1.bf16.xpose.msra.mxu0 0
        %251 = vmatprep.subr.bf16.mxu0 0
        %252 = vmatpush1.bf16.xpose.msra.mxu0 0
        %253 = vmatprep.subr.bf16.mxu0 0
        %254 = vmatpush1.bf16.xpose.msra.mxu0 0
        %255 = vmatprep.subr.bf16.mxu0 0
        %256 = vmatpush1.bf16.xpose.msra.mxu0 0
        %257 = vmatprep.subr.bf16.mxu0 0
        %258 = vmatpush1.bf16.xpose.msra.mxu0 0
        %259 = vmatprep.subr.bf16.mxu0 0
        %260 = vmatpush1.bf16.xpose.msra.mxu0 0
        %261 = vmatprep.subr.bf16.mxu0 0
        %262 = vmatpush1.bf16.xpose.msra.mxu0 0
        %263 = vmatprep.subr.bf16.mxu0 0
        %264 = vmatpush1.bf16.xpose.msra.mxu0 0
        %265 = vmatprep.subr.bf16.mxu0 0
        %266 = vmatpush1.bf16.xpose.msra.mxu0 0
        %267 = vmatprep.subr.bf16.mxu0 0
        %268 = vmatpush1.bf16.xpose.msra.mxu0 0
        %269 = vmatprep.subr.bf16.mxu0 0
        %270 = vmatpush1.bf16.xpose.msra.mxu0 0
        %271 = vmatprep.mubr.bf16.mxu0 0
        %272 = vmatmul.mubr.bf16.gmra.mrb[0].mxu0 %v234
        %v273 = vpop.f32.mrb[0].mxu0
        %v274 = vadd.f32 0.0, %v273
        %v275 = vpop.f32.mrb[0].mxu0
        %v276 = vpop.f32.mrb[0].mxu0
        %v277 = vpop.f32.mrb[0].mxu0
        %278 = vdwg.mxu0
        %v279 = vmul.f32 %v274, 0.5
        %vm280 = vcmask 24576
        %v281 = vsel %vm280, %v279, -inf
        %282 = vmax.xlane.f32.xlu0 %v281
        %v283 = vpop.xlane.xlu0 %282
        %v284 = vsub.f32 %v279, %v283
        %v285 = vmul.f32 %v284, 1.442695
        %v286 = vpow.pop %v285
        %v287 = vsel %vm280, %v286, 0.0
        %288 = vadd.xlane.f32.xlu0 %v287
        %v289 = vpop.xlane.xlu0 %288
        %v290 = vrcp.pop %v289
        %v291 = vmul.f32 %v286, %v290
        %v292 = vpack.c.bf16 %v291, %v291
        %vm293 = vcmask 31744
        %v295 = vsel %vm293, %v292, 0
        %vm297 = vcmask 1041408
        %v298 = vsel %vm297, %v230, 0
        %300 = vmatprep.subr.bf16.mxu0 0
        %301 = vmatpush1.bf16.msra.mxu0 %v298
        %302 = vmatprep.subr.bf16.mxu0 0
        %303 = vmatpush1.bf16.msra.mxu0 0
        %304 = vmatprep.subr.bf16.mxu0 0
        %305 = vmatpush1.bf16.msra.mxu0 0
        %306 = vmatprep.subr.bf16.mxu0 0
        %307 = vmatpush1.bf16.msra.mxu0 0
        %308 = vmatprep.subr.bf16.mxu0 0
        %309 = vmatpush1.bf16.msra.mxu0 0
        %310 = vmatprep.subr.bf16.mxu0 0
        %311 = vmatpush1.bf16.msra.mxu0 0
        %312 = vmatprep.subr.bf16.mxu0 0
        %313 = vmatpush1.bf16.msra.mxu0 0
        %314 = vmatprep.subr.bf16.mxu0 0
        %315 = vmatpush1.bf16.msra.mxu0 0
        %316 = vmatprep.subr.bf16.mxu0 0
        %317 = vmatpush1.bf16.msra.mxu0 0
        %318 = vmatprep.subr.bf16.mxu0 0
        %319 = vmatpush1.bf16.msra.mxu0 0
        %320 = vmatprep.subr.bf16.mxu0 0
        %321 = vmatpush1.bf16.msra.mxu0 0
        %322 = vmatprep.subr.bf16.mxu0 0
        %323 = vmatpush1.bf16.msra.mxu0 0
        %324 = vmatprep.subr.bf16.mxu0 0
        %325 = vmatpush1.bf16.msra.mxu0 0
        %326 = vmatprep.subr.bf16.mxu0 0
        %327 = vmatpush1.bf16.msra.mxu0 0
        %328 = vmatprep.subr.bf16.mxu0 0
        %329 = vmatpush1.bf16.msra.mxu0 0
        %330 = vmatprep.subr.bf16.mxu0 0
        %331 = vmatpush1.bf16.msra.mxu0 0
        %332 = vmatprep.mubr.bf16.mxu0 0
        %333 = vmatmul.mubr.bf16.gmra.mrb[0].mxu0 %v295
        %v334 = vpop.f32.mrb[0].mxu0
        %v335 = vadd.f32 0.0, %v334
        %v336 = vpop.f32.mrb[0].mxu0
        %v337 = vpop.f32.mrb[0].mxu0
        %v338 = vpop.f32.mrb[0].mxu0
        %339 = vdwg.mxu0
        %vm340 = vcmask 253952
        %341 = vst.msk [vmem:[%s218] sm:$0x1] %vm340, %v335
        %v342 = vld [vmem:[%s2] sm:$0xf]
        %v343 = vld [vmem:[%s2 + $0x4] sm:$0xf]
        %v344 = vld [vmem:[%s2 + $0x8] sm:$0xf]
        %v345 = vld [vmem:[%s2 + $0xc] sm:$0xf]
        %v346 = vpack.c.bf16 %v335, %v335
        %v347 = vld [vmem:[%s3] sm:$0x1]
        %v352 = vunpack.c.l.b16 %v342
        %v353 = vunpack.c.l.b16 %v343
        %v354 = vunpack.c.l.b16 %v344
        %v355 = vunpack.c.l.b16 %v345
        %v356 = vpack.c.b16 %v353, %v352
        %v357 = vpack.c.b16 %v355, %v354
        %v361 = vsel %vm232, %v346, 0
        %363 = vmatprep.subr.bf16.mxu0 0
        %364 = vmatpush1.bf16.msra.mxu0 %v356
        %365 = vmatprep.subr.bf16.mxu0 0
        %366 = vmatpush1.bf16.msra.mxu0 %v357
        %367 = vmatprep.subr.bf16.mxu0 0
        %368 = vmatpush1.bf16.msra.mxu0 0
        %369 = vmatprep.subr.bf16.mxu0 0
        %370 = vmatpush1.bf16.msra.mxu0 0
        %371 = vmatprep.subr.bf16.mxu0 0
        %372 = vmatpush1.bf16.msra.mxu0 0
        %373 = vmatprep.subr.bf16.mxu0 0
        %374 = vmatpush1.bf16.msra.mxu0 0
        %375 = vmatprep.subr.bf16.mxu0 0
        %376 = vmatpush1.bf16.msra.mxu0 0
        %377 = vmatprep.subr.bf16.mxu0 0
        %378 = vmatpush1.bf16.msra.mxu0 0
        %379 = vmatprep.subr.bf16.mxu0 0
        %380 = vmatpush1.bf16.msra.mxu0 0
        %381 = vmatprep.subr.bf16.mxu0 0
        %382 = vmatpush1.bf16.msra.mxu0 0
        %383 = vmatprep.subr.bf16.mxu0 0
        %384 = vmatpush1.bf16.msra.mxu0 0
        %385 = vmatprep.subr.bf16.mxu0 0
        %386 = vmatpush1.bf16.msra.mxu0 0
        %387 = vmatprep.subr.bf16.mxu0 0
        %388 = vmatpush1.bf16.msra.mxu0 0
        %389 = vmatprep.subr.bf16.mxu0 0
        %390 = vmatpush1.bf16.msra.mxu0 0
        %391 = vmatprep.subr.bf16.mxu0 0
        %392 = vmatpush1.bf16.msra.mxu0 0
        %393 = vmatprep.subr.bf16.mxu0 0
        %394 = vmatpush1.bf16.msra.mxu0 0
        %395 = vmatprep.mubr.bf16.mxu0 0
        %396 = vmatmul.mubr.bf16.gmra.mrb[0].mxu0 %v361
        %v397 = vpop.f32.mrb[0].mxu0
        %v398 = vadd.f32 %v347, %v397
        %v399 = vpop.f32.mrb[0].mxu0
        %v400 = vpop.f32.mrb[0].mxu0
        %v401 = vpop.f32.mrb[0].mxu0
        %402 = vdwg.mxu0
        %vm403 = vcmask 73728
        %404 = vst.msk [vmem:[%s224] sm:$0x1] %vm403, %v398
        %s405 = sand.u32 %s120, 1
        %s406 = scalar_lea.sflag [#allocation3], %s405
        %s407 = sand.u32 %s120, 1
        %s408 = scalar_lea.vmem [#allocation2], %s407
        %s409 = sand.u32 %s146, 1
        %s410 = scalar_lea.sflag [#allocation5], %s409
        %s411 = sand.u32 %s146, 1
        %s412 = scalar_lea.vmem [#allocation4], %s411
        // Predicated region
        $region37: #{_lambda_.19} parent=35 // pred_check
          %p413 = pneg %p130
        $region38: #{_lambda_.19} parent=35 // pred_check_branch
          %415 = sbr.rel (%p413) target = $region40
        $region39: #{_lambda_.19} parent=35 // pred_region
          %s417 = ssub.s32 16, 16
          %418 = vsyncadd %s406, %s417
          %s419 = smul.addr %s23, 16
          %s420 = scalar_lea.hbm %s4, %s419
          %s422 = sshll.u32 %s408, 4
          %s423 = int_to_ptr.vmem [resolvable:$true] %s422
          %425 = dma.vmem_to_hbm [thread:$0]  %s423, 16, %s420, %s406
        $region40: #{_lambda_.19} parent=35 // pred_fallthru
          _
        // Predicated region
        $region41: #{_lambda_.19} parent=35 // pred_check
          %p426 = pneg %p156
        $region42: #{_lambda_.19} parent=35 // pred_check_branch
          %428 = sbr.rel (%p426) target = $region44
        $region43: #{_lambda_.19} parent=35 // pred_region
          %s430 = ssub.s32 16, 16
          %431 = vsyncadd %s410, %s430
          %s432 = smul.addr %s23, 16
          %s433 = scalar_lea.hbm %s5, %s432
          %s435 = sshll.u32 %s412, 4
          %s436 = int_to_ptr.vmem [resolvable:$true] %s435
          %438 = dma.vmem_to_hbm [thread:$0]  %s436, 16, %s433, %s410
        $region44: #{_lambda_.19} parent=35 // pred_fallthru
          _
      $region36: #{_lambda_.19} parent=5 // pred_fallthru
        _
      %p439 = scmp.le.s32.totalorder 2, %s18
      // Predicated region
      $region45: #{_lambda_.19} parent=5 // pred_check
        %p440 = pneg %p439
      $region46: #{_lambda_.19} parent=5 // pred_check_branch
        %442 = sbr.rel (%p440) target = $region48
      $region47: #{_lambda_.19} parent=5 // pred_region
        %s443 = ssub.s32 %s18, 2
        // Predicated region
        $region49: #{_lambda_.19} parent=47 // pred_check
          %p444 = pneg %p136
        $region50: #{_lambda_.19} parent=47 // pred_check_branch
          %446 = sbr.rel (%p444) target = $region52
        $region51: #{_lambda_.19} parent=47 // pred_region
          %s447 = sand.u32 %s121, 1
          %s448 = scalar_lea.sflag [#allocation3], %s447
          %s449 = sand.u32 %s121, 1
          %s450 = scalar_lea.vmem [#allocation2], %s449
          %451 = dma.done %s448, 16
        $region52: #{_lambda_.19} parent=47 // pred_fallthru
          _
        // Predicated region
        $region53: #{_lambda_.19} parent=47 // pred_check
          %p452 = pneg %p162
        $region54: #{_lambda_.19} parent=47 // pred_check_branch
          %454 = sbr.rel (%p452) target = $region56
        $region55: #{_lambda_.19} parent=47 // pred_region
          %s455 = sand.u32 %s147, 1
          %s456 = scalar_lea.sflag [#allocation5], %s455
          %s457 = sand.u32 %s147, 1
          %s458 = scalar_lea.vmem [#allocation4], %s457
          %459 = dma.done %s456, 16
        $region56: #{_lambda_.19} parent=47 // pred_fallthru
          _
      $region48: #{_lambda_.19} parent=5 // pred_fallthru
        _
    $region6: #{_lambda_.19} parent=1 // loop_footer
      %s22 = sadd.s32 1, %s18
    $region7: #{_lambda_.19} parent=1 // loop_footer_branch
      %17 = sbr.rel target = $region3
    $region8: #{_lambda_.19} parent=1 // loop_exit
      _
    %460 = vsyncpa [#allocation3], 1
    %s461 = scalar_lea.sflag [#allocation3], 1
    %462 = vsyncpa %s461, 1
    %463 = vsyncpa [#allocation5], 1
    %s464 = scalar_lea.sflag [#allocation5], 1
    %465 = vsyncpa %s464, 1

</llo_original>
